<compile_context>
chip_gen: v6e
topology: v6e:2x2x1
jax: 0.10.0
libtpu: 0.0.40
codegen_flags: <defaults>
</compile_context>

<pallas_src>
import functools
import math

import jax
import jax.numpy as jnp
from jax import lax
from jax.experimental import pallas as pl
from jax.experimental.pallas import tpu as pltpu


APPROX_RECIPROCAL = True   # EUP vrcp (~1e-3 rel err) vs exact divide in softmax


def _vmem_budget():
    """Generation-aware scoped-VMEM budget (96 MiB on 128 MiB parts, ~48 MiB on v7x)."""
    try:
        cap = pltpu.get_tpu_info().vmem_capacity_bytes
    except Exception:
        cap = 64 * 1024 * 1024                      # conservative fallback (v7x-safe)
    return int(min(96 * 1024 * 1024, cap * 3 // 4))


VMEM_LIMIT_BYTES = _vmem_budget()


def _pick_tile(dim, candidates):
    """Largest MXU/lane-friendly tile that evenly divides `dim`, else full dim."""
    for c in candidates:
        if dim >= c and dim % c == 0:
            return c
    return dim


def _softmax_recip(x):
    if APPROX_RECIPROCAL:
        return pl.reciprocal(x, approx=True)
    return 1.0 / x


# ----------------------------- Pallas kernels ------------------------------

def _matmul_bias_kernel(x_ref, w_ref, b_ref, o_ref, acc_ref, *, activation):
    """Tiled y = x @ w + b (optional ReLU). Grid (M/tm, N/tn, K/tk); f32 accum."""
    @pl.when(pl.program_id(2) == 0)
    def _():
        acc_ref[...] = jnp.zeros_like(acc_ref)

    acc_ref[...] += jnp.dot(x_ref[...], w_ref[...],
                            preferred_element_type=jnp.float32)

    @pl.when(pl.program_id(2) == pl.num_programs(2) - 1)
    def _():
        acc = acc_ref[...] + b_ref[...]
        if activation == "relu":
            acc = jnp.maximum(acc, 0.0)
        o_ref[...] = acc.astype(o_ref.dtype)


def _weight_spec(tk, tn, nk, index_map):
    # Triple-buffer the weight stream only when the K axis is long enough to
    # pipeline (hides exposed weight DMA on v5e/v6e). Guarded so a Pallas
    # version without `pipeline_mode=` still constructs a plain BlockSpec.
    if nk >= 3:
        try:
            return pl.BlockSpec((tk, tn), index_map, pipeline_mode=pl.Buffered(3))
        except Exception:
            pass
    return pl.BlockSpec((tk, tn), index_map)


def linear(x2d, w, b, activation=None, out_dtype=jnp.float32):
    """y = x2d @ w + b.  x2d is cast to bf16 once here (halves streamed DMA bytes)."""
    x2d = x2d.astype(jnp.bfloat16)
    w = w.astype(jnp.bfloat16)
    M, K = x2d.shape
    K2, N = w.shape
    assert K == K2
    tn = _pick_tile(N, (512, 256, 128))
    tk = _pick_tile(K, (512, 256, 128))   # 128-granular keeps v5e's K pipeline alive
    nk = K // tk
    out_sz = jnp.dtype(out_dtype).itemsize
    # Cap tm so the (tm, *) blocks (bf16 x double-buffered, f32 acc, out double-
    # buffered) stay within ~half the scoped-VMEM budget; bigger tm cuts weight
    # re-streaming (weights are re-read M/tm times).
    row_bytes = 2 * 2 * tk + 4 * tn + 2 * out_sz * tn
    tm_cands = tuple(c for c in (1024, 512, 256, 128)
                     if c * row_bytes <= VMEM_LIMIT_BYTES // 2) or (128,)
    tm = _pick_tile(M, tm_cands)
    grid = (M // tm, N // tn, nk)
    return pl.pallas_call(
        functools.partial(_matmul_bias_kernel, activation=activation),
        out_shape=jax.ShapeDtypeStruct((M, N), out_dtype),
        grid=grid,
        in_specs=[
            pl.BlockSpec((tm, tk), lambda i, j, k: (i, k)),
            _weight_spec(tk, tn, nk, lambda i, j, k: (k, j)),
            pl.BlockSpec((1, tn), lambda i, j, k: (0, j)),
        ],
        out_specs=pl.BlockSpec((tm, tn), lambda i, j, k: (i, j)),
        scratch_shapes=[pltpu.VMEM((tm, tn), jnp.float32)],
        compiler_params=pltpu.CompilerParams(
            dimension_semantics=("parallel", "parallel", "arbitrary"),
            vmem_limit_bytes=VMEM_LIMIT_BYTES),
    )(x2d, w, b.reshape(1, N).astype(jnp.float32))


def _matmul_add_ln_kernel(x_ref, w_ref, b_ref, r_ref, g_ref, bt_ref, o_ref,
                          acc_ref, *, eps):
    """y = LayerNorm(residual + x @ w + b) fused epilogue. Grid (M/tm, K/tk)."""
    @pl.when(pl.program_id(1) == 0)
    def _():
        acc_ref[...] = jnp.zeros_like(acc_ref)

    acc_ref[...] += jnp.dot(x_ref[...], w_ref[...],
                            preferred_element_type=jnp.float32)

    @pl.when(pl.program_id(1) == pl.num_programs(1) - 1)
    def _():
        z = acc_ref[...] + b_ref[...] + r_ref[...]
        mu = jnp.mean(z, axis=-1, keepdims=True)
        var = jnp.mean(jnp.square(z - mu), axis=-1, keepdims=True)
        zn = (z - mu) * lax.rsqrt(var + eps)
        o_ref[...] = (zn * g_ref[...] + bt_ref[...]).astype(o_ref.dtype)


def linear_add_ln(x2d, w, b, resid2d, gamma, beta, eps=1e-5):
    """LayerNorm(resid + x2d @ w + b); N (= d_model) kept whole so LN sees full rows."""
    x2d = x2d.astype(jnp.bfloat16)
    w = w.astype(jnp.bfloat16)
    M, K = x2d.shape
    K2, N = w.shape
    assert K == K2
    tk = _pick_tile(K, (512, 256, 128))
    # The (tm, N) f32 blocks dominate (resid x2, acc, out x2); cap tm against the
    # VMEM budget so large d_model stays safe on v7x's 64 MiB VMEM.
    row_bytes = 2 * 2 * tk + 5 * 4 * N
    tm_cands = tuple(c for c in (512, 256, 128)
                     if c * row_bytes <= VMEM_LIMIT_BYTES // 2) or (128,)
    tm = _pick_tile(M, tm_cands)
    grid = (M // tm, K // tk)
    return pl.pallas_call(
        functools.partial(_matmul_add_ln_kernel, eps=eps),
        out_shape=jax.ShapeDtypeStruct((M, N), jnp.float32),
        grid=grid,
        in_specs=[
            pl.BlockSpec((tm, tk), lambda i, k: (i, k)),
            pl.BlockSpec((tk, N), lambda i, k: (k, 0)),
            pl.BlockSpec((1, N), lambda i, k: (0, 0)),
            pl.BlockSpec((tm, N), lambda i, k: (i, 0)),
            pl.BlockSpec((1, N), lambda i, k: (0, 0)),
            pl.BlockSpec((1, N), lambda i, k: (0, 0)),
        ],
        out_specs=pl.BlockSpec((tm, N), lambda i, k: (i, 0)),
        scratch_shapes=[pltpu.VMEM((tm, N), jnp.float32)],
        compiler_params=pltpu.CompilerParams(
            dimension_semantics=("parallel", "arbitrary"),
            vmem_limit_bytes=VMEM_LIMIT_BYTES),
    )(x2d, w, b.reshape(1, N), resid2d.astype(jnp.float32),
      gamma.reshape(1, N), beta.reshape(1, N))


def _flash_attention_kernel(q_ref, k_ref, v_ref, kpad_ref, o_ref,
                            m_scr, l_scr, acc_scr, *, h, causal, scale):
    """Flash-style streamed attention: grid (B, Sq/tq, Sk/tk), Sk innermost.

    q_ref: (1, tq, d) bf16, k_ref/v_ref: (1, tk, d) bf16, kpad_ref: (1, 1, tk)
    (1.0 = padding key).  Mask (key padding OR causal) is built in-kernel from
    block-global indices; per-head running max / denom / context live in VMEM
    scratch so the kernel's VMEM footprint is bounded by a few tiles.
    """
    ki = pl.program_id(2)
    _, tq, d = q_ref.shape
    tk = k_ref.shape[1]
    dk = d // h

    @pl.when(ki == 0)
    def _():
        m_scr[...] = jnp.full_like(m_scr, -jnp.inf)
        l_scr[...] = jnp.zeros_like(l_scr)
        acc_scr[...] = jnp.zeros_like(acc_scr)

    mask = jnp.broadcast_to(kpad_ref[0] > 0.5, (tq, tk))          # key padding
    if causal:
        q_idx = pl.program_id(1) * tq + lax.broadcasted_iota(jnp.int32, (tq, tk), 0)
        k_idx = ki * tk + lax.broadcasted_iota(jnp.int32, (tq, tk), 1)
        mask = mask | (k_idx > q_idx)                             # subsequent mask
    neg = jnp.float32(-1e9)

    for head in range(h):                                         # static unroll
        lo = head * dk
        qh = q_ref[0, :, pl.ds(lo, dk)]                           # (tq, dk) bf16
        kh = k_ref[0, :, pl.ds(lo, dk)]                           # (tk, dk) bf16
        vh = v_ref[0, :, pl.ds(lo, dk)]                           # (tk, dk) bf16
        s = lax.dot_general(qh, kh, (((1,), (1,)), ((), ())),
                            preferred_element_type=jnp.float32) * scale
        s = jnp.where(mask, neg, s)
        m_prev = m_scr[head]                                      # (tq, 1)
        m_new = jnp.maximum(m_prev, jnp.max(s, axis=-1, keepdims=True))
        alpha = jnp.exp(m_prev - m_new)
        p = jnp.exp(s - m_new)
        l_scr[head] = alpha * l_scr[head] + jnp.sum(p, axis=-1, keepdims=True)
        # per-head context written straight into the accumulator's lane slice
        acc_scr[:, pl.ds(lo, dk)] = (
            alpha * acc_scr[:, pl.ds(lo, dk)]
            + jnp.dot(p.astype(jnp.bfloat16), vh,
                      preferred_element_type=jnp.float32))
        m_scr[head] = m_new

    @pl.when(ki == pl.num_programs(2) - 1)
    def _():
        for head in range(h):
            lo = head * dk
            inv = _softmax_recip(l_scr[head])                     # (tq, 1)
            o_ref[0, :, pl.ds(lo, dk)] = (acc_scr[:, pl.ds(lo, dk)] * inv
                                          ).astype(o_ref.dtype)


def attention(q_arr, k_arr, v_arr, kpad, *, h, d, causal, q_fb=0, k_fb=0, v_fb=0):
    """Streamed multi-head attention.

    q_arr/k_arr/v_arr may all be the SAME fused tensor (e.g. QKV (B,S,3*d)); the
    feature-block indices q_fb/k_fb/v_fb select the d-wide window per role, so no
    JAX-side slicing (and no extra HBM activation copies) is needed.
    kpad: (B, 1, Sk) float32, 1.0 = "do not attend".  Returns (B, Sq, d) bf16.
    """
    assert d % h == 0
    B, Sq, _ = q_arr.shape
    Sk = k_arr.shape[1]
    dk = d // h
    scale = 1.0 / math.sqrt(dk)
    if d >= 2048:                      # keep tiles VMEM-safe at very large d_model
        tq = _pick_tile(Sq, (128,))
        tk = _pick_tile(Sk, (256, 128))
    else:
        tq = _pick_tile(Sq, (256, 128))
        tk = _pick_tile(Sk, (512, 256, 128))
    grid = (B, Sq // tq, Sk // tk)
    q_arr = q_arr.astype(jnp.bfloat16)
    k_arr = k_arr.astype(jnp.bfloat16)
    v_arr = v_arr.astype(jnp.bfloat16)
    return pl.pallas_call(
        functools.partial(_flash_attention_kernel, h=h, causal=causal, scale=scale),
        out_shape=jax.ShapeDtypeStruct((B, Sq, d), jnp.bfloat16),
        grid=grid,
        in_specs=[
            pl.BlockSpec((1, tq, d), lambda b, qi, ki: (b, qi, q_fb)),
            pl.BlockSpec((1, tk, d), lambda b, qi, ki: (b, ki, k_fb)),
            pl.BlockSpec((1, tk, d), lambda b, qi, ki: (b, ki, v_fb)),
            pl.BlockSpec((1, 1, tk), lambda b, qi, ki: (b, 0, ki)),
        ],
        out_specs=pl.BlockSpec((1, tq, d), lambda b, qi, ki: (b, qi, 0)),
        scratch_shapes=[
            pltpu.VMEM((h, tq, 1), jnp.float32),   # running max per head
            pltpu.VMEM((h, tq, 1), jnp.float32),   # running denom per head
            pltpu.VMEM((tq, d), jnp.float32),      # running context accumulator
        ],
        compiler_params=pltpu.CompilerParams(
            dimension_semantics=("parallel", "parallel", "arbitrary"),
            vmem_limit_bytes=VMEM_LIMIT_BYTES),
    )(q_arr, k_arr, v_arr, kpad.astype(jnp.float32))


# ------------------------------ model pieces -------------------------------

def positional_encoding(max_len, d_model):
    pos = jnp.arange(max_len, dtype=jnp.float32)[:, None]
    i = jnp.arange(d_model)[None, :]
    angle = pos / jnp.power(10000.0, (2.0 * (i // 2).astype(jnp.float32)) / d_model)
    pe = jnp.where(i % 2 == 0, jnp.sin(angle), jnp.cos(angle))
    return pe.astype(jnp.float32)


def self_attention_block(x, kpad, p, ln, *, h, causal):
    """y = LayerNorm(x + O(Attention(Q(x), K(x), V(x)))) with fused QKV + fused O/LN."""
    B, S, d = x.shape
    x2d = x.reshape(B * S, d)
    qkv = linear(x2d, p["w_qkv"], p["b_qkv"], out_dtype=jnp.bfloat16)
    qkv = qkv.reshape(B, S, 3 * d)
    if d % 128 == 0:
        # feed the fused QKV straight into the kernel; q/k/v picked by feature block
        ctx = attention(qkv, qkv, qkv, kpad, h=h, d=d, causal=causal,
                        q_fb=0, k_fb=1, v_fb=2)
    else:
        # TODO(synk): lane-misaligned d_model fallback (extra HBM slice copies)
        q, k, v = qkv[..., :d], qkv[..., d:2 * d], qkv[..., 2 * d:]
        ctx = attention(q, k, v, kpad, h=h, d=d, causal=causal)
    y = linear_add_ln(ctx.reshape(B * S, d), p["w_o"], p["b_o"],
                      x2d, ln["g"], ln["b"])
    return y.reshape(B, S, d)


def cross_attention_block(x, hs, kpad, p, ln, *, h):
    """y = LayerNorm(x + O(Attention(Q(x), K(hs), V(hs)))) with fused KV + fused O/LN."""
    B, Sq, d = x.shape
    Sk = hs.shape[1]
    x2d = x.reshape(B * Sq, d)
    q = linear(x2d, p["w_q"], p["b_q"], out_dtype=jnp.bfloat16).reshape(B, Sq, d)
    kv = linear(hs.reshape(B * Sk, d), p["w_kv"], p["b_kv"],
                out_dtype=jnp.bfloat16).reshape(B, Sk, 2 * d)
    if d % 128 == 0:
        ctx = attention(q, kv, kv, kpad, h=h, d=d, causal=False,
                        q_fb=0, k_fb=0, v_fb=1)
    else:
        k, v = kv[..., :d], kv[..., d:]
        ctx = attention(q, k, v, kpad, h=h, d=d, causal=False)
    y = linear_add_ln(ctx.reshape(B * Sq, d), p["w_o"], p["b_o"],
                      x2d, ln["g"], ln["b"])
    return y.reshape(B, Sq, d)


def ffn_block(x, p, ln):
    """y = LayerNorm(x + l2(relu(l1(x)))) with the l2 matmul + add + LN fused."""
    B, S, d = x.shape
    x2d = x.reshape(B * S, d)
    h1 = linear(x2d, p["w1"], p["b1"], activation="relu", out_dtype=jnp.bfloat16)
    y = linear_add_ln(h1, p["w2"], p["b2"], x2d, ln["g"], ln["b"])
    return y.reshape(B, S, d)


def transformer_forward(params, source, target, *, h, depth_target):
    B, S_src = source.shape
    d_model = params["enc_emb"].shape[1]

    # tiny per-batch key-padding vectors; full masks are built inside the kernel
    src_kpad = (source == 0).astype(jnp.float32).reshape(B, 1, S_src)

    # --- encoder ---
    x = params["enc_emb"][source] + params["pe"][:S_src][None, :, :]
    for lp in params["enc_layers"]:
        x = self_attention_block(x, src_kpad, lp["attn"], lp["ln1"], h=h, causal=False)
        x = ffn_block(x, lp["ffn"], lp["ln2"])
    hs = x

    # --- decoder ---
    tgt = target[:, :-1]
    S_t = tgt.shape[1]
    tgt_kpad = (tgt == 0).astype(jnp.float32).reshape(B, 1, S_t)

    y = params["dec_emb"][tgt] + params["pe"][:S_t][None, :, :]
    for lp in params["dec_layers"]:
        y = self_attention_block(y, tgt_kpad, lp["self_attn"], lp["ln1"],
                                 h=h, causal=True)
        y = cross_attention_block(y, hs, src_kpad, lp["cross_attn"], lp["ln2"], h=h)
        y = ffn_block(y, lp["ffn"], lp["ln3"])

    # final vocab projection (weight padded to a lane-dense multiple of 128)
    logits = linear(y.reshape(B * S_t, d_model), params["out"]["w"], params["out"]["b"])
    logits = logits[:, :depth_target]
    return logits.reshape(B, S_t, depth_target)


# --------------------------- deterministic params ---------------------------

def init_params(key, depth_source, depth_target, N, h, d_model, d_ff, max_len):
    keys = iter(jax.random.split(key, 512))

    def w_init(din, dout, scale=None):
        s = scale if scale is not None else 1.0 / (din ** 0.5)
        return (jax.random.normal(next(keys), (din, dout), jnp.float32) * s
                ).astype(jnp.bfloat16)

    def self_mha_p():
        wq, wk, wv = (w_init(d_model, d_model) for _ in range(3))
        return {"w_qkv": jnp.concatenate([wq, wk, wv], axis=1),
                "b_qkv": jnp.zeros((3 * d_model,), jnp.float32),
                "w_o": w_init(d_model, d_model),
                "b_o": jnp.zeros((d_model,), jnp.float32)}

    def cross_mha_p():
        wk, wv = w_init(d_model, d_model), w_init(d_model, d_model)
        return {"w_q": w_init(d_model, d_model),
                "b_q": jnp.zeros((d_model,), jnp.float32),
                "w_kv": jnp.concatenate([wk, wv], axis=1),
                "b_kv": jnp.zeros((2 * d_model,), jnp.float32),
                "w_o": w_init(d_model, d_model),
                "b_o": jnp.zeros((d_model,), jnp.float32)}

    def ln_p():
        return {"g": jnp.ones((d_model,), jnp.float32),
                "b": jnp.zeros((d_model,), jnp.float32)}

    def ffn_p():
        return {"w1": w_init(d_model, d_ff), "b1": jnp.zeros((d_ff,), jnp.float32),
                "w2": w_init(d_ff, d_model), "b2": jnp.zeros((d_model,), jnp.float32)}

    enc_emb = jax.random.normal(next(keys), (depth_source, d_model), jnp.float32) * 0.1
    enc_emb = enc_emb.at[0].set(0.0)            # padding_idx=0
    dec_emb = jax.random.normal(next(keys), (depth_target, d_model), jnp.float32) * 0.1
    dec_emb = dec_emb.at[0].set(0.0)

    enc_layers = [{"attn": self_mha_p(), "ln1": ln_p(), "ffn": ffn_p(), "ln2": ln_p()}
                  for _ in range(N)]
    dec_layers = [{"self_attn": self_mha_p(), "ln1": ln_p(), "cross_attn": cross_mha_p(),
                   "ln2": ln_p(), "ffn": ffn_p(), "ln3": ln_p()} for _ in range(N)]

    vocab_pad = ((depth_target + 127) // 128) * 128
    w_out = jax.random.normal(next(keys), (d_model, depth_target), jnp.float32)
    w_out = w_out * (2.0 / (d_model + depth_target)) ** 0.5       # xavier_normal-ish
    w_out = jnp.pad(w_out, ((0, 0), (0, vocab_pad - depth_target))).astype(jnp.bfloat16)
    out = {"w": w_out, "b": jnp.zeros((vocab_pad,), jnp.float32)}

    pe = positional_encoding(max_len, d_model)

    return {"enc_emb": enc_emb, "dec_emb": dec_emb, "pe": pe,
            "enc_layers": enc_layers, "dec_layers": dec_layers, "out": out}


# --------------------------------- main -------------------------------------

if __name__ == "__main__":
    depth_source, depth_target = 13, 11
    # small but lane-aligned config (d_model multiple of 128 exercises the fused
    # QKV feature-block path); spec defaults are N=6, h=8, d_model=512, d_ff=2048
    N, h, d_model, d_ff, max_len = 2, 4, 128, 256, 20
    B, S_src, S_tgt = 2, 8, 8

    params = init_params(jax.random.PRNGKey(0), depth_source, depth_target,
                         N, h, d_model, d_ff, max_len)

    k1, k2 = jax.random.split(jax.random.PRNGKey(0), 2)
    source = jax.random.randint(k1, (B, S_src), 1, depth_source, dtype=jnp.int32)
    source = source.at[:, -2:].set(0)      # trailing padding tokens
    target = jax.random.randint(k2, (B, S_tgt), 1, depth_target, dtype=jnp.int32)

    fwd = jax.jit(functools.partial(transformer_forward, h=h,
                                    depth_target=depth_target))
    out = fwd(params, source, target)
    jax.block_until_ready(out)

    assert out.shape == (B, S_tgt - 1, depth_target), out.shape
    assert out.dtype == jnp.float32
    assert bool(jnp.all(jnp.isfinite(out)))
    print("KERNEL_OK")
</pallas_src>

<mosaic_0001>
module attributes {stable_mosaic.version = 11 : i64} {
  func.func @_matmul_bias_kernel(%arg0: i32, %arg1: i32, %arg2: i32, %arg3: memref<14x128xbf16, #tpu.memory_space<vmem>>, %arg4: memref<128x128xbf16, #tpu.memory_space<vmem>>, %arg5: memref<1x128xf32, #tpu.memory_space<vmem>>, %arg6: memref<14x128xbf16, #tpu.memory_space<vmem>>, %arg7: memref<14x128xf32, #tpu.memory_space<vmem>>) attributes {dimension_semantics = [#tpu.dimension_semantics<parallel>, #tpu.dimension_semantics<parallel>, #tpu.dimension_semantics<arbitrary>], iteration_bounds = array<i64: 1, 3, 1>, scalar_prefetch = 0 : i64, scratch_operands = 1 : i64, tpu.core_type = #tpu.core_type<tc>, window_params = [{transform_indices = @transform_0, window_bounds = array<i64: 14, 128>}, {transform_indices = @transform_1, window_bounds = array<i64: 128, 128>}, {transform_indices = @transform_2, window_bounds = array<i64: 1, 128>}, {transform_indices = @transform_3, window_bounds = array<i64: 14, 128>}]} {
    %c0_i32 = arith.constant 0 : i32
    %0 = arith.cmpi eq, %arg2, %c0_i32 : i32
    %1 = arith.extui %0 : i1 to i32
    %c0_i32_0 = arith.constant 0 : i32
    %2 = arith.cmpi ne, %1, %c0_i32_0 : i32
    scf.if %2 {
      %cst_10 = arith.constant 0.000000e+00 : f32
      %12 = vector.broadcast %cst_10 : f32 to vector<14x128xf32>
      %c0_11 = arith.constant 0 : index
      %c0_12 = arith.constant 0 : index
      %13 = vector.load %arg7[%c0_11, %c0_12] : memref<14x128xf32, #tpu.memory_space<vmem>>, vector<14x128xf32>
      tpu.vector_store %arg7[%c0_11, %c0_12], %12 {strides = array<i32>} : memref<14x128xf32, #tpu.memory_space<vmem>>, vector<14x128xf32>,
    } else {
    }
    %c0 = arith.constant 0 : index
    %c0_1 = arith.constant 0 : index
    %3 = vector.load %arg7[%c0, %c0_1] : memref<14x128xf32, #tpu.memory_space<vmem>>, vector<14x128xf32>
    %c0_2 = arith.constant 0 : index
    %c0_3 = arith.constant 0 : index
    %4 = vector.load %arg3[%c0_2, %c0_3] : memref<14x128xbf16, #tpu.memory_space<vmem>>, vector<14x128xbf16>
    %c0_4 = arith.constant 0 : index
    %c0_5 = arith.constant 0 : index
    %5 = vector.load %arg4[%c0_4, %c0_5] : memref<128x128xbf16, #tpu.memory_space<vmem>>, vector<128x128xbf16>
    %cst = arith.constant dense<0.000000e+00> : vector<14x128xf32>
    %6 = tpu.matmul %4, %5, %cst {dimension_numbers = #tpu.dot_dimension_numbers<[1], [0], [0], [1], [0, 0, 1, 1], [], []>} : vector<14x128xbf16>, vector<128x128xbf16>, vector<14x128xf32> -> vector<14x128xf32>
    %7 = arith.addf %3, %6 : vector<14x128xf32>
    %c0_6 = arith.constant 0 : index
    %c0_7 = arith.constant 0 : index
    %8 = vector.load %arg7[%c0_6, %c0_7] : memref<14x128xf32, #tpu.memory_space<vmem>>, vector<14x128xf32>
    tpu.vector_store %arg7[%c0_6, %c0_7], %7 {strides = array<i32>} : memref<14x128xf32, #tpu.memory_space<vmem>>, vector<14x128xf32>,
    %c0_i32_8 = arith.constant 0 : i32
    %9 = arith.cmpi eq, %arg2, %c0_i32_8 : i32
    %10 = arith.extui %9 : i1 to i32
    %c0_i32_9 = arith.constant 0 : i32
    %11 = arith.cmpi ne, %10, %c0_i32_9 : i32
    scf.if %11 {
      %c0_10 = arith.constant 0 : index
      %c0_11 = arith.constant 0 : index
      %12 = vector.load %arg7[%c0_10, %c0_11] : memref<14x128xf32, #tpu.memory_space<vmem>>, vector<14x128xf32>
      %c0_12 = arith.constant 0 : index
      %c0_13 = arith.constant 0 : index
      %13 = vector.load %arg5[%c0_12, %c0_13] : memref<1x128xf32, #tpu.memory_space<vmem>>, vector<1x128xf32>
      %14 = vector.broadcast %13 : vector<1x128xf32> to vector<14x128xf32>
      %15 = arith.addf %12, %14 : vector<14x128xf32>
      %16 = arith.truncf %15 : vector<14x128xf32> to vector<14x128xbf16>
      %c0_14 = arith.constant 0 : index
      %c0_15 = arith.constant 0 : index
      %17 = vector.load %arg6[%c0_14, %c0_15] : memref<14x128xbf16, #tpu.memory_space<vmem>>, vector<14x128xbf16>
      tpu.vector_store %arg6[%c0_14, %c0_15], %16 {strides = array<i32>} : memref<14x128xbf16, #tpu.memory_space<vmem>>, vector<14x128xbf16>,
    } else {
    }
    return
  }
  func.func @transform_0(%arg0: i32, %arg1: i32, %arg2: i32) -> (i32, i32) {
    %c0_i32 = arith.constant 0 : i32
    return %arg0, %arg2 : i32, i32
  }
  func.func @transform_1(%arg0: i32, %arg1: i32, %arg2: i32) -> (i32, i32) {
    %c0_i32 = arith.constant 0 : i32
    return %arg2, %arg1 : i32, i32
  }
  func.func @transform_2(%arg0: i32, %arg1: i32, %arg2: i32) -> (i32, i32) {
    %c0_i32 = arith.constant 0 : i32
    %c0_i32_0 = arith.constant 0 : i32
    return %c0_i32, %arg1 : i32, i32
  }
  func.func @transform_3(%arg0: i32, %arg1: i32, %arg2: i32) -> (i32, i32) {
    %c0_i32 = arith.constant 0 : i32
    return %arg0, %arg1 : i32, i32
  }
}

module attributes {stable_mosaic.version = 11 : i64} {
  func.func @_matmul_bias_kernel(%arg0: i32, %arg1: i32, %arg2: i32, %arg3: memref<14x128xbf16, #tpu.memory_space<vmem>>, %arg4: memref<128x128xbf16, #tpu.memory_space<vmem>>, %arg5: memref<1x128xf32, #tpu.memory_space<vmem>>, %arg6: memref<14x128xbf16, #tpu.memory_space<vmem>>, %arg7: memref<14x128xf32, #tpu.memory_space<vmem>>) attributes {dimension_semantics = [#tpu.dimension_semantics<parallel>, #tpu.dimension_semantics<parallel>, #tpu.dimension_semantics<arbitrary>], iteration_bounds = array<i64: 1, 1, 1>, scalar_prefetch = 0 : i64, scratch_operands = 1 : i64, tpu.core_type = #tpu.core_type<tc>, window_params = [{transform_indices = @transform_0, window_bounds = array<i64: 14, 128>}, {transform_indices = @transform_1, window_bounds = array<i64: 128, 128>}, {transform_indices = @transform_2, window_bounds = array<i64: 1, 128>}, {transform_indices = @transform_3, window_bounds = array<i64: 14, 128>}]} {
    %c0_i32 = arith.constant 0 : i32
    %0 = arith.cmpi eq, %arg2, %c0_i32 : i32
    %1 = arith.extui %0 : i1 to i32
    %c0_i32_0 = arith.constant 0 : i32
    %2 = arith.cmpi ne, %1, %c0_i32_0 : i32
    scf.if %2 {
      %cst_10 = arith.constant 0.000000e+00 : f32
      %12 = vector.broadcast %cst_10 : f32 to vector<14x128xf32>
      %c0_11 = arith.constant 0 : index
      %c0_12 = arith.constant 0 : index
      %13 = vector.load %arg7[%c0_11, %c0_12] : memref<14x128xf32, #tpu.memory_space<vmem>>, vector<14x128xf32>
      tpu.vector_store %arg7[%c0_11, %c0_12], %12 {strides = array<i32>} : memref<14x128xf32, #tpu.memory_space<vmem>>, vector<14x128xf32>,
    } else {
    }
    %c0 = arith.constant 0 : index
    %c0_1 = arith.constant 0 : index
    %3 = vector.load %arg7[%c0, %c0_1] : memref<14x128xf32, #tpu.memory_space<vmem>>, vector<14x128xf32>
    %c0_2 = arith.constant 0 : index
    %c0_3 = arith.constant 0 : index
    %4 = vector.load %arg3[%c0_2, %c0_3] : memref<14x128xbf16, #tpu.memory_space<vmem>>, vector<14x128xbf16>
    %c0_4 = arith.constant 0 : index
    %c0_5 = arith.constant 0 : index
    %5 = vector.load %arg4[%c0_4, %c0_5] : memref<128x128xbf16, #tpu.memory_space<vmem>>, vector<128x128xbf16>
    %cst = arith.constant dense<0.000000e+00> : vector<14x128xf32>
    %6 = tpu.matmul %4, %5, %cst {dimension_numbers = #tpu.dot_dimension_numbers<[1], [0], [0], [1], [0, 0, 1, 1], [], []>} : vector<14x128xbf16>, vector<128x128xbf16>, vector<14x128xf32> -> vector<14x128xf32>
    %7 = arith.addf %3, %6 : vector<14x128xf32>
    %c0_6 = arith.constant 0 : index
    %c0_7 = arith.constant 0 : index
    %8 = vector.load %arg7[%c0_6, %c0_7] : memref<14x128xf32, #tpu.memory_space<vmem>>, vector<14x128xf32>
    tpu.vector_store %arg7[%c0_6, %c0_7], %7 {strides = array<i32>} : memref<14x128xf32, #tpu.memory_space<vmem>>, vector<14x128xf32>,
    %c0_i32_8 = arith.constant 0 : i32
    %9 = arith.cmpi eq, %arg2, %c0_i32_8 : i32
    %10 = arith.extui %9 : i1 to i32
    %c0_i32_9 = arith.constant 0 : i32
    %11 = arith.cmpi ne, %10, %c0_i32_9 : i32
    scf.if %11 {
      %c0_10 = arith.constant 0 : index
      %c0_11 = arith.constant 0 : index
      %12 = vector.load %arg7[%c0_10, %c0_11] : memref<14x128xf32, #tpu.memory_space<vmem>>, vector<14x128xf32>
      %c0_12 = arith.constant 0 : index
      %c0_13 = arith.constant 0 : index
      %13 = vector.load %arg5[%c0_12, %c0_13] : memref<1x128xf32, #tpu.memory_space<vmem>>, vector<1x128xf32>
      %14 = vector.broadcast %13 : vector<1x128xf32> to vector<14x128xf32>
      %15 = arith.addf %12, %14 : vector<14x128xf32>
      %16 = arith.truncf %15 : vector<14x128xf32> to vector<14x128xbf16>
      %c0_14 = arith.constant 0 : index
      %c0_15 = arith.constant 0 : index
      %17 = vector.load %arg6[%c0_14, %c0_15] : memref<14x128xbf16, #tpu.memory_space<vmem>>, vector<14x128xbf16>
      tpu.vector_store %arg6[%c0_14, %c0_15], %16 {strides = array<i32>} : memref<14x128xbf16, #tpu.memory_space<vmem>>, vector<14x128xbf16>,
    } else {
    }
    return
  }
  func.func @transform_0(%arg0: i32, %arg1: i32, %arg2: i32) -> (i32, i32) {
    %c0_i32 = arith.constant 0 : i32
    return %arg0, %arg2 : i32, i32
  }
  func.func @transform_1(%arg0: i32, %arg1: i32, %arg2: i32) -> (i32, i32) {
    %c0_i32 = arith.constant 0 : i32
    return %arg2, %arg1 : i32, i32
  }
  func.func @transform_2(%arg0: i32, %arg1: i32, %arg2: i32) -> (i32, i32) {
    %c0_i32 = arith.constant 0 : i32
    %c0_i32_0 = arith.constant 0 : i32
    return %c0_i32, %arg1 : i32, i32
  }
  func.func @transform_3(%arg0: i32, %arg1: i32, %arg2: i32) -> (i32, i32) {
    %c0_i32 = arith.constant 0 : i32
    return %arg0, %arg1 : i32, i32
  }
}

module attributes {stable_mosaic.version = 11 : i64} {
  func.func @_matmul_add_ln_kernel(%arg0: i32, %arg1: i32, %arg2: memref<14x128xbf16, #tpu.memory_space<vmem>>, %arg3: memref<128x128xbf16, #tpu.memory_space<vmem>>, %arg4: memref<1x128xf32, #tpu.memory_space<vmem>>, %arg5: memref<14x128xf32, #tpu.memory_space<vmem>>, %arg6: memref<1x128xf32, #tpu.memory_space<vmem>>, %arg7: memref<1x128xf32, #tpu.memory_space<vmem>>, %arg8: memref<14x128xf32, #tpu.memory_space<vmem>>, %arg9: memref<14x128xf32, #tpu.memory_space<vmem>>) attributes {dimension_semantics = [#tpu.dimension_semantics<parallel>, #tpu.dimension_semantics<arbitrary>], iteration_bounds = array<i64: 1, 1>, scalar_prefetch = 0 : i64, scratch_operands = 1 : i64, tpu.core_type = #tpu.core_type<tc>, window_params = [{transform_indices = @transform_0, window_bounds = array<i64: 14, 128>}, {transform_indices = @transform_1, window_bounds = array<i64: 128, 128>}, {pipeline_mode = #tpu.pipeline_mode<synchronous>, transform_indices = @transform_2, window_bounds = array<i64: 1, 128>}, {transform_indices = @transform_3, window_bounds = array<i64: 14, 128>}, {pipeline_mode = #tpu.pipeline_mode<synchronous>, transform_indices = @transform_4, window_bounds = array<i64: 1, 128>}, {pipeline_mode = #tpu.pipeline_mode<synchronous>, transform_indices = @transform_5, window_bounds = array<i64: 1, 128>}, {transform_indices = @transform_6, window_bounds = array<i64: 14, 128>}]} {
    %c0_i32 = arith.constant 0 : i32
    %0 = arith.cmpi eq, %arg1, %c0_i32 : i32
    %1 = arith.extui %0 : i1 to i32
    %c0_i32_0 = arith.constant 0 : i32
    %2 = arith.cmpi ne, %1, %c0_i32_0 : i32
    scf.if %2 {
      %cst_10 = arith.constant 0.000000e+00 : f32
      %12 = vector.broadcast %cst_10 : f32 to vector<14x128xf32>
      %c0_11 = arith.constant 0 : index
      %c0_12 = arith.constant 0 : index
      %13 = vector.load %arg9[%c0_11, %c0_12] : memref<14x128xf32, #tpu.memory_space<vmem>>, vector<14x128xf32>
      tpu.vector_store %arg9[%c0_11, %c0_12], %12 {strides = array<i32>} : memref<14x128xf32, #tpu.memory_space<vmem>>, vector<14x128xf32>,
    } else {
    }
    %c0 = arith.constant 0 : index
    %c0_1 = arith.constant 0 : index
    %3 = vector.load %arg9[%c0, %c0_1] : memref<14x128xf32, #tpu.memory_space<vmem>>, vector<14x128xf32>
    %c0_2 = arith.constant 0 : index
    %c0_3 = arith.constant 0 : index
    %4 = vector.load %arg2[%c0_2, %c0_3] : memref<14x128xbf16, #tpu.memory_space<vmem>>, vector<14x128xbf16>
    %c0_4 = arith.constant 0 : index
    %c0_5 = arith.constant 0 : index
    %5 = vector.load %arg3[%c0_4, %c0_5] : memref<128x128xbf16, #tpu.memory_space<vmem>>, vector<128x128xbf16>
    %cst = arith.constant dense<0.000000e+00> : vector<14x128xf32>
    %6 = tpu.matmul %4, %5, %cst {dimension_numbers = #tpu.dot_dimension_numbers<[1], [0], [0], [1], [0, 0, 1, 1], [], []>} : vector<14x128xbf16>, vector<128x128xbf16>, vector<14x128xf32> -> vector<14x128xf32>
    %7 = arith.addf %3, %6 : vector<14x128xf32>
    %c0_6 = arith.constant 0 : index
    %c0_7 = arith.constant 0 : index
    %8 = vector.load %arg9[%c0_6, %c0_7] : memref<14x128xf32, #tpu.memory_space<vmem>>, vector<14x128xf32>
    tpu.vector_store %arg9[%c0_6, %c0_7], %7 {strides = array<i32>} : memref<14x128xf32, #tpu.memory_space<vmem>>, vector<14x128xf32>,
    %c0_i32_8 = arith.constant 0 : i32
    %9 = arith.cmpi eq, %arg1, %c0_i32_8 : i32
    %10 = arith.extui %9 : i1 to i32
    %c0_i32_9 = arith.constant 0 : i32
    %11 = arith.cmpi ne, %10, %c0_i32_9 : i32
    scf.if %11 {
      %c0_10 = arith.constant 0 : index
      %c0_11 = arith.constant 0 : index
      %12 = vector.load %arg9[%c0_10, %c0_11] : memref<14x128xf32, #tpu.memory_space<vmem>>, vector<14x128xf32>
      %c0_12 = arith.constant 0 : index
      %c0_13 = arith.constant 0 : index
      %13 = vector.load %arg4[%c0_12, %c0_13] : memref<1x128xf32, #tpu.memory_space<vmem>>, vector<1x128xf32>
      %14 = vector.broadcast %13 : vector<1x128xf32> to vector<14x128xf32>
      %15 = arith.addf %12, %14 : vector<14x128xf32>
      %c0_14 = arith.constant 0 : index
      %c0_15 = arith.constant 0 : index
      %16 = vector.load %arg5[%c0_14, %c0_15] : memref<14x128xf32, #tpu.memory_space<vmem>>, vector<14x128xf32>
      %17 = arith.addf %15, %16 : vector<14x128xf32>
      %cst_16 = arith.constant dense<0.000000e+00> : vector<14xf32>
      %18 = vector.multi_reduction <add>, %17, %cst_16 [1] : vector<14x128xf32> to vector<14xf32>
      %19 = vector.shape_cast %18 : vector<14xf32> to vector<14x1xf32>
      %cst_17 = arith.constant 1.280000e+02 : f32
      %20 = vector.broadcast %cst_17 : f32 to vector<14x1xf32>
      %21 = arith.divf %19, %20 : vector<14x1xf32>
      %22 = vector.broadcast %21 : vector<14x1xf32> to vector<14x128xf32>
      %23 = arith.subf %17, %22 : vector<14x128xf32>
      %24 = arith.mulf %23, %23 : vector<14x128xf32>
      %cst_18 = arith.constant dense<0.000000e+00> : vector<14xf32>
      %25 = vector.multi_reduction <add>, %24, %cst_18 [1] : vector<14x128xf32> to vector<14xf32>
      %26 = vector.shape_cast %25 : vector<14xf32> to vector<14x1xf32>
      %cst_19 = arith.constant 1.280000e+02 : f32
      %27 = vector.broadcast %cst_19 : f32 to vector<14x1xf32>
      %28 = arith.divf %26, %27 : vector<14x1xf32>
      %29 = vector.broadcast %21 : vector<14x1xf32> to vector<14x128xf32>
      %30 = arith.subf %17, %29 : vector<14x128xf32>
      %cst_20 = arith.constant 9.99999974E-6 : f32
      %31 = vector.broadcast %cst_20 : f32 to vector<14x1xf32>
      %32 = arith.addf %28, %31 : vector<14x1xf32>
      %33 = math.rsqrt %32 : vector<14x1xf32>
      %34 = vector.broadcast %33 : vector<14x1xf32> to vector<14x128xf32>
      %35 = arith.mulf %30, %34 : vector<14x128xf32>
      %c0_21 = arith.constant 0 : index
      %c0_22 = arith.constant 0 : index
      %36 = vector.load %arg6[%c0_21, %c0_22] : memref<1x128xf32, #tpu.memory_space<vmem>>, vector<1x128xf32>
      %37 = vector.broadcast %36 : vector<1x128xf32> to vector<14x128xf32>
      %38 = arith.mulf %35, %37 : vector<14x128xf32>
      %c0_23 = arith.constant 0 : index
      %c0_24 = arith.constant 0 : index
      %39 = vector.load %arg7[%c0_23, %c0_24] : memref<1x128xf32, #tpu.memory_space<vmem>>, vector<1x128xf32>
      %40 = vector.broadcast %39 : vector<1x128xf32> to vector<14x128xf32>
      %41 = arith.addf %38, %40 : vector<14x128xf32>
      %c0_25 = arith.constant 0 : index
      %c0_26 = arith.constant 0 : index
      %42 = vector.load %arg8[%c0_25, %c0_26] : memref<14x128xf32, #tpu.memory_space<vmem>>, vector<14x128xf32>
      tpu.vector_store %arg8[%c0_25, %c0_26], %41 {strides = array<i32>} : memref<14x128xf32, #tpu.memory_space<vmem>>, vector<14x128xf32>,
    } else {
    }
    return
  }
  func.func @transform_0(%arg0: i32, %arg1: i32) -> (i32, i32) {
    %c0_i32 = arith.constant 0 : i32
    return %arg0, %arg1 : i32, i32
  }
  func.func @transform_1(%arg0: i32, %arg1: i32) -> (i32, i32) {
    %c0_i32 = arith.constant 0 : i32
    %c0_i32_0 = arith.constant 0 : i32
    return %arg1, %c0_i32 : i32, i32
  }
  func.func @transform_2(%arg0: i32, %arg1: i32) -> (i32, i32) {
    %c0_i32 = arith.constant 0 : i32
    %c0_i32_0 = arith.constant 0 : i32
    %c0_i32_1 = arith.constant 0 : i32
    return %c0_i32, %c0_i32_0 : i32, i32
  }
  func.func @transform_3(%arg0: i32, %arg1: i32) -> (i32, i32) {
    %c0_i32 = arith.constant 0 : i32
    %c0_i32_0 = arith.constant 0 : i32
    return %arg0, %c0_i32 : i32, i32
  }
  func.func @transform_4(%arg0: i32, %arg1: i32) -> (i32, i32) {
    %c0_i32 = arith.constant 0 : i32
    %c0_i32_0 = arith.constant 0 : i32
    %c0_i32_1 = arith.constant 0 : i32
    return %c0_i32, %c0_i32_0 : i32, i32
  }
  func.func @transform_5(%arg0: i32, %arg1: i32) -> (i32, i32) {
    %c0_i32 = arith.constant 0 : i32
    %c0_i32_0 = arith.constant 0 : i32
    %c0_i32_1 = arith.constant 0 : i32
    return %c0_i32, %c0_i32_0 : i32, i32
  }
  func.func @transform_6(%arg0: i32, %arg1: i32) -> (i32, i32) {
    %c0_i32 = arith.constant 0 : i32
    %c0_i32_0 = arith.constant 0 : i32
    return %arg0, %c0_i32 : i32, i32
  }
}

module attributes {stable_mosaic.version = 11 : i64} {
  func.func @_flash_attention_kernel(%arg0: i32, %arg1: i32, %arg2: i32, %arg3: memref<1x7x128xbf16, #tpu.memory_space<vmem>>, %arg4: memref<1x7x128xbf16, #tpu.memory_space<vmem>>, %arg5: memref<1x7x128xbf16, #tpu.memory_space<vmem>>, %arg6: memref<1x1x7xf32, #tpu.memory_space<vmem>>, %arg7: memref<1x7x128xbf16, #tpu.memory_space<vmem>>, %arg8: memref<4x7x1xf32, #tpu.memory_space<vmem>>, %arg9: memref<4x7x1xf32, #tpu.memory_space<vmem>>, %arg10: memref<7x128xf32, #tpu.memory_space<vmem>>) attributes {dimension_semantics = [#tpu.dimension_semantics<parallel>, #tpu.dimension_semantics<parallel>, #tpu.dimension_semantics<arbitrary>], iteration_bounds = array<i64: 2, 1, 1>, scalar_prefetch = 0 : i64, scratch_operands = 3 : i64, tpu.core_type = #tpu.core_type<tc>, window_params = [{transform_indices = @transform_0, window_bounds = array<i64: 1, 7, 128>}, {transform_indices = @transform_1, window_bounds = array<i64: 1, 7, 128>}, {transform_indices = @transform_2, window_bounds = array<i64: 1, 7, 128>}, {transform_indices = @transform_3, window_bounds = array<i64: 1, 1, 7>}, {transform_indices = @transform_4, window_bounds = array<i64: 1, 7, 128>}]} {
    %c0_i32 = arith.constant 0 : i32
    %0 = arith.cmpi eq, %arg2, %c0_i32 : i32
    %1 = arith.extui %0 : i1 to i32
    %c0_i32_0 = arith.constant 0 : i32
    %2 = arith.cmpi ne, %1, %c0_i32_0 : i32
    scf.if %2 {
      %cst_124 = arith.constant 0xFF800000 : f32
      %182 = vector.broadcast %cst_124 : f32 to vector<4x7x1xf32>
      %c0_125 = arith.constant 0 : index
      %c0_126 = arith.constant 0 : index
      %c0_127 = arith.constant 0 : index
      %183 = vector.load %arg8[%c0_125, %c0_126, %c0_127] : memref<4x7x1xf32, #tpu.memory_space<vmem>>, vector<4x7x1xf32>
      tpu.vector_store %arg8[%c0_125, %c0_126, %c0_127], %182 {strides = array<i32>} : memref<4x7x1xf32, #tpu.memory_space<vmem>>, vector<4x7x1xf32>,
      %cst_128 = arith.constant 0.000000e+00 : f32
      %184 = vector.broadcast %cst_128 : f32 to vector<4x7x1xf32>
      %c0_129 = arith.constant 0 : index
      %c0_130 = arith.constant 0 : index
      %c0_131 = arith.constant 0 : index
      %185 = vector.load %arg9[%c0_129, %c0_130, %c0_131] : memref<4x7x1xf32, #tpu.memory_space<vmem>>, vector<4x7x1xf32>
      tpu.vector_store %arg9[%c0_129, %c0_130, %c0_131], %184 {strides = array<i32>} : memref<4x7x1xf32, #tpu.memory_space<vmem>>, vector<4x7x1xf32>,
      %cst_132 = arith.constant 0.000000e+00 : f32
      %186 = vector.broadcast %cst_132 : f32 to vector<7x128xf32>
      %c0_133 = arith.constant 0 : index
      %c0_134 = arith.constant 0 : index
      %187 = vector.load %arg10[%c0_133, %c0_134] : memref<7x128xf32, #tpu.memory_space<vmem>>, vector<7x128xf32>
      tpu.vector_store %arg10[%c0_133, %c0_134], %186 {strides = array<i32>} : memref<7x128xf32, #tpu.memory_space<vmem>>, vector<7x128xf32>,
    } else {
    }
    %c0 = arith.constant 0 : index
    %c0_1 = arith.constant 0 : index
    %c0_2 = arith.constant 0 : index
    %3 = vector.load %arg6[%c0, %c0_1, %c0_2] : memref<1x1x7xf32, #tpu.memory_space<vmem>>, vector<1x1x7xf32>
    %4 = vector.shape_cast %3 : vector<1x1x7xf32> to vector<1x7xf32>
    %cst = arith.constant 5.000000e-01 : f32
    %5 = vector.broadcast %cst : f32 to vector<1x7xf32>
    %6 = arith.cmpf ogt, %4, %5 : vector<1x7xf32>
    %7 = vector.shape_cast %6 : vector<1x7xi1> to vector<1x7xi1>
    %8 = vector.broadcast %7 : vector<1x7xi1> to vector<7x7xi1>
    %c7_i32 = arith.constant 7 : i32
    %9 = arith.muli %arg1, %c7_i32 : i32
    %10 = tpu.iota {dimensions = array<i32: 0>} : vector<7x7xi32>
    %11 = vector.broadcast %9 : i32 to vector<7x7xi32>
    %12 = arith.addi %11, %10 : vector<7x7xi32>
    %c7_i32_3 = arith.constant 7 : i32
    %13 = arith.muli %arg2, %c7_i32_3 : i32
    %14 = tpu.iota {dimensions = array<i32: 1>} : vector<7x7xi32>
    %15 = vector.broadcast %13 : i32 to vector<7x7xi32>
    %16 = arith.addi %15, %14 : vector<7x7xi32>
    %17 = arith.cmpi sgt, %16, %12 : vector<7x7xi32>
    %18 = arith.ori %8, %17 : vector<7x7xi1>
    %c0_4 = arith.constant 0 : index
    %c0_5 = arith.constant 0 : index
    %c0_6 = arith.constant 0 : index
    %19 = vector.load %arg3[%c0_4, %c0_5, %c0_6] : memref<1x7x128xbf16, #tpu.memory_space<vmem>>, vector<1x7x32xbf16>
    %20 = vector.shape_cast %19 : vector<1x7x32xbf16> to vector<7x32xbf16>
    %c0_7 = arith.constant 0 : index
    %c0_8 = arith.constant 0 : index
    %c0_9 = arith.constant 0 : index
    %21 = vector.load %arg4[%c0_7, %c0_8, %c0_9] : memref<1x7x128xbf16, #tpu.memory_space<vmem>>, vector<1x7x32xbf16>
    %22 = vector.shape_cast %21 : vector<1x7x32xbf16> to vector<7x32xbf16>
    %c0_10 = arith.constant 0 : index
    %c0_11 = arith.constant 0 : index
    %c0_12 = arith.constant 0 : index
    %23 = vector.load %arg5[%c0_10, %c0_11, %c0_12] : memref<1x7x128xbf16, #tpu.memory_space<vmem>>, vector<1x7x32xbf16>
    %24 = vector.shape_cast %23 : vector<1x7x32xbf16> to vector<7x32xbf16>
    %cst_13 = arith.constant dense<0.000000e+00> : vector<7x7xf32>
    %25 = tpu.matmul %20, %22, %cst_13 {dimension_numbers = #tpu.dot_dimension_numbers<[1], [1], [0], [0], [0, 0, 1, 0], [], []>} : vector<7x32xbf16>, vector<7x32xbf16>, vector<7x7xf32> -> vector<7x7xf32>
    %cst_14 = arith.constant 0.176776692 : f32
    %26 = vector.broadcast %cst_14 : f32 to vector<7x7xf32>
    %27 = arith.mulf %25, %26 : vector<7x7xf32>
    %cst_15 = arith.constant -1.000000e+09 : f32
    %28 = vector.broadcast %cst_15 : f32 to vector<7x7xf32>
    %29 = arith.select %18, %28, %27 : vector<7x7xi1>, vector<7x7xf32>
    %c0_16 = arith.constant 0 : index
    %c0_17 = arith.constant 0 : index
    %c0_18 = arith.constant 0 : index
    %30 = vector.load %arg8[%c0_16, %c0_17, %c0_18] : memref<4x7x1xf32, #tpu.memory_space<vmem>>, vector<1x7x1xf32>
    %31 = vector.shape_cast %30 : vector<1x7x1xf32> to vector<7x1xf32>
    %cst_19 = arith.constant dense<0xFF800000> : vector<7xf32>
    %32 = vector.multi_reduction <maximumf>, %29, %cst_19 [1] : vector<7x7xf32> to vector<7xf32>
    %33 = vector.shape_cast %32 : vector<7xf32> to vector<7x1xf32>
    %34 = arith.maximumf %31, %33 : vector<7x1xf32>
    %35 = arith.subf %31, %34 : vector<7x1xf32>
    %36 = math.exp %35 : vector<7x1xf32>
    %37 = vector.broadcast %34 : vector<7x1xf32> to vector<7x7xf32>
    %38 = arith.subf %29, %37 : vector<7x7xf32>
    %39 = math.exp %38 : vector<7x7xf32>
    %c0_20 = arith.constant 0 : index
    %c0_21 = arith.constant 0 : index
    %c0_22 = arith.constant 0 : index
    %40 = vector.load %arg9[%c0_20, %c0_21, %c0_22] : memref<4x7x1xf32, #tpu.memory_space<vmem>>, vector<1x7x1xf32>
    %41 = vector.shape_cast %40 : vector<1x7x1xf32> to vector<7x1xf32>
    %42 = arith.mulf %36, %41 : vector<7x1xf32>
    %cst_23 = arith.constant dense<0.000000e+00> : vector<7xf32>
    %43 = vector.multi_reduction <add>, %39, %cst_23 [1] : vector<7x7xf32> to vector<7xf32>
    %44 = vector.shape_cast %43 : vector<7xf32> to vector<7x1xf32>
    %45 = arith.addf %42, %44 : vector<7x1xf32>
    %c0_24 = arith.constant 0 : index
    %c0_25 = arith.constant 0 : index
    %c0_26 = arith.constant 0 : index
    %46 = vector.load %arg9[%c0_24, %c0_25, %c0_26] : memref<4x7x1xf32, #tpu.memory_space<vmem>>, vector<1x7x1xf32>
    %47 = vector.shape_cast %46 : vector<1x7x1xf32> to vector<7x1xf32>
    %48 = vector.shape_cast %45 : vector<7x1xf32> to vector<1x7x1xf32>
    tpu.vector_store %arg9[%c0_24, %c0_25, %c0_26], %48 {strides = array<i32>} : memref<4x7x1xf32, #tpu.memory_space<vmem>>, vector<1x7x1xf32>,
    %c0_27 = arith.constant 0 : index
    %c0_28 = arith.constant 0 : index
    %49 = vector.load %arg10[%c0_27, %c0_28] : memref<7x128xf32, #tpu.memory_space<vmem>>, vector<7x32xf32>
    %50 = vector.broadcast %36 : vector<7x1xf32> to vector<7x32xf32>
    %51 = arith.mulf %50, %49 : vector<7x32xf32>
    %52 = arith.truncf %39 : vector<7x7xf32> to vector<7x7xbf16>
    %cst_29 = arith.constant dense<0.000000e+00> : vector<7x32xf32>
    %53 = tpu.matmul %52, %24, %cst_29 {dimension_numbers = #tpu.dot_dimension_numbers<[1], [0], [0], [1], [0, 0, 1, 1], [], []>} : vector<7x7xbf16>, vector<7x32xbf16>, vector<7x32xf32> -> vector<7x32xf32>
    %54 = arith.addf %51, %53 : vector<7x32xf32>
    %c0_30 = arith.constant 0 : index
    %c0_31 = arith.constant 0 : index
    %55 = vector.load %arg10[%c0_30, %c0_31] : memref<7x128xf32, #tpu.memory_space<vmem>>, vector<7x32xf32>
    tpu.vector_store %arg10[%c0_30, %c0_31], %54 {strides = array<i32>} : memref<7x128xf32, #tpu.memory_space<vmem>>, vector<7x32xf32>,
    %c0_32 = arith.constant 0 : index
    %c0_33 = arith.constant 0 : index
    %c0_34 = arith.constant 0 : index
    %56 = vector.load %arg8[%c0_32, %c0_33, %c0_34] : memref<4x7x1xf32, #tpu.memory_space<vmem>>, vector<1x7x1xf32>
    %57 = vector.shape_cast %56 : vector<1x7x1xf32> to vector<7x1xf32>
    %58 = vector.shape_cast %34 : vector<7x1xf32> to vector<1x7x1xf32>
    tpu.vector_store %arg8[%c0_32, %c0_33, %c0_34], %58 {strides = array<i32>} : memref<4x7x1xf32, #tpu.memory_space<vmem>>, vector<1x7x1xf32>,
    %c0_35 = arith.constant 0 : index
    %c0_36 = arith.constant 0 : index
    %c32 = arith.constant 32 : index
    %59 = vector.load %arg3[%c0_35, %c0_36, %c32] : memref<1x7x128xbf16, #tpu.memory_space<vmem>>, vector<1x7x32xbf16>
    %60 = vector.shape_cast %59 : vector<1x7x32xbf16> to vector<7x32xbf16>
    %c0_37 = arith.constant 0 : index
    %c0_38 = arith.constant 0 : index
    %c32_39 = arith.constant 32 : index
    %61 = vector.load %arg4[%c0_37, %c0_38, %c32_39] : memref<1x7x128xbf16, #tpu.memory_space<vmem>>, vector<1x7x32xbf16>
    %62 = vector.shape_cast %61 : vector<1x7x32xbf16> to vector<7x32xbf16>
    %c0_40 = arith.constant 0 : index
    %c0_41 = arith.constant 0 : index
    %c32_42 = arith.constant 32 : index
    %63 = vector.load %arg5[%c0_40, %c0_41, %c32_42] : memref<1x7x128xbf16, #tpu.memory_space<vmem>>, vector<1x7x32xbf16>
    %64 = vector.shape_cast %63 : vector<1x7x32xbf16> to vector<7x32xbf16>
    %cst_43 = arith.constant dense<0.000000e+00> : vector<7x7xf32>
    %65 = tpu.matmul %60, %62, %cst_43 {dimension_numbers = #tpu.dot_dimension_numbers<[1], [1], [0], [0], [0, 0, 1, 0], [], []>} : vector<7x32xbf16>, vector<7x32xbf16>, vector<7x7xf32> -> vector<7x7xf32>
    %cst_44 = arith.constant 0.176776692 : f32
    %66 = vector.broadcast %cst_44 : f32 to vector<7x7xf32>
    %67 = arith.mulf %65, %66 : vector<7x7xf32>
    %cst_45 = arith.constant -1.000000e+09 : f32
    %68 = vector.broadcast %cst_45 : f32 to vector<7x7xf32>
    %69 = arith.select %18, %68, %67 : vector<7x7xi1>, vector<7x7xf32>
    %c1 = arith.constant 1 : index
    %c0_46 = arith.constant 0 : index
    %c0_47 = arith.constant 0 : index
    %70 = vector.load %arg8[%c1, %c0_46, %c0_47] : memref<4x7x1xf32, #tpu.memory_space<vmem>>, vector<1x7x1xf32>
    %71 = vector.shape_cast %70 : vector<1x7x1xf32> to vector<7x1xf32>
    %cst_48 = arith.constant dense<0xFF800000> : vector<7xf32>
    %72 = vector.multi_reduction <maximumf>, %69, %cst_48 [1] : vector<7x7xf32> to vector<7xf32>
    %73 = vector.shape_cast %72 : vector<7xf32> to vector<7x1xf32>
    %74 = arith.maximumf %71, %73 : vector<7x1xf32>
    %75 = arith.subf %71, %74 : vector<7x1xf32>
    %76 = math.exp %75 : vector<7x1xf32>
    %77 = vector.broadcast %74 : vector<7x1xf32> to vector<7x7xf32>
    %78 = arith.subf %69, %77 : vector<7x7xf32>
    %79 = math.exp %78 : vector<7x7xf32>
    %c1_49 = arith.constant 1 : index
    %c0_50 = arith.constant 0 : index
    %c0_51 = arith.constant 0 : index
    %80 = vector.load %arg9[%c1_49, %c0_50, %c0_51] : memref<4x7x1xf32, #tpu.memory_space<vmem>>, vector<1x7x1xf32>
    %81 = vector.shape_cast %80 : vector<1x7x1xf32> to vector<7x1xf32>
    %82 = arith.mulf %76, %81 : vector<7x1xf32>
    %cst_52 = arith.constant dense<0.000000e+00> : vector<7xf32>
    %83 = vector.multi_reduction <add>, %79, %cst_52 [1] : vector<7x7xf32> to vector<7xf32>
    %84 = vector.shape_cast %83 : vector<7xf32> to vector<7x1xf32>
    %85 = arith.addf %82, %84 : vector<7x1xf32>
    %c1_53 = arith.constant 1 : index
    %c0_54 = arith.constant 0 : index
    %c0_55 = arith.constant 0 : index
    %86 = vector.load %arg9[%c1_53, %c0_54, %c0_55] : memref<4x7x1xf32, #tpu.memory_space<vmem>>, vector<1x7x1xf32>
    %87 = vector.shape_cast %86 : vector<1x7x1xf32> to vector<7x1xf32>
    %88 = vector.shape_cast %85 : vector<7x1xf32> to vector<1x7x1xf32>
    tpu.vector_store %arg9[%c1_53, %c0_54, %c0_55], %88 {strides = array<i32>} : memref<4x7x1xf32, #tpu.memory_space<vmem>>, vector<1x7x1xf32>,
    %c0_56 = arith.constant 0 : index
    %c32_57 = arith.constant 32 : index
    %89 = vector.load %arg10[%c0_56, %c32_57] : memref<7x128xf32, #tpu.memory_space<vmem>>, vector<7x32xf32>
    %90 = vector.broadcast %76 : vector<7x1xf32> to vector<7x32xf32>
    %91 = arith.mulf %90, %89 : vector<7x32xf32>
    %92 = arith.truncf %79 : vector<7x7xf32> to vector<7x7xbf16>
    %cst_58 = arith.constant dense<0.000000e+00> : vector<7x32xf32>
    %93 = tpu.matmul %92, %64, %cst_58 {dimension_numbers = #tpu.dot_dimension_numbers<[1], [0], [0], [1], [0, 0, 1, 1], [], []>} : vector<7x7xbf16>, vector<7x32xbf16>, vector<7x32xf32> -> vector<7x32xf32>
    %94 = arith.addf %91, %93 : vector<7x32xf32>
    %c0_59 = arith.constant 0 : index
    %c32_60 = arith.constant 32 : index
    %95 = vector.load %arg10[%c0_59, %c32_60] : memref<7x128xf32, #tpu.memory_space<vmem>>, vector<7x32xf32>
    tpu.vector_store %arg10[%c0_59, %c32_60], %94 {strides = array<i32>} : memref<7x128xf32, #tpu.memory_space<vmem>>, vector<7x32xf32>,
    %c1_61 = arith.constant 1 : index
    %c0_62 = arith.constant 0 : index
    %c0_63 = arith.constant 0 : index
    %96 = vector.load %arg8[%c1_61, %c0_62, %c0_63] : memref<4x7x1xf32, #tpu.memory_space<vmem>>, vector<1x7x1xf32>
    %97 = vector.shape_cast %96 : vector<1x7x1xf32> to vector<7x1xf32>
    %98 = vector.shape_cast %74 : vector<7x1xf32> to vector<1x7x1xf32>
    tpu.vector_store %arg8[%c1_61, %c0_62, %c0_63], %98 {strides = array<i32>} : memref<4x7x1xf32, #tpu.memory_space<vmem>>, vector<1x7x1xf32>,
    %c0_64 = arith.constant 0 : index
    %c0_65 = arith.constant 0 : index
    %c64 = arith.constant 64 : index
    %99 = vector.load %arg3[%c0_64, %c0_65, %c64] : memref<1x7x128xbf16, #tpu.memory_space<vmem>>, vector<1x7x32xbf16>
    %100 = vector.shape_cast %99 : vector<1x7x32xbf16> to vector<7x32xbf16>
    %c0_66 = arith.constant 0 : index
    %c0_67 = arith.constant 0 : index
    %c64_68 = arith.constant 64 : index
    %101 = vector.load %arg4[%c0_66, %c0_67, %c64_68] : memref<1x7x128xbf16, #tpu.memory_space<vmem>>, vector<1x7x32xbf16>
    %102 = vector.shape_cast %101 : vector<1x7x32xbf16> to vector<7x32xbf16>
    %c0_69 = arith.constant 0 : index
    %c0_70 = arith.constant 0 : index
    %c64_71 = arith.constant 64 : index
    %103 = vector.load %arg5[%c0_69, %c0_70, %c64_71] : memref<1x7x128xbf16, #tpu.memory_space<vmem>>, vector<1x7x32xbf16>
    %104 = vector.shape_cast %103 : vector<1x7x32xbf16> to vector<7x32xbf16>
    %cst_72 = arith.constant dense<0.000000e+00> : vector<7x7xf32>
    %105 = tpu.matmul %100, %102, %cst_72 {dimension_numbers = #tpu.dot_dimension_numbers<[1], [1], [0], [0], [0, 0, 1, 0], [], []>} : vector<7x32xbf16>, vector<7x32xbf16>, vector<7x7xf32> -> vector<7x7xf32>
    %cst_73 = arith.constant 0.176776692 : f32
    %106 = vector.broadcast %cst_73 : f32 to vector<7x7xf32>
    %107 = arith.mulf %105, %106 : vector<7x7xf32>
    %cst_74 = arith.constant -1.000000e+09 : f32
    %108 = vector.broadcast %cst_74 : f32 to vector<7x7xf32>
    %109 = arith.select %18, %108, %107 : vector<7x7xi1>, vector<7x7xf32>
    %c2 = arith.constant 2 : index
    %c0_75 = arith.constant 0 : index
    %c0_76 = arith.constant 0 : index
    %110 = vector.load %arg8[%c2, %c0_75, %c0_76] : memref<4x7x1xf32, #tpu.memory_space<vmem>>, vector<1x7x1xf32>
    %111 = vector.shape_cast %110 : vector<1x7x1xf32> to vector<7x1xf32>
    %cst_77 = arith.constant dense<0xFF800000> : vector<7xf32>
    %112 = vector.multi_reduction <maximumf>, %109, %cst_77 [1] : vector<7x7xf32> to vector<7xf32>
    %113 = vector.shape_cast %112 : vector<7xf32> to vector<7x1xf32>
    %114 = arith.maximumf %111, %113 : vector<7x1xf32>
    %115 = arith.subf %111, %114 : vector<7x1xf32>
    %116 = math.exp %115 : vector<7x1xf32>
    %117 = vector.broadcast %114 : vector<7x1xf32> to vector<7x7xf32>
    %118 = arith.subf %109, %117 : vector<7x7xf32>
    %119 = math.exp %118 : vector<7x7xf32>
    %c2_78 = arith.constant 2 : index
    %c0_79 = arith.constant 0 : index
    %c0_80 = arith.constant 0 : index
    %120 = vector.load %arg9[%c2_78, %c0_79, %c0_80] : memref<4x7x1xf32, #tpu.memory_space<vmem>>, vector<1x7x1xf32>
    %121 = vector.shape_cast %120 : vector<1x7x1xf32> to vector<7x1xf32>
    %122 = arith.mulf %116, %121 : vector<7x1xf32>
    %cst_81 = arith.constant dense<0.000000e+00> : vector<7xf32>
    %123 = vector.multi_reduction <add>, %119, %cst_81 [1] : vector<7x7xf32> to vector<7xf32>
    %124 = vector.shape_cast %123 : vector<7xf32> to vector<7x1xf32>
    %125 = arith.addf %122, %124 : vector<7x1xf32>
    %c2_82 = arith.constant 2 : index
    %c0_83 = arith.constant 0 : index
    %c0_84 = arith.constant 0 : index
    %126 = vector.load %arg9[%c2_82, %c0_83, %c0_84] : memref<4x7x1xf32, #tpu.memory_space<vmem>>, vector<1x7x1xf32>
    %127 = vector.shape_cast %126 : vector<1x7x1xf32> to vector<7x1xf32>
    %128 = vector.shape_cast %125 : vector<7x1xf32> to vector<1x7x1xf32>
    tpu.vector_store %arg9[%c2_82, %c0_83, %c0_84], %128 {strides = array<i32>} : memref<4x7x1xf32, #tpu.memory_space<vmem>>, vector<1x7x1xf32>,
    %c0_85 = arith.constant 0 : index
    %c64_86 = arith.constant 64 : index
    %129 = vector.load %arg10[%c0_85, %c64_86] : memref<7x128xf32, #tpu.memory_space<vmem>>, vector<7x32xf32>
    %130 = vector.broadcast %116 : vector<7x1xf32> to vector<7x32xf32>
    %131 = arith.mulf %130, %129 : vector<7x32xf32>
    %132 = arith.truncf %119 : vector<7x7xf32> to vector<7x7xbf16>
    %cst_87 = arith.constant dense<0.000000e+00> : vector<7x32xf32>
    %133 = tpu.matmul %132, %104, %cst_87 {dimension_numbers = #tpu.dot_dimension_numbers<[1], [0], [0], [1], [0, 0, 1, 1], [], []>} : vector<7x7xbf16>, vector<7x32xbf16>, vector<7x32xf32> -> vector<7x32xf32>
    %134 = arith.addf %131, %133 : vector<7x32xf32>
    %c0_88 = arith.constant 0 : index
    %c64_89 = arith.constant 64 : index
    %135 = vector.load %arg10[%c0_88, %c64_89] : memref<7x128xf32, #tpu.memory_space<vmem>>, vector<7x32xf32>
    tpu.vector_store %arg10[%c0_88, %c64_89], %134 {strides = array<i32>} : memref<7x128xf32, #tpu.memory_space<vmem>>, vector<7x32xf32>,
    %c2_90 = arith.constant 2 : index
    %c0_91 = arith.constant 0 : index
    %c0_92 = arith.constant 0 : index
    %136 = vector.load %arg8[%c2_90, %c0_91, %c0_92] : memref<4x7x1xf32, #tpu.memory_space<vmem>>, vector<1x7x1xf32>
    %137 = vector.shape_cast %136 : vector<1x7x1xf32> to vector<7x1xf32>
    %138 = vector.shape_cast %114 : vector<7x1xf32> to vector<1x7x1xf32>
    tpu.vector_store %arg8[%c2_90, %c0_91, %c0_92], %138 {strides = array<i32>} : memref<4x7x1xf32, #tpu.memory_space<vmem>>, vector<1x7x1xf32>,
    %c0_93 = arith.constant 0 : index
    %c0_94 = arith.constant 0 : index
    %c96 = arith.constant 96 : index
    %139 = vector.load %arg3[%c0_93, %c0_94, %c96] : memref<1x7x128xbf16, #tpu.memory_space<vmem>>, vector<1x7x32xbf16>
    %140 = vector.shape_cast %139 : vector<1x7x32xbf16> to vector<7x32xbf16>
    %c0_95 = arith.constant 0 : index
    %c0_96 = arith.constant 0 : index
    %c96_97 = arith.constant 96 : index
    %141 = vector.load %arg4[%c0_95, %c0_96, %c96_97] : memref<1x7x128xbf16, #tpu.memory_space<vmem>>, vector<1x7x32xbf16>
    %142 = vector.shape_cast %141 : vector<1x7x32xbf16> to vector<7x32xbf16>
    %c0_98 = arith.constant 0 : index
    %c0_99 = arith.constant 0 : index
    %c96_100 = arith.constant 96 : index
    %143 = vector.load %arg5[%c0_98, %c0_99, %c96_100] : memref<1x7x128xbf16, #tpu.memory_space<vmem>>, vector<1x7x32xbf16>
    %144 = vector.shape_cast %143 : vector<1x7x32xbf16> to vector<7x32xbf16>
    %cst_101 = arith.constant dense<0.000000e+00> : vector<7x7xf32>
    %145 = tpu.matmul %140, %142, %cst_101 {dimension_numbers = #tpu.dot_dimension_numbers<[1], [1], [0], [0], [0, 0, 1, 0], [], []>} : vector<7x32xbf16>, vector<7x32xbf16>, vector<7x7xf32> -> vector<7x7xf32>
    %cst_102 = arith.constant 0.176776692 : f32
    %146 = vector.broadcast %cst_102 : f32 to vector<7x7xf32>
    %147 = arith.mulf %145, %146 : vector<7x7xf32>
    %cst_103 = arith.constant -1.000000e+09 : f32
    %148 = vector.broadcast %cst_103 : f32 to vector<7x7xf32>
    %149 = arith.select %18, %148, %147 : vector<7x7xi1>, vector<7x7xf32>
    %c3 = arith.constant 3 : index
    %c0_104 = arith.constant 0 : index
    %c0_105 = arith.constant 0 : index
    %150 = vector.load %arg8[%c3, %c0_104, %c0_105] : memref<4x7x1xf32, #tpu.memory_space<vmem>>, vector<1x7x1xf32>
    %151 = vector.shape_cast %150 : vector<1x7x1xf32> to vector<7x1xf32>
    %cst_106 = arith.constant dense<0xFF800000> : vector<7xf32>
    %152 = vector.multi_reduction <maximumf>, %149, %cst_106 [1] : vector<7x7xf32> to vector<7xf32>
    %153 = vector.shape_cast %152 : vector<7xf32> to vector<7x1xf32>
    %154 = arith.maximumf %151, %153 : vector<7x1xf32>
    %155 = arith.subf %151, %154 : vector<7x1xf32>
    %156 = math.exp %155 : vector<7x1xf32>
    %157 = vector.broadcast %154 : vector<7x1xf32> to vector<7x7xf32>
    %158 = arith.subf %149, %157 : vector<7x7xf32>
    %159 = math.exp %158 : vector<7x7xf32>
    %c3_107 = arith.constant 3 : index
    %c0_108 = arith.constant 0 : index
    %c0_109 = arith.constant 0 : index
    %160 = vector.load %arg9[%c3_107, %c0_108, %c0_109] : memref<4x7x1xf32, #tpu.memory_space<vmem>>, vector<1x7x1xf32>
    %161 = vector.shape_cast %160 : vector<1x7x1xf32> to vector<7x1xf32>
    %162 = arith.mulf %156, %161 : vector<7x1xf32>
    %cst_110 = arith.constant dense<0.000000e+00> : vector<7xf32>
    %163 = vector.multi_reduction <add>, %159, %cst_110 [1] : vector<7x7xf32> to vector<7xf32>
    %164 = vector.shape_cast %163 : vector<7xf32> to vector<7x1xf32>
    %165 = arith.addf %162, %164 : vector<7x1xf32>
    %c3_111 = arith.constant 3 : index
    %c0_112 = arith.constant 0 : index
    %c0_113 = arith.constant 0 : index
    %166 = vector.load %arg9[%c3_111, %c0_112, %c0_113] : memref<4x7x1xf32, #tpu.memory_space<vmem>>, vector<1x7x1xf32>
    %167 = vector.shape_cast %166 : vector<1x7x1xf32> to vector<7x1xf32>
    %168 = vector.shape_cast %165 : vector<7x1xf32> to vector<1x7x1xf32>
    tpu.vector_store %arg9[%c3_111, %c0_112, %c0_113], %168 {strides = array<i32>} : memref<4x7x1xf32, #tpu.memory_space<vmem>>, vector<1x7x1xf32>,
    %c0_114 = arith.constant 0 : index
    %c96_115 = arith.constant 96 : index
    %169 = vector.load %arg10[%c0_114, %c96_115] : memref<7x128xf32, #tpu.memory_space<vmem>>, vector<7x32xf32>
    %170 = vector.broadcast %156 : vector<7x1xf32> to vector<7x32xf32>
    %171 = arith.mulf %170, %169 : vector<7x32xf32>
    %172 = arith.truncf %159 : vector<7x7xf32> to vector<7x7xbf16>
    %cst_116 = arith.constant dense<0.000000e+00> : vector<7x32xf32>
    %173 = tpu.matmul %172, %144, %cst_116 {dimension_numbers = #tpu.dot_dimension_numbers<[1], [0], [0], [1], [0, 0, 1, 1], [], []>} : vector<7x7xbf16>, vector<7x32xbf16>, vector<7x32xf32> -> vector<7x32xf32>
    %174 = arith.addf %171, %173 : vector<7x32xf32>
    %c0_117 = arith.constant 0 : index
    %c96_118 = arith.constant 96 : index
    %175 = vector.load %arg10[%c0_117, %c96_118] : memref<7x128xf32, #tpu.memory_space<vmem>>, vector<7x32xf32>
    tpu.vector_store %arg10[%c0_117, %c96_118], %174 {strides = array<i32>} : memref<7x128xf32, #tpu.memory_space<vmem>>, vector<7x32xf32>,
    %c3_119 = arith.constant 3 : index
    %c0_120 = arith.constant 0 : index
    %c0_121 = arith.constant 0 : index
    %176 = vector.load %arg8[%c3_119, %c0_120, %c0_121] : memref<4x7x1xf32, #tpu.memory_space<vmem>>, vector<1x7x1xf32>
    %177 = vector.shape_cast %176 : vector<1x7x1xf32> to vector<7x1xf32>
    %178 = vector.shape_cast %154 : vector<7x1xf32> to vector<1x7x1xf32>
    tpu.vector_store %arg8[%c3_119, %c0_120, %c0_121], %178 {strides = array<i32>} : memref<4x7x1xf32, #tpu.memory_space<vmem>>, vector<1x7x1xf32>,
    %c0_i32_122 = arith.constant 0 : i32
    %179 = arith.cmpi eq, %arg2, %c0_i32_122 : i32
    %180 = arith.extui %179 : i1 to i32
    %c0_i32_123 = arith.constant 0 : i32
    %181 = arith.cmpi ne, %180, %c0_i32_123 : i32
    scf.if %181 {
      %c0_124 = arith.constant 0 : index
      %c0_125 = arith.constant 0 : index
      %c0_126 = arith.constant 0 : index
      %182 = vector.load %arg9[%c0_124, %c0_125, %c0_126] : memref<4x7x1xf32, #tpu.memory_space<vmem>>, vector<1x7x1xf32>
      %183 = vector.shape_cast %182 : vector<1x7x1xf32> to vector<7x1xf32>
      %184 = tpu.reciprocal %183 {approx = true} : vector<7x1xf32> -> vector<7x1xf32>
      %c0_127 = arith.constant 0 : index
      %c0_128 = arith.constant 0 : index
      %185 = vector.load %arg10[%c0_127, %c0_128] : memref<7x128xf32, #tpu.memory_space<vmem>>, vector<7x32xf32>
      %186 = vector.broadcast %184 : vector<7x1xf32> to vector<7x32xf32>
      %187 = arith.mulf %185, %186 : vector<7x32xf32>
      %188 = arith.truncf %187 : vector<7x32xf32> to vector<7x32xbf16>
      %c0_129 = arith.constant 0 : index
      %c0_130 = arith.constant 0 : index
      %c0_131 = arith.constant 0 : index
      %189 = vector.load %arg7[%c0_129, %c0_130, %c0_131] : memref<1x7x128xbf16, #tpu.memory_space<vmem>>, vector<1x7x32xbf16>
      %190 = vector.shape_cast %189 : vector<1x7x32xbf16> to vector<7x32xbf16>
      %191 = vector.shape_cast %188 : vector<7x32xbf16> to vector<1x7x32xbf16>
      tpu.vector_store %arg7[%c0_129, %c0_130, %c0_131], %191 {strides = array<i32>} : memref<1x7x128xbf16, #tpu.memory_space<vmem>>, vector<1x7x32xbf16>,
      %c1_132 = arith.constant 1 : index
      %c0_133 = arith.constant 0 : index
      %c0_134 = arith.constant 0 : index
      %192 = vector.load %arg9[%c1_132, %c0_133, %c0_134] : memref<4x7x1xf32, #tpu.memory_space<vmem>>, vector<1x7x1xf32>
      %193 = vector.shape_cast %192 : vector<1x7x1xf32> to vector<7x1xf32>
      %194 = tpu.reciprocal %193 {approx = true} : vector<7x1xf32> -> vector<7x1xf32>
      %c0_135 = arith.constant 0 : index
      %c32_136 = arith.constant 32 : index
      %195 = vector.load %arg10[%c0_135, %c32_136] : memref<7x128xf32, #tpu.memory_space<vmem>>, vector<7x32xf32>
      %196 = vector.broadcast %194 : vector<7x1xf32> to vector<7x32xf32>
      %197 = arith.mulf %195, %196 : vector<7x32xf32>
      %198 = arith.truncf %197 : vector<7x32xf32> to vector<7x32xbf16>
      %c0_137 = arith.constant 0 : index
      %c0_138 = arith.constant 0 : index
      %c32_139 = arith.constant 32 : index
      %199 = vector.load %arg7[%c0_137, %c0_138, %c32_139] : memref<1x7x128xbf16, #tpu.memory_space<vmem>>, vector<1x7x32xbf16>
      %200 = vector.shape_cast %199 : vector<1x7x32xbf16> to vector<7x32xbf16>
      %201 = vector.shape_cast %198 : vector<7x32xbf16> to vector<1x7x32xbf16>
      tpu.vector_store %arg7[%c0_137, %c0_138, %c32_139], %201 {strides = array<i32>} : memref<1x7x128xbf16, #tpu.memory_space<vmem>>, vector<1x7x32xbf16>,
      %c2_140 = arith.constant 2 : index
      %c0_141 = arith.constant 0 : index
      %c0_142 = arith.constant 0 : index
      %202 = vector.load %arg9[%c2_140, %c0_141, %c0_142] : memref<4x7x1xf32, #tpu.memory_space<vmem>>, vector<1x7x1xf32>
      %203 = vector.shape_cast %202 : vector<1x7x1xf32> to vector<7x1xf32>
      %204 = tpu.reciprocal %203 {approx = true} : vector<7x1xf32> -> vector<7x1xf32>
      %c0_143 = arith.constant 0 : index
      %c64_144 = arith.constant 64 : index
      %205 = vector.load %arg10[%c0_143, %c64_144] : memref<7x128xf32, #tpu.memory_space<vmem>>, vector<7x32xf32>
      %206 = vector.broadcast %204 : vector<7x1xf32> to vector<7x32xf32>
      %207 = arith.mulf %205, %206 : vector<7x32xf32>
      %208 = arith.truncf %207 : vector<7x32xf32> to vector<7x32xbf16>
      %c0_145 = arith.constant 0 : index
      %c0_146 = arith.constant 0 : index
      %c64_147 = arith.constant 64 : index
      %209 = vector.load %arg7[%c0_145, %c0_146, %c64_147] : memref<1x7x128xbf16, #tpu.memory_space<vmem>>, vector<1x7x32xbf16>
      %210 = vector.shape_cast %209 : vector<1x7x32xbf16> to vector<7x32xbf16>
      %211 = vector.shape_cast %208 : vector<7x32xbf16> to vector<1x7x32xbf16>
      tpu.vector_store %arg7[%c0_145, %c0_146, %c64_147], %211 {strides = array<i32>} : memref<1x7x128xbf16, #tpu.memory_space<vmem>>, vector<1x7x32xbf16>,
      %c3_148 = arith.constant 3 : index
      %c0_149 = arith.constant 0 : index
      %c0_150 = arith.constant 0 : index
      %212 = vector.load %arg9[%c3_148, %c0_149, %c0_150] : memref<4x7x1xf32, #tpu.memory_space<vmem>>, vector<1x7x1xf32>
      %213 = vector.shape_cast %212 : vector<1x7x1xf32> to vector<7x1xf32>
      %214 = tpu.reciprocal %213 {approx = true} : vector<7x1xf32> -> vector<7x1xf32>
      %c0_151 = arith.constant 0 : index
      %c96_152 = arith.constant 96 : index
      %215 = vector.load %arg10[%c0_151, %c96_152] : memref<7x128xf32, #tpu.memory_space<vmem>>, vector<7x32xf32>
      %216 = vector.broadcast %214 : vector<7x1xf32> to vector<7x32xf32>
      %217 = arith.mulf %215, %216 : vector<7x32xf32>
      %218 = arith.truncf %217 : vector<7x32xf32> to vector<7x32xbf16>
      %c0_153 = arith.constant 0 : index
      %c0_154 = arith.constant 0 : index
      %c96_155 = arith.constant 96 : index
      %219 = vector.load %arg7[%c0_153, %c0_154, %c96_155] : memref<1x7x128xbf16, #tpu.memory_space<vmem>>, vector<1x7x32xbf16>
      %220 = vector.shape_cast %219 : vector<1x7x32xbf16> to vector<7x32xbf16>
      %221 = vector.shape_cast %218 : vector<7x32xbf16> to vector<1x7x32xbf16>
      tpu.vector_store %arg7[%c0_153, %c0_154, %c96_155], %221 {strides = array<i32>} : memref<1x7x128xbf16, #tpu.memory_space<vmem>>, vector<1x7x32xbf16>,
    } else {
    }
    return
  }
  func.func @transform_0(%arg0: i32, %arg1: i32, %arg2: i32) -> (i32, i32, i32) {
    %c0_i32 = arith.constant 0 : i32
    %c0_i32_0 = arith.constant 0 : i32
    return %arg0, %arg1, %c0_i32 : i32, i32, i32
  }
  func.func @transform_1(%arg0: i32, %arg1: i32, %arg2: i32) -> (i32, i32, i32) {
    %c1_i32 = arith.constant 1 : i32
    %c0_i32 = arith.constant 0 : i32
    return %arg0, %arg2, %c1_i32 : i32, i32, i32
  }
  func.func @transform_2(%arg0: i32, %arg1: i32, %arg2: i32) -> (i32, i32, i32) {
    %c2_i32 = arith.constant 2 : i32
    %c0_i32 = arith.constant 0 : i32
    return %arg0, %arg2, %c2_i32 : i32, i32, i32
  }
  func.func @transform_3(%arg0: i32, %arg1: i32, %arg2: i32) -> (i32, i32, i32) {
    %c0_i32 = arith.constant 0 : i32
    %c0_i32_0 = arith.constant 0 : i32
    return %arg0, %c0_i32, %arg2 : i32, i32, i32
  }
  func.func @transform_4(%arg0: i32, %arg1: i32, %arg2: i32) -> (i32, i32, i32) {
    %c0_i32 = arith.constant 0 : i32
    %c0_i32_0 = arith.constant 0 : i32
    return %arg0, %arg1, %c0_i32 : i32, i32, i32
  }
}

module attributes {stable_mosaic.version = 11 : i64} {
  func.func @_matmul_bias_kernel(%arg0: i32, %arg1: i32, %arg2: i32, %arg3: memref<16x128xbf16, #tpu.memory_space<vmem>>, %arg4: memref<128x128xbf16, #tpu.memory_space<vmem>>, %arg5: memref<1x128xf32, #tpu.memory_space<vmem>>, %arg6: memref<16x128xbf16, #tpu.memory_space<vmem>>, %arg7: memref<16x128xf32, #tpu.memory_space<vmem>>) attributes {dimension_semantics = [#tpu.dimension_semantics<parallel>, #tpu.dimension_semantics<parallel>, #tpu.dimension_semantics<arbitrary>], iteration_bounds = array<i64: 1, 3, 1>, scalar_prefetch = 0 : i64, scratch_operands = 1 : i64, tpu.core_type = #tpu.core_type<tc>, window_params = [{transform_indices = @transform_0, window_bounds = array<i64: 16, 128>}, {transform_indices = @transform_1, window_bounds = array<i64: 128, 128>}, {transform_indices = @transform_2, window_bounds = array<i64: 1, 128>}, {transform_indices = @transform_3, window_bounds = array<i64: 16, 128>}]} {
    %c0_i32 = arith.constant 0 : i32
    %0 = arith.cmpi eq, %arg2, %c0_i32 : i32
    %1 = arith.extui %0 : i1 to i32
    %c0_i32_0 = arith.constant 0 : i32
    %2 = arith.cmpi ne, %1, %c0_i32_0 : i32
    scf.if %2 {
      %cst_10 = arith.constant 0.000000e+00 : f32
      %12 = vector.broadcast %cst_10 : f32 to vector<16x128xf32>
      %c0_11 = arith.constant 0 : index
      %c0_12 = arith.constant 0 : index
      %13 = vector.load %arg7[%c0_11, %c0_12] : memref<16x128xf32, #tpu.memory_space<vmem>>, vector<16x128xf32>
      tpu.vector_store %arg7[%c0_11, %c0_12], %12 {strides = array<i32>} : memref<16x128xf32, #tpu.memory_space<vmem>>, vector<16x128xf32>,
    } else {
    }
    %c0 = arith.constant 0 : index
    %c0_1 = arith.constant 0 : index
    %3 = vector.load %arg7[%c0, %c0_1] : memref<16x128xf32, #tpu.memory_space<vmem>>, vector<16x128xf32>
    %c0_2 = arith.constant 0 : index
    %c0_3 = arith.constant 0 : index
    %4 = vector.load %arg3[%c0_2, %c0_3] : memref<16x128xbf16, #tpu.memory_space<vmem>>, vector<16x128xbf16>
    %c0_4 = arith.constant 0 : index
    %c0_5 = arith.constant 0 : index
    %5 = vector.load %arg4[%c0_4, %c0_5] : memref<128x128xbf16, #tpu.memory_space<vmem>>, vector<128x128xbf16>
    %cst = arith.constant dense<0.000000e+00> : vector<16x128xf32>
    %6 = tpu.matmul %4, %5, %cst {dimension_numbers = #tpu.dot_dimension_numbers<[1], [0], [0], [1], [0, 0, 1, 1], [], []>} : vector<16x128xbf16>, vector<128x128xbf16>, vector<16x128xf32> -> vector<16x128xf32>
    %7 = arith.addf %3, %6 : vector<16x128xf32>
    %c0_6 = arith.constant 0 : index
    %c0_7 = arith.constant 0 : index
    %8 = vector.load %arg7[%c0_6, %c0_7] : memref<16x128xf32, #tpu.memory_space<vmem>>, vector<16x128xf32>
    tpu.vector_store %arg7[%c0_6, %c0_7], %7 {strides = array<i32>} : memref<16x128xf32, #tpu.memory_space<vmem>>, vector<16x128xf32>,
    %c0_i32_8 = arith.constant 0 : i32
    %9 = arith.cmpi eq, %arg2, %c0_i32_8 : i32
    %10 = arith.extui %9 : i1 to i32
    %c0_i32_9 = arith.constant 0 : i32
    %11 = arith.cmpi ne, %10, %c0_i32_9 : i32
    scf.if %11 {
      %c0_10 = arith.constant 0 : index
      %c0_11 = arith.constant 0 : index
      %12 = vector.load %arg7[%c0_10, %c0_11] : memref<16x128xf32, #tpu.memory_space<vmem>>, vector<16x128xf32>
      %c0_12 = arith.constant 0 : index
      %c0_13 = arith.constant 0 : index
      %13 = vector.load %arg5[%c0_12, %c0_13] : memref<1x128xf32, #tpu.memory_space<vmem>>, vector<1x128xf32>
      %14 = vector.broadcast %13 : vector<1x128xf32> to vector<16x128xf32>
      %15 = arith.addf %12, %14 : vector<16x128xf32>
      %16 = arith.truncf %15 : vector<16x128xf32> to vector<16x128xbf16>
      %c0_14 = arith.constant 0 : index
      %c0_15 = arith.constant 0 : index
      %17 = vector.load %arg6[%c0_14, %c0_15] : memref<16x128xbf16, #tpu.memory_space<vmem>>, vector<16x128xbf16>
      tpu.vector_store %arg6[%c0_14, %c0_15], %16 {strides = array<i32>} : memref<16x128xbf16, #tpu.memory_space<vmem>>, vector<16x128xbf16>,
    } else {
    }
    return
  }
  func.func @transform_0(%arg0: i32, %arg1: i32, %arg2: i32) -> (i32, i32) {
    %c0_i32 = arith.constant 0 : i32
    return %arg0, %arg2 : i32, i32
  }
  func.func @transform_1(%arg0: i32, %arg1: i32, %arg2: i32) -> (i32, i32) {
    %c0_i32 = arith.constant 0 : i32
    return %arg2, %arg1 : i32, i32
  }
  func.func @transform_2(%arg0: i32, %arg1: i32, %arg2: i32) -> (i32, i32) {
    %c0_i32 = arith.constant 0 : i32
    %c0_i32_0 = arith.constant 0 : i32
    return %c0_i32, %arg1 : i32, i32
  }
  func.func @transform_3(%arg0: i32, %arg1: i32, %arg2: i32) -> (i32, i32) {
    %c0_i32 = arith.constant 0 : i32
    return %arg0, %arg1 : i32, i32
  }
}

module attributes {stable_mosaic.version = 11 : i64} {
  func.func @_flash_attention_kernel(%arg0: i32, %arg1: i32, %arg2: i32, %arg3: memref<1x8x128xbf16, #tpu.memory_space<vmem>>, %arg4: memref<1x8x128xbf16, #tpu.memory_space<vmem>>, %arg5: memref<1x8x128xbf16, #tpu.memory_space<vmem>>, %arg6: memref<1x1x8xf32, #tpu.memory_space<vmem>>, %arg7: memref<1x8x128xbf16, #tpu.memory_space<vmem>>, %arg8: memref<4x8x1xf32, #tpu.memory_space<vmem>>, %arg9: memref<4x8x1xf32, #tpu.memory_space<vmem>>, %arg10: memref<8x128xf32, #tpu.memory_space<vmem>>) attributes {dimension_semantics = [#tpu.dimension_semantics<parallel>, #tpu.dimension_semantics<parallel>, #tpu.dimension_semantics<arbitrary>], iteration_bounds = array<i64: 2, 1, 1>, scalar_prefetch = 0 : i64, scratch_operands = 3 : i64, tpu.core_type = #tpu.core_type<tc>, window_params = [{transform_indices = @transform_0, window_bounds = array<i64: 1, 8, 128>}, {transform_indices = @transform_1, window_bounds = array<i64: 1, 8, 128>}, {transform_indices = @transform_2, window_bounds = array<i64: 1, 8, 128>}, {transform_indices = @transform_3, window_bounds = array<i64: 1, 1, 8>}, {transform_indices = @transform_4, window_bounds = array<i64: 1, 8, 128>}]} {
    %c0_i32 = arith.constant 0 : i32
    %0 = arith.cmpi eq, %arg2, %c0_i32 : i32
    %1 = arith.extui %0 : i1 to i32
    %c0_i32_0 = arith.constant 0 : i32
    %2 = arith.cmpi ne, %1, %c0_i32_0 : i32
    scf.if %2 {
      %cst_123 = arith.constant 0xFF800000 : f32
      %172 = vector.broadcast %cst_123 : f32 to vector<4x8x1xf32>
      %c0_124 = arith.constant 0 : index
      %c0_125 = arith.constant 0 : index
      %c0_126 = arith.constant 0 : index
      %173 = vector.load %arg8[%c0_124, %c0_125, %c0_126] : memref<4x8x1xf32, #tpu.memory_space<vmem>>, vector<4x8x1xf32>
      tpu.vector_store %arg8[%c0_124, %c0_125, %c0_126], %172 {strides = array<i32>} : memref<4x8x1xf32, #tpu.memory_space<vmem>>, vector<4x8x1xf32>,
      %cst_127 = arith.constant 0.000000e+00 : f32
      %174 = vector.broadcast %cst_127 : f32 to vector<4x8x1xf32>
      %c0_128 = arith.constant 0 : index
      %c0_129 = arith.constant 0 : index
      %c0_130 = arith.constant 0 : index
      %175 = vector.load %arg9[%c0_128, %c0_129, %c0_130] : memref<4x8x1xf32, #tpu.memory_space<vmem>>, vector<4x8x1xf32>
      tpu.vector_store %arg9[%c0_128, %c0_129, %c0_130], %174 {strides = array<i32>} : memref<4x8x1xf32, #tpu.memory_space<vmem>>, vector<4x8x1xf32>,
      %cst_131 = arith.constant 0.000000e+00 : f32
      %176 = vector.broadcast %cst_131 : f32 to vector<8x128xf32>
      %c0_132 = arith.constant 0 : index
      %c0_133 = arith.constant 0 : index
      %177 = vector.load %arg10[%c0_132, %c0_133] : memref<8x128xf32, #tpu.memory_space<vmem>>, vector<8x128xf32>
      tpu.vector_store %arg10[%c0_132, %c0_133], %176 {strides = array<i32>} : memref<8x128xf32, #tpu.memory_space<vmem>>, vector<8x128xf32>,
    } else {
    }
    %c0 = arith.constant 0 : index
    %c0_1 = arith.constant 0 : index
    %c0_2 = arith.constant 0 : index
    %3 = vector.load %arg6[%c0, %c0_1, %c0_2] : memref<1x1x8xf32, #tpu.memory_space<vmem>>, vector<1x1x8xf32>
    %4 = vector.shape_cast %3 : vector<1x1x8xf32> to vector<1x8xf32>
    %cst = arith.constant 5.000000e-01 : f32
    %5 = vector.broadcast %cst : f32 to vector<1x8xf32>
    %6 = arith.cmpf ogt, %4, %5 : vector<1x8xf32>
    %7 = vector.shape_cast %6 : vector<1x8xi1> to vector<1x8xi1>
    %8 = vector.broadcast %7 : vector<1x8xi1> to vector<8x8xi1>
    %c0_3 = arith.constant 0 : index
    %c0_4 = arith.constant 0 : index
    %c0_5 = arith.constant 0 : index
    %9 = vector.load %arg3[%c0_3, %c0_4, %c0_5] : memref<1x8x128xbf16, #tpu.memory_space<vmem>>, vector<1x8x32xbf16>
    %10 = vector.shape_cast %9 : vector<1x8x32xbf16> to vector<8x32xbf16>
    %c0_6 = arith.constant 0 : index
    %c0_7 = arith.constant 0 : index
    %c0_8 = arith.constant 0 : index
    %11 = vector.load %arg4[%c0_6, %c0_7, %c0_8] : memref<1x8x128xbf16, #tpu.memory_space<vmem>>, vector<1x8x32xbf16>
    %12 = vector.shape_cast %11 : vector<1x8x32xbf16> to vector<8x32xbf16>
    %c0_9 = arith.constant 0 : index
    %c0_10 = arith.constant 0 : index
    %c0_11 = arith.constant 0 : index
    %13 = vector.load %arg5[%c0_9, %c0_10, %c0_11] : memref<1x8x128xbf16, #tpu.memory_space<vmem>>, vector<1x8x32xbf16>
    %14 = vector.shape_cast %13 : vector<1x8x32xbf16> to vector<8x32xbf16>
    %cst_12 = arith.constant dense<0.000000e+00> : vector<8x8xf32>
    %15 = tpu.matmul %10, %12, %cst_12 {dimension_numbers = #tpu.dot_dimension_numbers<[1], [1], [0], [0], [0, 0, 1, 0], [], []>} : vector<8x32xbf16>, vector<8x32xbf16>, vector<8x8xf32> -> vector<8x8xf32>
    %cst_13 = arith.constant 0.176776692 : f32
    %16 = vector.broadcast %cst_13 : f32 to vector<8x8xf32>
    %17 = arith.mulf %15, %16 : vector<8x8xf32>
    %cst_14 = arith.constant -1.000000e+09 : f32
    %18 = vector.broadcast %cst_14 : f32 to vector<8x8xf32>
    %19 = arith.select %8, %18, %17 : vector<8x8xi1>, vector<8x8xf32>
    %c0_15 = arith.constant 0 : index
    %c0_16 = arith.constant 0 : index
    %c0_17 = arith.constant 0 : index
    %20 = vector.load %arg8[%c0_15, %c0_16, %c0_17] : memref<4x8x1xf32, #tpu.memory_space<vmem>>, vector<1x8x1xf32>
    %21 = vector.shape_cast %20 : vector<1x8x1xf32> to vector<8x1xf32>
    %cst_18 = arith.constant dense<0xFF800000> : vector<8xf32>
    %22 = vector.multi_reduction <maximumf>, %19, %cst_18 [1] : vector<8x8xf32> to vector<8xf32>
    %23 = vector.shape_cast %22 : vector<8xf32> to vector<8x1xf32>
    %24 = arith.maximumf %21, %23 : vector<8x1xf32>
    %25 = arith.subf %21, %24 : vector<8x1xf32>
    %26 = math.exp %25 : vector<8x1xf32>
    %27 = vector.broadcast %24 : vector<8x1xf32> to vector<8x8xf32>
    %28 = arith.subf %19, %27 : vector<8x8xf32>
    %29 = math.exp %28 : vector<8x8xf32>
    %c0_19 = arith.constant 0 : index
    %c0_20 = arith.constant 0 : index
    %c0_21 = arith.constant 0 : index
    %30 = vector.load %arg9[%c0_19, %c0_20, %c0_21] : memref<4x8x1xf32, #tpu.memory_space<vmem>>, vector<1x8x1xf32>
    %31 = vector.shape_cast %30 : vector<1x8x1xf32> to vector<8x1xf32>
    %32 = arith.mulf %26, %31 : vector<8x1xf32>
    %cst_22 = arith.constant dense<0.000000e+00> : vector<8xf32>
    %33 = vector.multi_reduction <add>, %29, %cst_22 [1] : vector<8x8xf32> to vector<8xf32>
    %34 = vector.shape_cast %33 : vector<8xf32> to vector<8x1xf32>
    %35 = arith.addf %32, %34 : vector<8x1xf32>
    %c0_23 = arith.constant 0 : index
    %c0_24 = arith.constant 0 : index
    %c0_25 = arith.constant 0 : index
    %36 = vector.load %arg9[%c0_23, %c0_24, %c0_25] : memref<4x8x1xf32, #tpu.memory_space<vmem>>, vector<1x8x1xf32>
    %37 = vector.shape_cast %36 : vector<1x8x1xf32> to vector<8x1xf32>
    %38 = vector.shape_cast %35 : vector<8x1xf32> to vector<1x8x1xf32>
    tpu.vector_store %arg9[%c0_23, %c0_24, %c0_25], %38 {strides = array<i32>} : memref<4x8x1xf32, #tpu.memory_space<vmem>>, vector<1x8x1xf32>,
    %c0_26 = arith.constant 0 : index
    %c0_27 = arith.constant 0 : index
    %39 = vector.load %arg10[%c0_26, %c0_27] : memref<8x128xf32, #tpu.memory_space<vmem>>, vector<8x32xf32>
    %40 = vector.broadcast %26 : vector<8x1xf32> to vector<8x32xf32>
    %41 = arith.mulf %40, %39 : vector<8x32xf32>
    %42 = arith.truncf %29 : vector<8x8xf32> to vector<8x8xbf16>
    %cst_28 = arith.constant dense<0.000000e+00> : vector<8x32xf32>
    %43 = tpu.matmul %42, %14, %cst_28 {dimension_numbers = #tpu.dot_dimension_numbers<[1], [0], [0], [1], [0, 0, 1, 1], [], []>} : vector<8x8xbf16>, vector<8x32xbf16>, vector<8x32xf32> -> vector<8x32xf32>
    %44 = arith.addf %41, %43 : vector<8x32xf32>
    %c0_29 = arith.constant 0 : index
    %c0_30 = arith.constant 0 : index
    %45 = vector.load %arg10[%c0_29, %c0_30] : memref<8x128xf32, #tpu.memory_space<vmem>>, vector<8x32xf32>
    tpu.vector_store %arg10[%c0_29, %c0_30], %44 {strides = array<i32>} : memref<8x128xf32, #tpu.memory_space<vmem>>, vector<8x32xf32>,
    %c0_31 = arith.constant 0 : index
    %c0_32 = arith.constant 0 : index
    %c0_33 = arith.constant 0 : index
    %46 = vector.load %arg8[%c0_31, %c0_32, %c0_33] : memref<4x8x1xf32, #tpu.memory_space<vmem>>, vector<1x8x1xf32>
    %47 = vector.shape_cast %46 : vector<1x8x1xf32> to vector<8x1xf32>
    %48 = vector.shape_cast %24 : vector<8x1xf32> to vector<1x8x1xf32>
    tpu.vector_store %arg8[%c0_31, %c0_32, %c0_33], %48 {strides = array<i32>} : memref<4x8x1xf32, #tpu.memory_space<vmem>>, vector<1x8x1xf32>,
    %c0_34 = arith.constant 0 : index
    %c0_35 = arith.constant 0 : index
    %c32 = arith.constant 32 : index
    %49 = vector.load %arg3[%c0_34, %c0_35, %c32] : memref<1x8x128xbf16, #tpu.memory_space<vmem>>, vector<1x8x32xbf16>
    %50 = vector.shape_cast %49 : vector<1x8x32xbf16> to vector<8x32xbf16>
    %c0_36 = arith.constant 0 : index
    %c0_37 = arith.constant 0 : index
    %c32_38 = arith.constant 32 : index
    %51 = vector.load %arg4[%c0_36, %c0_37, %c32_38] : memref<1x8x128xbf16, #tpu.memory_space<vmem>>, vector<1x8x32xbf16>
    %52 = vector.shape_cast %51 : vector<1x8x32xbf16> to vector<8x32xbf16>
    %c0_39 = arith.constant 0 : index
    %c0_40 = arith.constant 0 : index
    %c32_41 = arith.constant 32 : index
    %53 = vector.load %arg5[%c0_39, %c0_40, %c32_41] : memref<1x8x128xbf16, #tpu.memory_space<vmem>>, vector<1x8x32xbf16>
    %54 = vector.shape_cast %53 : vector<1x8x32xbf16> to vector<8x32xbf16>
    %cst_42 = arith.constant dense<0.000000e+00> : vector<8x8xf32>
    %55 = tpu.matmul %50, %52, %cst_42 {dimension_numbers = #tpu.dot_dimension_numbers<[1], [1], [0], [0], [0, 0, 1, 0], [], []>} : vector<8x32xbf16>, vector<8x32xbf16>, vector<8x8xf32> -> vector<8x8xf32>
    %cst_43 = arith.constant 0.176776692 : f32
    %56 = vector.broadcast %cst_43 : f32 to vector<8x8xf32>
    %57 = arith.mulf %55, %56 : vector<8x8xf32>
    %cst_44 = arith.constant -1.000000e+09 : f32
    %58 = vector.broadcast %cst_44 : f32 to vector<8x8xf32>
    %59 = arith.select %8, %58, %57 : vector<8x8xi1>, vector<8x8xf32>
    %c1 = arith.constant 1 : index
    %c0_45 = arith.constant 0 : index
    %c0_46 = arith.constant 0 : index
    %60 = vector.load %arg8[%c1, %c0_45, %c0_46] : memref<4x8x1xf32, #tpu.memory_space<vmem>>, vector<1x8x1xf32>
    %61 = vector.shape_cast %60 : vector<1x8x1xf32> to vector<8x1xf32>
    %cst_47 = arith.constant dense<0xFF800000> : vector<8xf32>
    %62 = vector.multi_reduction <maximumf>, %59, %cst_47 [1] : vector<8x8xf32> to vector<8xf32>
    %63 = vector.shape_cast %62 : vector<8xf32> to vector<8x1xf32>
    %64 = arith.maximumf %61, %63 : vector<8x1xf32>
    %65 = arith.subf %61, %64 : vector<8x1xf32>
    %66 = math.exp %65 : vector<8x1xf32>
    %67 = vector.broadcast %64 : vector<8x1xf32> to vector<8x8xf32>
    %68 = arith.subf %59, %67 : vector<8x8xf32>
    %69 = math.exp %68 : vector<8x8xf32>
    %c1_48 = arith.constant 1 : index
    %c0_49 = arith.constant 0 : index
    %c0_50 = arith.constant 0 : index
    %70 = vector.load %arg9[%c1_48, %c0_49, %c0_50] : memref<4x8x1xf32, #tpu.memory_space<vmem>>, vector<1x8x1xf32>
    %71 = vector.shape_cast %70 : vector<1x8x1xf32> to vector<8x1xf32>
    %72 = arith.mulf %66, %71 : vector<8x1xf32>
    %cst_51 = arith.constant dense<0.000000e+00> : vector<8xf32>
    %73 = vector.multi_reduction <add>, %69, %cst_51 [1] : vector<8x8xf32> to vector<8xf32>
    %74 = vector.shape_cast %73 : vector<8xf32> to vector<8x1xf32>
    %75 = arith.addf %72, %74 : vector<8x1xf32>
    %c1_52 = arith.constant 1 : index
    %c0_53 = arith.constant 0 : index
    %c0_54 = arith.constant 0 : index
    %76 = vector.load %arg9[%c1_52, %c0_53, %c0_54] : memref<4x8x1xf32, #tpu.memory_space<vmem>>, vector<1x8x1xf32>
    %77 = vector.shape_cast %76 : vector<1x8x1xf32> to vector<8x1xf32>
    %78 = vector.shape_cast %75 : vector<8x1xf32> to vector<1x8x1xf32>
    tpu.vector_store %arg9[%c1_52, %c0_53, %c0_54], %78 {strides = array<i32>} : memref<4x8x1xf32, #tpu.memory_space<vmem>>, vector<1x8x1xf32>,
    %c0_55 = arith.constant 0 : index
    %c32_56 = arith.constant 32 : index
    %79 = vector.load %arg10[%c0_55, %c32_56] : memref<8x128xf32, #tpu.memory_space<vmem>>, vector<8x32xf32>
    %80 = vector.broadcast %66 : vector<8x1xf32> to vector<8x32xf32>
    %81 = arith.mulf %80, %79 : vector<8x32xf32>
    %82 = arith.truncf %69 : vector<8x8xf32> to vector<8x8xbf16>
    %cst_57 = arith.constant dense<0.000000e+00> : vector<8x32xf32>
    %83 = tpu.matmul %82, %54, %cst_57 {dimension_numbers = #tpu.dot_dimension_numbers<[1], [0], [0], [1], [0, 0, 1, 1], [], []>} : vector<8x8xbf16>, vector<8x32xbf16>, vector<8x32xf32> -> vector<8x32xf32>
    %84 = arith.addf %81, %83 : vector<8x32xf32>
    %c0_58 = arith.constant 0 : index
    %c32_59 = arith.constant 32 : index
    %85 = vector.load %arg10[%c0_58, %c32_59] : memref<8x128xf32, #tpu.memory_space<vmem>>, vector<8x32xf32>
    tpu.vector_store %arg10[%c0_58, %c32_59], %84 {strides = array<i32>} : memref<8x128xf32, #tpu.memory_space<vmem>>, vector<8x32xf32>,
    %c1_60 = arith.constant 1 : index
    %c0_61 = arith.constant 0 : index
    %c0_62 = arith.constant 0 : index
    %86 = vector.load %arg8[%c1_60, %c0_61, %c0_62] : memref<4x8x1xf32, #tpu.memory_space<vmem>>, vector<1x8x1xf32>
    %87 = vector.shape_cast %86 : vector<1x8x1xf32> to vector<8x1xf32>
    %88 = vector.shape_cast %64 : vector<8x1xf32> to vector<1x8x1xf32>
    tpu.vector_store %arg8[%c1_60, %c0_61, %c0_62], %88 {strides = array<i32>} : memref<4x8x1xf32, #tpu.memory_space<vmem>>, vector<1x8x1xf32>,
    %c0_63 = arith.constant 0 : index
    %c0_64 = arith.constant 0 : index
    %c64 = arith.constant 64 : index
    %89 = vector.load %arg3[%c0_63, %c0_64, %c64] : memref<1x8x128xbf16, #tpu.memory_space<vmem>>, vector<1x8x32xbf16>
    %90 = vector.shape_cast %89 : vector<1x8x32xbf16> to vector<8x32xbf16>
    %c0_65 = arith.constant 0 : index
    %c0_66 = arith.constant 0 : index
    %c64_67 = arith.constant 64 : index
    %91 = vector.load %arg4[%c0_65, %c0_66, %c64_67] : memref<1x8x128xbf16, #tpu.memory_space<vmem>>, vector<1x8x32xbf16>
    %92 = vector.shape_cast %91 : vector<1x8x32xbf16> to vector<8x32xbf16>
    %c0_68 = arith.constant 0 : index
    %c0_69 = arith.constant 0 : index
    %c64_70 = arith.constant 64 : index
    %93 = vector.load %arg5[%c0_68, %c0_69, %c64_70] : memref<1x8x128xbf16, #tpu.memory_space<vmem>>, vector<1x8x32xbf16>
    %94 = vector.shape_cast %93 : vector<1x8x32xbf16> to vector<8x32xbf16>
    %cst_71 = arith.constant dense<0.000000e+00> : vector<8x8xf32>
    %95 = tpu.matmul %90, %92, %cst_71 {dimension_numbers = #tpu.dot_dimension_numbers<[1], [1], [0], [0], [0, 0, 1, 0], [], []>} : vector<8x32xbf16>, vector<8x32xbf16>, vector<8x8xf32> -> vector<8x8xf32>
    %cst_72 = arith.constant 0.176776692 : f32
    %96 = vector.broadcast %cst_72 : f32 to vector<8x8xf32>
    %97 = arith.mulf %95, %96 : vector<8x8xf32>
    %cst_73 = arith.constant -1.000000e+09 : f32
    %98 = vector.broadcast %cst_73 : f32 to vector<8x8xf32>
    %99 = arith.select %8, %98, %97 : vector<8x8xi1>, vector<8x8xf32>
    %c2 = arith.constant 2 : index
    %c0_74 = arith.constant 0 : index
    %c0_75 = arith.constant 0 : index
    %100 = vector.load %arg8[%c2, %c0_74, %c0_75] : memref<4x8x1xf32, #tpu.memory_space<vmem>>, vector<1x8x1xf32>
    %101 = vector.shape_cast %100 : vector<1x8x1xf32> to vector<8x1xf32>
    %cst_76 = arith.constant dense<0xFF800000> : vector<8xf32>
    %102 = vector.multi_reduction <maximumf>, %99, %cst_76 [1] : vector<8x8xf32> to vector<8xf32>
    %103 = vector.shape_cast %102 : vector<8xf32> to vector<8x1xf32>
    %104 = arith.maximumf %101, %103 : vector<8x1xf32>
    %105 = arith.subf %101, %104 : vector<8x1xf32>
    %106 = math.exp %105 : vector<8x1xf32>
    %107 = vector.broadcast %104 : vector<8x1xf32> to vector<8x8xf32>
    %108 = arith.subf %99, %107 : vector<8x8xf32>
    %109 = math.exp %108 : vector<8x8xf32>
    %c2_77 = arith.constant 2 : index
    %c0_78 = arith.constant 0 : index
    %c0_79 = arith.constant 0 : index
    %110 = vector.load %arg9[%c2_77, %c0_78, %c0_79] : memref<4x8x1xf32, #tpu.memory_space<vmem>>, vector<1x8x1xf32>
    %111 = vector.shape_cast %110 : vector<1x8x1xf32> to vector<8x1xf32>
    %112 = arith.mulf %106, %111 : vector<8x1xf32>
    %cst_80 = arith.constant dense<0.000000e+00> : vector<8xf32>
    %113 = vector.multi_reduction <add>, %109, %cst_80 [1] : vector<8x8xf32> to vector<8xf32>
    %114 = vector.shape_cast %113 : vector<8xf32> to vector<8x1xf32>
    %115 = arith.addf %112, %114 : vector<8x1xf32>
    %c2_81 = arith.constant 2 : index
    %c0_82 = arith.constant 0 : index
    %c0_83 = arith.constant 0 : index
    %116 = vector.load %arg9[%c2_81, %c0_82, %c0_83] : memref<4x8x1xf32, #tpu.memory_space<vmem>>, vector<1x8x1xf32>
    %117 = vector.shape_cast %116 : vector<1x8x1xf32> to vector<8x1xf32>
    %118 = vector.shape_cast %115 : vector<8x1xf32> to vector<1x8x1xf32>
    tpu.vector_store %arg9[%c2_81, %c0_82, %c0_83], %118 {strides = array<i32>} : memref<4x8x1xf32, #tpu.memory_space<vmem>>, vector<1x8x1xf32>,
    %c0_84 = arith.constant 0 : index
    %c64_85 = arith.constant 64 : index
    %119 = vector.load %arg10[%c0_84, %c64_85] : memref<8x128xf32, #tpu.memory_space<vmem>>, vector<8x32xf32>
    %120 = vector.broadcast %106 : vector<8x1xf32> to vector<8x32xf32>
    %121 = arith.mulf %120, %119 : vector<8x32xf32>
    %122 = arith.truncf %109 : vector<8x8xf32> to vector<8x8xbf16>
    %cst_86 = arith.constant dense<0.000000e+00> : vector<8x32xf32>
    %123 = tpu.matmul %122, %94, %cst_86 {dimension_numbers = #tpu.dot_dimension_numbers<[1], [0], [0], [1], [0, 0, 1, 1], [], []>} : vector<8x8xbf16>, vector<8x32xbf16>, vector<8x32xf32> -> vector<8x32xf32>
    %124 = arith.addf %121, %123 : vector<8x32xf32>
    %c0_87 = arith.constant 0 : index
    %c64_88 = arith.constant 64 : index
    %125 = vector.load %arg10[%c0_87, %c64_88] : memref<8x128xf32, #tpu.memory_space<vmem>>, vector<8x32xf32>
    tpu.vector_store %arg10[%c0_87, %c64_88], %124 {strides = array<i32>} : memref<8x128xf32, #tpu.memory_space<vmem>>, vector<8x32xf32>,
    %c2_89 = arith.constant 2 : index
    %c0_90 = arith.constant 0 : index
    %c0_91 = arith.constant 0 : index
    %126 = vector.load %arg8[%c2_89, %c0_90, %c0_91] : memref<4x8x1xf32, #tpu.memory_space<vmem>>, vector<1x8x1xf32>
    %127 = vector.shape_cast %126 : vector<1x8x1xf32> to vector<8x1xf32>
    %128 = vector.shape_cast %104 : vector<8x1xf32> to vector<1x8x1xf32>
    tpu.vector_store %arg8[%c2_89, %c0_90, %c0_91], %128 {strides = array<i32>} : memref<4x8x1xf32, #tpu.memory_space<vmem>>, vector<1x8x1xf32>,
    %c0_92 = arith.constant 0 : index
    %c0_93 = arith.constant 0 : index
    %c96 = arith.constant 96 : index
    %129 = vector.load %arg3[%c0_92, %c0_93, %c96] : memref<1x8x128xbf16, #tpu.memory_space<vmem>>, vector<1x8x32xbf16>
    %130 = vector.shape_cast %129 : vector<1x8x32xbf16> to vector<8x32xbf16>
    %c0_94 = arith.constant 0 : index
    %c0_95 = arith.constant 0 : index
    %c96_96 = arith.constant 96 : index
    %131 = vector.load %arg4[%c0_94, %c0_95, %c96_96] : memref<1x8x128xbf16, #tpu.memory_space<vmem>>, vector<1x8x32xbf16>
    %132 = vector.shape_cast %131 : vector<1x8x32xbf16> to vector<8x32xbf16>
    %c0_97 = arith.constant 0 : index
    %c0_98 = arith.constant 0 : index
    %c96_99 = arith.constant 96 : index
    %133 = vector.load %arg5[%c0_97, %c0_98, %c96_99] : memref<1x8x128xbf16, #tpu.memory_space<vmem>>, vector<1x8x32xbf16>
    %134 = vector.shape_cast %133 : vector<1x8x32xbf16> to vector<8x32xbf16>
    %cst_100 = arith.constant dense<0.000000e+00> : vector<8x8xf32>
    %135 = tpu.matmul %130, %132, %cst_100 {dimension_numbers = #tpu.dot_dimension_numbers<[1], [1], [0], [0], [0, 0, 1, 0], [], []>} : vector<8x32xbf16>, vector<8x32xbf16>, vector<8x8xf32> -> vector<8x8xf32>
    %cst_101 = arith.constant 0.176776692 : f32
    %136 = vector.broadcast %cst_101 : f32 to vector<8x8xf32>
    %137 = arith.mulf %135, %136 : vector<8x8xf32>
    %cst_102 = arith.constant -1.000000e+09 : f32
    %138 = vector.broadcast %cst_102 : f32 to vector<8x8xf32>
    %139 = arith.select %8, %138, %137 : vector<8x8xi1>, vector<8x8xf32>
    %c3 = arith.constant 3 : index
    %c0_103 = arith.constant 0 : index
    %c0_104 = arith.constant 0 : index
    %140 = vector.load %arg8[%c3, %c0_103, %c0_104] : memref<4x8x1xf32, #tpu.memory_space<vmem>>, vector<1x8x1xf32>
    %141 = vector.shape_cast %140 : vector<1x8x1xf32> to vector<8x1xf32>
    %cst_105 = arith.constant dense<0xFF800000> : vector<8xf32>
    %142 = vector.multi_reduction <maximumf>, %139, %cst_105 [1] : vector<8x8xf32> to vector<8xf32>
    %143 = vector.shape_cast %142 : vector<8xf32> to vector<8x1xf32>
    %144 = arith.maximumf %141, %143 : vector<8x1xf32>
    %145 = arith.subf %141, %144 : vector<8x1xf32>
    %146 = math.exp %145 : vector<8x1xf32>
    %147 = vector.broadcast %144 : vector<8x1xf32> to vector<8x8xf32>
    %148 = arith.subf %139, %147 : vector<8x8xf32>
    %149 = math.exp %148 : vector<8x8xf32>
    %c3_106 = arith.constant 3 : index
    %c0_107 = arith.constant 0 : index
    %c0_108 = arith.constant 0 : index
    %150 = vector.load %arg9[%c3_106, %c0_107, %c0_108] : memref<4x8x1xf32, #tpu.memory_space<vmem>>, vector<1x8x1xf32>
    %151 = vector.shape_cast %150 : vector<1x8x1xf32> to vector<8x1xf32>
    %152 = arith.mulf %146, %151 : vector<8x1xf32>
    %cst_109 = arith.constant dense<0.000000e+00> : vector<8xf32>
    %153 = vector.multi_reduction <add>, %149, %cst_109 [1] : vector<8x8xf32> to vector<8xf32>
    %154 = vector.shape_cast %153 : vector<8xf32> to vector<8x1xf32>
    %155 = arith.addf %152, %154 : vector<8x1xf32>
    %c3_110 = arith.constant 3 : index
    %c0_111 = arith.constant 0 : index
    %c0_112 = arith.constant 0 : index
    %156 = vector.load %arg9[%c3_110, %c0_111, %c0_112] : memref<4x8x1xf32, #tpu.memory_space<vmem>>, vector<1x8x1xf32>
    %157 = vector.shape_cast %156 : vector<1x8x1xf32> to vector<8x1xf32>
    %158 = vector.shape_cast %155 : vector<8x1xf32> to vector<1x8x1xf32>
    tpu.vector_store %arg9[%c3_110, %c0_111, %c0_112], %158 {strides = array<i32>} : memref<4x8x1xf32, #tpu.memory_space<vmem>>, vector<1x8x1xf32>,
    %c0_113 = arith.constant 0 : index
    %c96_114 = arith.constant 96 : index
    %159 = vector.load %arg10[%c0_113, %c96_114] : memref<8x128xf32, #tpu.memory_space<vmem>>, vector<8x32xf32>
    %160 = vector.broadcast %146 : vector<8x1xf32> to vector<8x32xf32>
    %161 = arith.mulf %160, %159 : vector<8x32xf32>
    %162 = arith.truncf %149 : vector<8x8xf32> to vector<8x8xbf16>
    %cst_115 = arith.constant dense<0.000000e+00> : vector<8x32xf32>
    %163 = tpu.matmul %162, %134, %cst_115 {dimension_numbers = #tpu.dot_dimension_numbers<[1], [0], [0], [1], [0, 0, 1, 1], [], []>} : vector<8x8xbf16>, vector<8x32xbf16>, vector<8x32xf32> -> vector<8x32xf32>
    %164 = arith.addf %161, %163 : vector<8x32xf32>
    %c0_116 = arith.constant 0 : index
    %c96_117 = arith.constant 96 : index
    %165 = vector.load %arg10[%c0_116, %c96_117] : memref<8x128xf32, #tpu.memory_space<vmem>>, vector<8x32xf32>
    tpu.vector_store %arg10[%c0_116, %c96_117], %164 {strides = array<i32>} : memref<8x128xf32, #tpu.memory_space<vmem>>, vector<8x32xf32>,
    %c3_118 = arith.constant 3 : index
    %c0_119 = arith.constant 0 : index
    %c0_120 = arith.constant 0 : index
    %166 = vector.load %arg8[%c3_118, %c0_119, %c0_120] : memref<4x8x1xf32, #tpu.memory_space<vmem>>, vector<1x8x1xf32>
    %167 = vector.shape_cast %166 : vector<1x8x1xf32> to vector<8x1xf32>
    %168 = vector.shape_cast %144 : vector<8x1xf32> to vector<1x8x1xf32>
    tpu.vector_store %arg8[%c3_118, %c0_119, %c0_120], %168 {strides = array<i32>} : memref<4x8x1xf32, #tpu.memory_space<vmem>>, vector<1x8x1xf32>,
    %c0_i32_121 = arith.constant 0 : i32
    %169 = arith.cmpi eq, %arg2, %c0_i32_121 : i32
    %170 = arith.extui %169 : i1 to i32
    %c0_i32_122 = arith.constant 0 : i32
    %171 = arith.cmpi ne, %170, %c0_i32_122 : i32
    scf.if %171 {
      %c0_123 = arith.constant 0 : index
      %c0_124 = arith.constant 0 : index
      %c0_125 = arith.constant 0 : index
      %172 = vector.load %arg9[%c0_123, %c0_124, %c0_125] : memref<4x8x1xf32, #tpu.memory_space<vmem>>, vector<1x8x1xf32>
      %173 = vector.shape_cast %172 : vector<1x8x1xf32> to vector<8x1xf32>
      %174 = tpu.reciprocal %173 {approx = true} : vector<8x1xf32> -> vector<8x1xf32>
      %c0_126 = arith.constant 0 : index
      %c0_127 = arith.constant 0 : index
      %175 = vector.load %arg10[%c0_126, %c0_127] : memref<8x128xf32, #tpu.memory_space<vmem>>, vector<8x32xf32>
      %176 = vector.broadcast %174 : vector<8x1xf32> to vector<8x32xf32>
      %177 = arith.mulf %175, %176 : vector<8x32xf32>
      %178 = arith.truncf %177 : vector<8x32xf32> to vector<8x32xbf16>
      %c0_128 = arith.constant 0 : index
      %c0_129 = arith.constant 0 : index
      %c0_130 = arith.constant 0 : index
      %179 = vector.load %arg7[%c0_128, %c0_129, %c0_130] : memref<1x8x128xbf16, #tpu.memory_space<vmem>>, vector<1x8x32xbf16>
      %180 = vector.shape_cast %179 : vector<1x8x32xbf16> to vector<8x32xbf16>
      %181 = vector.shape_cast %178 : vector<8x32xbf16> to vector<1x8x32xbf16>
      tpu.vector_store %arg7[%c0_128, %c0_129, %c0_130], %181 {strides = array<i32>} : memref<1x8x128xbf16, #tpu.memory_space<vmem>>, vector<1x8x32xbf16>,
      %c1_131 = arith.constant 1 : index
      %c0_132 = arith.constant 0 : index
      %c0_133 = arith.constant 0 : index
      %182 = vector.load %arg9[%c1_131, %c0_132, %c0_133] : memref<4x8x1xf32, #tpu.memory_space<vmem>>, vector<1x8x1xf32>
      %183 = vector.shape_cast %182 : vector<1x8x1xf32> to vector<8x1xf32>
      %184 = tpu.reciprocal %183 {approx = true} : vector<8x1xf32> -> vector<8x1xf32>
      %c0_134 = arith.constant 0 : index
      %c32_135 = arith.constant 32 : index
      %185 = vector.load %arg10[%c0_134, %c32_135] : memref<8x128xf32, #tpu.memory_space<vmem>>, vector<8x32xf32>
      %186 = vector.broadcast %184 : vector<8x1xf32> to vector<8x32xf32>
      %187 = arith.mulf %185, %186 : vector<8x32xf32>
      %188 = arith.truncf %187 : vector<8x32xf32> to vector<8x32xbf16>
      %c0_136 = arith.constant 0 : index
      %c0_137 = arith.constant 0 : index
      %c32_138 = arith.constant 32 : index
      %189 = vector.load %arg7[%c0_136, %c0_137, %c32_138] : memref<1x8x128xbf16, #tpu.memory_space<vmem>>, vector<1x8x32xbf16>
      %190 = vector.shape_cast %189 : vector<1x8x32xbf16> to vector<8x32xbf16>
      %191 = vector.shape_cast %188 : vector<8x32xbf16> to vector<1x8x32xbf16>
      tpu.vector_store %arg7[%c0_136, %c0_137, %c32_138], %191 {strides = array<i32>} : memref<1x8x128xbf16, #tpu.memory_space<vmem>>, vector<1x8x32xbf16>,
      %c2_139 = arith.constant 2 : index
      %c0_140 = arith.constant 0 : index
      %c0_141 = arith.constant 0 : index
      %192 = vector.load %arg9[%c2_139, %c0_140, %c0_141] : memref<4x8x1xf32, #tpu.memory_space<vmem>>, vector<1x8x1xf32>
      %193 = vector.shape_cast %192 : vector<1x8x1xf32> to vector<8x1xf32>
      %194 = tpu.reciprocal %193 {approx = true} : vector<8x1xf32> -> vector<8x1xf32>
      %c0_142 = arith.constant 0 : index
      %c64_143 = arith.constant 64 : index
      %195 = vector.load %arg10[%c0_142, %c64_143] : memref<8x128xf32, #tpu.memory_space<vmem>>, vector<8x32xf32>
      %196 = vector.broadcast %194 : vector<8x1xf32> to vector<8x32xf32>
      %197 = arith.mulf %195, %196 : vector<8x32xf32>
      %198 = arith.truncf %197 : vector<8x32xf32> to vector<8x32xbf16>
      %c0_144 = arith.constant 0 : index
      %c0_145 = arith.constant 0 : index
      %c64_146 = arith.constant 64 : index
      %199 = vector.load %arg7[%c0_144, %c0_145, %c64_146] : memref<1x8x128xbf16, #tpu.memory_space<vmem>>, vector<1x8x32xbf16>
      %200 = vector.shape_cast %199 : vector<1x8x32xbf16> to vector<8x32xbf16>
      %201 = vector.shape_cast %198 : vector<8x32xbf16> to vector<1x8x32xbf16>
      tpu.vector_store %arg7[%c0_144, %c0_145, %c64_146], %201 {strides = array<i32>} : memref<1x8x128xbf16, #tpu.memory_space<vmem>>, vector<1x8x32xbf16>,
      %c3_147 = arith.constant 3 : index
      %c0_148 = arith.constant 0 : index
      %c0_149 = arith.constant 0 : index
      %202 = vector.load %arg9[%c3_147, %c0_148, %c0_149] : memref<4x8x1xf32, #tpu.memory_space<vmem>>, vector<1x8x1xf32>
      %203 = vector.shape_cast %202 : vector<1x8x1xf32> to vector<8x1xf32>
      %204 = tpu.reciprocal %203 {approx = true} : vector<8x1xf32> -> vector<8x1xf32>
      %c0_150 = arith.constant 0 : index
      %c96_151 = arith.constant 96 : index
      %205 = vector.load %arg10[%c0_150, %c96_151] : memref<8x128xf32, #tpu.memory_space<vmem>>, vector<8x32xf32>
      %206 = vector.broadcast %204 : vector<8x1xf32> to vector<8x32xf32>
      %207 = arith.mulf %205, %206 : vector<8x32xf32>
      %208 = arith.truncf %207 : vector<8x32xf32> to vector<8x32xbf16>
      %c0_152 = arith.constant 0 : index
      %c0_153 = arith.constant 0 : index
      %c96_154 = arith.constant 96 : index
      %209 = vector.load %arg7[%c0_152, %c0_153, %c96_154] : memref<1x8x128xbf16, #tpu.memory_space<vmem>>, vector<1x8x32xbf16>
      %210 = vector.shape_cast %209 : vector<1x8x32xbf16> to vector<8x32xbf16>
      %211 = vector.shape_cast %208 : vector<8x32xbf16> to vector<1x8x32xbf16>
      tpu.vector_store %arg7[%c0_152, %c0_153, %c96_154], %211 {strides = array<i32>} : memref<1x8x128xbf16, #tpu.memory_space<vmem>>, vector<1x8x32xbf16>,
    } else {
    }
    return
  }
  func.func @transform_0(%arg0: i32, %arg1: i32, %arg2: i32) -> (i32, i32, i32) {
    %c0_i32 = arith.constant 0 : i32
    %c0_i32_0 = arith.constant 0 : i32
    return %arg0, %arg1, %c0_i32 : i32, i32, i32
  }
  func.func @transform_1(%arg0: i32, %arg1: i32, %arg2: i32) -> (i32, i32, i32) {
    %c1_i32 = arith.constant 1 : i32
    %c0_i32 = arith.constant 0 : i32
    return %arg0, %arg2, %c1_i32 : i32, i32, i32
  }
  func.func @transform_2(%arg0: i32, %arg1: i32, %arg2: i32) -> (i32, i32, i32) {
    %c2_i32 = arith.constant 2 : i32
    %c0_i32 = arith.constant 0 : i32
    return %arg0, %arg2, %c2_i32 : i32, i32, i32
  }
  func.func @transform_3(%arg0: i32, %arg1: i32, %arg2: i32) -> (i32, i32, i32) {
    %c0_i32 = arith.constant 0 : i32
    %c0_i32_0 = arith.constant 0 : i32
    return %arg0, %c0_i32, %arg2 : i32, i32, i32
  }
  func.func @transform_4(%arg0: i32, %arg1: i32, %arg2: i32) -> (i32, i32, i32) {
    %c0_i32 = arith.constant 0 : i32
    %c0_i32_0 = arith.constant 0 : i32
    return %arg0, %arg1, %c0_i32 : i32, i32, i32
  }
}

module attributes {stable_mosaic.version = 11 : i64} {
  func.func @_matmul_add_ln_kernel(%arg0: i32, %arg1: i32, %arg2: memref<16x128xbf16, #tpu.memory_space<vmem>>, %arg3: memref<128x128xbf16, #tpu.memory_space<vmem>>, %arg4: memref<1x128xf32, #tpu.memory_space<vmem>>, %arg5: memref<16x128xf32, #tpu.memory_space<vmem>>, %arg6: memref<1x128xf32, #tpu.memory_space<vmem>>, %arg7: memref<1x128xf32, #tpu.memory_space<vmem>>, %arg8: memref<16x128xf32, #tpu.memory_space<vmem>>, %arg9: memref<16x128xf32, #tpu.memory_space<vmem>>) attributes {dimension_semantics = [#tpu.dimension_semantics<parallel>, #tpu.dimension_semantics<arbitrary>], iteration_bounds = array<i64: 1, 1>, scalar_prefetch = 0 : i64, scratch_operands = 1 : i64, tpu.core_type = #tpu.core_type<tc>, window_params = [{transform_indices = @transform_0, window_bounds = array<i64: 16, 128>}, {transform_indices = @transform_1, window_bounds = array<i64: 128, 128>}, {pipeline_mode = #tpu.pipeline_mode<synchronous>, transform_indices = @transform_2, window_bounds = array<i64: 1, 128>}, {transform_indices = @transform_3, window_bounds = array<i64: 16, 128>}, {pipeline_mode = #tpu.pipeline_mode<synchronous>, transform_indices = @transform_4, window_bounds = array<i64: 1, 128>}, {pipeline_mode = #tpu.pipeline_mode<synchronous>, transform_indices = @transform_5, window_bounds = array<i64: 1, 128>}, {transform_indices = @transform_6, window_bounds = array<i64: 16, 128>}]} {
    %c0_i32 = arith.constant 0 : i32
    %0 = arith.cmpi eq, %arg1, %c0_i32 : i32
    %1 = arith.extui %0 : i1 to i32
    %c0_i32_0 = arith.constant 0 : i32
    %2 = arith.cmpi ne, %1, %c0_i32_0 : i32
    scf.if %2 {
      %cst_10 = arith.constant 0.000000e+00 : f32
      %12 = vector.broadcast %cst_10 : f32 to vector<16x128xf32>
      %c0_11 = arith.constant 0 : index
      %c0_12 = arith.constant 0 : index
      %13 = vector.load %arg9[%c0_11, %c0_12] : memref<16x128xf32, #tpu.memory_space<vmem>>, vector<16x128xf32>
      tpu.vector_store %arg9[%c0_11, %c0_12], %12 {strides = array<i32>} : memref<16x128xf32, #tpu.memory_space<vmem>>, vector<16x128xf32>,
    } else {
    }
    %c0 = arith.constant 0 : index
    %c0_1 = arith.constant 0 : index
    %3 = vector.load %arg9[%c0, %c0_1] : memref<16x128xf32, #tpu.memory_space<vmem>>, vector<16x128xf32>
    %c0_2 = arith.constant 0 : index
    %c0_3 = arith.constant 0 : index
    %4 = vector.load %arg2[%c0_2, %c0_3] : memref<16x128xbf16, #tpu.memory_space<vmem>>, vector<16x128xbf16>
    %c0_4 = arith.constant 0 : index
    %c0_5 = arith.constant 0 : index
    %5 = vector.load %arg3[%c0_4, %c0_5] : memref<128x128xbf16, #tpu.memory_space<vmem>>, vector<128x128xbf16>
    %cst = arith.constant dense<0.000000e+00> : vector<16x128xf32>
    %6 = tpu.matmul %4, %5, %cst {dimension_numbers = #tpu.dot_dimension_numbers<[1], [0], [0], [1], [0, 0, 1, 1], [], []>} : vector<16x128xbf16>, vector<128x128xbf16>, vector<16x128xf32> -> vector<16x128xf32>
    %7 = arith.addf %3, %6 : vector<16x128xf32>
    %c0_6 = arith.constant 0 : index
    %c0_7 = arith.constant 0 : index
    %8 = vector.load %arg9[%c0_6, %c0_7] : memref<16x128xf32, #tpu.memory_space<vmem>>, vector<16x128xf32>
    tpu.vector_store %arg9[%c0_6, %c0_7], %7 {strides = array<i32>} : memref<16x128xf32, #tpu.memory_space<vmem>>, vector<16x128xf32>,
    %c0_i32_8 = arith.constant 0 : i32
    %9 = arith.cmpi eq, %arg1, %c0_i32_8 : i32
    %10 = arith.extui %9 : i1 to i32
    %c0_i32_9 = arith.constant 0 : i32
    %11 = arith.cmpi ne, %10, %c0_i32_9 : i32
    scf.if %11 {
      %c0_10 = arith.constant 0 : index
      %c0_11 = arith.constant 0 : index
      %12 = vector.load %arg9[%c0_10, %c0_11] : memref<16x128xf32, #tpu.memory_space<vmem>>, vector<16x128xf32>
      %c0_12 = arith.constant 0 : index
      %c0_13 = arith.constant 0 : index
      %13 = vector.load %arg4[%c0_12, %c0_13] : memref<1x128xf32, #tpu.memory_space<vmem>>, vector<1x128xf32>
      %14 = vector.broadcast %13 : vector<1x128xf32> to vector<16x128xf32>
      %15 = arith.addf %12, %14 : vector<16x128xf32>
      %c0_14 = arith.constant 0 : index
      %c0_15 = arith.constant 0 : index
      %16 = vector.load %arg5[%c0_14, %c0_15] : memref<16x128xf32, #tpu.memory_space<vmem>>, vector<16x128xf32>
      %17 = arith.addf %15, %16 : vector<16x128xf32>
      %cst_16 = arith.constant dense<0.000000e+00> : vector<16xf32>
      %18 = vector.multi_reduction <add>, %17, %cst_16 [1] : vector<16x128xf32> to vector<16xf32>
      %19 = vector.shape_cast %18 : vector<16xf32> to vector<16x1xf32>
      %cst_17 = arith.constant 1.280000e+02 : f32
      %20 = vector.broadcast %cst_17 : f32 to vector<16x1xf32>
      %21 = arith.divf %19, %20 : vector<16x1xf32>
      %22 = vector.broadcast %21 : vector<16x1xf32> to vector<16x128xf32>
      %23 = arith.subf %17, %22 : vector<16x128xf32>
      %24 = arith.mulf %23, %23 : vector<16x128xf32>
      %cst_18 = arith.constant dense<0.000000e+00> : vector<16xf32>
      %25 = vector.multi_reduction <add>, %24, %cst_18 [1] : vector<16x128xf32> to vector<16xf32>
      %26 = vector.shape_cast %25 : vector<16xf32> to vector<16x1xf32>
      %cst_19 = arith.constant 1.280000e+02 : f32
      %27 = vector.broadcast %cst_19 : f32 to vector<16x1xf32>
      %28 = arith.divf %26, %27 : vector<16x1xf32>
      %29 = vector.broadcast %21 : vector<16x1xf32> to vector<16x128xf32>
      %30 = arith.subf %17, %29 : vector<16x128xf32>
      %cst_20 = arith.constant 9.99999974E-6 : f32
      %31 = vector.broadcast %cst_20 : f32 to vector<16x1xf32>
      %32 = arith.addf %28, %31 : vector<16x1xf32>
      %33 = math.rsqrt %32 : vector<16x1xf32>
      %34 = vector.broadcast %33 : vector<16x1xf32> to vector<16x128xf32>
      %35 = arith.mulf %30, %34 : vector<16x128xf32>
      %c0_21 = arith.constant 0 : index
      %c0_22 = arith.constant 0 : index
      %36 = vector.load %arg6[%c0_21, %c0_22] : memref<1x128xf32, #tpu.memory_space<vmem>>, vector<1x128xf32>
      %37 = vector.broadcast %36 : vector<1x128xf32> to vector<16x128xf32>
      %38 = arith.mulf %35, %37 : vector<16x128xf32>
      %c0_23 = arith.constant 0 : index
      %c0_24 = arith.constant 0 : index
      %39 = vector.load %arg7[%c0_23, %c0_24] : memref<1x128xf32, #tpu.memory_space<vmem>>, vector<1x128xf32>
      %40 = vector.broadcast %39 : vector<1x128xf32> to vector<16x128xf32>
      %41 = arith.addf %38, %40 : vector<16x128xf32>
      %c0_25 = arith.constant 0 : index
      %c0_26 = arith.constant 0 : index
      %42 = vector.load %arg8[%c0_25, %c0_26] : memref<16x128xf32, #tpu.memory_space<vmem>>, vector<16x128xf32>
      tpu.vector_store %arg8[%c0_25, %c0_26], %41 {strides = array<i32>} : memref<16x128xf32, #tpu.memory_space<vmem>>, vector<16x128xf32>,
    } else {
    }
    return
  }
  func.func @transform_0(%arg0: i32, %arg1: i32) -> (i32, i32) {
    %c0_i32 = arith.constant 0 : i32
    return %arg0, %arg1 : i32, i32
  }
  func.func @transform_1(%arg0: i32, %arg1: i32) -> (i32, i32) {
    %c0_i32 = arith.constant 0 : i32
    %c0_i32_0 = arith.constant 0 : i32
    return %arg1, %c0_i32 : i32, i32
  }
  func.func @transform_2(%arg0: i32, %arg1: i32) -> (i32, i32) {
    %c0_i32 = arith.constant 0 : i32
    %c0_i32_0 = arith.constant 0 : i32
    %c0_i32_1 = arith.constant 0 : i32
    return %c0_i32, %c0_i32_0 : i32, i32
  }
  func.func @transform_3(%arg0: i32, %arg1: i32) -> (i32, i32) {
    %c0_i32 = arith.constant 0 : i32
    %c0_i32_0 = arith.constant 0 : i32
    return %arg0, %c0_i32 : i32, i32
  }
  func.func @transform_4(%arg0: i32, %arg1: i32) -> (i32, i32) {
    %c0_i32 = arith.constant 0 : i32
    %c0_i32_0 = arith.constant 0 : i32
    %c0_i32_1 = arith.constant 0 : i32
    return %c0_i32, %c0_i32_0 : i32, i32
  }
  func.func @transform_5(%arg0: i32, %arg1: i32) -> (i32, i32) {
    %c0_i32 = arith.constant 0 : i32
    %c0_i32_0 = arith.constant 0 : i32
    %c0_i32_1 = arith.constant 0 : i32
    return %c0_i32, %c0_i32_0 : i32, i32
  }
  func.func @transform_6(%arg0: i32, %arg1: i32) -> (i32, i32) {
    %c0_i32 = arith.constant 0 : i32
    %c0_i32_0 = arith.constant 0 : i32
    return %arg0, %c0_i32 : i32, i32
  }
}

module attributes {stable_mosaic.version = 11 : i64} {
  func.func @_matmul_bias_kernel(%arg0: i32, %arg1: i32, %arg2: i32, %arg3: memref<16x128xbf16, #tpu.memory_space<vmem>>, %arg4: memref<128x256xbf16, #tpu.memory_space<vmem>>, %arg5: memref<1x256xf32, #tpu.memory_space<vmem>>, %arg6: memref<16x256xbf16, #tpu.memory_space<vmem>>, %arg7: memref<16x256xf32, #tpu.memory_space<vmem>>) attributes {dimension_semantics = [#tpu.dimension_semantics<parallel>, #tpu.dimension_semantics<parallel>, #tpu.dimension_semantics<arbitrary>], iteration_bounds = array<i64: 1, 1, 1>, scalar_prefetch = 0 : i64, scratch_operands = 1 : i64, tpu.core_type = #tpu.core_type<tc>, window_params = [{transform_indices = @transform_0, window_bounds = array<i64: 16, 128>}, {transform_indices = @transform_1, window_bounds = array<i64: 128, 256>}, {transform_indices = @transform_2, window_bounds = array<i64: 1, 256>}, {transform_indices = @transform_3, window_bounds = array<i64: 16, 256>}]} {
    %c0_i32 = arith.constant 0 : i32
    %0 = arith.cmpi eq, %arg2, %c0_i32 : i32
    %1 = arith.extui %0 : i1 to i32
    %c0_i32_0 = arith.constant 0 : i32
    %2 = arith.cmpi ne, %1, %c0_i32_0 : i32
    scf.if %2 {
      %cst_10 = arith.constant 0.000000e+00 : f32
      %12 = vector.broadcast %cst_10 : f32 to vector<16x256xf32>
      %c0_11 = arith.constant 0 : index
      %c0_12 = arith.constant 0 : index
      %13 = vector.load %arg7[%c0_11, %c0_12] : memref<16x256xf32, #tpu.memory_space<vmem>>, vector<16x256xf32>
      tpu.vector_store %arg7[%c0_11, %c0_12], %12 {strides = array<i32>} : memref<16x256xf32, #tpu.memory_space<vmem>>, vector<16x256xf32>,
    } else {
    }
    %c0 = arith.constant 0 : index
    %c0_1 = arith.constant 0 : index
    %3 = vector.load %arg7[%c0, %c0_1] : memref<16x256xf32, #tpu.memory_space<vmem>>, vector<16x256xf32>
    %c0_2 = arith.constant 0 : index
    %c0_3 = arith.constant 0 : index
    %4 = vector.load %arg3[%c0_2, %c0_3] : memref<16x128xbf16, #tpu.memory_space<vmem>>, vector<16x128xbf16>
    %c0_4 = arith.constant 0 : index
    %c0_5 = arith.constant 0 : index
    %5 = vector.load %arg4[%c0_4, %c0_5] : memref<128x256xbf16, #tpu.memory_space<vmem>>, vector<128x256xbf16>
    %cst = arith.constant dense<0.000000e+00> : vector<16x256xf32>
    %6 = tpu.matmul %4, %5, %cst {dimension_numbers = #tpu.dot_dimension_numbers<[1], [0], [0], [1], [0, 0, 1, 1], [], []>} : vector<16x128xbf16>, vector<128x256xbf16>, vector<16x256xf32> -> vector<16x256xf32>
    %7 = arith.addf %3, %6 : vector<16x256xf32>
    %c0_6 = arith.constant 0 : index
    %c0_7 = arith.constant 0 : index
    %8 = vector.load %arg7[%c0_6, %c0_7] : memref<16x256xf32, #tpu.memory_space<vmem>>, vector<16x256xf32>
    tpu.vector_store %arg7[%c0_6, %c0_7], %7 {strides = array<i32>} : memref<16x256xf32, #tpu.memory_space<vmem>>, vector<16x256xf32>,
    %c0_i32_8 = arith.constant 0 : i32
    %9 = arith.cmpi eq, %arg2, %c0_i32_8 : i32
    %10 = arith.extui %9 : i1 to i32
    %c0_i32_9 = arith.constant 0 : i32
    %11 = arith.cmpi ne, %10, %c0_i32_9 : i32
    scf.if %11 {
      %c0_10 = arith.constant 0 : index
      %c0_11 = arith.constant 0 : index
      %12 = vector.load %arg7[%c0_10, %c0_11] : memref<16x256xf32, #tpu.memory_space<vmem>>, vector<16x256xf32>
      %c0_12 = arith.constant 0 : index
      %c0_13 = arith.constant 0 : index
      %13 = vector.load %arg5[%c0_12, %c0_13] : memref<1x256xf32, #tpu.memory_space<vmem>>, vector<1x256xf32>
      %14 = vector.broadcast %13 : vector<1x256xf32> to vector<16x256xf32>
      %15 = arith.addf %12, %14 : vector<16x256xf32>
      %cst_14 = arith.constant 0.000000e+00 : f32
      %16 = vector.broadcast %cst_14 : f32 to vector<16x256xf32>
      %17 = arith.maximumf %15, %16 : vector<16x256xf32>
      %18 = arith.truncf %17 : vector<16x256xf32> to vector<16x256xbf16>
      %c0_15 = arith.constant 0 : index
      %c0_16 = arith.constant 0 : index
      %19 = vector.load %arg6[%c0_15, %c0_16] : memref<16x256xbf16, #tpu.memory_space<vmem>>, vector<16x256xbf16>
      tpu.vector_store %arg6[%c0_15, %c0_16], %18 {strides = array<i32>} : memref<16x256xbf16, #tpu.memory_space<vmem>>, vector<16x256xbf16>,
    } else {
    }
    return
  }
  func.func @transform_0(%arg0: i32, %arg1: i32, %arg2: i32) -> (i32, i32) {
    %c0_i32 = arith.constant 0 : i32
    return %arg0, %arg2 : i32, i32
  }
  func.func @transform_1(%arg0: i32, %arg1: i32, %arg2: i32) -> (i32, i32) {
    %c0_i32 = arith.constant 0 : i32
    return %arg2, %arg1 : i32, i32
  }
  func.func @transform_2(%arg0: i32, %arg1: i32, %arg2: i32) -> (i32, i32) {
    %c0_i32 = arith.constant 0 : i32
    %c0_i32_0 = arith.constant 0 : i32
    return %c0_i32, %arg1 : i32, i32
  }
  func.func @transform_3(%arg0: i32, %arg1: i32, %arg2: i32) -> (i32, i32) {
    %c0_i32 = arith.constant 0 : i32
    return %arg0, %arg1 : i32, i32
  }
}

module attributes {stable_mosaic.version = 11 : i64} {
  func.func @_matmul_add_ln_kernel(%arg0: i32, %arg1: i32, %arg2: memref<16x256xbf16, #tpu.memory_space<vmem>>, %arg3: memref<256x128xbf16, #tpu.memory_space<vmem>>, %arg4: memref<1x128xf32, #tpu.memory_space<vmem>>, %arg5: memref<16x128xf32, #tpu.memory_space<vmem>>, %arg6: memref<1x128xf32, #tpu.memory_space<vmem>>, %arg7: memref<1x128xf32, #tpu.memory_space<vmem>>, %arg8: memref<16x128xf32, #tpu.memory_space<vmem>>, %arg9: memref<16x128xf32, #tpu.memory_space<vmem>>) attributes {dimension_semantics = [#tpu.dimension_semantics<parallel>, #tpu.dimension_semantics<arbitrary>], iteration_bounds = array<i64: 1, 1>, scalar_prefetch = 0 : i64, scratch_operands = 1 : i64, tpu.core_type = #tpu.core_type<tc>, window_params = [{transform_indices = @transform_0, window_bounds = array<i64: 16, 256>}, {transform_indices = @transform_1, window_bounds = array<i64: 256, 128>}, {pipeline_mode = #tpu.pipeline_mode<synchronous>, transform_indices = @transform_2, window_bounds = array<i64: 1, 128>}, {transform_indices = @transform_3, window_bounds = array<i64: 16, 128>}, {pipeline_mode = #tpu.pipeline_mode<synchronous>, transform_indices = @transform_4, window_bounds = array<i64: 1, 128>}, {pipeline_mode = #tpu.pipeline_mode<synchronous>, transform_indices = @transform_5, window_bounds = array<i64: 1, 128>}, {transform_indices = @transform_6, window_bounds = array<i64: 16, 128>}]} {
    %c0_i32 = arith.constant 0 : i32
    %0 = arith.cmpi eq, %arg1, %c0_i32 : i32
    %1 = arith.extui %0 : i1 to i32
    %c0_i32_0 = arith.constant 0 : i32
    %2 = arith.cmpi ne, %1, %c0_i32_0 : i32
    scf.if %2 {
      %cst_10 = arith.constant 0.000000e+00 : f32
      %12 = vector.broadcast %cst_10 : f32 to vector<16x128xf32>
      %c0_11 = arith.constant 0 : index
      %c0_12 = arith.constant 0 : index
      %13 = vector.load %arg9[%c0_11, %c0_12] : memref<16x128xf32, #tpu.memory_space<vmem>>, vector<16x128xf32>
      tpu.vector_store %arg9[%c0_11, %c0_12], %12 {strides = array<i32>} : memref<16x128xf32, #tpu.memory_space<vmem>>, vector<16x128xf32>,
    } else {
    }
    %c0 = arith.constant 0 : index
    %c0_1 = arith.constant 0 : index
    %3 = vector.load %arg9[%c0, %c0_1] : memref<16x128xf32, #tpu.memory_space<vmem>>, vector<16x128xf32>
    %c0_2 = arith.constant 0 : index
    %c0_3 = arith.constant 0 : index
    %4 = vector.load %arg2[%c0_2, %c0_3] : memref<16x256xbf16, #tpu.memory_space<vmem>>, vector<16x256xbf16>
    %c0_4 = arith.constant 0 : index
    %c0_5 = arith.constant 0 : index
    %5 = vector.load %arg3[%c0_4, %c0_5] : memref<256x128xbf16, #tpu.memory_space<vmem>>, vector<256x128xbf16>
    %cst = arith.constant dense<0.000000e+00> : vector<16x128xf32>
    %6 = tpu.matmul %4, %5, %cst {dimension_numbers = #tpu.dot_dimension_numbers<[1], [0], [0], [1], [0, 0, 1, 1], [], []>} : vector<16x256xbf16>, vector<256x128xbf16>, vector<16x128xf32> -> vector<16x128xf32>
    %7 = arith.addf %3, %6 : vector<16x128xf32>
    %c0_6 = arith.constant 0 : index
    %c0_7 = arith.constant 0 : index
    %8 = vector.load %arg9[%c0_6, %c0_7] : memref<16x128xf32, #tpu.memory_space<vmem>>, vector<16x128xf32>
    tpu.vector_store %arg9[%c0_6, %c0_7], %7 {strides = array<i32>} : memref<16x128xf32, #tpu.memory_space<vmem>>, vector<16x128xf32>,
    %c0_i32_8 = arith.constant 0 : i32
    %9 = arith.cmpi eq, %arg1, %c0_i32_8 : i32
    %10 = arith.extui %9 : i1 to i32
    %c0_i32_9 = arith.constant 0 : i32
    %11 = arith.cmpi ne, %10, %c0_i32_9 : i32
    scf.if %11 {
      %c0_10 = arith.constant 0 : index
      %c0_11 = arith.constant 0 : index
      %12 = vector.load %arg9[%c0_10, %c0_11] : memref<16x128xf32, #tpu.memory_space<vmem>>, vector<16x128xf32>
      %c0_12 = arith.constant 0 : index
      %c0_13 = arith.constant 0 : index
      %13 = vector.load %arg4[%c0_12, %c0_13] : memref<1x128xf32, #tpu.memory_space<vmem>>, vector<1x128xf32>
      %14 = vector.broadcast %13 : vector<1x128xf32> to vector<16x128xf32>
      %15 = arith.addf %12, %14 : vector<16x128xf32>
      %c0_14 = arith.constant 0 : index
      %c0_15 = arith.constant 0 : index
      %16 = vector.load %arg5[%c0_14, %c0_15] : memref<16x128xf32, #tpu.memory_space<vmem>>, vector<16x128xf32>
      %17 = arith.addf %15, %16 : vector<16x128xf32>
      %cst_16 = arith.constant dense<0.000000e+00> : vector<16xf32>
      %18 = vector.multi_reduction <add>, %17, %cst_16 [1] : vector<16x128xf32> to vector<16xf32>
      %19 = vector.shape_cast %18 : vector<16xf32> to vector<16x1xf32>
      %cst_17 = arith.constant 1.280000e+02 : f32
      %20 = vector.broadcast %cst_17 : f32 to vector<16x1xf32>
      %21 = arith.divf %19, %20 : vector<16x1xf32>
      %22 = vector.broadcast %21 : vector<16x1xf32> to vector<16x128xf32>
      %23 = arith.subf %17, %22 : vector<16x128xf32>
      %24 = arith.mulf %23, %23 : vector<16x128xf32>
      %cst_18 = arith.constant dense<0.000000e+00> : vector<16xf32>
      %25 = vector.multi_reduction <add>, %24, %cst_18 [1] : vector<16x128xf32> to vector<16xf32>
      %26 = vector.shape_cast %25 : vector<16xf32> to vector<16x1xf32>
      %cst_19 = arith.constant 1.280000e+02 : f32
      %27 = vector.broadcast %cst_19 : f32 to vector<16x1xf32>
      %28 = arith.divf %26, %27 : vector<16x1xf32>
      %29 = vector.broadcast %21 : vector<16x1xf32> to vector<16x128xf32>
      %30 = arith.subf %17, %29 : vector<16x128xf32>
      %cst_20 = arith.constant 9.99999974E-6 : f32
      %31 = vector.broadcast %cst_20 : f32 to vector<16x1xf32>
      %32 = arith.addf %28, %31 : vector<16x1xf32>
      %33 = math.rsqrt %32 : vector<16x1xf32>
      %34 = vector.broadcast %33 : vector<16x1xf32> to vector<16x128xf32>
      %35 = arith.mulf %30, %34 : vector<16x128xf32>
      %c0_21 = arith.constant 0 : index
      %c0_22 = arith.constant 0 : index
      %36 = vector.load %arg6[%c0_21, %c0_22] : memref<1x128xf32, #tpu.memory_space<vmem>>, vector<1x128xf32>
      %37 = vector.broadcast %36 : vector<1x128xf32> to vector<16x128xf32>
      %38 = arith.mulf %35, %37 : vector<16x128xf32>
      %c0_23 = arith.constant 0 : index
      %c0_24 = arith.constant 0 : index
      %39 = vector.load %arg7[%c0_23, %c0_24] : memref<1x128xf32, #tpu.memory_space<vmem>>, vector<1x128xf32>
      %40 = vector.broadcast %39 : vector<1x128xf32> to vector<16x128xf32>
      %41 = arith.addf %38, %40 : vector<16x128xf32>
      %c0_25 = arith.constant 0 : index
      %c0_26 = arith.constant 0 : index
      %42 = vector.load %arg8[%c0_25, %c0_26] : memref<16x128xf32, #tpu.memory_space<vmem>>, vector<16x128xf32>
      tpu.vector_store %arg8[%c0_25, %c0_26], %41 {strides = array<i32>} : memref<16x128xf32, #tpu.memory_space<vmem>>, vector<16x128xf32>,
    } else {
    }
    return
  }
  func.func @transform_0(%arg0: i32, %arg1: i32) -> (i32, i32) {
    %c0_i32 = arith.constant 0 : i32
    return %arg0, %arg1 : i32, i32
  }
  func.func @transform_1(%arg0: i32, %arg1: i32) -> (i32, i32) {
    %c0_i32 = arith.constant 0 : i32
    %c0_i32_0 = arith.constant 0 : i32
    return %arg1, %c0_i32 : i32, i32
  }
  func.func @transform_2(%arg0: i32, %arg1: i32) -> (i32, i32) {
    %c0_i32 = arith.constant 0 : i32
    %c0_i32_0 = arith.constant 0 : i32
    %c0_i32_1 = arith.constant 0 : i32
    return %c0_i32, %c0_i32_0 : i32, i32
  }
  func.func @transform_3(%arg0: i32, %arg1: i32) -> (i32, i32) {
    %c0_i32 = arith.constant 0 : i32
    %c0_i32_0 = arith.constant 0 : i32
    return %arg0, %c0_i32 : i32, i32
  }
  func.func @transform_4(%arg0: i32, %arg1: i32) -> (i32, i32) {
    %c0_i32 = arith.constant 0 : i32
    %c0_i32_0 = arith.constant 0 : i32
    %c0_i32_1 = arith.constant 0 : i32
    return %c0_i32, %c0_i32_0 : i32, i32
  }
  func.func @transform_5(%arg0: i32, %arg1: i32) -> (i32, i32) {
    %c0_i32 = arith.constant 0 : i32
    %c0_i32_0 = arith.constant 0 : i32
    %c0_i32_1 = arith.constant 0 : i32
    return %c0_i32, %c0_i32_0 : i32, i32
  }
  func.func @transform_6(%arg0: i32, %arg1: i32) -> (i32, i32) {
    %c0_i32 = arith.constant 0 : i32
    %c0_i32_0 = arith.constant 0 : i32
    return %arg0, %c0_i32 : i32, i32
  }
}

module attributes {stable_mosaic.version = 11 : i64} {
  func.func @_matmul_bias_kernel(%arg0: i32, %arg1: i32, %arg2: i32, %arg3: memref<16x128xbf16, #tpu.memory_space<vmem>>, %arg4: memref<128x256xbf16, #tpu.memory_space<vmem>>, %arg5: memref<1x256xf32, #tpu.memory_space<vmem>>, %arg6: memref<16x256xbf16, #tpu.memory_space<vmem>>, %arg7: memref<16x256xf32, #tpu.memory_space<vmem>>) attributes {dimension_semantics = [#tpu.dimension_semantics<parallel>, #tpu.dimension_semantics<parallel>, #tpu.dimension_semantics<arbitrary>], iteration_bounds = array<i64: 1, 1, 1>, scalar_prefetch = 0 : i64, scratch_operands = 1 : i64, tpu.core_type = #tpu.core_type<tc>, window_params = [{transform_indices = @transform_0, window_bounds = array<i64: 16, 128>}, {transform_indices = @transform_1, window_bounds = array<i64: 128, 256>}, {transform_indices = @transform_2, window_bounds = array<i64: 1, 256>}, {transform_indices = @transform_3, window_bounds = array<i64: 16, 256>}]} {
    %c0_i32 = arith.constant 0 : i32
    %0 = arith.cmpi eq, %arg2, %c0_i32 : i32
    %1 = arith.extui %0 : i1 to i32
    %c0_i32_0 = arith.constant 0 : i32
    %2 = arith.cmpi ne, %1, %c0_i32_0 : i32
    scf.if %2 {
      %cst_10 = arith.constant 0.000000e+00 : f32
      %12 = vector.broadcast %cst_10 : f32 to vector<16x256xf32>
      %c0_11 = arith.constant 0 : index
      %c0_12 = arith.constant 0 : index
      %13 = vector.load %arg7[%c0_11, %c0_12] : memref<16x256xf32, #tpu.memory_space<vmem>>, vector<16x256xf32>
      tpu.vector_store %arg7[%c0_11, %c0_12], %12 {strides = array<i32>} : memref<16x256xf32, #tpu.memory_space<vmem>>, vector<16x256xf32>,
    } else {
    }
    %c0 = arith.constant 0 : index
    %c0_1 = arith.constant 0 : index
    %3 = vector.load %arg7[%c0, %c0_1] : memref<16x256xf32, #tpu.memory_space<vmem>>, vector<16x256xf32>
    %c0_2 = arith.constant 0 : index
    %c0_3 = arith.constant 0 : index
    %4 = vector.load %arg3[%c0_2, %c0_3] : memref<16x128xbf16, #tpu.memory_space<vmem>>, vector<16x128xbf16>
    %c0_4 = arith.constant 0 : index
    %c0_5 = arith.constant 0 : index
    %5 = vector.load %arg4[%c0_4, %c0_5] : memref<128x256xbf16, #tpu.memory_space<vmem>>, vector<128x256xbf16>
    %cst = arith.constant dense<0.000000e+00> : vector<16x256xf32>
    %6 = tpu.matmul %4, %5, %cst {dimension_numbers = #tpu.dot_dimension_numbers<[1], [0], [0], [1], [0, 0, 1, 1], [], []>} : vector<16x128xbf16>, vector<128x256xbf16>, vector<16x256xf32> -> vector<16x256xf32>
    %7 = arith.addf %3, %6 : vector<16x256xf32>
    %c0_6 = arith.constant 0 : index
    %c0_7 = arith.constant 0 : index
    %8 = vector.load %arg7[%c0_6, %c0_7] : memref<16x256xf32, #tpu.memory_space<vmem>>, vector<16x256xf32>
    tpu.vector_store %arg7[%c0_6, %c0_7], %7 {strides = array<i32>} : memref<16x256xf32, #tpu.memory_space<vmem>>, vector<16x256xf32>,
    %c0_i32_8 = arith.constant 0 : i32
    %9 = arith.cmpi eq, %arg2, %c0_i32_8 : i32
    %10 = arith.extui %9 : i1 to i32
    %c0_i32_9 = arith.constant 0 : i32
    %11 = arith.cmpi ne, %10, %c0_i32_9 : i32
    scf.if %11 {
      %c0_10 = arith.constant 0 : index
      %c0_11 = arith.constant 0 : index
      %12 = vector.load %arg7[%c0_10, %c0_11] : memref<16x256xf32, #tpu.memory_space<vmem>>, vector<16x256xf32>
      %c0_12 = arith.constant 0 : index
      %c0_13 = arith.constant 0 : index
      %13 = vector.load %arg5[%c0_12, %c0_13] : memref<1x256xf32, #tpu.memory_space<vmem>>, vector<1x256xf32>
      %14 = vector.broadcast %13 : vector<1x256xf32> to vector<16x256xf32>
      %15 = arith.addf %12, %14 : vector<16x256xf32>
      %16 = arith.truncf %15 : vector<16x256xf32> to vector<16x256xbf16>
      %c0_14 = arith.constant 0 : index
      %c0_15 = arith.constant 0 : index
      %17 = vector.load %arg6[%c0_14, %c0_15] : memref<16x256xbf16, #tpu.memory_space<vmem>>, vector<16x256xbf16>
      tpu.vector_store %arg6[%c0_14, %c0_15], %16 {strides = array<i32>} : memref<16x256xbf16, #tpu.memory_space<vmem>>, vector<16x256xbf16>,
    } else {
    }
    return
  }
  func.func @transform_0(%arg0: i32, %arg1: i32, %arg2: i32) -> (i32, i32) {
    %c0_i32 = arith.constant 0 : i32
    return %arg0, %arg2 : i32, i32
  }
  func.func @transform_1(%arg0: i32, %arg1: i32, %arg2: i32) -> (i32, i32) {
    %c0_i32 = arith.constant 0 : i32
    return %arg2, %arg1 : i32, i32
  }
  func.func @transform_2(%arg0: i32, %arg1: i32, %arg2: i32) -> (i32, i32) {
    %c0_i32 = arith.constant 0 : i32
    %c0_i32_0 = arith.constant 0 : i32
    return %c0_i32, %arg1 : i32, i32
  }
  func.func @transform_3(%arg0: i32, %arg1: i32, %arg2: i32) -> (i32, i32) {
    %c0_i32 = arith.constant 0 : i32
    return %arg0, %arg1 : i32, i32
  }
}

module attributes {stable_mosaic.version = 11 : i64} {
  func.func @_flash_attention_kernel(%arg0: i32, %arg1: i32, %arg2: i32, %arg3: memref<1x7x128xbf16, #tpu.memory_space<vmem>>, %arg4: memref<1x8x128xbf16, #tpu.memory_space<vmem>>, %arg5: memref<1x8x128xbf16, #tpu.memory_space<vmem>>, %arg6: memref<1x1x8xf32, #tpu.memory_space<vmem>>, %arg7: memref<1x7x128xbf16, #tpu.memory_space<vmem>>, %arg8: memref<4x7x1xf32, #tpu.memory_space<vmem>>, %arg9: memref<4x7x1xf32, #tpu.memory_space<vmem>>, %arg10: memref<7x128xf32, #tpu.memory_space<vmem>>) attributes {dimension_semantics = [#tpu.dimension_semantics<parallel>, #tpu.dimension_semantics<parallel>, #tpu.dimension_semantics<arbitrary>], iteration_bounds = array<i64: 2, 1, 1>, scalar_prefetch = 0 : i64, scratch_operands = 3 : i64, tpu.core_type = #tpu.core_type<tc>, window_params = [{transform_indices = @transform_0, window_bounds = array<i64: 1, 7, 128>}, {transform_indices = @transform_1, window_bounds = array<i64: 1, 8, 128>}, {transform_indices = @transform_2, window_bounds = array<i64: 1, 8, 128>}, {transform_indices = @transform_3, window_bounds = array<i64: 1, 1, 8>}, {transform_indices = @transform_4, window_bounds = array<i64: 1, 7, 128>}]} {
    %c0_i32 = arith.constant 0 : i32
    %0 = arith.cmpi eq, %arg2, %c0_i32 : i32
    %1 = arith.extui %0 : i1 to i32
    %c0_i32_0 = arith.constant 0 : i32
    %2 = arith.cmpi ne, %1, %c0_i32_0 : i32
    scf.if %2 {
      %cst_123 = arith.constant 0xFF800000 : f32
      %172 = vector.broadcast %cst_123 : f32 to vector<4x7x1xf32>
      %c0_124 = arith.constant 0 : index
      %c0_125 = arith.constant 0 : index
      %c0_126 = arith.constant 0 : index
      %173 = vector.load %arg8[%c0_124, %c0_125, %c0_126] : memref<4x7x1xf32, #tpu.memory_space<vmem>>, vector<4x7x1xf32>
      tpu.vector_store %arg8[%c0_124, %c0_125, %c0_126], %172 {strides = array<i32>} : memref<4x7x1xf32, #tpu.memory_space<vmem>>, vector<4x7x1xf32>,
      %cst_127 = arith.constant 0.000000e+00 : f32
      %174 = vector.broadcast %cst_127 : f32 to vector<4x7x1xf32>
      %c0_128 = arith.constant 0 : index
      %c0_129 = arith.constant 0 : index
      %c0_130 = arith.constant 0 : index
      %175 = vector.load %arg9[%c0_128, %c0_129, %c0_130] : memref<4x7x1xf32, #tpu.memory_space<vmem>>, vector<4x7x1xf32>
      tpu.vector_store %arg9[%c0_128, %c0_129, %c0_130], %174 {strides = array<i32>} : memref<4x7x1xf32, #tpu.memory_space<vmem>>, vector<4x7x1xf32>,
      %cst_131 = arith.constant 0.000000e+00 : f32
      %176 = vector.broadcast %cst_131 : f32 to vector<7x128xf32>
      %c0_132 = arith.constant 0 : index
      %c0_133 = arith.constant 0 : index
      %177 = vector.load %arg10[%c0_132, %c0_133] : memref<7x128xf32, #tpu.memory_space<vmem>>, vector<7x128xf32>
      tpu.vector_store %arg10[%c0_132, %c0_133], %176 {strides = array<i32>} : memref<7x128xf32, #tpu.memory_space<vmem>>, vector<7x128xf32>,
    } else {
    }
    %c0 = arith.constant 0 : index
    %c0_1 = arith.constant 0 : index
    %c0_2 = arith.constant 0 : index
    %3 = vector.load %arg6[%c0, %c0_1, %c0_2] : memref<1x1x8xf32, #tpu.memory_space<vmem>>, vector<1x1x8xf32>
    %4 = vector.shape_cast %3 : vector<1x1x8xf32> to vector<1x8xf32>
    %cst = arith.constant 5.000000e-01 : f32
    %5 = vector.broadcast %cst : f32 to vector<1x8xf32>
    %6 = arith.cmpf ogt, %4, %5 : vector<1x8xf32>
    %7 = vector.shape_cast %6 : vector<1x8xi1> to vector<1x8xi1>
    %8 = vector.broadcast %7 : vector<1x8xi1> to vector<7x8xi1>
    %c0_3 = arith.constant 0 : index
    %c0_4 = arith.constant 0 : index
    %c0_5 = arith.constant 0 : index
    %9 = vector.load %arg3[%c0_3, %c0_4, %c0_5] : memref<1x7x128xbf16, #tpu.memory_space<vmem>>, vector<1x7x32xbf16>
    %10 = vector.shape_cast %9 : vector<1x7x32xbf16> to vector<7x32xbf16>
    %c0_6 = arith.constant 0 : index
    %c0_7 = arith.constant 0 : index
    %c0_8 = arith.constant 0 : index
    %11 = vector.load %arg4[%c0_6, %c0_7, %c0_8] : memref<1x8x128xbf16, #tpu.memory_space<vmem>>, vector<1x8x32xbf16>
    %12 = vector.shape_cast %11 : vector<1x8x32xbf16> to vector<8x32xbf16>
    %c0_9 = arith.constant 0 : index
    %c0_10 = arith.constant 0 : index
    %c0_11 = arith.constant 0 : index
    %13 = vector.load %arg5[%c0_9, %c0_10, %c0_11] : memref<1x8x128xbf16, #tpu.memory_space<vmem>>, vector<1x8x32xbf16>
    %14 = vector.shape_cast %13 : vector<1x8x32xbf16> to vector<8x32xbf16>
    %cst_12 = arith.constant dense<0.000000e+00> : vector<7x8xf32>
    %15 = tpu.matmul %10, %12, %cst_12 {dimension_numbers = #tpu.dot_dimension_numbers<[1], [1], [0], [0], [0, 0, 1, 0], [], []>} : vector<7x32xbf16>, vector<8x32xbf16>, vector<7x8xf32> -> vector<7x8xf32>
    %cst_13 = arith.constant 0.176776692 : f32
    %16 = vector.broadcast %cst_13 : f32 to vector<7x8xf32>
    %17 = arith.mulf %15, %16 : vector<7x8xf32>
    %cst_14 = arith.constant -1.000000e+09 : f32
    %18 = vector.broadcast %cst_14 : f32 to vector<7x8xf32>
    %19 = arith.select %8, %18, %17 : vector<7x8xi1>, vector<7x8xf32>
    %c0_15 = arith.constant 0 : index
    %c0_16 = arith.constant 0 : index
    %c0_17 = arith.constant 0 : index
    %20 = vector.load %arg8[%c0_15, %c0_16, %c0_17] : memref<4x7x1xf32, #tpu.memory_space<vmem>>, vector<1x7x1xf32>
    %21 = vector.shape_cast %20 : vector<1x7x1xf32> to vector<7x1xf32>
    %cst_18 = arith.constant dense<0xFF800000> : vector<7xf32>
    %22 = vector.multi_reduction <maximumf>, %19, %cst_18 [1] : vector<7x8xf32> to vector<7xf32>
    %23 = vector.shape_cast %22 : vector<7xf32> to vector<7x1xf32>
    %24 = arith.maximumf %21, %23 : vector<7x1xf32>
    %25 = arith.subf %21, %24 : vector<7x1xf32>
    %26 = math.exp %25 : vector<7x1xf32>
    %27 = vector.broadcast %24 : vector<7x1xf32> to vector<7x8xf32>
    %28 = arith.subf %19, %27 : vector<7x8xf32>
    %29 = math.exp %28 : vector<7x8xf32>
    %c0_19 = arith.constant 0 : index
    %c0_20 = arith.constant 0 : index
    %c0_21 = arith.constant 0 : index
    %30 = vector.load %arg9[%c0_19, %c0_20, %c0_21] : memref<4x7x1xf32, #tpu.memory_space<vmem>>, vector<1x7x1xf32>
    %31 = vector.shape_cast %30 : vector<1x7x1xf32> to vector<7x1xf32>
    %32 = arith.mulf %26, %31 : vector<7x1xf32>
    %cst_22 = arith.constant dense<0.000000e+00> : vector<7xf32>
    %33 = vector.multi_reduction <add>, %29, %cst_22 [1] : vector<7x8xf32> to vector<7xf32>
    %34 = vector.shape_cast %33 : vector<7xf32> to vector<7x1xf32>
    %35 = arith.addf %32, %34 : vector<7x1xf32>
    %c0_23 = arith.constant 0 : index
    %c0_24 = arith.constant 0 : index
    %c0_25 = arith.constant 0 : index
    %36 = vector.load %arg9[%c0_23, %c0_24, %c0_25] : memref<4x7x1xf32, #tpu.memory_space<vmem>>, vector<1x7x1xf32>
    %37 = vector.shape_cast %36 : vector<1x7x1xf32> to vector<7x1xf32>
    %38 = vector.shape_cast %35 : vector<7x1xf32> to vector<1x7x1xf32>
    tpu.vector_store %arg9[%c0_23, %c0_24, %c0_25], %38 {strides = array<i32>} : memref<4x7x1xf32, #tpu.memory_space<vmem>>, vector<1x7x1xf32>,
    %c0_26 = arith.constant 0 : index
    %c0_27 = arith.constant 0 : index
    %39 = vector.load %arg10[%c0_26, %c0_27] : memref<7x128xf32, #tpu.memory_space<vmem>>, vector<7x32xf32>
    %40 = vector.broadcast %26 : vector<7x1xf32> to vector<7x32xf32>
    %41 = arith.mulf %40, %39 : vector<7x32xf32>
    %42 = arith.truncf %29 : vector<7x8xf32> to vector<7x8xbf16>
    %cst_28 = arith.constant dense<0.000000e+00> : vector<7x32xf32>
    %43 = tpu.matmul %42, %14, %cst_28 {dimension_numbers = #tpu.dot_dimension_numbers<[1], [0], [0], [1], [0, 0, 1, 1], [], []>} : vector<7x8xbf16>, vector<8x32xbf16>, vector<7x32xf32> -> vector<7x32xf32>
    %44 = arith.addf %41, %43 : vector<7x32xf32>
    %c0_29 = arith.constant 0 : index
    %c0_30 = arith.constant 0 : index
    %45 = vector.load %arg10[%c0_29, %c0_30] : memref<7x128xf32, #tpu.memory_space<vmem>>, vector<7x32xf32>
    tpu.vector_store %arg10[%c0_29, %c0_30], %44 {strides = array<i32>} : memref<7x128xf32, #tpu.memory_space<vmem>>, vector<7x32xf32>,
    %c0_31 = arith.constant 0 : index
    %c0_32 = arith.constant 0 : index
    %c0_33 = arith.constant 0 : index
    %46 = vector.load %arg8[%c0_31, %c0_32, %c0_33] : memref<4x7x1xf32, #tpu.memory_space<vmem>>, vector<1x7x1xf32>
    %47 = vector.shape_cast %46 : vector<1x7x1xf32> to vector<7x1xf32>
    %48 = vector.shape_cast %24 : vector<7x1xf32> to vector<1x7x1xf32>
    tpu.vector_store %arg8[%c0_31, %c0_32, %c0_33], %48 {strides = array<i32>} : memref<4x7x1xf32, #tpu.memory_space<vmem>>, vector<1x7x1xf32>,
    %c0_34 = arith.constant 0 : index
    %c0_35 = arith.constant 0 : index
    %c32 = arith.constant 32 : index
    %49 = vector.load %arg3[%c0_34, %c0_35, %c32] : memref<1x7x128xbf16, #tpu.memory_space<vmem>>, vector<1x7x32xbf16>
    %50 = vector.shape_cast %49 : vector<1x7x32xbf16> to vector<7x32xbf16>
    %c0_36 = arith.constant 0 : index
    %c0_37 = arith.constant 0 : index
    %c32_38 = arith.constant 32 : index
    %51 = vector.load %arg4[%c0_36, %c0_37, %c32_38] : memref<1x8x128xbf16, #tpu.memory_space<vmem>>, vector<1x8x32xbf16>
    %52 = vector.shape_cast %51 : vector<1x8x32xbf16> to vector<8x32xbf16>
    %c0_39 = arith.constant 0 : index
    %c0_40 = arith.constant 0 : index
    %c32_41 = arith.constant 32 : index
    %53 = vector.load %arg5[%c0_39, %c0_40, %c32_41] : memref<1x8x128xbf16, #tpu.memory_space<vmem>>, vector<1x8x32xbf16>
    %54 = vector.shape_cast %53 : vector<1x8x32xbf16> to vector<8x32xbf16>
    %cst_42 = arith.constant dense<0.000000e+00> : vector<7x8xf32>
    %55 = tpu.matmul %50, %52, %cst_42 {dimension_numbers = #tpu.dot_dimension_numbers<[1], [1], [0], [0], [0, 0, 1, 0], [], []>} : vector<7x32xbf16>, vector<8x32xbf16>, vector<7x8xf32> -> vector<7x8xf32>
    %cst_43 = arith.constant 0.176776692 : f32
    %56 = vector.broadcast %cst_43 : f32 to vector<7x8xf32>
    %57 = arith.mulf %55, %56 : vector<7x8xf32>
    %cst_44 = arith.constant -1.000000e+09 : f32
    %58 = vector.broadcast %cst_44 : f32 to vector<7x8xf32>
    %59 = arith.select %8, %58, %57 : vector<7x8xi1>, vector<7x8xf32>
    %c1 = arith.constant 1 : index
    %c0_45 = arith.constant 0 : index
    %c0_46 = arith.constant 0 : index
    %60 = vector.load %arg8[%c1, %c0_45, %c0_46] : memref<4x7x1xf32, #tpu.memory_space<vmem>>, vector<1x7x1xf32>
    %61 = vector.shape_cast %60 : vector<1x7x1xf32> to vector<7x1xf32>
    %cst_47 = arith.constant dense<0xFF800000> : vector<7xf32>
    %62 = vector.multi_reduction <maximumf>, %59, %cst_47 [1] : vector<7x8xf32> to vector<7xf32>
    %63 = vector.shape_cast %62 : vector<7xf32> to vector<7x1xf32>
    %64 = arith.maximumf %61, %63 : vector<7x1xf32>
    %65 = arith.subf %61, %64 : vector<7x1xf32>
    %66 = math.exp %65 : vector<7x1xf32>
    %67 = vector.broadcast %64 : vector<7x1xf32> to vector<7x8xf32>
    %68 = arith.subf %59, %67 : vector<7x8xf32>
    %69 = math.exp %68 : vector<7x8xf32>
    %c1_48 = arith.constant 1 : index
    %c0_49 = arith.constant 0 : index
    %c0_50 = arith.constant 0 : index
    %70 = vector.load %arg9[%c1_48, %c0_49, %c0_50] : memref<4x7x1xf32, #tpu.memory_space<vmem>>, vector<1x7x1xf32>
    %71 = vector.shape_cast %70 : vector<1x7x1xf32> to vector<7x1xf32>
    %72 = arith.mulf %66, %71 : vector<7x1xf32>
    %cst_51 = arith.constant dense<0.000000e+00> : vector<7xf32>
    %73 = vector.multi_reduction <add>, %69, %cst_51 [1] : vector<7x8xf32> to vector<7xf32>
    %74 = vector.shape_cast %73 : vector<7xf32> to vector<7x1xf32>
    %75 = arith.addf %72, %74 : vector<7x1xf32>
    %c1_52 = arith.constant 1 : index
    %c0_53 = arith.constant 0 : index
    %c0_54 = arith.constant 0 : index
    %76 = vector.load %arg9[%c1_52, %c0_53, %c0_54] : memref<4x7x1xf32, #tpu.memory_space<vmem>>, vector<1x7x1xf32>
    %77 = vector.shape_cast %76 : vector<1x7x1xf32> to vector<7x1xf32>
    %78 = vector.shape_cast %75 : vector<7x1xf32> to vector<1x7x1xf32>
    tpu.vector_store %arg9[%c1_52, %c0_53, %c0_54], %78 {strides = array<i32>} : memref<4x7x1xf32, #tpu.memory_space<vmem>>, vector<1x7x1xf32>,
    %c0_55 = arith.constant 0 : index
    %c32_56 = arith.constant 32 : index
    %79 = vector.load %arg10[%c0_55, %c32_56] : memref<7x128xf32, #tpu.memory_space<vmem>>, vector<7x32xf32>
    %80 = vector.broadcast %66 : vector<7x1xf32> to vector<7x32xf32>
    %81 = arith.mulf %80, %79 : vector<7x32xf32>
    %82 = arith.truncf %69 : vector<7x8xf32> to vector<7x8xbf16>
    %cst_57 = arith.constant dense<0.000000e+00> : vector<7x32xf32>
    %83 = tpu.matmul %82, %54, %cst_57 {dimension_numbers = #tpu.dot_dimension_numbers<[1], [0], [0], [1], [0, 0, 1, 1], [], []>} : vector<7x8xbf16>, vector<8x32xbf16>, vector<7x32xf32> -> vector<7x32xf32>
    %84 = arith.addf %81, %83 : vector<7x32xf32>
    %c0_58 = arith.constant 0 : index
    %c32_59 = arith.constant 32 : index
    %85 = vector.load %arg10[%c0_58, %c32_59] : memref<7x128xf32, #tpu.memory_space<vmem>>, vector<7x32xf32>
    tpu.vector_store %arg10[%c0_58, %c32_59], %84 {strides = array<i32>} : memref<7x128xf32, #tpu.memory_space<vmem>>, vector<7x32xf32>,
    %c1_60 = arith.constant 1 : index
    %c0_61 = arith.constant 0 : index
    %c0_62 = arith.constant 0 : index
    %86 = vector.load %arg8[%c1_60, %c0_61, %c0_62] : memref<4x7x1xf32, #tpu.memory_space<vmem>>, vector<1x7x1xf32>
    %87 = vector.shape_cast %86 : vector<1x7x1xf32> to vector<7x1xf32>
    %88 = vector.shape_cast %64 : vector<7x1xf32> to vector<1x7x1xf32>
    tpu.vector_store %arg8[%c1_60, %c0_61, %c0_62], %88 {strides = array<i32>} : memref<4x7x1xf32, #tpu.memory_space<vmem>>, vector<1x7x1xf32>,
    %c0_63 = arith.constant 0 : index
    %c0_64 = arith.constant 0 : index
    %c64 = arith.constant 64 : index
    %89 = vector.load %arg3[%c0_63, %c0_64, %c64] : memref<1x7x128xbf16, #tpu.memory_space<vmem>>, vector<1x7x32xbf16>
    %90 = vector.shape_cast %89 : vector<1x7x32xbf16> to vector<7x32xbf16>
    %c0_65 = arith.constant 0 : index
    %c0_66 = arith.constant 0 : index
    %c64_67 = arith.constant 64 : index
    %91 = vector.load %arg4[%c0_65, %c0_66, %c64_67] : memref<1x8x128xbf16, #tpu.memory_space<vmem>>, vector<1x8x32xbf16>
    %92 = vector.shape_cast %91 : vector<1x8x32xbf16> to vector<8x32xbf16>
    %c0_68 = arith.constant 0 : index
    %c0_69 = arith.constant 0 : index
    %c64_70 = arith.constant 64 : index
    %93 = vector.load %arg5[%c0_68, %c0_69, %c64_70] : memref<1x8x128xbf16, #tpu.memory_space<vmem>>, vector<1x8x32xbf16>
    %94 = vector.shape_cast %93 : vector<1x8x32xbf16> to vector<8x32xbf16>
    %cst_71 = arith.constant dense<0.000000e+00> : vector<7x8xf32>
    %95 = tpu.matmul %90, %92, %cst_71 {dimension_numbers = #tpu.dot_dimension_numbers<[1], [1], [0], [0], [0, 0, 1, 0], [], []>} : vector<7x32xbf16>, vector<8x32xbf16>, vector<7x8xf32> -> vector<7x8xf32>
    %cst_72 = arith.constant 0.176776692 : f32
    %96 = vector.broadcast %cst_72 : f32 to vector<7x8xf32>
    %97 = arith.mulf %95, %96 : vector<7x8xf32>
    %cst_73 = arith.constant -1.000000e+09 : f32
    %98 = vector.broadcast %cst_73 : f32 to vector<7x8xf32>
    %99 = arith.select %8, %98, %97 : vector<7x8xi1>, vector<7x8xf32>
    %c2 = arith.constant 2 : index
    %c0_74 = arith.constant 0 : index
    %c0_75 = arith.constant 0 : index
    %100 = vector.load %arg8[%c2, %c0_74, %c0_75] : memref<4x7x1xf32, #tpu.memory_space<vmem>>, vector<1x7x1xf32>
    %101 = vector.shape_cast %100 : vector<1x7x1xf32> to vector<7x1xf32>
    %cst_76 = arith.constant dense<0xFF800000> : vector<7xf32>
    %102 = vector.multi_reduction <maximumf>, %99, %cst_76 [1] : vector<7x8xf32> to vector<7xf32>
    %103 = vector.shape_cast %102 : vector<7xf32> to vector<7x1xf32>
    %104 = arith.maximumf %101, %103 : vector<7x1xf32>
    %105 = arith.subf %101, %104 : vector<7x1xf32>
    %106 = math.exp %105 : vector<7x1xf32>
    %107 = vector.broadcast %104 : vector<7x1xf32> to vector<7x8xf32>
    %108 = arith.subf %99, %107 : vector<7x8xf32>
    %109 = math.exp %108 : vector<7x8xf32>
    %c2_77 = arith.constant 2 : index
    %c0_78 = arith.constant 0 : index
    %c0_79 = arith.constant 0 : index
    %110 = vector.load %arg9[%c2_77, %c0_78, %c0_79] : memref<4x7x1xf32, #tpu.memory_space<vmem>>, vector<1x7x1xf32>
    %111 = vector.shape_cast %110 : vector<1x7x1xf32> to vector<7x1xf32>
    %112 = arith.mulf %106, %111 : vector<7x1xf32>
    %cst_80 = arith.constant dense<0.000000e+00> : vector<7xf32>
    %113 = vector.multi_reduction <add>, %109, %cst_80 [1] : vector<7x8xf32> to vector<7xf32>
    %114 = vector.shape_cast %113 : vector<7xf32> to vector<7x1xf32>
    %115 = arith.addf %112, %114 : vector<7x1xf32>
    %c2_81 = arith.constant 2 : index
    %c0_82 = arith.constant 0 : index
    %c0_83 = arith.constant 0 : index
    %116 = vector.load %arg9[%c2_81, %c0_82, %c0_83] : memref<4x7x1xf32, #tpu.memory_space<vmem>>, vector<1x7x1xf32>
    %117 = vector.shape_cast %116 : vector<1x7x1xf32> to vector<7x1xf32>
    %118 = vector.shape_cast %115 : vector<7x1xf32> to vector<1x7x1xf32>
    tpu.vector_store %arg9[%c2_81, %c0_82, %c0_83], %118 {strides = array<i32>} : memref<4x7x1xf32, #tpu.memory_space<vmem>>, vector<1x7x1xf32>,
    %c0_84 = arith.constant 0 : index
    %c64_85 = arith.constant 64 : index
    %119 = vector.load %arg10[%c0_84, %c64_85] : memref<7x128xf32, #tpu.memory_space<vmem>>, vector<7x32xf32>
    %120 = vector.broadcast %106 : vector<7x1xf32> to vector<7x32xf32>
    %121 = arith.mulf %120, %119 : vector<7x32xf32>
    %122 = arith.truncf %109 : vector<7x8xf32> to vector<7x8xbf16>
    %cst_86 = arith.constant dense<0.000000e+00> : vector<7x32xf32>
    %123 = tpu.matmul %122, %94, %cst_86 {dimension_numbers = #tpu.dot_dimension_numbers<[1], [0], [0], [1], [0, 0, 1, 1], [], []>} : vector<7x8xbf16>, vector<8x32xbf16>, vector<7x32xf32> -> vector<7x32xf32>
    %124 = arith.addf %121, %123 : vector<7x32xf32>
    %c0_87 = arith.constant 0 : index
    %c64_88 = arith.constant 64 : index
    %125 = vector.load %arg10[%c0_87, %c64_88] : memref<7x128xf32, #tpu.memory_space<vmem>>, vector<7x32xf32>
    tpu.vector_store %arg10[%c0_87, %c64_88], %124 {strides = array<i32>} : memref<7x128xf32, #tpu.memory_space<vmem>>, vector<7x32xf32>,
    %c2_89 = arith.constant 2 : index
    %c0_90 = arith.constant 0 : index
    %c0_91 = arith.constant 0 : index
    %126 = vector.load %arg8[%c2_89, %c0_90, %c0_91] : memref<4x7x1xf32, #tpu.memory_space<vmem>>, vector<1x7x1xf32>
    %127 = vector.shape_cast %126 : vector<1x7x1xf32> to vector<7x1xf32>
    %128 = vector.shape_cast %104 : vector<7x1xf32> to vector<1x7x1xf32>
    tpu.vector_store %arg8[%c2_89, %c0_90, %c0_91], %128 {strides = array<i32>} : memref<4x7x1xf32, #tpu.memory_space<vmem>>, vector<1x7x1xf32>,
    %c0_92 = arith.constant 0 : index
    %c0_93 = arith.constant 0 : index
    %c96 = arith.constant 96 : index
    %129 = vector.load %arg3[%c0_92, %c0_93, %c96] : memref<1x7x128xbf16, #tpu.memory_space<vmem>>, vector<1x7x32xbf16>
    %130 = vector.shape_cast %129 : vector<1x7x32xbf16> to vector<7x32xbf16>
    %c0_94 = arith.constant 0 : index
    %c0_95 = arith.constant 0 : index
    %c96_96 = arith.constant 96 : index
    %131 = vector.load %arg4[%c0_94, %c0_95, %c96_96] : memref<1x8x128xbf16, #tpu.memory_space<vmem>>, vector<1x8x32xbf16>
    %132 = vector.shape_cast %131 : vector<1x8x32xbf16> to vector<8x32xbf16>
    %c0_97 = arith.constant 0 : index
    %c0_98 = arith.constant 0 : index
    %c96_99 = arith.constant 96 : index
    %133 = vector.load %arg5[%c0_97, %c0_98, %c96_99] : memref<1x8x128xbf16, #tpu.memory_space<vmem>>, vector<1x8x32xbf16>
    %134 = vector.shape_cast %133 : vector<1x8x32xbf16> to vector<8x32xbf16>
    %cst_100 = arith.constant dense<0.000000e+00> : vector<7x8xf32>
    %135 = tpu.matmul %130, %132, %cst_100 {dimension_numbers = #tpu.dot_dimension_numbers<[1], [1], [0], [0], [0, 0, 1, 0], [], []>} : vector<7x32xbf16>, vector<8x32xbf16>, vector<7x8xf32> -> vector<7x8xf32>
    %cst_101 = arith.constant 0.176776692 : f32
    %136 = vector.broadcast %cst_101 : f32 to vector<7x8xf32>
    %137 = arith.mulf %135, %136 : vector<7x8xf32>
    %cst_102 = arith.constant -1.000000e+09 : f32
    %138 = vector.broadcast %cst_102 : f32 to vector<7x8xf32>
    %139 = arith.select %8, %138, %137 : vector<7x8xi1>, vector<7x8xf32>
    %c3 = arith.constant 3 : index
    %c0_103 = arith.constant 0 : index
    %c0_104 = arith.constant 0 : index
    %140 = vector.load %arg8[%c3, %c0_103, %c0_104] : memref<4x7x1xf32, #tpu.memory_space<vmem>>, vector<1x7x1xf32>
    %141 = vector.shape_cast %140 : vector<1x7x1xf32> to vector<7x1xf32>
    %cst_105 = arith.constant dense<0xFF800000> : vector<7xf32>
    %142 = vector.multi_reduction <maximumf>, %139, %cst_105 [1] : vector<7x8xf32> to vector<7xf32>
    %143 = vector.shape_cast %142 : vector<7xf32> to vector<7x1xf32>
    %144 = arith.maximumf %141, %143 : vector<7x1xf32>
    %145 = arith.subf %141, %144 : vector<7x1xf32>
    %146 = math.exp %145 : vector<7x1xf32>
    %147 = vector.broadcast %144 : vector<7x1xf32> to vector<7x8xf32>
    %148 = arith.subf %139, %147 : vector<7x8xf32>
    %149 = math.exp %148 : vector<7x8xf32>
    %c3_106 = arith.constant 3 : index
    %c0_107 = arith.constant 0 : index
    %c0_108 = arith.constant 0 : index
    %150 = vector.load %arg9[%c3_106, %c0_107, %c0_108] : memref<4x7x1xf32, #tpu.memory_space<vmem>>, vector<1x7x1xf32>
    %151 = vector.shape_cast %150 : vector<1x7x1xf32> to vector<7x1xf32>
    %152 = arith.mulf %146, %151 : vector<7x1xf32>
    %cst_109 = arith.constant dense<0.000000e+00> : vector<7xf32>
    %153 = vector.multi_reduction <add>, %149, %cst_109 [1] : vector<7x8xf32> to vector<7xf32>
    %154 = vector.shape_cast %153 : vector<7xf32> to vector<7x1xf32>
    %155 = arith.addf %152, %154 : vector<7x1xf32>
    %c3_110 = arith.constant 3 : index
    %c0_111 = arith.constant 0 : index
    %c0_112 = arith.constant 0 : index
    %156 = vector.load %arg9[%c3_110, %c0_111, %c0_112] : memref<4x7x1xf32, #tpu.memory_space<vmem>>, vector<1x7x1xf32>
    %157 = vector.shape_cast %156 : vector<1x7x1xf32> to vector<7x1xf32>
    %158 = vector.shape_cast %155 : vector<7x1xf32> to vector<1x7x1xf32>
    tpu.vector_store %arg9[%c3_110, %c0_111, %c0_112], %158 {strides = array<i32>} : memref<4x7x1xf32, #tpu.memory_space<vmem>>, vector<1x7x1xf32>,
    %c0_113 = arith.constant 0 : index
    %c96_114 = arith.constant 96 : index
    %159 = vector.load %arg10[%c0_113, %c96_114] : memref<7x128xf32, #tpu.memory_space<vmem>>, vector<7x32xf32>
    %160 = vector.broadcast %146 : vector<7x1xf32> to vector<7x32xf32>
    %161 = arith.mulf %160, %159 : vector<7x32xf32>
    %162 = arith.truncf %149 : vector<7x8xf32> to vector<7x8xbf16>
    %cst_115 = arith.constant dense<0.000000e+00> : vector<7x32xf32>
    %163 = tpu.matmul %162, %134, %cst_115 {dimension_numbers = #tpu.dot_dimension_numbers<[1], [0], [0], [1], [0, 0, 1, 1], [], []>} : vector<7x8xbf16>, vector<8x32xbf16>, vector<7x32xf32> -> vector<7x32xf32>
    %164 = arith.addf %161, %163 : vector<7x32xf32>
    %c0_116 = arith.constant 0 : index
    %c96_117 = arith.constant 96 : index
    %165 = vector.load %arg10[%c0_116, %c96_117] : memref<7x128xf32, #tpu.memory_space<vmem>>, vector<7x32xf32>
    tpu.vector_store %arg10[%c0_116, %c96_117], %164 {strides = array<i32>} : memref<7x128xf32, #tpu.memory_space<vmem>>, vector<7x32xf32>,
    %c3_118 = arith.constant 3 : index
    %c0_119 = arith.constant 0 : index
    %c0_120 = arith.constant 0 : index
    %166 = vector.load %arg8[%c3_118, %c0_119, %c0_120] : memref<4x7x1xf32, #tpu.memory_space<vmem>>, vector<1x7x1xf32>
    %167 = vector.shape_cast %166 : vector<1x7x1xf32> to vector<7x1xf32>
    %168 = vector.shape_cast %144 : vector<7x1xf32> to vector<1x7x1xf32>
    tpu.vector_store %arg8[%c3_118, %c0_119, %c0_120], %168 {strides = array<i32>} : memref<4x7x1xf32, #tpu.memory_space<vmem>>, vector<1x7x1xf32>,
    %c0_i32_121 = arith.constant 0 : i32
    %169 = arith.cmpi eq, %arg2, %c0_i32_121 : i32
    %170 = arith.extui %169 : i1 to i32
    %c0_i32_122 = arith.constant 0 : i32
    %171 = arith.cmpi ne, %170, %c0_i32_122 : i32
    scf.if %171 {
      %c0_123 = arith.constant 0 : index
      %c0_124 = arith.constant 0 : index
      %c0_125 = arith.constant 0 : index
      %172 = vector.load %arg9[%c0_123, %c0_124, %c0_125] : memref<4x7x1xf32, #tpu.memory_space<vmem>>, vector<1x7x1xf32>
      %173 = vector.shape_cast %172 : vector<1x7x1xf32> to vector<7x1xf32>
      %174 = tpu.reciprocal %173 {approx = true} : vector<7x1xf32> -> vector<7x1xf32>
      %c0_126 = arith.constant 0 : index
      %c0_127 = arith.constant 0 : index
      %175 = vector.load %arg10[%c0_126, %c0_127] : memref<7x128xf32, #tpu.memory_space<vmem>>, vector<7x32xf32>
      %176 = vector.broadcast %174 : vector<7x1xf32> to vector<7x32xf32>
      %177 = arith.mulf %175, %176 : vector<7x32xf32>
      %178 = arith.truncf %177 : vector<7x32xf32> to vector<7x32xbf16>
      %c0_128 = arith.constant 0 : index
      %c0_129 = arith.constant 0 : index
      %c0_130 = arith.constant 0 : index
      %179 = vector.load %arg7[%c0_128, %c0_129, %c0_130] : memref<1x7x128xbf16, #tpu.memory_space<vmem>>, vector<1x7x32xbf16>
      %180 = vector.shape_cast %179 : vector<1x7x32xbf16> to vector<7x32xbf16>
      %181 = vector.shape_cast %178 : vector<7x32xbf16> to vector<1x7x32xbf16>
      tpu.vector_store %arg7[%c0_128, %c0_129, %c0_130], %181 {strides = array<i32>} : memref<1x7x128xbf16, #tpu.memory_space<vmem>>, vector<1x7x32xbf16>,
      %c1_131 = arith.constant 1 : index
      %c0_132 = arith.constant 0 : index
      %c0_133 = arith.constant 0 : index
      %182 = vector.load %arg9[%c1_131, %c0_132, %c0_133] : memref<4x7x1xf32, #tpu.memory_space<vmem>>, vector<1x7x1xf32>
      %183 = vector.shape_cast %182 : vector<1x7x1xf32> to vector<7x1xf32>
      %184 = tpu.reciprocal %183 {approx = true} : vector<7x1xf32> -> vector<7x1xf32>
      %c0_134 = arith.constant 0 : index
      %c32_135 = arith.constant 32 : index
      %185 = vector.load %arg10[%c0_134, %c32_135] : memref<7x128xf32, #tpu.memory_space<vmem>>, vector<7x32xf32>
      %186 = vector.broadcast %184 : vector<7x1xf32> to vector<7x32xf32>
      %187 = arith.mulf %185, %186 : vector<7x32xf32>
      %188 = arith.truncf %187 : vector<7x32xf32> to vector<7x32xbf16>
      %c0_136 = arith.constant 0 : index
      %c0_137 = arith.constant 0 : index
      %c32_138 = arith.constant 32 : index
      %189 = vector.load %arg7[%c0_136, %c0_137, %c32_138] : memref<1x7x128xbf16, #tpu.memory_space<vmem>>, vector<1x7x32xbf16>
      %190 = vector.shape_cast %189 : vector<1x7x32xbf16> to vector<7x32xbf16>
      %191 = vector.shape_cast %188 : vector<7x32xbf16> to vector<1x7x32xbf16>
      tpu.vector_store %arg7[%c0_136, %c0_137, %c32_138], %191 {strides = array<i32>} : memref<1x7x128xbf16, #tpu.memory_space<vmem>>, vector<1x7x32xbf16>,
      %c2_139 = arith.constant 2 : index
      %c0_140 = arith.constant 0 : index
      %c0_141 = arith.constant 0 : index
      %192 = vector.load %arg9[%c2_139, %c0_140, %c0_141] : memref<4x7x1xf32, #tpu.memory_space<vmem>>, vector<1x7x1xf32>
      %193 = vector.shape_cast %192 : vector<1x7x1xf32> to vector<7x1xf32>
      %194 = tpu.reciprocal %193 {approx = true} : vector<7x1xf32> -> vector<7x1xf32>
      %c0_142 = arith.constant 0 : index
      %c64_143 = arith.constant 64 : index
      %195 = vector.load %arg10[%c0_142, %c64_143] : memref<7x128xf32, #tpu.memory_space<vmem>>, vector<7x32xf32>
      %196 = vector.broadcast %194 : vector<7x1xf32> to vector<7x32xf32>
      %197 = arith.mulf %195, %196 : vector<7x32xf32>
      %198 = arith.truncf %197 : vector<7x32xf32> to vector<7x32xbf16>
      %c0_144 = arith.constant 0 : index
      %c0_145 = arith.constant 0 : index
      %c64_146 = arith.constant 64 : index
      %199 = vector.load %arg7[%c0_144, %c0_145, %c64_146] : memref<1x7x128xbf16, #tpu.memory_space<vmem>>, vector<1x7x32xbf16>
      %200 = vector.shape_cast %199 : vector<1x7x32xbf16> to vector<7x32xbf16>
      %201 = vector.shape_cast %198 : vector<7x32xbf16> to vector<1x7x32xbf16>
      tpu.vector_store %arg7[%c0_144, %c0_145, %c64_146], %201 {strides = array<i32>} : memref<1x7x128xbf16, #tpu.memory_space<vmem>>, vector<1x7x32xbf16>,
      %c3_147 = arith.constant 3 : index
      %c0_148 = arith.constant 0 : index
      %c0_149 = arith.constant 0 : index
      %202 = vector.load %arg9[%c3_147, %c0_148, %c0_149] : memref<4x7x1xf32, #tpu.memory_space<vmem>>, vector<1x7x1xf32>
      %203 = vector.shape_cast %202 : vector<1x7x1xf32> to vector<7x1xf32>
      %204 = tpu.reciprocal %203 {approx = true} : vector<7x1xf32> -> vector<7x1xf32>
      %c0_150 = arith.constant 0 : index
      %c96_151 = arith.constant 96 : index
      %205 = vector.load %arg10[%c0_150, %c96_151] : memref<7x128xf32, #tpu.memory_space<vmem>>, vector<7x32xf32>
      %206 = vector.broadcast %204 : vector<7x1xf32> to vector<7x32xf32>
      %207 = arith.mulf %205, %206 : vector<7x32xf32>
      %208 = arith.truncf %207 : vector<7x32xf32> to vector<7x32xbf16>
      %c0_152 = arith.constant 0 : index
      %c0_153 = arith.constant 0 : index
      %c96_154 = arith.constant 96 : index
      %209 = vector.load %arg7[%c0_152, %c0_153, %c96_154] : memref<1x7x128xbf16, #tpu.memory_space<vmem>>, vector<1x7x32xbf16>
      %210 = vector.shape_cast %209 : vector<1x7x32xbf16> to vector<7x32xbf16>
      %211 = vector.shape_cast %208 : vector<7x32xbf16> to vector<1x7x32xbf16>
      tpu.vector_store %arg7[%c0_152, %c0_153, %c96_154], %211 {strides = array<i32>} : memref<1x7x128xbf16, #tpu.memory_space<vmem>>, vector<1x7x32xbf16>,
    } else {
    }
    return
  }
  func.func @transform_0(%arg0: i32, %arg1: i32, %arg2: i32) -> (i32, i32, i32) {
    %c0_i32 = arith.constant 0 : i32
    %c0_i32_0 = arith.constant 0 : i32
    return %arg0, %arg1, %c0_i32 : i32, i32, i32
  }
  func.func @transform_1(%arg0: i32, %arg1: i32, %arg2: i32) -> (i32, i32, i32) {
    %c0_i32 = arith.constant 0 : i32
    %c0_i32_0 = arith.constant 0 : i32
    return %arg0, %arg2, %c0_i32 : i32, i32, i32
  }
  func.func @transform_2(%arg0: i32, %arg1: i32, %arg2: i32) -> (i32, i32, i32) {
    %c1_i32 = arith.constant 1 : i32
    %c0_i32 = arith.constant 0 : i32
    return %arg0, %arg2, %c1_i32 : i32, i32, i32
  }
  func.func @transform_3(%arg0: i32, %arg1: i32, %arg2: i32) -> (i32, i32, i32) {
    %c0_i32 = arith.constant 0 : i32
    %c0_i32_0 = arith.constant 0 : i32
    return %arg0, %c0_i32, %arg2 : i32, i32, i32
  }
  func.func @transform_4(%arg0: i32, %arg1: i32, %arg2: i32) -> (i32, i32, i32) {
    %c0_i32 = arith.constant 0 : i32
    %c0_i32_0 = arith.constant 0 : i32
    return %arg0, %arg1, %c0_i32 : i32, i32, i32
  }
}

module attributes {stable_mosaic.version = 11 : i64} {
  func.func @_matmul_bias_kernel(%arg0: i32, %arg1: i32, %arg2: i32, %arg3: memref<14x128xbf16, #tpu.memory_space<vmem>>, %arg4: memref<128x256xbf16, #tpu.memory_space<vmem>>, %arg5: memref<1x256xf32, #tpu.memory_space<vmem>>, %arg6: memref<14x256xbf16, #tpu.memory_space<vmem>>, %arg7: memref<14x256xf32, #tpu.memory_space<vmem>>) attributes {dimension_semantics = [#tpu.dimension_semantics<parallel>, #tpu.dimension_semantics<parallel>, #tpu.dimension_semantics<arbitrary>], iteration_bounds = array<i64: 1, 1, 1>, scalar_prefetch = 0 : i64, scratch_operands = 1 : i64, tpu.core_type = #tpu.core_type<tc>, window_params = [{transform_indices = @transform_0, window_bounds = array<i64: 14, 128>}, {transform_indices = @transform_1, window_bounds = array<i64: 128, 256>}, {transform_indices = @transform_2, window_bounds = array<i64: 1, 256>}, {transform_indices = @transform_3, window_bounds = array<i64: 14, 256>}]} {
    %c0_i32 = arith.constant 0 : i32
    %0 = arith.cmpi eq, %arg2, %c0_i32 : i32
    %1 = arith.extui %0 : i1 to i32
    %c0_i32_0 = arith.constant 0 : i32
    %2 = arith.cmpi ne, %1, %c0_i32_0 : i32
    scf.if %2 {
      %cst_10 = arith.constant 0.000000e+00 : f32
      %12 = vector.broadcast %cst_10 : f32 to vector<14x256xf32>
      %c0_11 = arith.constant 0 : index
      %c0_12 = arith.constant 0 : index
      %13 = vector.load %arg7[%c0_11, %c0_12] : memref<14x256xf32, #tpu.memory_space<vmem>>, vector<14x256xf32>
      tpu.vector_store %arg7[%c0_11, %c0_12], %12 {strides = array<i32>} : memref<14x256xf32, #tpu.memory_space<vmem>>, vector<14x256xf32>,
    } else {
    }
    %c0 = arith.constant 0 : index
    %c0_1 = arith.constant 0 : index
    %3 = vector.load %arg7[%c0, %c0_1] : memref<14x256xf32, #tpu.memory_space<vmem>>, vector<14x256xf32>
    %c0_2 = arith.constant 0 : index
    %c0_3 = arith.constant 0 : index
    %4 = vector.load %arg3[%c0_2, %c0_3] : memref<14x128xbf16, #tpu.memory_space<vmem>>, vector<14x128xbf16>
    %c0_4 = arith.constant 0 : index
    %c0_5 = arith.constant 0 : index
    %5 = vector.load %arg4[%c0_4, %c0_5] : memref<128x256xbf16, #tpu.memory_space<vmem>>, vector<128x256xbf16>
    %cst = arith.constant dense<0.000000e+00> : vector<14x256xf32>
    %6 = tpu.matmul %4, %5, %cst {dimension_numbers = #tpu.dot_dimension_numbers<[1], [0], [0], [1], [0, 0, 1, 1], [], []>} : vector<14x128xbf16>, vector<128x256xbf16>, vector<14x256xf32> -> vector<14x256xf32>
    %7 = arith.addf %3, %6 : vector<14x256xf32>
    %c0_6 = arith.constant 0 : index
    %c0_7 = arith.constant 0 : index
    %8 = vector.load %arg7[%c0_6, %c0_7] : memref<14x256xf32, #tpu.memory_space<vmem>>, vector<14x256xf32>
    tpu.vector_store %arg7[%c0_6, %c0_7], %7 {strides = array<i32>} : memref<14x256xf32, #tpu.memory_space<vmem>>, vector<14x256xf32>,
    %c0_i32_8 = arith.constant 0 : i32
    %9 = arith.cmpi eq, %arg2, %c0_i32_8 : i32
    %10 = arith.extui %9 : i1 to i32
    %c0_i32_9 = arith.constant 0 : i32
    %11 = arith.cmpi ne, %10, %c0_i32_9 : i32
    scf.if %11 {
      %c0_10 = arith.constant 0 : index
      %c0_11 = arith.constant 0 : index
      %12 = vector.load %arg7[%c0_10, %c0_11] : memref<14x256xf32, #tpu.memory_space<vmem>>, vector<14x256xf32>
      %c0_12 = arith.constant 0 : index
      %c0_13 = arith.constant 0 : index
      %13 = vector.load %arg5[%c0_12, %c0_13] : memref<1x256xf32, #tpu.memory_space<vmem>>, vector<1x256xf32>
      %14 = vector.broadcast %13 : vector<1x256xf32> to vector<14x256xf32>
      %15 = arith.addf %12, %14 : vector<14x256xf32>
      %cst_14 = arith.constant 0.000000e+00 : f32
      %16 = vector.broadcast %cst_14 : f32 to vector<14x256xf32>
      %17 = arith.maximumf %15, %16 : vector<14x256xf32>
      %18 = arith.truncf %17 : vector<14x256xf32> to vector<14x256xbf16>
      %c0_15 = arith.constant 0 : index
      %c0_16 = arith.constant 0 : index
      %19 = vector.load %arg6[%c0_15, %c0_16] : memref<14x256xbf16, #tpu.memory_space<vmem>>, vector<14x256xbf16>
      tpu.vector_store %arg6[%c0_15, %c0_16], %18 {strides = array<i32>} : memref<14x256xbf16, #tpu.memory_space<vmem>>, vector<14x256xbf16>,
    } else {
    }
    return
  }
  func.func @transform_0(%arg0: i32, %arg1: i32, %arg2: i32) -> (i32, i32) {
    %c0_i32 = arith.constant 0 : i32
    return %arg0, %arg2 : i32, i32
  }
  func.func @transform_1(%arg0: i32, %arg1: i32, %arg2: i32) -> (i32, i32) {
    %c0_i32 = arith.constant 0 : i32
    return %arg2, %arg1 : i32, i32
  }
  func.func @transform_2(%arg0: i32, %arg1: i32, %arg2: i32) -> (i32, i32) {
    %c0_i32 = arith.constant 0 : i32
    %c0_i32_0 = arith.constant 0 : i32
    return %c0_i32, %arg1 : i32, i32
  }
  func.func @transform_3(%arg0: i32, %arg1: i32, %arg2: i32) -> (i32, i32) {
    %c0_i32 = arith.constant 0 : i32
    return %arg0, %arg1 : i32, i32
  }
}

module attributes {stable_mosaic.version = 11 : i64} {
  func.func @_matmul_bias_kernel(%arg0: i32, %arg1: i32, %arg2: i32, %arg3: memref<14x128xbf16, #tpu.memory_space<vmem>>, %arg4: memref<128x128xbf16, #tpu.memory_space<vmem>>, %arg5: memref<1x128xf32, #tpu.memory_space<vmem>>, %arg6: memref<14x128xf32, #tpu.memory_space<vmem>>, %arg7: memref<14x128xf32, #tpu.memory_space<vmem>>) attributes {dimension_semantics = [#tpu.dimension_semantics<parallel>, #tpu.dimension_semantics<parallel>, #tpu.dimension_semantics<arbitrary>], iteration_bounds = array<i64: 1, 1, 1>, scalar_prefetch = 0 : i64, scratch_operands = 1 : i64, tpu.core_type = #tpu.core_type<tc>, window_params = [{transform_indices = @transform_0, window_bounds = array<i64: 14, 128>}, {transform_indices = @transform_1, window_bounds = array<i64: 128, 128>}, {transform_indices = @transform_2, window_bounds = array<i64: 1, 128>}, {transform_indices = @transform_3, window_bounds = array<i64: 14, 128>}]} {
    %c0_i32 = arith.constant 0 : i32
    %0 = arith.cmpi eq, %arg2, %c0_i32 : i32
    %1 = arith.extui %0 : i1 to i32
    %c0_i32_0 = arith.constant 0 : i32
    %2 = arith.cmpi ne, %1, %c0_i32_0 : i32
    scf.if %2 {
      %cst_10 = arith.constant 0.000000e+00 : f32
      %12 = vector.broadcast %cst_10 : f32 to vector<14x128xf32>
      %c0_11 = arith.constant 0 : index
      %c0_12 = arith.constant 0 : index
      %13 = vector.load %arg7[%c0_11, %c0_12] : memref<14x128xf32, #tpu.memory_space<vmem>>, vector<14x128xf32>
      tpu.vector_store %arg7[%c0_11, %c0_12], %12 {strides = array<i32>} : memref<14x128xf32, #tpu.memory_space<vmem>>, vector<14x128xf32>,
    } else {
    }
    %c0 = arith.constant 0 : index
    %c0_1 = arith.constant 0 : index
    %3 = vector.load %arg7[%c0, %c0_1] : memref<14x128xf32, #tpu.memory_space<vmem>>, vector<14x128xf32>
    %c0_2 = arith.constant 0 : index
    %c0_3 = arith.constant 0 : index
    %4 = vector.load %arg3[%c0_2, %c0_3] : memref<14x128xbf16, #tpu.memory_space<vmem>>, vector<14x128xbf16>
    %c0_4 = arith.constant 0 : index
    %c0_5 = arith.constant 0 : index
    %5 = vector.load %arg4[%c0_4, %c0_5] : memref<128x128xbf16, #tpu.memory_space<vmem>>, vector<128x128xbf16>
    %cst = arith.constant dense<0.000000e+00> : vector<14x128xf32>
    %6 = tpu.matmul %4, %5, %cst {dimension_numbers = #tpu.dot_dimension_numbers<[1], [0], [0], [1], [0, 0, 1, 1], [], []>} : vector<14x128xbf16>, vector<128x128xbf16>, vector<14x128xf32> -> vector<14x128xf32>
    %7 = arith.addf %3, %6 : vector<14x128xf32>
    %c0_6 = arith.constant 0 : index
    %c0_7 = arith.constant 0 : index
    %8 = vector.load %arg7[%c0_6, %c0_7] : memref<14x128xf32, #tpu.memory_space<vmem>>, vector<14x128xf32>
    tpu.vector_store %arg7[%c0_6, %c0_7], %7 {strides = array<i32>} : memref<14x128xf32, #tpu.memory_space<vmem>>, vector<14x128xf32>,
    %c0_i32_8 = arith.constant 0 : i32
    %9 = arith.cmpi eq, %arg2, %c0_i32_8 : i32
    %10 = arith.extui %9 : i1 to i32
    %c0_i32_9 = arith.constant 0 : i32
    %11 = arith.cmpi ne, %10, %c0_i32_9 : i32
    scf.if %11 {
      %c0_10 = arith.constant 0 : index
      %c0_11 = arith.constant 0 : index
      %12 = vector.load %arg7[%c0_10, %c0_11] : memref<14x128xf32, #tpu.memory_space<vmem>>, vector<14x128xf32>
      %c0_12 = arith.constant 0 : index
      %c0_13 = arith.constant 0 : index
      %13 = vector.load %arg5[%c0_12, %c0_13] : memref<1x128xf32, #tpu.memory_space<vmem>>, vector<1x128xf32>
      %14 = vector.broadcast %13 : vector<1x128xf32> to vector<14x128xf32>
      %15 = arith.addf %12, %14 : vector<14x128xf32>
      %c0_14 = arith.constant 0 : index
      %c0_15 = arith.constant 0 : index
      %16 = vector.load %arg6[%c0_14, %c0_15] : memref<14x128xf32, #tpu.memory_space<vmem>>, vector<14x128xf32>
      tpu.vector_store %arg6[%c0_14, %c0_15], %15 {strides = array<i32>} : memref<14x128xf32, #tpu.memory_space<vmem>>, vector<14x128xf32>,
    } else {
    }
    return
  }
  func.func @transform_0(%arg0: i32, %arg1: i32, %arg2: i32) -> (i32, i32) {
    %c0_i32 = arith.constant 0 : i32
    return %arg0, %arg2 : i32, i32
  }
  func.func @transform_1(%arg0: i32, %arg1: i32, %arg2: i32) -> (i32, i32) {
    %c0_i32 = arith.constant 0 : i32
    return %arg2, %arg1 : i32, i32
  }
  func.func @transform_2(%arg0: i32, %arg1: i32, %arg2: i32) -> (i32, i32) {
    %c0_i32 = arith.constant 0 : i32
    %c0_i32_0 = arith.constant 0 : i32
    return %c0_i32, %arg1 : i32, i32
  }
  func.func @transform_3(%arg0: i32, %arg1: i32, %arg2: i32) -> (i32, i32) {
    %c0_i32 = arith.constant 0 : i32
    return %arg0, %arg1 : i32, i32
  }
}

module attributes {stable_mosaic.version = 11 : i64} {
  func.func @_matmul_add_ln_kernel(%arg0: i32, %arg1: i32, %arg2: memref<14x256xbf16, #tpu.memory_space<vmem>>, %arg3: memref<256x128xbf16, #tpu.memory_space<vmem>>, %arg4: memref<1x128xf32, #tpu.memory_space<vmem>>, %arg5: memref<14x128xf32, #tpu.memory_space<vmem>>, %arg6: memref<1x128xf32, #tpu.memory_space<vmem>>, %arg7: memref<1x128xf32, #tpu.memory_space<vmem>>, %arg8: memref<14x128xf32, #tpu.memory_space<vmem>>, %arg9: memref<14x128xf32, #tpu.memory_space<vmem>>) attributes {dimension_semantics = [#tpu.dimension_semantics<parallel>, #tpu.dimension_semantics<arbitrary>], iteration_bounds = array<i64: 1, 1>, scalar_prefetch = 0 : i64, scratch_operands = 1 : i64, tpu.core_type = #tpu.core_type<tc>, window_params = [{transform_indices = @transform_0, window_bounds = array<i64: 14, 256>}, {transform_indices = @transform_1, window_bounds = array<i64: 256, 128>}, {pipeline_mode = #tpu.pipeline_mode<synchronous>, transform_indices = @transform_2, window_bounds = array<i64: 1, 128>}, {transform_indices = @transform_3, window_bounds = array<i64: 14, 128>}, {pipeline_mode = #tpu.pipeline_mode<synchronous>, transform_indices = @transform_4, window_bounds = array<i64: 1, 128>}, {pipeline_mode = #tpu.pipeline_mode<synchronous>, transform_indices = @transform_5, window_bounds = array<i64: 1, 128>}, {transform_indices = @transform_6, window_bounds = array<i64: 14, 128>}]} {
    %c0_i32 = arith.constant 0 : i32
    %0 = arith.cmpi eq, %arg1, %c0_i32 : i32
    %1 = arith.extui %0 : i1 to i32
    %c0_i32_0 = arith.constant 0 : i32
    %2 = arith.cmpi ne, %1, %c0_i32_0 : i32
    scf.if %2 {
      %cst_10 = arith.constant 0.000000e+00 : f32
      %12 = vector.broadcast %cst_10 : f32 to vector<14x128xf32>
      %c0_11 = arith.constant 0 : index
      %c0_12 = arith.constant 0 : index
      %13 = vector.load %arg9[%c0_11, %c0_12] : memref<14x128xf32, #tpu.memory_space<vmem>>, vector<14x128xf32>
      tpu.vector_store %arg9[%c0_11, %c0_12], %12 {strides = array<i32>} : memref<14x128xf32, #tpu.memory_space<vmem>>, vector<14x128xf32>,
    } else {
    }
    %c0 = arith.constant 0 : index
    %c0_1 = arith.constant 0 : index
    %3 = vector.load %arg9[%c0, %c0_1] : memref<14x128xf32, #tpu.memory_space<vmem>>, vector<14x128xf32>
    %c0_2 = arith.constant 0 : index
    %c0_3 = arith.constant 0 : index
    %4 = vector.load %arg2[%c0_2, %c0_3] : memref<14x256xbf16, #tpu.memory_space<vmem>>, vector<14x256xbf16>
    %c0_4 = arith.constant 0 : index
    %c0_5 = arith.constant 0 : index
    %5 = vector.load %arg3[%c0_4, %c0_5] : memref<256x128xbf16, #tpu.memory_space<vmem>>, vector<256x128xbf16>
    %cst = arith.constant dense<0.000000e+00> : vector<14x128xf32>
    %6 = tpu.matmul %4, %5, %cst {dimension_numbers = #tpu.dot_dimension_numbers<[1], [0], [0], [1], [0, 0, 1, 1], [], []>} : vector<14x256xbf16>, vector<256x128xbf16>, vector<14x128xf32> -> vector<14x128xf32>
    %7 = arith.addf %3, %6 : vector<14x128xf32>
    %c0_6 = arith.constant 0 : index
    %c0_7 = arith.constant 0 : index
    %8 = vector.load %arg9[%c0_6, %c0_7] : memref<14x128xf32, #tpu.memory_space<vmem>>, vector<14x128xf32>
    tpu.vector_store %arg9[%c0_6, %c0_7], %7 {strides = array<i32>} : memref<14x128xf32, #tpu.memory_space<vmem>>, vector<14x128xf32>,
    %c0_i32_8 = arith.constant 0 : i32
    %9 = arith.cmpi eq, %arg1, %c0_i32_8 : i32
    %10 = arith.extui %9 : i1 to i32
    %c0_i32_9 = arith.constant 0 : i32
    %11 = arith.cmpi ne, %10, %c0_i32_9 : i32
    scf.if %11 {
      %c0_10 = arith.constant 0 : index
      %c0_11 = arith.constant 0 : index
      %12 = vector.load %arg9[%c0_10, %c0_11] : memref<14x128xf32, #tpu.memory_space<vmem>>, vector<14x128xf32>
      %c0_12 = arith.constant 0 : index
      %c0_13 = arith.constant 0 : index
      %13 = vector.load %arg4[%c0_12, %c0_13] : memref<1x128xf32, #tpu.memory_space<vmem>>, vector<1x128xf32>
      %14 = vector.broadcast %13 : vector<1x128xf32> to vector<14x128xf32>
      %15 = arith.addf %12, %14 : vector<14x128xf32>
      %c0_14 = arith.constant 0 : index
      %c0_15 = arith.constant 0 : index
      %16 = vector.load %arg5[%c0_14, %c0_15] : memref<14x128xf32, #tpu.memory_space<vmem>>, vector<14x128xf32>
      %17 = arith.addf %15, %16 : vector<14x128xf32>
      %cst_16 = arith.constant dense<0.000000e+00> : vector<14xf32>
      %18 = vector.multi_reduction <add>, %17, %cst_16 [1] : vector<14x128xf32> to vector<14xf32>
      %19 = vector.shape_cast %18 : vector<14xf32> to vector<14x1xf32>
      %cst_17 = arith.constant 1.280000e+02 : f32
      %20 = vector.broadcast %cst_17 : f32 to vector<14x1xf32>
      %21 = arith.divf %19, %20 : vector<14x1xf32>
      %22 = vector.broadcast %21 : vector<14x1xf32> to vector<14x128xf32>
      %23 = arith.subf %17, %22 : vector<14x128xf32>
      %24 = arith.mulf %23, %23 : vector<14x128xf32>
      %cst_18 = arith.constant dense<0.000000e+00> : vector<14xf32>
      %25 = vector.multi_reduction <add>, %24, %cst_18 [1] : vector<14x128xf32> to vector<14xf32>
      %26 = vector.shape_cast %25 : vector<14xf32> to vector<14x1xf32>
      %cst_19 = arith.constant 1.280000e+02 : f32
      %27 = vector.broadcast %cst_19 : f32 to vector<14x1xf32>
      %28 = arith.divf %26, %27 : vector<14x1xf32>
      %29 = vector.broadcast %21 : vector<14x1xf32> to vector<14x128xf32>
      %30 = arith.subf %17, %29 : vector<14x128xf32>
      %cst_20 = arith.constant 9.99999974E-6 : f32
      %31 = vector.broadcast %cst_20 : f32 to vector<14x1xf32>
      %32 = arith.addf %28, %31 : vector<14x1xf32>
      %33 = math.rsqrt %32 : vector<14x1xf32>
      %34 = vector.broadcast %33 : vector<14x1xf32> to vector<14x128xf32>
      %35 = arith.mulf %30, %34 : vector<14x128xf32>
      %c0_21 = arith.constant 0 : index
      %c0_22 = arith.constant 0 : index
      %36 = vector.load %arg6[%c0_21, %c0_22] : memref<1x128xf32, #tpu.memory_space<vmem>>, vector<1x128xf32>
      %37 = vector.broadcast %36 : vector<1x128xf32> to vector<14x128xf32>
      %38 = arith.mulf %35, %37 : vector<14x128xf32>
      %c0_23 = arith.constant 0 : index
      %c0_24 = arith.constant 0 : index
      %39 = vector.load %arg7[%c0_23, %c0_24] : memref<1x128xf32, #tpu.memory_space<vmem>>, vector<1x128xf32>
      %40 = vector.broadcast %39 : vector<1x128xf32> to vector<14x128xf32>
      %41 = arith.addf %38, %40 : vector<14x128xf32>
      %c0_25 = arith.constant 0 : index
      %c0_26 = arith.constant 0 : index
      %42 = vector.load %arg8[%c0_25, %c0_26] : memref<14x128xf32, #tpu.memory_space<vmem>>, vector<14x128xf32>
      tpu.vector_store %arg8[%c0_25, %c0_26], %41 {strides = array<i32>} : memref<14x128xf32, #tpu.memory_space<vmem>>, vector<14x128xf32>,
    } else {
    }
    return
  }
  func.func @transform_0(%arg0: i32, %arg1: i32) -> (i32, i32) {
    %c0_i32 = arith.constant 0 : i32
    return %arg0, %arg1 : i32, i32
  }
  func.func @transform_1(%arg0: i32, %arg1: i32) -> (i32, i32) {
    %c0_i32 = arith.constant 0 : i32
    %c0_i32_0 = arith.constant 0 : i32
    return %arg1, %c0_i32 : i32, i32
  }
  func.func @transform_2(%arg0: i32, %arg1: i32) -> (i32, i32) {
    %c0_i32 = arith.constant 0 : i32
    %c0_i32_0 = arith.constant 0 : i32
    %c0_i32_1 = arith.constant 0 : i32
    return %c0_i32, %c0_i32_0 : i32, i32
  }
  func.func @transform_3(%arg0: i32, %arg1: i32) -> (i32, i32) {
    %c0_i32 = arith.constant 0 : i32
    %c0_i32_0 = arith.constant 0 : i32
    return %arg0, %c0_i32 : i32, i32
  }
  func.func @transform_4(%arg0: i32, %arg1: i32) -> (i32, i32) {
    %c0_i32 = arith.constant 0 : i32
    %c0_i32_0 = arith.constant 0 : i32
    %c0_i32_1 = arith.constant 0 : i32
    return %c0_i32, %c0_i32_0 : i32, i32
  }
  func.func @transform_5(%arg0: i32, %arg1: i32) -> (i32, i32) {
    %c0_i32 = arith.constant 0 : i32
    %c0_i32_0 = arith.constant 0 : i32
    %c0_i32_1 = arith.constant 0 : i32
    return %c0_i32, %c0_i32_0 : i32, i32
  }
  func.func @transform_6(%arg0: i32, %arg1: i32) -> (i32, i32) {
    %c0_i32 = arith.constant 0 : i32
    %c0_i32_0 = arith.constant 0 : i32
    return %arg0, %c0_i32 : i32, i32
  }
}

</mosaic_0001>

<llo_original>
// kernel: transformer_forward.39
$region0: #{transformer_forward.39}
  #allocation0 [shape = 'u32[]', space=smem, size = 0x4, offset = 0x4, fixed_abs, tag = 'smem constant byte address 0x4 - core index']
  #allocation1 [shape = 'u32[144,128]{1,0:T(1,128)}', space=vmem, size = 0x12000, scoped, tag = 'internal scratch']
  #allocation2 [shape = 'f32[14,128]{1,0:T(8,128)}', space=vmem, size = 0x2000, scoped, tag = 'scratch operand']
  %s0 = inlined_call_operand.vmem [shape: bf16[14,128], index: 0, kind: input, shape index: {}]
  %s1 = inlined_call_operand.vmem [shape: bf16[128,384], index: 1, kind: input, shape index: {}]
  %s2 = inlined_call_operand.vmem [shape: f32[1,384], index: 2, kind: input, shape index: {}]
  %s3 = inlined_call_operand.vmem [shape: bf16[14,384], index: 3, kind: output, shape index: {}]
  %s4 = sld [smem:[#allocation0]]
  $region131: #{transformer_forward.39} parent=0
    _
  %s6 = ssub.s32 1, %s4
  %s7 = scalar_select 0, %s6, %s4
  $region1: #{transformer_forward.39} parent=0
    #allocation3 [shape = 'u8[65536]{0}', space=vmem, size = 0x10000, scoped, tag = 'input window, operand 1']
    #allocation4 [shape = 'u8[8192]{0}', space=vmem, size = 0x2000, scoped, tag = 'output window, operand 0']
    loop: start=0, step=1, limit=5
    $region2: #{transformer_forward.39} parent=1 // loop_pre_header
      _
    $region3: #{transformer_forward.39} parent=1 // loop_header
      %s9 = sphi 0, %s13
      %p10 = scmp.ge.s32.totalorder %s9, 5
      %s16 = sphi 0, %s35
      %s17 = sphi 0, %s31
      %s18 = sphi 0, %s27
      %s19 = sphi 0, %s16
      %s20 = sphi 0, %s17
      %s21 = sphi 0, %s18
      %s22 = sphi 0, %s19
      %s23 = sphi 0, %s20
      %s24 = sphi 0, %s21
      %s40 = sphi 0, %s42
      %s43 = sphi 0, %s40
      %s44 = sphi 0, %s43
      %s60 = sphi 0, %s44
      %s68 = sphi 0, %s70
      %s71 = sphi 0, %s68
      %s72 = sphi 0, %s71
      %s88 = sphi 0, %s72
      %s94 = sphi 0, %s96
      %s97 = sphi 0, %s94
      %s98 = sphi 0, %s97
      %s114 = sphi 0, %s98
      %s122 = sphi 0, %s124
      %s125 = sphi 0, %s122
      %s126 = sphi 0, %s125
      %s142 = sphi 0, %s126
    $region4: #{transformer_forward.39} parent=1 // loop_header_branch
      %12 = sbr.rel (%p10) target = $region8
    $region5: #{transformer_forward.39} parent=1 // loop_body
      %s14 = ssub.s32 %s9, 1
      %s15 = ssub.s32 %s9, 2
      %s25 = sadd.s32 1, %s18
      %p26 = scmp.ge.s32.totalorder %s25, 1
      %s27 = scalar_select %p26, 0, %s25
      %s28 = sadd.s32 1, %s17
      %s29 = scalar_select %p26, %s28, %s17
      %p30 = scmp.ge.s32.totalorder %s29, 3
      %s31 = scalar_select %p30, 0, %s29
      %s32 = sadd.s32 1, %s16
      %s33 = scalar_select %p30, %s32, %s16
      %p34 = scmp.ge.s32.totalorder %s33, 1
      %s35 = scalar_select %p34, 0, %s33
      %s36 = ssub.s32 %s16, %s35
      %s37 = ssub.s32 %s18, %s27
      %s38 = sor.u32 %s36, %s37
      %p39 = scmp.eq.s32.totalorder %s38, 0
      %s41 = sadd.s32 %s40, 1
      %s42 = scalar_select %p39, %s40, %s41
      %p45 = pneg %p39
      %p46 = scmp.eq.s32.totalorder %s9, 2
      %p47 = por %p45, %p46
      %p48 = scmp.ne.s32.totalorder %s40, %s43
      %p49 = scmp.eq.s32.totalorder %s9, 0
      %p50 = por %p48, %p49
      %p51 = scmp.ne.s32.totalorder %s40, %s43
      %p52 = scmp.eq.s32.totalorder %s14, 2
      %p53 = por %p51, %p52
      %p54 = scmp.ne.s32.totalorder %s43, %s44
      %p55 = scmp.eq.s32.totalorder %s14, 0
      %p56 = por %p54, %p55
      %p57 = scmp.ne.s32.totalorder %s43, %s44
      %p58 = scmp.eq.s32.totalorder %s15, 2
      %p59 = por %p57, %p58
      %p61 = scmp.ne.s32.totalorder %s44, %s60
      %p62 = scmp.eq.s32.totalorder %s15, 0
      %p63 = por %p61, %p62
      %s64 = ssub.s32 %s18, %s27
      %s65 = ssub.s32 %s17, %s31
      %s66 = sor.u32 %s64, %s65
      %p67 = scmp.eq.s32.totalorder %s66, 0
      %s69 = sadd.s32 %s68, 1
      %s70 = scalar_select %p67, %s68, %s69
      %p73 = pneg %p67
      %p74 = scmp.eq.s32.totalorder %s9, 2
      %p75 = por %p73, %p74
      %p76 = scmp.ne.s32.totalorder %s68, %s71
      %p77 = scmp.eq.s32.totalorder %s9, 0
      %p78 = por %p76, %p77
      %p79 = scmp.ne.s32.totalorder %s68, %s71
      %p80 = scmp.eq.s32.totalorder %s14, 2
      %p81 = por %p79, %p80
      %p82 = scmp.ne.s32.totalorder %s71, %s72
      %p83 = scmp.eq.s32.totalorder %s14, 0
      %p84 = por %p82, %p83
      %p85 = scmp.ne.s32.totalorder %s71, %s72
      %p86 = scmp.eq.s32.totalorder %s15, 2
      %p87 = por %p85, %p86
      %p89 = scmp.ne.s32.totalorder %s72, %s88
      %p90 = scmp.eq.s32.totalorder %s15, 0
      %p91 = por %p89, %p90
      %s92 = ssub.s32 %s17, %s31
      %p93 = scmp.eq.s32.totalorder %s92, 0
      %s95 = sadd.s32 %s94, 1
      %s96 = scalar_select %p93, %s94, %s95
      %p99 = pneg %p93
      %p100 = scmp.eq.s32.totalorder %s9, 2
      %p101 = por %p99, %p100
      %p102 = scmp.ne.s32.totalorder %s94, %s97
      %p103 = scmp.eq.s32.totalorder %s9, 0
      %p104 = por %p102, %p103
      %p105 = scmp.ne.s32.totalorder %s94, %s97
      %p106 = scmp.eq.s32.totalorder %s14, 2
      %p107 = por %p105, %p106
      %p108 = scmp.ne.s32.totalorder %s97, %s98
      %p109 = scmp.eq.s32.totalorder %s14, 0
      %p110 = por %p108, %p109
      %p111 = scmp.ne.s32.totalorder %s97, %s98
      %p112 = scmp.eq.s32.totalorder %s15, 2
      %p113 = por %p111, %p112
      %p115 = scmp.ne.s32.totalorder %s98, %s114
      %p116 = scmp.eq.s32.totalorder %s15, 0
      %p117 = por %p115, %p116
      %s118 = ssub.s32 %s16, %s35
      %s119 = ssub.s32 %s17, %s31
      %s120 = sor.u32 %s118, %s119
      %p121 = scmp.eq.s32.totalorder %s120, 0
      %s123 = sadd.s32 %s122, 1
      %s124 = scalar_select %p121, %s122, %s123
      %p127 = pneg %p121
      %p128 = scmp.eq.s32.totalorder %s9, 2
      %p129 = por %p127, %p128
      %p130 = scmp.ne.s32.totalorder %s122, %s125
      %p131 = scmp.eq.s32.totalorder %s9, 0
      %p132 = por %p130, %p131
      %p133 = scmp.ne.s32.totalorder %s122, %s125
      %p134 = scmp.eq.s32.totalorder %s14, 2
      %p135 = por %p133, %p134
      %p136 = scmp.ne.s32.totalorder %s125, %s126
      %p137 = scmp.eq.s32.totalorder %s14, 0
      %p138 = por %p136, %p137
      %p139 = scmp.ne.s32.totalorder %s125, %s126
      %p140 = scmp.eq.s32.totalorder %s15, 2
      %p141 = por %p139, %p140
      %p143 = scmp.ne.s32.totalorder %s126, %s142
      %p144 = scmp.eq.s32.totalorder %s15, 0
      %p145 = por %p143, %p144
      %p146 = scmp.le.s32.totalorder 1, %s9
      %p147 = scmp.lt.s32.totalorder %s9, 4
      %p148 = pnand %p146, %p147
      %p149 = pneg %p148
      // Predicated region
      $region9: #{transformer_forward.39} parent=5 // pred_check
        _
      $region10: #{transformer_forward.39} parent=5 // pred_check_branch
        %151 = sbr.rel (%p148) target = $region12
      $region11: #{transformer_forward.39} parent=5 // pred_region
        %s152 = ssub.s32 %s9, 1
        // Predicated region
        $region13: #{transformer_forward.39} parent=11 // pred_check
          %p153 = pneg %p56
        $region14: #{transformer_forward.39} parent=11 // pred_check_branch
          %155 = sbr.rel (%p153) target = $region16
        $region15: #{transformer_forward.39} parent=11 // pred_region
          %s156 = smul.u32 2, %s19
          %p157 = scmp.lt.s32.totalorder %s156, 1
          %s158 = scalar_select %p157, %s156, 1
          %p159 = scmp.lt.s32.totalorder %s21, 0
          %s160 = scalar_select %p159, %s21, 0
          %s161 = sadd.s32 %s160, %s158
          %s162 = smul.addr %s161, 4
          %s163 = scalar_lea.vmem %s0, %s162
          %s164 = smul.u32 2, %s19
        $region16: #{transformer_forward.39} parent=11 // pred_fallthru
          _
      $region12: #{transformer_forward.39} parent=5 // pred_fallthru
        _
      %p165 = scmp.lt.s32.totalorder %s9, 3
      // Predicated region
      $region17: #{transformer_forward.39} parent=5 // pred_check
        %p166 = pneg %p165
      $region18: #{transformer_forward.39} parent=5 // pred_check_branch
        %168 = sbr.rel (%p166) target = $region20
      $region19: #{transformer_forward.39} parent=5 // pred_region
        // Predicated region
        $region21: #{transformer_forward.39} parent=19 // pred_check
          %p169 = pneg %p78
        $region22: #{transformer_forward.39} parent=19 // pred_check_branch
          %171 = sbr.rel (%p169) target = $region24
        $region23: #{transformer_forward.39} parent=19 // pred_region
          %s172 = sand.u32 %s68, 1
          %s173 = sand.u32 %s68, 1
          %s174 = smul.addr %s173, 64
          %s175 = scalar_lea.vmem [#allocation3], %s174
          %s176 = smul.u32 16, %s18
          %s177 = smul.addr %s176, 3
          %s178 = sadd.s32 %s17, %s177
          %s179 = smul.addr %s178, 4
          %s180 = scalar_lea.vmem %s1, %s179
          // Predicated region
          $region25: #{transformer_forward.39} parent=23 // pred_check
            _
          $region26: #{transformer_forward.39} parent=23 // pred_check_branch
            %182 = sbr.rel (0) target = $region28
          $region27: #{transformer_forward.39} parent=23 // pred_region
            // Predicated region
            $region29: #{transformer_forward.39} parent=27 // pred_check
              _
            $region30: #{transformer_forward.39} parent=27 // pred_check_branch
              %184 = sbr.rel target = $region32
            $region31: #{transformer_forward.39} parent=27 // pred_region
              // Predicated region
              $region44: #{transformer_forward.39} parent=31 // pred_check
                _
              $region45: #{transformer_forward.39} parent=31 // pred_check_branch
                %230 = sbr.rel (0) target = $region47
              $region46: #{transformer_forward.39} parent=31 // pred_region
                loop: start=0, step=1, limit=1
                $region48: #{transformer_forward.39} parent=46 // loop_pre_header
                  _
                $region49: #{transformer_forward.39} parent=46 // loop_header
                  %s232 = sphi 0, %s236
                  %p233 = scmp.ge.s32.totalorder %s232, 1
                  %s237 = sphi %s180, %s180
                  %s238 = sphi %s175, %s175
                $region50: #{transformer_forward.39} parent=46 // loop_header_branch
                  %235 = sbr.rel (%p233) target = $region54
                $region51: #{transformer_forward.39} parent=46 // loop_body
                  _
                $region52: #{transformer_forward.39} parent=46 // loop_footer
                  %s236 = sadd.s32 1, %s232
                $region53: #{transformer_forward.39} parent=46 // loop_footer_branch
                  %231 = sbr.rel target = $region49
                $region54: #{transformer_forward.39} parent=46 // loop_exit
                  _
                %s240 = ssub.s32 16, 1
                loop: start=0, step=1, limit=1
                $region55: #{transformer_forward.39} parent=46 // loop_pre_header
                  _
                $region56: #{transformer_forward.39} parent=46 // loop_header
                  %s242 = sphi 0, %s246
                  %p243 = scmp.ge.s32.totalorder %s242, 1
                  %s247 = sphi %s180, %s180
                  %s248 = sphi %s175, %s175
                $region57: #{transformer_forward.39} parent=46 // loop_header_branch
                  %245 = sbr.rel (%p243) target = $region61
                $region58: #{transformer_forward.39} parent=46 // loop_body
                  %v249 = vld [vmem:[%s247] sm:%s240]
                  %250 = vst [vmem:[%s248] sm:%s240] %v249
                  %v251 = vld [vmem:[%s247 + $0xc] sm:%s240]
                  %252 = vst [vmem:[%s248 + $0x4] sm:%s240] %v251
                  %v253 = vld [vmem:[%s247 + $0x18] sm:%s240]
                  %254 = vst [vmem:[%s248 + $0x8] sm:%s240] %v253
                  %v255 = vld [vmem:[%s247 + $0x24] sm:%s240]
                  %256 = vst [vmem:[%s248 + $0xc] sm:%s240] %v255
                  %v257 = vld [vmem:[%s247 + $0x30] sm:%s240]
                  %258 = vst [vmem:[%s248 + $0x10] sm:%s240] %v257
                  %v259 = vld [vmem:[%s247 + $0x3c] sm:%s240]
                  %260 = vst [vmem:[%s248 + $0x14] sm:%s240] %v259
                  %v261 = vld [vmem:[%s247 + $0x48] sm:%s240]
                  %262 = vst [vmem:[%s248 + $0x18] sm:%s240] %v261
                  %v263 = vld [vmem:[%s247 + $0x54] sm:%s240]
                  %264 = vst [vmem:[%s248 + $0x1c] sm:%s240] %v263
                  %v265 = vld [vmem:[%s247 + $0x60] sm:%s240]
                  %266 = vst [vmem:[%s248 + $0x20] sm:%s240] %v265
                  %v267 = vld [vmem:[%s247 + $0x6c] sm:%s240]
                  %268 = vst [vmem:[%s248 + $0x24] sm:%s240] %v267
                  %v269 = vld [vmem:[%s247 + $0x78] sm:%s240]
                  %270 = vst [vmem:[%s248 + $0x28] sm:%s240] %v269
                  %v271 = vld [vmem:[%s247 + $0x84] sm:%s240]
                  %272 = vst [vmem:[%s248 + $0x2c] sm:%s240] %v271
                  %v273 = vld [vmem:[%s247 + $0x90] sm:%s240]
                  %274 = vst [vmem:[%s248 + $0x30] sm:%s240] %v273
                  %v275 = vld [vmem:[%s247 + $0x9c] sm:%s240]
                  %276 = vst [vmem:[%s248 + $0x34] sm:%s240] %v275
                  %v277 = vld [vmem:[%s247 + $0xa8] sm:%s240]
                  %278 = vst [vmem:[%s248 + $0x38] sm:%s240] %v277
                  %v279 = vld [vmem:[%s247 + $0xb4] sm:%s240]
                  %280 = vst [vmem:[%s248 + $0x3c] sm:%s240] %v279
                $region59: #{transformer_forward.39} parent=46 // loop_footer
                  %s246 = sadd.s32 1, %s242
                $region60: #{transformer_forward.39} parent=46 // loop_footer_branch
                  %241 = sbr.rel target = $region56
                $region61: #{transformer_forward.39} parent=46 // loop_exit
                  _
              $region47: #{transformer_forward.39} parent=31 // pred_fallthru
                _
            $region32: #{transformer_forward.39} parent=27 // pred_fallthru
              _
            // Predicated region
            $region33: #{transformer_forward.39} parent=27 // pred_check
              _
            $region34: #{transformer_forward.39} parent=27 // pred_check_branch
              %186 = sbr.rel (0) target = $region36
            $region35: #{transformer_forward.39} parent=27 // pred_region
              %s188 = ssub.s32 16, 1
              loop: start=0, step=1, limit=1
              $region37: #{transformer_forward.39} parent=35 // loop_pre_header
                _
              $region38: #{transformer_forward.39} parent=35 // loop_header
                %s190 = sphi 0, %s194
                %p191 = scmp.ge.s32.totalorder %s190, 1
                %s195 = sphi %s180, %s180
                %s196 = sphi %s175, %s175
              $region39: #{transformer_forward.39} parent=35 // loop_header_branch
                %193 = sbr.rel (%p191) target = $region43
              $region40: #{transformer_forward.39} parent=35 // loop_body
                %v197 = vld [vmem:[%s195] sm:%s188]
                %198 = vst [vmem:[%s196] sm:%s188] %v197
                %v199 = vld [vmem:[%s195 + $0xc] sm:%s188]
                %200 = vst [vmem:[%s196 + $0x4] sm:%s188] %v199
                %v201 = vld [vmem:[%s195 + $0x18] sm:%s188]
                %202 = vst [vmem:[%s196 + $0x8] sm:%s188] %v201
                %v203 = vld [vmem:[%s195 + $0x24] sm:%s188]
                %204 = vst [vmem:[%s196 + $0xc] sm:%s188] %v203
                %v205 = vld [vmem:[%s195 + $0x30] sm:%s188]
                %206 = vst [vmem:[%s196 + $0x10] sm:%s188] %v205
                %v207 = vld [vmem:[%s195 + $0x3c] sm:%s188]
                %208 = vst [vmem:[%s196 + $0x14] sm:%s188] %v207
                %v209 = vld [vmem:[%s195 + $0x48] sm:%s188]
                %210 = vst [vmem:[%s196 + $0x18] sm:%s188] %v209
                %v211 = vld [vmem:[%s195 + $0x54] sm:%s188]
                %212 = vst [vmem:[%s196 + $0x1c] sm:%s188] %v211
                %v213 = vld [vmem:[%s195 + $0x60] sm:%s188]
                %214 = vst [vmem:[%s196 + $0x20] sm:%s188] %v213
                %v215 = vld [vmem:[%s195 + $0x6c] sm:%s188]
                %216 = vst [vmem:[%s196 + $0x24] sm:%s188] %v215
                %v217 = vld [vmem:[%s195 + $0x78] sm:%s188]
                %218 = vst [vmem:[%s196 + $0x28] sm:%s188] %v217
                %v219 = vld [vmem:[%s195 + $0x84] sm:%s188]
                %220 = vst [vmem:[%s196 + $0x2c] sm:%s188] %v219
                %v221 = vld [vmem:[%s195 + $0x90] sm:%s188]
                %222 = vst [vmem:[%s196 + $0x30] sm:%s188] %v221
                %v223 = vld [vmem:[%s195 + $0x9c] sm:%s188]
                %224 = vst [vmem:[%s196 + $0x34] sm:%s188] %v223
                %v225 = vld [vmem:[%s195 + $0xa8] sm:%s188]
                %226 = vst [vmem:[%s196 + $0x38] sm:%s188] %v225
                %v227 = vld [vmem:[%s195 + $0xb4] sm:%s188]
                %228 = vst [vmem:[%s196 + $0x3c] sm:%s188] %v227
              $region41: #{transformer_forward.39} parent=35 // loop_footer
                %s194 = sadd.s32 1, %s190
              $region42: #{transformer_forward.39} parent=35 // loop_footer_branch
                %189 = sbr.rel target = $region38
              $region43: #{transformer_forward.39} parent=35 // loop_exit
                _
            $region36: #{transformer_forward.39} parent=27 // pred_fallthru
              _
          $region28: #{transformer_forward.39} parent=23 // pred_fallthru
            _
          %281 = vnop
        $region24: #{transformer_forward.39} parent=19 // pred_fallthru
          _
        // Predicated region
        $region62: #{transformer_forward.39} parent=19 // pred_check
          %p282 = pneg %p104
        $region63: #{transformer_forward.39} parent=19 // pred_check_branch
          %284 = sbr.rel (%p282) target = $region65
        $region64: #{transformer_forward.39} parent=19 // pred_region
          %p285 = scmp.lt.s32.totalorder %s17, 2
          %s286 = scalar_select %p285, %s17, 2
          %s287 = scalar_lea.vmem %s2, %s286
        $region65: #{transformer_forward.39} parent=19 // pred_fallthru
          _
      $region20: #{transformer_forward.39} parent=5 // pred_fallthru
        _
      %p288 = scmp.le.s32.totalorder 1, %s9
      %p289 = scmp.lt.s32.totalorder %s9, 4
      %p290 = pnand %p288, %p289
      %p291 = pneg %p290
      // Predicated region
      $region66: #{transformer_forward.39} parent=5 // pred_check
        _
      $region67: #{transformer_forward.39} parent=5 // pred_check_branch
        %293 = sbr.rel (%p290) target = $region69
      $region68: #{transformer_forward.39} parent=5 // pred_region
        %s294 = ssub.s32 %s9, 1
        %s295 = sand.u32 %s71, 1
        %s296 = sand.u32 %s71, 1
        %s297 = smul.addr %s296, 64
        %s298 = scalar_lea.vmem [#allocation3], %s297
        // Predicated region
        $region70: #{transformer_forward.39} parent=68 // pred_check
          %p299 = pneg %p84
        $region71: #{transformer_forward.39} parent=68 // pred_check_branch
          %301 = sbr.rel (%p299) target = $region73
        $region72: #{transformer_forward.39} parent=68 // pred_region
          _
        $region73: #{transformer_forward.39} parent=68 // pred_fallthru
          _
        %s302 = smul.u32 2, %s19
        %p303 = scmp.lt.s32.totalorder %s302, 1
        %s304 = scalar_select %p303, %s302, 1
        %p305 = scmp.lt.s32.totalorder %s21, 0
        %s306 = scalar_select %p305, %s21, 0
        %s307 = sadd.s32 %s306, %s304
        %s308 = smul.addr %s307, 4
        %s309 = scalar_lea.vmem %s0, %s308
        %p310 = pneg %p56
        %p311 = pneg %p53
        %s312 = sand.u32 %s71, 1
        %s313 = sand.u32 %s71, 1
        %s314 = smul.addr %s313, 64
        %s315 = scalar_lea.vmem [#allocation3], %s314
        %p316 = pneg %p84
        %p317 = pneg %p81
        %p318 = scmp.lt.s32.totalorder %s20, 2
        %s319 = scalar_select %p318, %s20, 2
        %s320 = scalar_lea.vmem %s2, %s319
        %p321 = pneg %p110
        %p322 = pneg %p107
        %p323 = pneg %p138
        %p324 = pneg %p135
        %s325 = sand.u32 %s125, 1
        %s326 = sand.u32 %s125, 1
        %s327 = smul.addr %s326, 8
        %s328 = scalar_lea.vmem [#allocation4], %s327
        %s329 = smul.u32 2, %s19
        %p330 = scmp.lt.s32.totalorder %s329, 1
        %s331 = scalar_select %p330, %s329, 1
        %p332 = scmp.lt.s32.totalorder %s21, 0
        %s333 = scalar_select %p332, %s21, 0
        %s334 = sadd.s32 %s333, %s331
        %s335 = smul.addr %s334, 4
        %s336 = scalar_lea.vmem %s0, %s335
        %s337 = smul.u32 2, %s19
        %s338 = smul.u32 16, %s21
        %p339 = scmp.lt.s32.totalorder %s20, 2
        %s340 = scalar_select %p339, %s20, 2
        %s341 = scalar_lea.vmem %s2, %s340
        %s342 = smul.u32 2, %s19
        %p344 = scmp.eq.s32.totalorder %s21, 0
        // Predicated region
        $region74: #{transformer_forward.39} parent=68 // pred_check
          %p345 = pneg %p344
        $region75: #{transformer_forward.39} parent=68 // pred_check_branch
          %347 = sbr.rel (%p345) target = $region77
        $region76: #{transformer_forward.39} parent=68 // pred_region
          %348 = vst [vmem:[#allocation2] sm:$0xff] 0.0
          %349 = vst [vmem:[#allocation2 + $0x8] sm:$0x3f] 0.0
        $region77: #{transformer_forward.39} parent=68 // pred_fallthru
          _
        %v350 = vld [vmem:[#allocation2] sm:$0xff]
        %v351 = vld [vmem:[#allocation2 + $0x8] sm:$0x3f]
        %v352 = vld [vmem:[%s336] sm:$0xf]
        %v353 = vld [vmem:[%s336 + $0x4] sm:$0x7]
        %v354 = vld [vmem:[%s298] sm:$0xf]
        %v355 = vld [vmem:[%s298 + $0x4] sm:$0xf]
        %v356 = vld [vmem:[%s298 + $0x8] sm:$0xf]
        %v357 = vld [vmem:[%s298 + $0xc] sm:$0xf]
        %v358 = vld [vmem:[%s298 + $0x10] sm:$0xf]
        %v359 = vld [vmem:[%s298 + $0x14] sm:$0xf]
        %v360 = vld [vmem:[%s298 + $0x18] sm:$0xf]
        %v361 = vld [vmem:[%s298 + $0x1c] sm:$0xf]
        %v362 = vld [vmem:[%s298 + $0x20] sm:$0xf]
        %v363 = vld [vmem:[%s298 + $0x24] sm:$0xf]
        %v364 = vld [vmem:[%s298 + $0x28] sm:$0xf]
        %v365 = vld [vmem:[%s298 + $0x2c] sm:$0xf]
        %v366 = vld [vmem:[%s298 + $0x30] sm:$0xf]
        %v367 = vld [vmem:[%s298 + $0x34] sm:$0xf]
        %v368 = vld [vmem:[%s298 + $0x38] sm:$0xf]
        %v369 = vld [vmem:[%s298 + $0x3c] sm:$0xf]
        %v372 = vunpack.c.l.b16 %v352
        %v373 = vunpack.c.l.b16 %v353
        %v374 = vpack.c.b16 %v373, %v372
        %v392 = vunpack.c.l.b16 %v354
        %v393 = vunpack.c.l.b16 %v355
        %v394 = vunpack.c.l.b16 %v356
        %v395 = vunpack.c.l.b16 %v357
        %v396 = vunpack.c.l.b16 %v358
        %v397 = vunpack.c.l.b16 %v359
        %v398 = vunpack.c.l.b16 %v360
        %v399 = vunpack.c.l.b16 %v361
        %v400 = vunpack.c.l.b16 %v362
        %v401 = vunpack.c.l.b16 %v363
        %v402 = vunpack.c.l.b16 %v364
        %v403 = vunpack.c.l.b16 %v365
        %v404 = vunpack.c.l.b16 %v366
        %v405 = vunpack.c.l.b16 %v367
        %v406 = vunpack.c.l.b16 %v368
        %v407 = vunpack.c.l.b16 %v369
        %v408 = vpack.c.b16 %v393, %v392
        %v409 = vpack.c.b16 %v395, %v394
        %v410 = vpack.c.b16 %v397, %v396
        %v411 = vpack.c.b16 %v399, %v398
        %v412 = vpack.c.b16 %v401, %v400
        %v413 = vpack.c.b16 %v403, %v402
        %v414 = vpack.c.b16 %v405, %v404
        %v415 = vpack.c.b16 %v407, %v406
        %424 = vmatprep.subr.bf16.mxu0 0
        %425 = vmatpush1.bf16.msra.mxu0 %v415
        %426 = vmatprep.subr.bf16.mxu0 0
        %427 = vmatpush1.bf16.msra.mxu0 %v414
        %428 = vmatprep.subr.bf16.mxu0 0
        %429 = vmatpush1.bf16.msra.mxu0 %v413
        %430 = vmatprep.subr.bf16.mxu0 0
        %431 = vmatpush1.bf16.msra.mxu0 %v412
        %432 = vmatprep.subr.bf16.mxu0 0
        %433 = vmatpush1.bf16.msra.mxu0 %v411
        %434 = vmatprep.subr.bf16.mxu0 0
        %435 = vmatpush1.bf16.msra.mxu0 %v410
        %436 = vmatprep.subr.bf16.mxu0 0
        %437 = vmatpush1.bf16.msra.mxu0 %v409
        %438 = vmatprep.subr.bf16.mxu0 0
        %439 = vmatpush1.bf16.msra.mxu0 %v408
        %440 = vmatprep.subr.bf16.mxu0 0
        %441 = vmatpush2.bf16.msra.mxu0 0
        %442 = vmatprep.subr.bf16.mxu0 0
        %443 = vmatpush2.bf16.msra.mxu0 0
        %444 = vmatprep.subr.bf16.mxu0 0
        %445 = vmatpush2.bf16.msra.mxu0 0
        %446 = vmatprep.subr.bf16.mxu0 0
        %447 = vmatpush2.bf16.msra.mxu0 0
        %448 = vmatprep.subr.bf16.mxu0 0
        %449 = vmatpush2.bf16.msra.mxu0 0
        %450 = vmatprep.subr.bf16.mxu0 0
        %451 = vmatpush2.bf16.msra.mxu0 0
        %452 = vmatprep.subr.bf16.mxu0 0
        %453 = vmatpush2.bf16.msra.mxu0 0
        %454 = vmatprep.subr.bf16.mxu0 0
        %455 = vmatpush2.bf16.msra.mxu0 0
        %456 = vmatprep.mubr.bf16.mxu0 0
        %457 = vmatmul.mubr.bf16.gmra.mxu0 %v374
        %v458 = vpop.f32.mrf.mxu0
        %v459 = vadd.f32 0.0, %v458
        %v460 = vpop.f32.mrf.mxu0
        %v461 = vpop.f32.mrf.mxu0
        %v462 = vadd.f32 0.0, %v461
        %v463 = vpop.f32.mrf.mxu0
        %464 = vdwg.mxu0
        %v465 = vadd.f32 %v350, %v459
        %v466 = vadd.f32 %v351, %v462
        %467 = vst [vmem:[#allocation2] sm:$0xff] %v465
        %468 = vst [vmem:[#allocation2 + $0x8] sm:$0x3f] %v466
        // Predicated region
        $region78: #{transformer_forward.39} parent=68 // pred_check
          %p469 = pneg %p344
        $region79: #{transformer_forward.39} parent=68 // pred_check_branch
          %471 = sbr.rel (%p469) target = $region81
        $region80: #{transformer_forward.39} parent=68 // pred_region
          %v472 = vld [vmem:[#allocation2] sm:$0xff]
          %v473 = vld [vmem:[#allocation2 + $0x8] sm:$0x3f]
          %v474 = vld [vmem:[%s341] sm:$0x1]
          %v476 = vlaneseq
          %v477 = vshrl.u32 %v476, 7
          %v478 = vsub.s32 0, %v477
          %v479 = vrot.slane %v474, %v478
          %v481 = vadd.f32 %v472, %v479
          %v482 = vadd.f32 %v473, %v479
          %v483 = vpack.c.bf16 %v482, %v481
          %v485 = vunpack.c.l.b16 %v483
          %v486 = vunpack.c.h.b16 %v483
          %v487 = vpack.c.b16 %v485, %v485
          %v488 = vpack.c.b16 %v486, %v486
          %491 = vst [vmem:[%s328] sm:$0xf] %v487
          %492 = vst [vmem:[%s328 + $0x4] sm:$0x7] %v488
        $region81: #{transformer_forward.39} parent=68 // pred_fallthru
          _
        %s493 = sand.u32 %s125, 1
        %s494 = sand.u32 %s125, 1
        %s495 = smul.addr %s494, 8
        %s496 = scalar_lea.vmem [#allocation4], %s495
        // Predicated region
        $region82: #{transformer_forward.39} parent=68 // pred_check
          %p497 = pneg %p135
        $region83: #{transformer_forward.39} parent=68 // pred_check_branch
          %499 = sbr.rel (%p497) target = $region85
        $region84: #{transformer_forward.39} parent=68 // pred_region
          %s500 = smul.u32 2, %s19
          %s501 = smul.addr %s500, 3
          %s502 = sadd.s32 %s20, %s501
          %s503 = smul.addr %s502, 4
          %s504 = scalar_lea.vmem %s3, %s503
          // Predicated region
          $region86: #{transformer_forward.39} parent=84 // pred_check
            _
          $region87: #{transformer_forward.39} parent=84 // pred_check_branch
            %506 = sbr.rel (0) target = $region89
          $region88: #{transformer_forward.39} parent=84 // pred_region
            // Predicated region
            $region90: #{transformer_forward.39} parent=88 // pred_check
              _
            $region91: #{transformer_forward.39} parent=88 // pred_check_branch
              %508 = sbr.rel target = $region93
            $region92: #{transformer_forward.39} parent=88 // pred_region
              // Predicated region
              $region105: #{transformer_forward.39} parent=92 // pred_check
                _
              $region106: #{transformer_forward.39} parent=92 // pred_check_branch
                %526 = sbr.rel (0) target = $region108
              $region107: #{transformer_forward.39} parent=92 // pred_region
                loop: start=0, step=1, limit=1
                $region109: #{transformer_forward.39} parent=107 // loop_pre_header
                  _
                $region110: #{transformer_forward.39} parent=107 // loop_header
                  %s528 = sphi 0, %s532
                  %p529 = scmp.ge.s32.totalorder %s528, 1
                  %s533 = sphi %s496, %s496
                  %s534 = sphi %s504, %s504
                $region111: #{transformer_forward.39} parent=107 // loop_header_branch
                  %531 = sbr.rel (%p529) target = $region115
                $region112: #{transformer_forward.39} parent=107 // loop_body
                  _
                $region113: #{transformer_forward.39} parent=107 // loop_footer
                  %s532 = sadd.s32 1, %s528
                $region114: #{transformer_forward.39} parent=107 // loop_footer_branch
                  %527 = sbr.rel target = $region110
                $region115: #{transformer_forward.39} parent=107 // loop_exit
                  _
                %s536 = ssub.s32 16, 1
                loop: start=0, step=1, limit=1
                $region116: #{transformer_forward.39} parent=107 // loop_pre_header
                  _
                $region117: #{transformer_forward.39} parent=107 // loop_header
                  %s538 = sphi 0, %s542
                  %p539 = scmp.ge.s32.totalorder %s538, 1
                  %s543 = sphi %s496, %s496
                  %s544 = sphi %s504, %s504
                $region118: #{transformer_forward.39} parent=107 // loop_header_branch
                  %541 = sbr.rel (%p539) target = $region122
                $region119: #{transformer_forward.39} parent=107 // loop_body
                  %v545 = vld [vmem:[%s543] sm:%s536]
                  %546 = vst [vmem:[%s544] sm:%s536] %v545
                  %v547 = vld [vmem:[%s543 + $0x4] sm:%s536]
                  %548 = vst [vmem:[%s544 + $0xc] sm:%s536] %v547
                $region120: #{transformer_forward.39} parent=107 // loop_footer
                  %s542 = sadd.s32 1, %s538
                $region121: #{transformer_forward.39} parent=107 // loop_footer_branch
                  %537 = sbr.rel target = $region117
                $region122: #{transformer_forward.39} parent=107 // loop_exit
                  _
              $region108: #{transformer_forward.39} parent=92 // pred_fallthru
                _
            $region93: #{transformer_forward.39} parent=88 // pred_fallthru
              _
            // Predicated region
            $region94: #{transformer_forward.39} parent=88 // pred_check
              _
            $region95: #{transformer_forward.39} parent=88 // pred_check_branch
              %510 = sbr.rel (0) target = $region97
            $region96: #{transformer_forward.39} parent=88 // pred_region
              %s512 = ssub.s32 16, 1
              loop: start=0, step=1, limit=1
              $region98: #{transformer_forward.39} parent=96 // loop_pre_header
                _
              $region99: #{transformer_forward.39} parent=96 // loop_header
                %s514 = sphi 0, %s518
                %p515 = scmp.ge.s32.totalorder %s514, 1
                %s519 = sphi %s496, %s496
                %s520 = sphi %s504, %s504
              $region100: #{transformer_forward.39} parent=96 // loop_header_branch
                %517 = sbr.rel (%p515) target = $region104
              $region101: #{transformer_forward.39} parent=96 // loop_body
                %v521 = vld [vmem:[%s519] sm:%s512]
                %522 = vst [vmem:[%s520] sm:%s512] %v521
                %v523 = vld [vmem:[%s519 + $0x4] sm:%s512]
                %524 = vst [vmem:[%s520 + $0xc] sm:%s512] %v523
              $region102: #{transformer_forward.39} parent=96 // loop_footer
                %s518 = sadd.s32 1, %s514
              $region103: #{transformer_forward.39} parent=96 // loop_footer_branch
                %513 = sbr.rel target = $region99
              $region104: #{transformer_forward.39} parent=96 // loop_exit
                _
            $region97: #{transformer_forward.39} parent=88 // pred_fallthru
              _
          $region89: #{transformer_forward.39} parent=84 // pred_fallthru
            _
          %549 = vnop
        $region85: #{transformer_forward.39} parent=68 // pred_fallthru
          _
      $region69: #{transformer_forward.39} parent=5 // pred_fallthru
        _
      %p550 = scmp.le.s32.totalorder 2, %s9
      // Predicated region
      $region123: #{transformer_forward.39} parent=5 // pred_check
        %p551 = pneg %p550
      $region124: #{transformer_forward.39} parent=5 // pred_check_branch
        %553 = sbr.rel (%p551) target = $region126
      $region125: #{transformer_forward.39} parent=5 // pred_region
        %s554 = ssub.s32 %s9, 2
        // Predicated region
        $region127: #{transformer_forward.39} parent=125 // pred_check
          %p555 = pneg %p141
        $region128: #{transformer_forward.39} parent=125 // pred_check_branch
          %557 = sbr.rel (%p555) target = $region130
        $region129: #{transformer_forward.39} parent=125 // pred_region
          %s558 = sand.u32 %s126, 1
          %s559 = sand.u32 %s126, 1
          %s560 = smul.addr %s559, 8
          %s561 = scalar_lea.vmem [#allocation4], %s560
        $region130: #{transformer_forward.39} parent=125 // pred_fallthru
          _
      $region126: #{transformer_forward.39} parent=5 // pred_fallthru
        _
    $region6: #{transformer_forward.39} parent=1 // loop_footer
      %s13 = sadd.s32 1, %s9
    $region7: #{transformer_forward.39} parent=1 // loop_footer_branch
      %8 = sbr.rel target = $region3
    $region8: #{transformer_forward.39} parent=1 // loop_exit
      _

// kernel: transformer_forward.42
$region0: #{transformer_forward.42}
  #allocation0 [shape = 'u32[]', space=smem, size = 0x4, offset = 0x4, fixed_abs, tag = 'smem constant byte address 0x4 - core index']
  #allocation1 [shape = 'u32[144,128]{1,0:T(1,128)}', space=vmem, size = 0x12000, scoped, tag = 'internal scratch']
  #allocation2 [shape = 'f32[14,128]{1,0:T(8,128)}', space=vmem, size = 0x2000, scoped, tag = 'scratch operand']
  %s0 = inlined_call_operand.vmem [shape: bf16[14,128], index: 0, kind: input, shape index: {}]
  %s1 = inlined_call_operand.vmem [shape: bf16[128,128], index: 1, kind: input, shape index: {}]
  %s2 = inlined_call_operand.vmem [shape: f32[1,128], index: 2, kind: input, shape index: {}]
  %s3 = inlined_call_operand.vmem [shape: bf16[14,128], index: 3, kind: output, shape index: {}]
  %s4 = sld [smem:[#allocation0]]
  $region30: #{transformer_forward.42} parent=0
    _
  %s6 = ssub.s32 1, %s4
  %s7 = scalar_select 0, %s6, %s4
  // Predicated region
  $region2: #{transformer_forward.42} parent=0 // pred_check
    _
  $region3: #{transformer_forward.42} parent=0 // pred_check_branch
    %9 = sbr.rel (0) target = $region5
  $region4: #{transformer_forward.42} parent=0 // pred_region
    _
  $region5: #{transformer_forward.42} parent=0 // pred_fallthru
    _
  // Predicated region
  $region6: #{transformer_forward.42} parent=0 // pred_check
    _
  $region7: #{transformer_forward.42} parent=0 // pred_check_branch
    %11 = sbr.rel (0) target = $region9
  $region8: #{transformer_forward.42} parent=0 // pred_region
    _
  $region9: #{transformer_forward.42} parent=0 // pred_fallthru
    _
  // Predicated region
  $region10: #{transformer_forward.42} parent=0 // pred_check
    _
  $region11: #{transformer_forward.42} parent=0 // pred_check_branch
    %13 = sbr.rel (0) target = $region13
  $region12: #{transformer_forward.42} parent=0 // pred_region
    _
  $region13: #{transformer_forward.42} parent=0 // pred_fallthru
    _
  %p15 = scmp.eq.s32.totalorder 0, 0
  // Predicated region
  $region14: #{transformer_forward.42} parent=0 // pred_check
    %p16 = pneg %p15
  $region15: #{transformer_forward.42} parent=0 // pred_check_branch
    %18 = sbr.rel (%p16) target = $region17
  $region16: #{transformer_forward.42} parent=0 // pred_region
    %19 = vst [vmem:[#allocation2] sm:$0xff] 0.0
    %20 = vst [vmem:[#allocation2 + $0x8] sm:$0x3f] 0.0
  $region17: #{transformer_forward.42} parent=0 // pred_fallthru
    _
  %v21 = vld [vmem:[#allocation2] sm:$0xff]
  %v22 = vld [vmem:[#allocation2 + $0x8] sm:$0x3f]
  %v23 = vld [vmem:[%s0] sm:$0xf]
  %v24 = vld [vmem:[%s0 + $0x4] sm:$0x7]
  %v25 = vld [vmem:[%s1] sm:$0xf]
  %v26 = vld [vmem:[%s1 + $0x4] sm:$0xf]
  %v27 = vld [vmem:[%s1 + $0x8] sm:$0xf]
  %v28 = vld [vmem:[%s1 + $0xc] sm:$0xf]
  %v29 = vld [vmem:[%s1 + $0x10] sm:$0xf]
  %v30 = vld [vmem:[%s1 + $0x14] sm:$0xf]
  %v31 = vld [vmem:[%s1 + $0x18] sm:$0xf]
  %v32 = vld [vmem:[%s1 + $0x1c] sm:$0xf]
  %v33 = vld [vmem:[%s1 + $0x20] sm:$0xf]
  %v34 = vld [vmem:[%s1 + $0x24] sm:$0xf]
  %v35 = vld [vmem:[%s1 + $0x28] sm:$0xf]
  %v36 = vld [vmem:[%s1 + $0x2c] sm:$0xf]
  %v37 = vld [vmem:[%s1 + $0x30] sm:$0xf]
  %v38 = vld [vmem:[%s1 + $0x34] sm:$0xf]
  %v39 = vld [vmem:[%s1 + $0x38] sm:$0xf]
  %v40 = vld [vmem:[%s1 + $0x3c] sm:$0xf]
  %v43 = vunpack.c.l.b16 %v23
  %v44 = vunpack.c.l.b16 %v24
  %v45 = vpack.c.b16 %v44, %v43
  %v63 = vunpack.c.l.b16 %v25
  %v64 = vunpack.c.l.b16 %v26
  %v65 = vunpack.c.l.b16 %v27
  %v66 = vunpack.c.l.b16 %v28
  %v67 = vunpack.c.l.b16 %v29
  %v68 = vunpack.c.l.b16 %v30
  %v69 = vunpack.c.l.b16 %v31
  %v70 = vunpack.c.l.b16 %v32
  %v71 = vunpack.c.l.b16 %v33
  %v72 = vunpack.c.l.b16 %v34
  %v73 = vunpack.c.l.b16 %v35
  %v74 = vunpack.c.l.b16 %v36
  %v75 = vunpack.c.l.b16 %v37
  %v76 = vunpack.c.l.b16 %v38
  %v77 = vunpack.c.l.b16 %v39
  %v78 = vunpack.c.l.b16 %v40
  %v79 = vpack.c.b16 %v64, %v63
  %v80 = vpack.c.b16 %v66, %v65
  %v81 = vpack.c.b16 %v68, %v67
  %v82 = vpack.c.b16 %v70, %v69
  %v83 = vpack.c.b16 %v72, %v71
  %v84 = vpack.c.b16 %v74, %v73
  %v85 = vpack.c.b16 %v76, %v75
  %v86 = vpack.c.b16 %v78, %v77
  %95 = vmatprep.subr.bf16.mxu0 0
  %96 = vmatpush1.bf16.msra.mxu0 %v86
  %97 = vmatprep.subr.bf16.mxu0 0
  %98 = vmatpush1.bf16.msra.mxu0 %v85
  %99 = vmatprep.subr.bf16.mxu0 0
  %100 = vmatpush1.bf16.msra.mxu0 %v84
  %101 = vmatprep.subr.bf16.mxu0 0
  %102 = vmatpush1.bf16.msra.mxu0 %v83
  %103 = vmatprep.subr.bf16.mxu0 0
  %104 = vmatpush1.bf16.msra.mxu0 %v82
  %105 = vmatprep.subr.bf16.mxu0 0
  %106 = vmatpush1.bf16.msra.mxu0 %v81
  %107 = vmatprep.subr.bf16.mxu0 0
  %108 = vmatpush1.bf16.msra.mxu0 %v80
  %109 = vmatprep.subr.bf16.mxu0 0
  %110 = vmatpush1.bf16.msra.mxu0 %v79
  %111 = vmatprep.subr.bf16.mxu0 0
  %112 = vmatpush2.bf16.msra.mxu0 0
  %113 = vmatprep.subr.bf16.mxu0 0
  %114 = vmatpush2.bf16.msra.mxu0 0
  %115 = vmatprep.subr.bf16.mxu0 0
  %116 = vmatpush2.bf16.msra.mxu0 0
  %117 = vmatprep.subr.bf16.mxu0 0
  %118 = vmatpush2.bf16.msra.mxu0 0
  %119 = vmatprep.subr.bf16.mxu0 0
  %120 = vmatpush2.bf16.msra.mxu0 0
  %121 = vmatprep.subr.bf16.mxu0 0
  %122 = vmatpush2.bf16.msra.mxu0 0
  %123 = vmatprep.subr.bf16.mxu0 0
  %124 = vmatpush2.bf16.msra.mxu0 0
  %125 = vmatprep.subr.bf16.mxu0 0
  %126 = vmatpush2.bf16.msra.mxu0 0
  %127 = vmatprep.mubr.bf16.mxu0 0
  %128 = vmatmul.mubr.bf16.gmra.mxu0 %v45
  %v129 = vpop.f32.mrf.mxu0
  %v130 = vadd.f32 0.0, %v129
  %v131 = vpop.f32.mrf.mxu0
  %v132 = vpop.f32.mrf.mxu0
  %v133 = vadd.f32 0.0, %v132
  %v134 = vpop.f32.mrf.mxu0
  %135 = vdwg.mxu0
  %v136 = vadd.f32 %v21, %v130
  %v137 = vadd.f32 %v22, %v133
  %138 = vst [vmem:[#allocation2] sm:$0xff] %v136
  %139 = vst [vmem:[#allocation2 + $0x8] sm:$0x3f] %v137
  // Predicated region
  $region18: #{transformer_forward.42} parent=0 // pred_check
    %p140 = pneg %p15
  $region19: #{transformer_forward.42} parent=0 // pred_check_branch
    %142 = sbr.rel (%p140) target = $region21
  $region20: #{transformer_forward.42} parent=0 // pred_region
    %v143 = vld [vmem:[#allocation2] sm:$0xff]
    %v144 = vld [vmem:[#allocation2 + $0x8] sm:$0x3f]
    %v145 = vld [vmem:[%s2] sm:$0x1]
    %v147 = vlaneseq
    %v148 = vshrl.u32 %v147, 7
    %v149 = vsub.s32 0, %v148
    %v150 = vrot.slane %v145, %v149
    %v152 = vadd.f32 %v143, %v150
    %v153 = vadd.f32 %v144, %v150
    %v154 = vpack.c.bf16 %v153, %v152
    %v156 = vunpack.c.l.b16 %v154
    %v157 = vunpack.c.h.b16 %v154
    %v158 = vpack.c.b16 %v156, %v156
    %v159 = vpack.c.b16 %v157, %v157
    %162 = vst [vmem:[%s3] sm:$0xf] %v158
    %163 = vst [vmem:[%s3 + $0x4] sm:$0x7] %v159
  $region21: #{transformer_forward.42} parent=0 // pred_fallthru
    _
  // Predicated region
  $region22: #{transformer_forward.42} parent=0 // pred_check
    _
  $region23: #{transformer_forward.42} parent=0 // pred_check_branch
    %165 = sbr.rel (0) target = $region25
  $region24: #{transformer_forward.42} parent=0 // pred_region
    _
  $region25: #{transformer_forward.42} parent=0 // pred_fallthru
    _
  // Predicated region
  $region26: #{transformer_forward.42} parent=0 // pred_check
    _
  $region27: #{transformer_forward.42} parent=0 // pred_check_branch
    %167 = sbr.rel (0) target = $region29
  $region28: #{transformer_forward.42} parent=0 // pred_region
    _
  $region29: #{transformer_forward.42} parent=0 // pred_fallthru
    _

// kernel: transformer_forward.41
$region0: #{transformer_forward.41}
  #allocation0 [shape = 'u32[]', space=smem, size = 0x4, offset = 0x4, fixed_abs, tag = 'smem constant byte address 0x4 - core index']
  #allocation1 [shape = 'u32[144,128]{1,0:T(1,128)}', space=vmem, size = 0x12000, scoped, tag = 'internal scratch']
  #allocation2 [shape = 'f32[14,128]{1,0:T(8,128)}', space=vmem, size = 0x2000, scoped, tag = 'scratch operand']
  %s0 = inlined_call_operand.vmem [shape: bf16[14,128], index: 0, kind: input, shape index: {}]
  %s1 = inlined_call_operand.vmem [shape: bf16[128,128], index: 1, kind: input, shape index: {}]
  %s2 = inlined_call_operand.vmem [shape: f32[1,128], index: 2, kind: input, shape index: {}]
  %s3 = inlined_call_operand.vmem [shape: f32[14,128], index: 3, kind: input, shape index: {}]
  %s4 = inlined_call_operand.vmem [shape: f32[1,128], index: 4, kind: input, shape index: {}]
  %s5 = inlined_call_operand.vmem [shape: f32[1,128], index: 5, kind: input, shape index: {}]
  %s6 = inlined_call_operand.vmem [shape: f32[14,128], index: 6, kind: output, shape index: {}]
  %s7 = sld [smem:[#allocation0]]
  $region42: #{transformer_forward.41} parent=0
    _
  %s9 = ssub.s32 1, %s7
  %s10 = scalar_select 0, %s9, %s7
  // Predicated region
  $region2: #{transformer_forward.41} parent=0 // pred_check
    _
  $region3: #{transformer_forward.41} parent=0 // pred_check_branch
    %12 = sbr.rel (0) target = $region5
  $region4: #{transformer_forward.41} parent=0 // pred_region
    _
  $region5: #{transformer_forward.41} parent=0 // pred_fallthru
    _
  // Predicated region
  $region6: #{transformer_forward.41} parent=0 // pred_check
    _
  $region7: #{transformer_forward.41} parent=0 // pred_check_branch
    %14 = sbr.rel (0) target = $region9
  $region8: #{transformer_forward.41} parent=0 // pred_region
    _
  $region9: #{transformer_forward.41} parent=0 // pred_fallthru
    _
  // Predicated region
  $region10: #{transformer_forward.41} parent=0 // pred_check
    _
  $region11: #{transformer_forward.41} parent=0 // pred_check_branch
    %16 = sbr.rel (0) target = $region13
  $region12: #{transformer_forward.41} parent=0 // pred_region
    _
  $region13: #{transformer_forward.41} parent=0 // pred_fallthru
    _
  // Predicated region
  $region14: #{transformer_forward.41} parent=0 // pred_check
    _
  $region15: #{transformer_forward.41} parent=0 // pred_check_branch
    %18 = sbr.rel (0) target = $region17
  $region16: #{transformer_forward.41} parent=0 // pred_region
    _
  $region17: #{transformer_forward.41} parent=0 // pred_fallthru
    _
  // Predicated region
  $region18: #{transformer_forward.41} parent=0 // pred_check
    _
  $region19: #{transformer_forward.41} parent=0 // pred_check_branch
    %20 = sbr.rel (0) target = $region21
  $region20: #{transformer_forward.41} parent=0 // pred_region
    _
  $region21: #{transformer_forward.41} parent=0 // pred_fallthru
    _
  // Predicated region
  $region22: #{transformer_forward.41} parent=0 // pred_check
    _
  $region23: #{transformer_forward.41} parent=0 // pred_check_branch
    %22 = sbr.rel (0) target = $region25
  $region24: #{transformer_forward.41} parent=0 // pred_region
    _
  $region25: #{transformer_forward.41} parent=0 // pred_fallthru
    _
  %p24 = scmp.eq.s32.totalorder 0, 0
  // Predicated region
  $region26: #{transformer_forward.41} parent=0 // pred_check
    %p25 = pneg %p24
  $region27: #{transformer_forward.41} parent=0 // pred_check_branch
    %27 = sbr.rel (%p25) target = $region29
  $region28: #{transformer_forward.41} parent=0 // pred_region
    %28 = vst [vmem:[#allocation2] sm:$0xff] 0.0
    %29 = vst [vmem:[#allocation2 + $0x8] sm:$0x3f] 0.0
  $region29: #{transformer_forward.41} parent=0 // pred_fallthru
    _
  %v30 = vld [vmem:[#allocation2] sm:$0xff]
  %v31 = vld [vmem:[#allocation2 + $0x8] sm:$0x3f]
  %v32 = vld [vmem:[%s0] sm:$0xf]
  %v33 = vld [vmem:[%s0 + $0x4] sm:$0x7]
  %v34 = vld [vmem:[%s1] sm:$0xf]
  %v35 = vld [vmem:[%s1 + $0x4] sm:$0xf]
  %v36 = vld [vmem:[%s1 + $0x8] sm:$0xf]
  %v37 = vld [vmem:[%s1 + $0xc] sm:$0xf]
  %v38 = vld [vmem:[%s1 + $0x10] sm:$0xf]
  %v39 = vld [vmem:[%s1 + $0x14] sm:$0xf]
  %v40 = vld [vmem:[%s1 + $0x18] sm:$0xf]
  %v41 = vld [vmem:[%s1 + $0x1c] sm:$0xf]
  %v42 = vld [vmem:[%s1 + $0x20] sm:$0xf]
  %v43 = vld [vmem:[%s1 + $0x24] sm:$0xf]
  %v44 = vld [vmem:[%s1 + $0x28] sm:$0xf]
  %v45 = vld [vmem:[%s1 + $0x2c] sm:$0xf]
  %v46 = vld [vmem:[%s1 + $0x30] sm:$0xf]
  %v47 = vld [vmem:[%s1 + $0x34] sm:$0xf]
  %v48 = vld [vmem:[%s1 + $0x38] sm:$0xf]
  %v49 = vld [vmem:[%s1 + $0x3c] sm:$0xf]
  %v52 = vunpack.c.l.b16 %v32
  %v53 = vunpack.c.l.b16 %v33
  %v54 = vpack.c.b16 %v53, %v52
  %v72 = vunpack.c.l.b16 %v34
  %v73 = vunpack.c.l.b16 %v35
  %v74 = vunpack.c.l.b16 %v36
  %v75 = vunpack.c.l.b16 %v37
  %v76 = vunpack.c.l.b16 %v38
  %v77 = vunpack.c.l.b16 %v39
  %v78 = vunpack.c.l.b16 %v40
  %v79 = vunpack.c.l.b16 %v41
  %v80 = vunpack.c.l.b16 %v42
  %v81 = vunpack.c.l.b16 %v43
  %v82 = vunpack.c.l.b16 %v44
  %v83 = vunpack.c.l.b16 %v45
  %v84 = vunpack.c.l.b16 %v46
  %v85 = vunpack.c.l.b16 %v47
  %v86 = vunpack.c.l.b16 %v48
  %v87 = vunpack.c.l.b16 %v49
  %v88 = vpack.c.b16 %v73, %v72
  %v89 = vpack.c.b16 %v75, %v74
  %v90 = vpack.c.b16 %v77, %v76
  %v91 = vpack.c.b16 %v79, %v78
  %v92 = vpack.c.b16 %v81, %v80
  %v93 = vpack.c.b16 %v83, %v82
  %v94 = vpack.c.b16 %v85, %v84
  %v95 = vpack.c.b16 %v87, %v86
  %104 = vmatprep.subr.bf16.mxu0 0
  %105 = vmatpush1.bf16.msra.mxu0 %v95
  %106 = vmatprep.subr.bf16.mxu0 0
  %107 = vmatpush1.bf16.msra.mxu0 %v94
  %108 = vmatprep.subr.bf16.mxu0 0
  %109 = vmatpush1.bf16.msra.mxu0 %v93
  %110 = vmatprep.subr.bf16.mxu0 0
  %111 = vmatpush1.bf16.msra.mxu0 %v92
  %112 = vmatprep.subr.bf16.mxu0 0
  %113 = vmatpush1.bf16.msra.mxu0 %v91
  %114 = vmatprep.subr.bf16.mxu0 0
  %115 = vmatpush1.bf16.msra.mxu0 %v90
  %116 = vmatprep.subr.bf16.mxu0 0
  %117 = vmatpush1.bf16.msra.mxu0 %v89
  %118 = vmatprep.subr.bf16.mxu0 0
  %119 = vmatpush1.bf16.msra.mxu0 %v88
  %120 = vmatprep.subr.bf16.mxu0 0
  %121 = vmatpush2.bf16.msra.mxu0 0
  %122 = vmatprep.subr.bf16.mxu0 0
  %123 = vmatpush2.bf16.msra.mxu0 0
  %124 = vmatprep.subr.bf16.mxu0 0
  %125 = vmatpush2.bf16.msra.mxu0 0
  %126 = vmatprep.subr.bf16.mxu0 0
  %127 = vmatpush2.bf16.msra.mxu0 0
  %128 = vmatprep.subr.bf16.mxu0 0
  %129 = vmatpush2.bf16.msra.mxu0 0
  %130 = vmatprep.subr.bf16.mxu0 0
  %131 = vmatpush2.bf16.msra.mxu0 0
  %132 = vmatprep.subr.bf16.mxu0 0
  %133 = vmatpush2.bf16.msra.mxu0 0
  %134 = vmatprep.subr.bf16.mxu0 0
  %135 = vmatpush2.bf16.msra.mxu0 0
  %136 = vmatprep.mubr.bf16.mxu0 0
  %137 = vmatmul.mubr.bf16.gmra.mxu0 %v54
  %v138 = vpop.f32.mrf.mxu0
  %v139 = vadd.f32 0.0, %v138
  %v140 = vpop.f32.mrf.mxu0
  %v141 = vpop.f32.mrf.mxu0
  %v142 = vadd.f32 0.0, %v141
  %v143 = vpop.f32.mrf.mxu0
  %144 = vdwg.mxu0
  %v145 = vadd.f32 %v30, %v139
  %v146 = vadd.f32 %v31, %v142
  %147 = vst [vmem:[#allocation2] sm:$0xff] %v145
  %148 = vst [vmem:[#allocation2 + $0x8] sm:$0x3f] %v146
  // Predicated region
  $region30: #{transformer_forward.41} parent=0 // pred_check
    %p149 = pneg %p24
  $region31: #{transformer_forward.41} parent=0 // pred_check_branch
    %151 = sbr.rel (%p149) target = $region33
  $region32: #{transformer_forward.41} parent=0 // pred_region
    %v152 = vld [vmem:[#allocation2] sm:$0xff]
    %v153 = vld [vmem:[#allocation2 + $0x8] sm:$0x3f]
    %v154 = vld [vmem:[%s2] sm:$0x1]
    %v156 = vlaneseq
    %v157 = vshrl.u32 %v156, 7
    %v158 = vsub.s32 0, %v157
    %v159 = vrot.slane %v154, %v158
    %v161 = vadd.f32 %v152, %v159
    %v162 = vadd.f32 %v153, %v159
    %v163 = vld [vmem:[%s3] sm:$0xff]
    %v164 = vld [vmem:[%s3 + $0x8] sm:$0x3f]
    %v165 = vadd.f32 %v161, %v163
    %v166 = vadd.f32 %v162, %v164
    %167 = vadd.xlane.f32.xlu0 %v165
    %v168 = vpop.xlane.xlu0 %167
    %vm169 = vcmask 1045504
    %v170 = vsel %vm169, %v166, 0.0
    %171 = vadd.xlane.f32.xlu0 %v170
    %v172 = vpop.xlane.xlu0 %171
    %v173 = vrcp.pop 128.0
    %v174 = vmul.f32 %v168, %v173
    %v175 = vmul.f32 %v172, %v173
    %v176 = vsub.f32 %v165, %v174
    %v177 = vsub.f32 %v166, %v175
    %v178 = vmul.f32 %v176, %v176
    %v179 = vmul.f32 %v177, %v177
    %180 = vadd.xlane.f32.xlu0 %v178
    %v181 = vpop.xlane.xlu0 %180
    %v182 = vsel %vm169, %v179, 0.0
    %183 = vadd.xlane.f32.xlu0 %v182
    %v184 = vpop.xlane.xlu0 %183
    %v185 = vmul.f32 %v181, %v173
    %v186 = vmul.f32 %v184, %v173
    %v187 = vadd.f32 %v185, 1e-05
    %v188 = vadd.f32 %v186, 1e-05
    %v189 = vrsqrt.pop %v187
    %v190 = vrsqrt.pop %v188
    %v191 = vmul.f32 %v176, %v189
    %v192 = vmul.f32 %v177, %v190
    %v193 = vld [vmem:[%s4] sm:$0x1]
    %v195 = vlaneseq
    %v196 = vshrl.u32 %v195, 7
    %v197 = vsub.s32 0, %v196
    %v198 = vrot.slane %v193, %v197
    %v200 = vmul.f32 %v191, %v198
    %v201 = vmul.f32 %v192, %v198
    %v202 = vld [vmem:[%s5] sm:$0x1]
    %v204 = vlaneseq
    %v205 = vshrl.u32 %v204, 7
    %v206 = vsub.s32 0, %v205
    %v207 = vrot.slane %v202, %v206
    %v209 = vadd.f32 %v200, %v207
    %v210 = vadd.f32 %v201, %v207
    %211 = vst [vmem:[%s6] sm:$0xff] %v209
    %212 = vst [vmem:[%s6 + $0x8] sm:$0x3f] %v210
  $region33: #{transformer_forward.41} parent=0 // pred_fallthru
    _
  // Predicated region
  $region34: #{transformer_forward.41} parent=0 // pred_check
    _
  $region35: #{transformer_forward.41} parent=0 // pred_check_branch
    %214 = sbr.rel (0) target = $region37
  $region36: #{transformer_forward.41} parent=0 // pred_region
    _
  $region37: #{transformer_forward.41} parent=0 // pred_fallthru
    _
  // Predicated region
  $region38: #{transformer_forward.41} parent=0 // pred_check
    _
  $region39: #{transformer_forward.41} parent=0 // pred_check_branch
    %216 = sbr.rel (0) target = $region41
  $region40: #{transformer_forward.41} parent=0 // pred_region
    _
  $region41: #{transformer_forward.41} parent=0 // pred_fallthru
    _

// kernel: transformer_forward.40
$region0: #{transformer_forward.40}
  #allocation0 [shape = 'u32[]', space=smem, size = 0x4, offset = 0x4, fixed_abs, tag = 'smem constant byte address 0x4 - core index']
  #allocation1 [shape = 'u32[144,128]{1,0:T(1,128)}', space=vmem, size = 0x12000, scoped, tag = 'internal scratch']
  #allocation2 [shape = 'f32[4,7,1]{2,1,0:T(8,128)}', space=vmem, size = 0x4000, scoped, tag = 'scratch operand']
  #allocation3 [shape = 'f32[4,7,1]{2,1,0:T(8,128)}', space=vmem, size = 0x4000, scoped, tag = 'scratch operand']
  #allocation4 [shape = 'f32[7,128]{1,0:T(8,128)}', space=vmem, size = 0x1000, scoped, tag = 'scratch operand']
  %s0 = inlined_call_operand.vmem [shape: bf16[2,7,384], index: 0, kind: input, shape index: {}, may-alias: {0,1,2}]
  %s1 = inlined_call_operand.vmem [shape: bf16[2,7,384], index: 1, kind: input, shape index: {}, may-alias: {0,1,2}]
  %s2 = inlined_call_operand.vmem [shape: bf16[2,7,384], index: 2, kind: input, shape index: {}, may-alias: {0,1,2}]
  %s3 = inlined_call_operand.vmem [shape: f32[2,1,7], index: 3, kind: input, shape index: {}]
  %s4 = inlined_call_operand.vmem [shape: bf16[2,7,128], index: 4, kind: output, shape index: {}]
  %s5 = sld [smem:[#allocation0]]
  $region57: #{transformer_forward.40} parent=0
    _
  %s7 = ssub.s32 1, %s5
  %s8 = scalar_select 0, %s7, %s5
  loop: start=0, step=1, limit=4
  $region2: #{transformer_forward.40} parent=0 // loop_pre_header
    _
  $region3: #{transformer_forward.40} parent=0 // loop_header
    %s10 = sphi 0, %s14
    %p11 = scmp.ge.s32.totalorder %s10, 4
    %s17 = sphi 0, %s36
    %s18 = sphi 0, %s32
    %s19 = sphi 0, %s28
    %s20 = sphi 0, %s17
    %s21 = sphi 0, %s18
    %s22 = sphi 0, %s19
    %s23 = sphi 0, %s20
    %s24 = sphi 0, %s21
    %s25 = sphi 0, %s22
    %s41 = sphi 0, %s43
    %s44 = sphi 0, %s41
    %s45 = sphi 0, %s44
    %s61 = sphi 0, %s45
    %s69 = sphi 0, %s71
    %s72 = sphi 0, %s69
    %s73 = sphi 0, %s72
    %s89 = sphi 0, %s73
    %s97 = sphi 0, %s99
    %s100 = sphi 0, %s97
    %s101 = sphi 0, %s100
    %s117 = sphi 0, %s101
    %s125 = sphi 0, %s127
    %s128 = sphi 0, %s125
    %s129 = sphi 0, %s128
    %s145 = sphi 0, %s129
    %s153 = sphi 0, %s155
    %s156 = sphi 0, %s153
    %s157 = sphi 0, %s156
    %s173 = sphi 0, %s157
  $region4: #{transformer_forward.40} parent=0 // loop_header_branch
    %13 = sbr.rel (%p11) target = $region8
  $region5: #{transformer_forward.40} parent=0 // loop_body
    %s15 = ssub.s32 %s10, 1
    %s16 = ssub.s32 %s10, 2
    %s26 = sadd.s32 1, %s19
    %p27 = scmp.ge.s32.totalorder %s26, 1
    %s28 = scalar_select %p27, 0, %s26
    %s29 = sadd.s32 1, %s18
    %s30 = scalar_select %p27, %s29, %s18
    %p31 = scmp.ge.s32.totalorder %s30, 1
    %s32 = scalar_select %p31, 0, %s30
    %s33 = sadd.s32 1, %s17
    %s34 = scalar_select %p31, %s33, %s17
    %p35 = scmp.ge.s32.totalorder %s34, 2
    %s36 = scalar_select %p35, 0, %s34
    %s37 = ssub.s32 %s17, %s36
    %s38 = ssub.s32 %s18, %s32
    %s39 = sor.u32 %s37, %s38
    %p40 = scmp.eq.s32.totalorder %s39, 0
    %s42 = sadd.s32 %s41, 1
    %s43 = scalar_select %p40, %s41, %s42
    %p46 = pneg %p40
    %p47 = scmp.eq.s32.totalorder %s10, 1
    %p48 = por %p46, %p47
    %p49 = scmp.ne.s32.totalorder %s41, %s44
    %p50 = scmp.eq.s32.totalorder %s10, 0
    %p51 = por %p49, %p50
    %p52 = scmp.ne.s32.totalorder %s41, %s44
    %p53 = scmp.eq.s32.totalorder %s15, 1
    %p54 = por %p52, %p53
    %p55 = scmp.ne.s32.totalorder %s44, %s45
    %p56 = scmp.eq.s32.totalorder %s15, 0
    %p57 = por %p55, %p56
    %p58 = scmp.ne.s32.totalorder %s44, %s45
    %p59 = scmp.eq.s32.totalorder %s16, 1
    %p60 = por %p58, %p59
    %p62 = scmp.ne.s32.totalorder %s45, %s61
    %p63 = scmp.eq.s32.totalorder %s16, 0
    %p64 = por %p62, %p63
    %s65 = ssub.s32 %s17, %s36
    %s66 = ssub.s32 %s19, %s28
    %s67 = sor.u32 %s65, %s66
    %p68 = scmp.eq.s32.totalorder %s67, 0
    %s70 = sadd.s32 %s69, 1
    %s71 = scalar_select %p68, %s69, %s70
    %p74 = pneg %p68
    %p75 = scmp.eq.s32.totalorder %s10, 1
    %p76 = por %p74, %p75
    %p77 = scmp.ne.s32.totalorder %s69, %s72
    %p78 = scmp.eq.s32.totalorder %s10, 0
    %p79 = por %p77, %p78
    %p80 = scmp.ne.s32.totalorder %s69, %s72
    %p81 = scmp.eq.s32.totalorder %s15, 1
    %p82 = por %p80, %p81
    %p83 = scmp.ne.s32.totalorder %s72, %s73
    %p84 = scmp.eq.s32.totalorder %s15, 0
    %p85 = por %p83, %p84
    %p86 = scmp.ne.s32.totalorder %s72, %s73
    %p87 = scmp.eq.s32.totalorder %s16, 1
    %p88 = por %p86, %p87
    %p90 = scmp.ne.s32.totalorder %s73, %s89
    %p91 = scmp.eq.s32.totalorder %s16, 0
    %p92 = por %p90, %p91
    %s93 = ssub.s32 %s17, %s36
    %s94 = ssub.s32 %s19, %s28
    %s95 = sor.u32 %s93, %s94
    %p96 = scmp.eq.s32.totalorder %s95, 0
    %s98 = sadd.s32 %s97, 1
    %s99 = scalar_select %p96, %s97, %s98
    %p102 = pneg %p96
    %p103 = scmp.eq.s32.totalorder %s10, 1
    %p104 = por %p102, %p103
    %p105 = scmp.ne.s32.totalorder %s97, %s100
    %p106 = scmp.eq.s32.totalorder %s10, 0
    %p107 = por %p105, %p106
    %p108 = scmp.ne.s32.totalorder %s97, %s100
    %p109 = scmp.eq.s32.totalorder %s15, 1
    %p110 = por %p108, %p109
    %p111 = scmp.ne.s32.totalorder %s100, %s101
    %p112 = scmp.eq.s32.totalorder %s15, 0
    %p113 = por %p111, %p112
    %p114 = scmp.ne.s32.totalorder %s100, %s101
    %p115 = scmp.eq.s32.totalorder %s16, 1
    %p116 = por %p114, %p115
    %p118 = scmp.ne.s32.totalorder %s101, %s117
    %p119 = scmp.eq.s32.totalorder %s16, 0
    %p120 = por %p118, %p119
    %s121 = ssub.s32 %s17, %s36
    %s122 = ssub.s32 %s19, %s28
    %s123 = sor.u32 %s121, %s122
    %p124 = scmp.eq.s32.totalorder %s123, 0
    %s126 = sadd.s32 %s125, 1
    %s127 = scalar_select %p124, %s125, %s126
    %p130 = pneg %p124
    %p131 = scmp.eq.s32.totalorder %s10, 1
    %p132 = por %p130, %p131
    %p133 = scmp.ne.s32.totalorder %s125, %s128
    %p134 = scmp.eq.s32.totalorder %s10, 0
    %p135 = por %p133, %p134
    %p136 = scmp.ne.s32.totalorder %s125, %s128
    %p137 = scmp.eq.s32.totalorder %s15, 1
    %p138 = por %p136, %p137
    %p139 = scmp.ne.s32.totalorder %s128, %s129
    %p140 = scmp.eq.s32.totalorder %s15, 0
    %p141 = por %p139, %p140
    %p142 = scmp.ne.s32.totalorder %s128, %s129
    %p143 = scmp.eq.s32.totalorder %s16, 1
    %p144 = por %p142, %p143
    %p146 = scmp.ne.s32.totalorder %s129, %s145
    %p147 = scmp.eq.s32.totalorder %s16, 0
    %p148 = por %p146, %p147
    %s149 = ssub.s32 %s17, %s36
    %s150 = ssub.s32 %s18, %s32
    %s151 = sor.u32 %s149, %s150
    %p152 = scmp.eq.s32.totalorder %s151, 0
    %s154 = sadd.s32 %s153, 1
    %s155 = scalar_select %p152, %s153, %s154
    %p158 = pneg %p152
    %p159 = scmp.eq.s32.totalorder %s10, 1
    %p160 = por %p158, %p159
    %p161 = scmp.ne.s32.totalorder %s153, %s156
    %p162 = scmp.eq.s32.totalorder %s10, 0
    %p163 = por %p161, %p162
    %p164 = scmp.ne.s32.totalorder %s153, %s156
    %p165 = scmp.eq.s32.totalorder %s15, 1
    %p166 = por %p164, %p165
    %p167 = scmp.ne.s32.totalorder %s156, %s157
    %p168 = scmp.eq.s32.totalorder %s15, 0
    %p169 = por %p167, %p168
    %p170 = scmp.ne.s32.totalorder %s156, %s157
    %p171 = scmp.eq.s32.totalorder %s16, 1
    %p172 = por %p170, %p171
    %p174 = scmp.ne.s32.totalorder %s157, %s173
    %p175 = scmp.eq.s32.totalorder %s16, 0
    %p176 = por %p174, %p175
    %p177 = scmp.le.s32.totalorder 1, %s10
    %p178 = scmp.lt.s32.totalorder %s10, 3
    %p179 = pnand %p177, %p178
    %p180 = pneg %p179
    // Predicated region
    $region9: #{transformer_forward.40} parent=5 // pred_check
      _
    $region10: #{transformer_forward.40} parent=5 // pred_check_branch
      %182 = sbr.rel (%p179) target = $region12
    $region11: #{transformer_forward.40} parent=5 // pred_region
      %s183 = ssub.s32 %s10, 1
    $region12: #{transformer_forward.40} parent=5 // pred_fallthru
      _
    %p184 = scmp.lt.s32.totalorder %s10, 2
    // Predicated region
    $region13: #{transformer_forward.40} parent=5 // pred_check
      %p185 = pneg %p184
    $region14: #{transformer_forward.40} parent=5 // pred_check_branch
      %187 = sbr.rel (%p185) target = $region16
    $region15: #{transformer_forward.40} parent=5 // pred_region
      // Predicated region
      $region17: #{transformer_forward.40} parent=15 // pred_check
        %p188 = pneg %p51
      $region18: #{transformer_forward.40} parent=15 // pred_check_branch
        %190 = sbr.rel (%p188) target = $region20
      $region19: #{transformer_forward.40} parent=15 // pred_region
        %p191 = scmp.lt.s32.totalorder %s17, 1
        %s192 = scalar_select %p191, %s17, 1
        %p193 = scmp.lt.s32.totalorder %s18, 0
        %s194 = scalar_select %p193, %s18, 0
        %s195 = smul.addr %s194, 3
        %s196 = smul.addr %s192, 3
        %s197 = sadd.s32 %s195, %s196
        %s198 = smul.addr %s197, 4
        %s199 = scalar_lea.vmem %s0, %s198
      $region20: #{transformer_forward.40} parent=15 // pred_fallthru
        _
      // Predicated region
      $region21: #{transformer_forward.40} parent=15 // pred_check
        %p200 = pneg %p79
      $region22: #{transformer_forward.40} parent=15 // pred_check_branch
        %202 = sbr.rel (%p200) target = $region24
      $region23: #{transformer_forward.40} parent=15 // pred_region
        %p203 = scmp.lt.s32.totalorder %s17, 1
        %s204 = scalar_select %p203, %s17, 1
        %p205 = scmp.lt.s32.totalorder %s19, 0
        %s206 = scalar_select %p205, %s19, 0
        %s207 = smul.addr %s206, 3
        %s208 = sadd.s32 1, %s207
        %s209 = smul.addr %s204, 3
        %s210 = sadd.s32 %s208, %s209
        %s211 = smul.addr %s210, 4
        %s212 = scalar_lea.vmem %s1, %s211
      $region24: #{transformer_forward.40} parent=15 // pred_fallthru
        _
      // Predicated region
      $region25: #{transformer_forward.40} parent=15 // pred_check
        %p213 = pneg %p107
      $region26: #{transformer_forward.40} parent=15 // pred_check_branch
        %215 = sbr.rel (%p213) target = $region28
      $region27: #{transformer_forward.40} parent=15 // pred_region
        %p216 = scmp.lt.s32.totalorder %s17, 1
        %s217 = scalar_select %p216, %s17, 1
        %p218 = scmp.lt.s32.totalorder %s19, 0
        %s219 = scalar_select %p218, %s19, 0
        %s220 = smul.addr %s219, 3
        %s221 = sadd.s32 2, %s220
        %s222 = smul.addr %s217, 3
        %s223 = sadd.s32 %s221, %s222
        %s224 = smul.addr %s223, 4
        %s225 = scalar_lea.vmem %s2, %s224
      $region28: #{transformer_forward.40} parent=15 // pred_fallthru
        _
      // Predicated region
      $region29: #{transformer_forward.40} parent=15 // pred_check
        %p226 = pneg %p135
      $region30: #{transformer_forward.40} parent=15 // pred_check_branch
        %228 = sbr.rel (%p226) target = $region32
      $region31: #{transformer_forward.40} parent=15 // pred_region
        %p229 = scmp.lt.s32.totalorder %s17, 1
        %s230 = scalar_select %p229, %s17, 1
        %p231 = scmp.lt.s32.totalorder %s19, 0
        %s232 = scalar_select %p231, %s19, 0
        %s233 = sadd.s32 %s232, %s230
        %s234 = scalar_lea.vmem %s3, %s233
      $region32: #{transformer_forward.40} parent=15 // pred_fallthru
        _
    $region16: #{transformer_forward.40} parent=5 // pred_fallthru
      _
    %p235 = scmp.le.s32.totalorder 1, %s10
    %p236 = scmp.lt.s32.totalorder %s10, 3
    %p237 = pnand %p235, %p236
    %p238 = pneg %p237
    // Predicated region
    $region33: #{transformer_forward.40} parent=5 // pred_check
      _
    $region34: #{transformer_forward.40} parent=5 // pred_check_branch
      %240 = sbr.rel (%p237) target = $region36
    $region35: #{transformer_forward.40} parent=5 // pred_region
      %s241 = ssub.s32 %s10, 1
      %p242 = scmp.lt.s32.totalorder %s20, 1
      %s243 = scalar_select %p242, %s20, 1
      %p244 = scmp.lt.s32.totalorder %s21, 0
      %s245 = scalar_select %p244, %s21, 0
      %s246 = smul.addr %s245, 3
      %s247 = smul.addr %s243, 3
      %s248 = sadd.s32 %s246, %s247
      %s249 = smul.addr %s248, 4
      %s250 = scalar_lea.vmem %s0, %s249
      %p251 = pneg %p57
      %p252 = pneg %p54
      %p253 = scmp.lt.s32.totalorder %s20, 1
      %s254 = scalar_select %p253, %s20, 1
      %p255 = scmp.lt.s32.totalorder %s22, 0
      %s256 = scalar_select %p255, %s22, 0
      %s257 = smul.addr %s256, 3
      %s258 = sadd.s32 1, %s257
      %s259 = smul.addr %s254, 3
      %s260 = sadd.s32 %s258, %s259
      %s261 = smul.addr %s260, 4
      %s262 = scalar_lea.vmem %s1, %s261
      %p263 = pneg %p85
      %p264 = pneg %p82
      %p265 = scmp.lt.s32.totalorder %s20, 1
      %s266 = scalar_select %p265, %s20, 1
      %p267 = scmp.lt.s32.totalorder %s22, 0
      %s268 = scalar_select %p267, %s22, 0
      %s269 = smul.addr %s268, 3
      %s270 = sadd.s32 2, %s269
      %s271 = smul.addr %s266, 3
      %s272 = sadd.s32 %s270, %s271
      %s273 = smul.addr %s272, 4
      %s274 = scalar_lea.vmem %s2, %s273
      %p275 = pneg %p113
      %p276 = pneg %p110
      %p277 = scmp.lt.s32.totalorder %s20, 1
      %s278 = scalar_select %p277, %s20, 1
      %p279 = scmp.lt.s32.totalorder %s22, 0
      %s280 = scalar_select %p279, %s22, 0
      %s281 = sadd.s32 %s280, %s278
      %s282 = scalar_lea.vmem %s3, %s281
      %p283 = pneg %p141
      %p284 = pneg %p138
      %p285 = pneg %p169
      %p286 = pneg %p166
      %p287 = scmp.lt.s32.totalorder %s20, 1
      %s288 = scalar_select %p287, %s20, 1
      %p289 = scmp.lt.s32.totalorder %s21, 0
      %s290 = scalar_select %p289, %s21, 0
      %s291 = sadd.s32 %s290, %s288
      %s292 = smul.addr %s291, 4
      %s293 = scalar_lea.vmem %s4, %s292
      %p294 = scmp.lt.s32.totalorder %s20, 1
      %s295 = scalar_select %p294, %s20, 1
      %p296 = scmp.lt.s32.totalorder %s21, 0
      %s297 = scalar_select %p296, %s21, 0
      %s298 = smul.addr %s297, 3
      %s299 = smul.addr %s295, 3
      %s300 = sadd.s32 %s298, %s299
      %s301 = smul.addr %s300, 4
      %s302 = scalar_lea.vmem %s0, %s301
      %p303 = scmp.lt.s32.totalorder %s20, 1
      %s304 = scalar_select %p303, %s20, 1
      %p305 = scmp.lt.s32.totalorder %s22, 0
      %s306 = scalar_select %p305, %s22, 0
      %s307 = smul.addr %s306, 3
      %s308 = sadd.s32 1, %s307
      %s309 = smul.addr %s304, 3
      %s310 = sadd.s32 %s308, %s309
      %s311 = smul.addr %s310, 4
      %s312 = scalar_lea.vmem %s1, %s311
      %p313 = scmp.lt.s32.totalorder %s20, 1
      %s314 = scalar_select %p313, %s20, 1
      %p315 = scmp.lt.s32.totalorder %s22, 0
      %s316 = scalar_select %p315, %s22, 0
      %s317 = smul.addr %s316, 3
      %s318 = sadd.s32 2, %s317
      %s319 = smul.addr %s314, 3
      %s320 = sadd.s32 %s318, %s319
      %s321 = smul.addr %s320, 4
      %s322 = scalar_lea.vmem %s2, %s321
      %p323 = scmp.lt.s32.totalorder %s20, 1
      %s324 = scalar_select %p323, %s20, 1
      %p325 = scmp.lt.s32.totalorder %s22, 0
      %s326 = scalar_select %p325, %s22, 0
      %s327 = sadd.s32 %s326, %s324
      %s328 = scalar_lea.vmem %s3, %s327
      %p329 = scmp.lt.s32.totalorder %s20, 1
      %s330 = scalar_select %p329, %s20, 1
      %p331 = scmp.lt.s32.totalorder %s21, 0
      %s332 = scalar_select %p331, %s21, 0
      %s333 = sadd.s32 %s332, %s330
      %s334 = smul.addr %s333, 4
      %s335 = scalar_lea.vmem %s4, %s334
      %p337 = scmp.eq.s32.totalorder %s22, 0
      // Predicated region
      $region37: #{transformer_forward.40} parent=35 // pred_check
        %p338 = pneg %p337
      $region38: #{transformer_forward.40} parent=35 // pred_check_branch
        %340 = sbr.rel (%p338) target = $region40
      $region39: #{transformer_forward.40} parent=35 // pred_region
        %vm341 = vcmask 6144
        %342 = vst.msk [vmem:[#allocation2] sm:$0x7f] %vm341, -inf
        %343 = vst.msk [vmem:[#allocation2 + $0x8] sm:$0x7f] %vm341, -inf
        %344 = vst.msk [vmem:[#allocation2 + $0x10] sm:$0x7f] %vm341, -inf
        %345 = vst.msk [vmem:[#allocation2 + $0x18] sm:$0x7f] %vm341, -inf
        %346 = vst.msk [vmem:[#allocation3] sm:$0x7f] %vm341, 0.0
        %347 = vst.msk [vmem:[#allocation3 + $0x8] sm:$0x7f] %vm341, 0.0
        %348 = vst.msk [vmem:[#allocation3 + $0x10] sm:$0x7f] %vm341, 0.0
        %349 = vst.msk [vmem:[#allocation3 + $0x18] sm:$0x7f] %vm341, 0.0
        %350 = vst [vmem:[#allocation4] sm:$0x7f] 0.0
      $region40: #{transformer_forward.40} parent=35 // pred_fallthru
        _
      %v351 = vld [vmem:[%s328] sm:$0x1]
      %vm352 = vcmp.gt.f32.partialorder %v351, 0.5
      %v353 = vsel %vm352, 1, 0
      %v354 = vlaneseq
      %v355 = vshrl.u32 %v354, 7
      %v356 = vsub.s32 0, %v355
      %v357 = vrot.slane %v353, %v356
      %vm358 = vcmp.eq.s32.totalorder %v357, 1
      %s359 = smul.u32 %s21, 7
      %v360 = vlaneseq
      %v361 = vshrl.u32 %v360, 7
      %v362 = vstv %s359
      %v363 = vadd.s32 %v362, %v361
      %s364 = smul.u32 %s22, 7
      %v365 = vlaneseq
      %v366 = vand.u32 %v365, 127
      %v367 = vstv %s364
      %v368 = vadd.s32 %v367, %v366
      %vm369 = vcmp.gt.s32.totalorder %v368, %v363
      %vm370 = vmor %vm358, %vm369
      %v371 = vld [vmem:[%s302] sm:$0xf]
      %v372 = vld [vmem:[%s312] sm:$0xf]
      %v373 = vld [vmem:[%s322] sm:$0xf]
      %vm374 = vcmask 261120
      %v376 = vsel %vm374, %v371, 0
      %v379 = vsel %vm374, %v372, 0
      %381 = vmatprep.subr.bf16.mxu0 0
      %382 = vmatpush1.bf16.xpose.msra.mxu0 0
      %383 = vmatprep.subr.bf16.mxu0 0
      %384 = vmatpush1.bf16.xpose.msra.mxu0 0
      %385 = vmatprep.subr.bf16.mxu0 0
      %386 = vmatpush1.bf16.xpose.msra.mxu0 0
      %387 = vmatprep.subr.bf16.mxu0 0
      %388 = vmatpush1.bf16.xpose.msra.mxu0 0
      %389 = vmatprep.subr.bf16.mxu0 0
      %390 = vmatpush1.bf16.xpose.msra.mxu0 0
      %391 = vmatprep.subr.bf16.mxu0 0
      %392 = vmatpush1.bf16.xpose.msra.mxu0 0
      %393 = vmatprep.subr.bf16.mxu0 0
      %394 = vmatpush1.bf16.xpose.msra.mxu0 0
      %395 = vmatprep.subr.bf16.mxu0 0
      %396 = vmatpush1.bf16.xpose.msra.mxu0 %v379
      %397 = vmatprep.subr.bf16.mxu0 0
      %398 = vmatpush2.bf16.xpose.msra.mxu0 0
      %399 = vmatprep.subr.bf16.mxu0 0
      %400 = vmatpush2.bf16.xpose.msra.mxu0 0
      %401 = vmatprep.subr.bf16.mxu0 0
      %402 = vmatpush2.bf16.xpose.msra.mxu0 0
      %403 = vmatprep.subr.bf16.mxu0 0
      %404 = vmatpush2.bf16.xpose.msra.mxu0 0
      %405 = vmatprep.subr.bf16.mxu0 0
      %406 = vmatpush2.bf16.xpose.msra.mxu0 0
      %407 = vmatprep.subr.bf16.mxu0 0
      %408 = vmatpush2.bf16.xpose.msra.mxu0 0
      %409 = vmatprep.subr.bf16.mxu0 0
      %410 = vmatpush2.bf16.xpose.msra.mxu0 0
      %411 = vmatprep.subr.bf16.mxu0 0
      %412 = vmatpush2.bf16.xpose.msra.mxu0 0
      %413 = vmatprep.mubr.bf16.mxu0 0
      %414 = vmatmul.mubr.bf16.gmra.mxu0 %v376
      %v415 = vpop.f32.mrf.mxu0
      %v416 = vadd.f32 0.0, %v415
      %v417 = vpop.f32.mrf.mxu0
      %v418 = vpop.f32.mrf.mxu0
      %v419 = vpop.f32.mrf.mxu0
      %420 = vdwg.mxu0
      %v421 = vmul.f32 %v416, 0.17677669
      %v422 = vsel %vm370, -1e+09, %v421
      %v423 = vld [vmem:[#allocation2] sm:$0x7f]
      %vm424 = vcmask 55296
      %v425 = vsel %vm424, %v422, -inf
      %426 = vmax.xlane.f32.xlu0 %v425
      %v427 = vpop.xlane.xlu0 %426
      %v428 = vmax.f32 %v423, %v427
      %v429 = vsub.f32 %v423, %v428
      %v430 = vmul.f32 %v429, 1.442695
      %v431 = vpow.pop %v430
      %433 = vset.pattern.permute.xlu0 0
      %434 = vperm.xlu0 %433, %v428
      %v435 = vpop.permute.xlu0 %434
      %v437 = vsub.f32 %v422, %v435
      %v438 = vmul.f32 %v437, 1.442695
      %v439 = vpow.pop %v438
      %v440 = vld [vmem:[#allocation3] sm:$0x7f]
      %v441 = vmul.f32 %v431, %v440
      %v442 = vsel %vm424, %v439, 0.0
      %443 = vadd.xlane.f32.xlu0 %v442
      %v444 = vpop.xlane.xlu0 %443
      %v445 = vadd.f32 %v441, %v444
      %vm446 = vcmask 6144
      %447 = vst.msk [vmem:[#allocation3] sm:$0x7f] %vm446, %v445
      %v448 = vld [vmem:[#allocation4] sm:$0x7f]
      %450 = vset.pattern.permute.xlu0 0
      %451 = vperm.xlu0 %450, %v431
      %v452 = vpop.permute.xlu0 %451
      %v454 = vmul.f32 %v452, %v448
      %v455 = vpack.c.bf16 %v439, %v439
      %vm456 = vcmask 56320
      %v458 = vsel %vm456, %v455, 0
      %vm460 = vcmask 1042432
      %vm461 = vcmask 1043456
      %v462 = vsel %vm460, 4294967295, 65535
      %v463 = vsel %vm461, %v462, 0
      %v465 = vand.u32 %v373, %v463
      %467 = vmatprep.subr.bf16.mxu0 0
      %468 = vmatpush1.bf16.msra.mxu0 0
      %469 = vmatprep.subr.bf16.mxu0 0
      %470 = vmatpush1.bf16.msra.mxu0 0
      %471 = vmatprep.subr.bf16.mxu0 0
      %472 = vmatpush1.bf16.msra.mxu0 0
      %473 = vmatprep.subr.bf16.mxu0 0
      %474 = vmatpush1.bf16.msra.mxu0 0
      %475 = vmatprep.subr.bf16.mxu0 0
      %476 = vmatpush1.bf16.msra.mxu0 0
      %477 = vmatprep.subr.bf16.mxu0 0
      %478 = vmatpush1.bf16.msra.mxu0 0
      %479 = vmatprep.subr.bf16.mxu0 0
      %480 = vmatpush1.bf16.msra.mxu0 0
      %481 = vmatprep.subr.bf16.mxu0 0
      %482 = vmatpush1.bf16.msra.mxu0 %v465
      %483 = vmatprep.subr.bf16.mxu0 0
      %484 = vmatpush2.bf16.msra.mxu0 0
      %485 = vmatprep.subr.bf16.mxu0 0
      %486 = vmatpush2.bf16.msra.mxu0 0
      %487 = vmatprep.subr.bf16.mxu0 0
      %488 = vmatpush2.bf16.msra.mxu0 0
      %489 = vmatprep.subr.bf16.mxu0 0
      %490 = vmatpush2.bf16.msra.mxu0 0
      %491 = vmatprep.subr.bf16.mxu0 0
      %492 = vmatpush2.bf16.msra.mxu0 0
      %493 = vmatprep.subr.bf16.mxu0 0
      %494 = vmatpush2.bf16.msra.mxu0 0
      %495 = vmatprep.subr.bf16.mxu0 0
      %496 = vmatpush2.bf16.msra.mxu0 0
      %497 = vmatprep.subr.bf16.mxu0 0
      %498 = vmatpush2.bf16.msra.mxu0 0
      %499 = vmatprep.mubr.bf16.mxu0 0
      %500 = vmatmul.mubr.bf16.gmra.mxu0 %v458
      %v501 = vpop.f32.mrf.mxu0
      %v502 = vadd.f32 0.0, %v501
      %v503 = vpop.f32.mrf.mxu0
      %v504 = vpop.f32.mrf.mxu0
      %v505 = vpop.f32.mrf.mxu0
      %506 = vdwg.mxu0
      %v507 = vadd.f32 %v454, %v502
      %vm508 = vcmask 260096
      %509 = vst.msk [vmem:[#allocation4] sm:$0x7f] %vm508, %v507
      %510 = vst.msk [vmem:[#allocation2] sm:$0x7f] %vm446, %v428
      %v511 = vld [vmem:[%s302] sm:$0xf]
      %v512 = vld [vmem:[%s312] sm:$0xf]
      %v513 = vld [vmem:[%s322] sm:$0xf]
      %v515 = vunpack.c.l.b16 %v511
      %v516 = vpack.c.b16 %v515, %v515
      %517 = vrot.lane.b32.xlu0 %v516, 96
      %v518 = vpop.permute.xlu0 %517
      %v520 = vunpack.c.l.b16 %v512
      %v521 = vpack.c.b16 %v520, %v520
      %522 = vrot.lane.b32.xlu0 %v521, 96
      %v523 = vpop.permute.xlu0 %522
      %v525 = vsel %vm374, %v518, 0
      %v528 = vsel %vm374, %v523, 0
      %530 = vmatprep.subr.bf16.mxu0 0
      %531 = vmatpush1.bf16.xpose.msra.mxu0 0
      %532 = vmatprep.subr.bf16.mxu0 0
      %533 = vmatpush1.bf16.xpose.msra.mxu0 0
      %534 = vmatprep.subr.bf16.mxu0 0
      %535 = vmatpush1.bf16.xpose.msra.mxu0 0
      %536 = vmatprep.subr.bf16.mxu0 0
      %537 = vmatpush1.bf16.xpose.msra.mxu0 0
      %538 = vmatprep.subr.bf16.mxu0 0
      %539 = vmatpush1.bf16.xpose.msra.mxu0 0
      %540 = vmatprep.subr.bf16.mxu0 0
      %541 = vmatpush1.bf16.xpose.msra.mxu0 0
      %542 = vmatprep.subr.bf16.mxu0 0
      %543 = vmatpush1.bf16.xpose.msra.mxu0 0
      %544 = vmatprep.subr.bf16.mxu0 0
      %545 = vmatpush1.bf16.xpose.msra.mxu0 %v528
      %546 = vmatprep.subr.bf16.mxu0 0
      %547 = vmatpush2.bf16.xpose.msra.mxu0 0
      %548 = vmatprep.subr.bf16.mxu0 0
      %549 = vmatpush2.bf16.xpose.msra.mxu0 0
      %550 = vmatprep.subr.bf16.mxu0 0
      %551 = vmatpush2.bf16.xpose.msra.mxu0 0
      %552 = vmatprep.subr.bf16.mxu0 0
      %553 = vmatpush2.bf16.xpose.msra.mxu0 0
      %554 = vmatprep.subr.bf16.mxu0 0
      %555 = vmatpush2.bf16.xpose.msra.mxu0 0
      %556 = vmatprep.subr.bf16.mxu0 0
      %557 = vmatpush2.bf16.xpose.msra.mxu0 0
      %558 = vmatprep.subr.bf16.mxu0 0
      %559 = vmatpush2.bf16.xpose.msra.mxu0 0
      %560 = vmatprep.subr.bf16.mxu0 0
      %561 = vmatpush2.bf16.xpose.msra.mxu0 0
      %562 = vmatprep.mubr.bf16.mxu0 0
      %563 = vmatmul.mubr.bf16.gmra.mxu0 %v525
      %v564 = vpop.f32.mrf.mxu0
      %v565 = vadd.f32 0.0, %v564
      %v566 = vpop.f32.mrf.mxu0
      %v567 = vpop.f32.mrf.mxu0
      %v568 = vpop.f32.mrf.mxu0
      %569 = vdwg.mxu0
      %v570 = vmul.f32 %v565, 0.17677669
      %v571 = vsel %vm370, -1e+09, %v570
      %s572 = scalar_lea.vmem [#allocation2], 8
      %v573 = vld [vmem:[%s572] sm:$0x7f]
      %v574 = vsel %vm424, %v571, -inf
      %575 = vmax.xlane.f32.xlu0 %v574
      %v576 = vpop.xlane.xlu0 %575
      %v577 = vmax.f32 %v573, %v576
      %v578 = vsub.f32 %v573, %v577
      %v579 = vmul.f32 %v578, 1.442695
      %v580 = vpow.pop %v579
      %582 = vset.pattern.permute.xlu0 0
      %583 = vperm.xlu0 %582, %v577
      %v584 = vpop.permute.xlu0 %583
      %v586 = vsub.f32 %v571, %v584
      %v587 = vmul.f32 %v586, 1.442695
      %v588 = vpow.pop %v587
      %s589 = scalar_lea.vmem [#allocation3], 8
      %v590 = vld [vmem:[%s589] sm:$0x7f]
      %v591 = vmul.f32 %v580, %v590
      %v592 = vsel %vm424, %v588, 0.0
      %593 = vadd.xlane.f32.xlu0 %v592
      %v594 = vpop.xlane.xlu0 %593
      %v595 = vadd.f32 %v591, %v594
      %596 = vst.msk [vmem:[%s589] sm:$0x7f] %vm446, %v595
      %v597 = vld [vmem:[#allocation4] sm:$0x7f]
      %599 = vset.pattern.permute.xlu0 0
      %600 = vperm.xlu0 %599, %v580
      %v601 = vpop.permute.xlu0 %600
      %v603 = vmul.f32 %v601, %v597
      %v604 = vpack.c.bf16 %v588, %v588
      %v606 = vunpack.c.l.b16 %v513
      %v607 = vpack.c.b16 %v606, %v606
      %608 = vrot.lane.b32.xlu0 %v607, 96
      %v609 = vpop.permute.xlu0 %608
      %v611 = vsel %vm456, %v604, 0
      %v614 = vand.u32 %v609, %v463
      %616 = vmatprep.subr.bf16.mxu0 0
      %617 = vmatpush1.bf16.msra.mxu0 0
      %618 = vmatprep.subr.bf16.mxu0 0
      %619 = vmatpush1.bf16.msra.mxu0 0
      %620 = vmatprep.subr.bf16.mxu0 0
      %621 = vmatpush1.bf16.msra.mxu0 0
      %622 = vmatprep.subr.bf16.mxu0 0
      %623 = vmatpush1.bf16.msra.mxu0 0
      %624 = vmatprep.subr.bf16.mxu0 0
      %625 = vmatpush1.bf16.msra.mxu0 0
      %626 = vmatprep.subr.bf16.mxu0 0
      %627 = vmatpush1.bf16.msra.mxu0 0
      %628 = vmatprep.subr.bf16.mxu0 0
      %629 = vmatpush1.bf16.msra.mxu0 0
      %630 = vmatprep.subr.bf16.mxu0 0
      %631 = vmatpush1.bf16.msra.mxu0 %v614
      %632 = vmatprep.subr.bf16.mxu0 0
      %633 = vmatpush2.bf16.msra.mxu0 0
      %634 = vmatprep.subr.bf16.mxu0 0
      %635 = vmatpush2.bf16.msra.mxu0 0
      %636 = vmatprep.subr.bf16.mxu0 0
      %637 = vmatpush2.bf16.msra.mxu0 0
      %638 = vmatprep.subr.bf16.mxu0 0
      %639 = vmatpush2.bf16.msra.mxu0 0
      %640 = vmatprep.subr.bf16.mxu0 0
      %641 = vmatpush2.bf16.msra.mxu0 0
      %642 = vmatprep.subr.bf16.mxu0 0
      %643 = vmatpush2.bf16.msra.mxu0 0
      %644 = vmatprep.subr.bf16.mxu0 0
      %645 = vmatpush2.bf16.msra.mxu0 0
      %646 = vmatprep.subr.bf16.mxu0 0
      %647 = vmatpush2.bf16.msra.mxu0 0
      %648 = vmatprep.mubr.bf16.mxu0 0
      %649 = vmatmul.mubr.bf16.gmra.mxu0 %v611
      %v650 = vpop.f32.mrf.mxu0
      %v651 = vadd.f32 0.0, %v650
      %v652 = vpop.f32.mrf.mxu0
      %v653 = vpop.f32.mrf.mxu0
      %v654 = vpop.f32.mrf.mxu0
      %655 = vdwg.mxu0
      %657 = vrot.lane.b32.xlu0 %v651, 32
      %v658 = vpop.permute.xlu0 %657
      %v660 = vadd.f32 %v603, %v658
      %vm661 = vcmask 522496
      %662 = vst.msk [vmem:[#allocation4] sm:$0x7f] %vm661, %v660
      %663 = vst.msk [vmem:[%s572] sm:$0x7f] %vm446, %v577
      %v664 = vld [vmem:[%s302] sm:$0xf]
      %v665 = vld [vmem:[%s312] sm:$0xf]
      %v666 = vld [vmem:[%s322] sm:$0xf]
      %v668 = vunpack.c.l.b16 %v664
      %v669 = vpack.c.b16 %v668, %v668
      %670 = vrot.lane.b32.xlu0 %v669, 64
      %v671 = vpop.permute.xlu0 %670
      %v673 = vunpack.c.l.b16 %v665
      %v674 = vpack.c.b16 %v673, %v673
      %675 = vrot.lane.b32.xlu0 %v674, 64
      %v676 = vpop.permute.xlu0 %675
      %v678 = vsel %vm374, %v671, 0
      %v681 = vsel %vm374, %v676, 0
      %683 = vmatprep.subr.bf16.mxu0 0
      %684 = vmatpush1.bf16.xpose.msra.mxu0 0
      %685 = vmatprep.subr.bf16.mxu0 0
      %686 = vmatpush1.bf16.xpose.msra.mxu0 0
      %687 = vmatprep.subr.bf16.mxu0 0
      %688 = vmatpush1.bf16.xpose.msra.mxu0 0
      %689 = vmatprep.subr.bf16.mxu0 0
      %690 = vmatpush1.bf16.xpose.msra.mxu0 0
      %691 = vmatprep.subr.bf16.mxu0 0
      %692 = vmatpush1.bf16.xpose.msra.mxu0 0
      %693 = vmatprep.subr.bf16.mxu0 0
      %694 = vmatpush1.bf16.xpose.msra.mxu0 0
      %695 = vmatprep.subr.bf16.mxu0 0
      %696 = vmatpush1.bf16.xpose.msra.mxu0 0
      %697 = vmatprep.subr.bf16.mxu0 0
      %698 = vmatpush1.bf16.xpose.msra.mxu0 %v681
      %699 = vmatprep.subr.bf16.mxu0 0
      %700 = vmatpush2.bf16.xpose.msra.mxu0 0
      %701 = vmatprep.subr.bf16.mxu0 0
      %702 = vmatpush2.bf16.xpose.msra.mxu0 0
      %703 = vmatprep.subr.bf16.mxu0 0
      %704 = vmatpush2.bf16.xpose.msra.mxu0 0
      %705 = vmatprep.subr.bf16.mxu0 0
      %706 = vmatpush2.bf16.xpose.msra.mxu0 0
      %707 = vmatprep.subr.bf16.mxu0 0
      %708 = vmatpush2.bf16.xpose.msra.mxu0 0
      %709 = vmatprep.subr.bf16.mxu0 0
      %710 = vmatpush2.bf16.xpose.msra.mxu0 0
      %711 = vmatprep.subr.bf16.mxu0 0
      %712 = vmatpush2.bf16.xpose.msra.mxu0 0
      %713 = vmatprep.subr.bf16.mxu0 0
      %714 = vmatpush2.bf16.xpose.msra.mxu0 0
      %715 = vmatprep.mubr.bf16.mxu0 0
      %716 = vmatmul.mubr.bf16.gmra.mxu0 %v678
      %v717 = vpop.f32.mrf.mxu0
      %v718 = vadd.f32 0.0, %v717
      %v719 = vpop.f32.mrf.mxu0
      %v720 = vpop.f32.mrf.mxu0
      %v721 = vpop.f32.mrf.mxu0
      %722 = vdwg.mxu0
      %v723 = vmul.f32 %v718, 0.17677669
      %v724 = vsel %vm370, -1e+09, %v723
      %s725 = scalar_lea.vmem [#allocation2], 16
      %v726 = vld [vmem:[%s725] sm:$0x7f]
      %v727 = vsel %vm424, %v724, -inf
      %728 = vmax.xlane.f32.xlu0 %v727
      %v729 = vpop.xlane.xlu0 %728
      %v730 = vmax.f32 %v726, %v729
      %v731 = vsub.f32 %v726, %v730
      %v732 = vmul.f32 %v731, 1.442695
      %v733 = vpow.pop %v732
      %735 = vset.pattern.permute.xlu0 0
      %736 = vperm.xlu0 %735, %v730
      %v737 = vpop.permute.xlu0 %736
      %v739 = vsub.f32 %v724, %v737
      %v740 = vmul.f32 %v739, 1.442695
      %v741 = vpow.pop %v740
      %s742 = scalar_lea.vmem [#allocation3], 16
      %v743 = vld [vmem:[%s742] sm:$0x7f]
      %v744 = vmul.f32 %v733, %v743
      %v745 = vsel %vm424, %v741, 0.0
      %746 = vadd.xlane.f32.xlu0 %v745
      %v747 = vpop.xlane.xlu0 %746
      %v748 = vadd.f32 %v744, %v747
      %749 = vst.msk [vmem:[%s742] sm:$0x7f] %vm446, %v748
      %v750 = vld [vmem:[#allocation4] sm:$0x7f]
      %752 = vset.pattern.permute.xlu0 0
      %753 = vperm.xlu0 %752, %v733
      %v754 = vpop.permute.xlu0 %753
      %v756 = vmul.f32 %v754, %v750
      %v757 = vpack.c.bf16 %v741, %v741
      %v759 = vunpack.c.l.b16 %v666
      %v760 = vpack.c.b16 %v759, %v759
      %761 = vrot.lane.b32.xlu0 %v760, 64
      %v762 = vpop.permute.xlu0 %761
      %v764 = vsel %vm456, %v757, 0
      %v767 = vand.u32 %v762, %v463
      %769 = vmatprep.subr.bf16.mxu0 0
      %770 = vmatpush1.bf16.msra.mxu0 0
      %771 = vmatprep.subr.bf16.mxu0 0
      %772 = vmatpush1.bf16.msra.mxu0 0
      %773 = vmatprep.subr.bf16.mxu0 0
      %774 = vmatpush1.bf16.msra.mxu0 0
      %775 = vmatprep.subr.bf16.mxu0 0
      %776 = vmatpush1.bf16.msra.mxu0 0
      %777 = vmatprep.subr.bf16.mxu0 0
      %778 = vmatpush1.bf16.msra.mxu0 0
      %779 = vmatprep.subr.bf16.mxu0 0
      %780 = vmatpush1.bf16.msra.mxu0 0
      %781 = vmatprep.subr.bf16.mxu0 0
      %782 = vmatpush1.bf16.msra.mxu0 0
      %783 = vmatprep.subr.bf16.mxu0 0
      %784 = vmatpush1.bf16.msra.mxu0 %v767
      %785 = vmatprep.subr.bf16.mxu0 0
      %786 = vmatpush2.bf16.msra.mxu0 0
      %787 = vmatprep.subr.bf16.mxu0 0
      %788 = vmatpush2.bf16.msra.mxu0 0
      %789 = vmatprep.subr.bf16.mxu0 0
      %790 = vmatpush2.bf16.msra.mxu0 0
      %791 = vmatprep.subr.bf16.mxu0 0
      %792 = vmatpush2.bf16.msra.mxu0 0
      %793 = vmatprep.subr.bf16.mxu0 0
      %794 = vmatpush2.bf16.msra.mxu0 0
      %795 = vmatprep.subr.bf16.mxu0 0
      %796 = vmatpush2.bf16.msra.mxu0 0
      %797 = vmatprep.subr.bf16.mxu0 0
      %798 = vmatpush2.bf16.msra.mxu0 0
      %799 = vmatprep.subr.bf16.mxu0 0
      %800 = vmatpush2.bf16.msra.mxu0 0
      %801 = vmatprep.mubr.bf16.mxu0 0
      %802 = vmatmul.mubr.bf16.gmra.mxu0 %v764
      %v803 = vpop.f32.mrf.mxu0
      %v804 = vadd.f32 0.0, %v803
      %v805 = vpop.f32.mrf.mxu0
      %v806 = vpop.f32.mrf.mxu0
      %v807 = vpop.f32.mrf.mxu0
      %808 = vdwg.mxu0
      %810 = vrot.lane.b32.xlu0 %v804, 64
      %v811 = vpop.permute.xlu0 %810
      %v813 = vadd.f32 %v756, %v811
      %vm814 = vcmask 784896
      %815 = vst.msk [vmem:[#allocation4] sm:$0x7f] %vm814, %v813
      %816 = vst.msk [vmem:[%s725] sm:$0x7f] %vm446, %v730
      %v817 = vld [vmem:[%s302] sm:$0xf]
      %v818 = vld [vmem:[%s312] sm:$0xf]
      %v819 = vld [vmem:[%s322] sm:$0xf]
      %v821 = vunpack.c.l.b16 %v817
      %v822 = vpack.c.b16 %v821, %v821
      %823 = vrot.lane.b32.xlu0 %v822, 32
      %v824 = vpop.permute.xlu0 %823
      %v826 = vunpack.c.l.b16 %v818
      %v827 = vpack.c.b16 %v826, %v826
      %828 = vrot.lane.b32.xlu0 %v827, 32
      %v829 = vpop.permute.xlu0 %828
      %v831 = vsel %vm374, %v824, 0
      %v834 = vsel %vm374, %v829, 0
      %836 = vmatprep.subr.bf16.mxu0 0
      %837 = vmatpush1.bf16.xpose.msra.mxu0 0
      %838 = vmatprep.subr.bf16.mxu0 0
      %839 = vmatpush1.bf16.xpose.msra.mxu0 0
      %840 = vmatprep.subr.bf16.mxu0 0
      %841 = vmatpush1.bf16.xpose.msra.mxu0 0
      %842 = vmatprep.subr.bf16.mxu0 0
      %843 = vmatpush1.bf16.xpose.msra.mxu0 0
      %844 = vmatprep.subr.bf16.mxu0 0
      %845 = vmatpush1.bf16.xpose.msra.mxu0 0
      %846 = vmatprep.subr.bf16.mxu0 0
      %847 = vmatpush1.bf16.xpose.msra.mxu0 0
      %848 = vmatprep.subr.bf16.mxu0 0
      %849 = vmatpush1.bf16.xpose.msra.mxu0 0
      %850 = vmatprep.subr.bf16.mxu0 0
      %851 = vmatpush1.bf16.xpose.msra.mxu0 %v834
      %852 = vmatprep.subr.bf16.mxu0 0
      %853 = vmatpush2.bf16.xpose.msra.mxu0 0
      %854 = vmatprep.subr.bf16.mxu0 0
      %855 = vmatpush2.bf16.xpose.msra.mxu0 0
      %856 = vmatprep.subr.bf16.mxu0 0
      %857 = vmatpush2.bf16.xpose.msra.mxu0 0
      %858 = vmatprep.subr.bf16.mxu0 0
      %859 = vmatpush2.bf16.xpose.msra.mxu0 0
      %860 = vmatprep.subr.bf16.mxu0 0
      %861 = vmatpush2.bf16.xpose.msra.mxu0 0
      %862 = vmatprep.subr.bf16.mxu0 0
      %863 = vmatpush2.bf16.xpose.msra.mxu0 0
      %864 = vmatprep.subr.bf16.mxu0 0
      %865 = vmatpush2.bf16.xpose.msra.mxu0 0
      %866 = vmatprep.subr.bf16.mxu0 0
      %867 = vmatpush2.bf16.xpose.msra.mxu0 0
      %868 = vmatprep.mubr.bf16.mxu0 0
      %869 = vmatmul.mubr.bf16.gmra.mxu0 %v831
      %v870 = vpop.f32.mrf.mxu0
      %v871 = vadd.f32 0.0, %v870
      %v872 = vpop.f32.mrf.mxu0
      %v873 = vpop.f32.mrf.mxu0
      %v874 = vpop.f32.mrf.mxu0
      %875 = vdwg.mxu0
      %v876 = vmul.f32 %v871, 0.17677669
      %v877 = vsel %vm370, -1e+09, %v876
      %s878 = scalar_lea.vmem [#allocation2], 24
      %v879 = vld [vmem:[%s878] sm:$0x7f]
      %v880 = vsel %vm424, %v877, -inf
      %881 = vmax.xlane.f32.xlu0 %v880
      %v882 = vpop.xlane.xlu0 %881
      %v883 = vmax.f32 %v879, %v882
      %v884 = vsub.f32 %v879, %v883
      %v885 = vmul.f32 %v884, 1.442695
      %v886 = vpow.pop %v885
      %888 = vset.pattern.permute.xlu0 0
      %889 = vperm.xlu0 %888, %v883
      %v890 = vpop.permute.xlu0 %889
      %v892 = vsub.f32 %v877, %v890
      %v893 = vmul.f32 %v892, 1.442695
      %v894 = vpow.pop %v893
      %s895 = scalar_lea.vmem [#allocation3], 24
      %v896 = vld [vmem:[%s895] sm:$0x7f]
      %v897 = vmul.f32 %v886, %v896
      %v898 = vsel %vm424, %v894, 0.0
      %899 = vadd.xlane.f32.xlu0 %v898
      %v900 = vpop.xlane.xlu0 %899
      %v901 = vadd.f32 %v897, %v900
      %902 = vst.msk [vmem:[%s895] sm:$0x7f] %vm446, %v901
      %v903 = vld [vmem:[#allocation4] sm:$0x7f]
      %905 = vset.pattern.permute.xlu0 0
      %906 = vperm.xlu0 %905, %v886
      %v907 = vpop.permute.xlu0 %906
      %v909 = vmul.f32 %v907, %v903
      %v910 = vpack.c.bf16 %v894, %v894
      %v912 = vunpack.c.l.b16 %v819
      %v913 = vpack.c.b16 %v912, %v912
      %914 = vrot.lane.b32.xlu0 %v913, 32
      %v915 = vpop.permute.xlu0 %914
      %v917 = vsel %vm456, %v910, 0
      %v920 = vand.u32 %v915, %v463
      %922 = vmatprep.subr.bf16.mxu0 0
      %923 = vmatpush1.bf16.msra.mxu0 0
      %924 = vmatprep.subr.bf16.mxu0 0
      %925 = vmatpush1.bf16.msra.mxu0 0
      %926 = vmatprep.subr.bf16.mxu0 0
      %927 = vmatpush1.bf16.msra.mxu0 0
      %928 = vmatprep.subr.bf16.mxu0 0
      %929 = vmatpush1.bf16.msra.mxu0 0
      %930 = vmatprep.subr.bf16.mxu0 0
      %931 = vmatpush1.bf16.msra.mxu0 0
      %932 = vmatprep.subr.bf16.mxu0 0
      %933 = vmatpush1.bf16.msra.mxu0 0
      %934 = vmatprep.subr.bf16.mxu0 0
      %935 = vmatpush1.bf16.msra.mxu0 0
      %936 = vmatprep.subr.bf16.mxu0 0
      %937 = vmatpush1.bf16.msra.mxu0 %v920
      %938 = vmatprep.subr.bf16.mxu0 0
      %939 = vmatpush2.bf16.msra.mxu0 0
      %940 = vmatprep.subr.bf16.mxu0 0
      %941 = vmatpush2.bf16.msra.mxu0 0
      %942 = vmatprep.subr.bf16.mxu0 0
      %943 = vmatpush2.bf16.msra.mxu0 0
      %944 = vmatprep.subr.bf16.mxu0 0
      %945 = vmatpush2.bf16.msra.mxu0 0
      %946 = vmatprep.subr.bf16.mxu0 0
      %947 = vmatpush2.bf16.msra.mxu0 0
      %948 = vmatprep.subr.bf16.mxu0 0
      %949 = vmatpush2.bf16.msra.mxu0 0
      %950 = vmatprep.subr.bf16.mxu0 0
      %951 = vmatpush2.bf16.msra.mxu0 0
      %952 = vmatprep.subr.bf16.mxu0 0
      %953 = vmatpush2.bf16.msra.mxu0 0
      %954 = vmatprep.mubr.bf16.mxu0 0
      %955 = vmatmul.mubr.bf16.gmra.mxu0 %v917
      %v956 = vpop.f32.mrf.mxu0
      %v957 = vadd.f32 0.0, %v956
      %v958 = vpop.f32.mrf.mxu0
      %v959 = vpop.f32.mrf.mxu0
      %v960 = vpop.f32.mrf.mxu0
      %961 = vdwg.mxu0
      %963 = vrot.lane.b32.xlu0 %v957, 96
      %v964 = vpop.permute.xlu0 %963
      %v966 = vadd.f32 %v909, %v964
      %vm967 = vcmask 1047296
      %968 = vst.msk [vmem:[#allocation4] sm:$0x7f] %vm967, %v966
      %969 = vst.msk [vmem:[%s878] sm:$0x7f] %vm446, %v883
      // Predicated region
      $region41: #{transformer_forward.40} parent=35 // pred_check
        %p970 = pneg %p337
      $region42: #{transformer_forward.40} parent=35 // pred_check_branch
        %972 = sbr.rel (%p970) target = $region44
      $region43: #{transformer_forward.40} parent=35 // pred_region
        %v973 = vld [vmem:[#allocation3] sm:$0x7f]
        %v974 = vrcp.pop %v973
        %v975 = vld [vmem:[#allocation4] sm:$0x7f]
        %977 = vset.pattern.permute.xlu0 0
        %978 = vperm.xlu0 %977, %v974
        %v979 = vpop.permute.xlu0 %978
        %v981 = vmul.f32 %v975, %v979
        %v982 = vpack.c.bf16 %v981, %v981
        %vm983 = vcmask 257024
        %vm984 = vsmask.f32 3328
        %vm985 = vmand %vm983, %vm984
        %v986 = vld [vmem:[%s335] sm:$0xf]
        %v987 = vsel %vm985, %v982, %v986
        %988 = vst [vmem:[%s335] sm:$0xf] %v987
        %v989 = vld [vmem:[%s589] sm:$0x7f]
        %v990 = vrcp.pop %v989
        %v991 = vld [vmem:[#allocation4] sm:$0x7f]
        %993 = vset.pattern.permute.xlu0 0
        %994 = vperm.xlu0 %993, %v990
        %v995 = vpop.permute.xlu0 %994
        %v997 = vmul.f32 %v991, %v995
        %v998 = vpack.c.bf16 %v997, %v997
        %vm999 = vcmask 519424
        %vm1000 = vmand %vm999, %vm984
        %v1001 = vld [vmem:[%s335] sm:$0xf]
        %v1002 = vsel %vm1000, %v998, %v1001
        %1003 = vst [vmem:[%s335] sm:$0xf] %v1002
        %v1004 = vld [vmem:[%s742] sm:$0x7f]
        %v1005 = vrcp.pop %v1004
        %v1006 = vld [vmem:[#allocation4] sm:$0x7f]
        %1008 = vset.pattern.permute.xlu0 0
        %1009 = vperm.xlu0 %1008, %v1005
        %v1010 = vpop.permute.xlu0 %1009
        %v1012 = vmul.f32 %v1006, %v1010
        %v1013 = vpack.c.bf16 %v1012, %v1012
        %vm1014 = vcmask 781824
        %vm1015 = vmand %vm1014, %vm984
        %v1016 = vld [vmem:[%s335] sm:$0xf]
        %v1017 = vsel %vm1015, %v1013, %v1016
        %1018 = vst [vmem:[%s335] sm:$0xf] %v1017
        %v1019 = vld [vmem:[%s895] sm:$0x7f]
        %v1020 = vrcp.pop %v1019
        %v1021 = vld [vmem:[#allocation4] sm:$0x7f]
        %1023 = vset.pattern.permute.xlu0 0
        %1024 = vperm.xlu0 %1023, %v1020
        %v1025 = vpop.permute.xlu0 %1024
        %v1027 = vmul.f32 %v1021, %v1025
        %v1028 = vpack.c.bf16 %v1027, %v1027
        %vm1029 = vcmask 1044224
        %vm1030 = vmand %vm1029, %vm984
        %v1031 = vld [vmem:[%s335] sm:$0xf]
        %v1032 = vsel %vm1030, %v1028, %v1031
        %1033 = vst [vmem:[%s335] sm:$0xf] %v1032
      $region44: #{transformer_forward.40} parent=35 // pred_fallthru
        _
      %p1034 = scmp.lt.s32.totalorder %s20, 1
      %s1035 = scalar_select %p1034, %s20, 1
      %p1036 = scmp.lt.s32.totalorder %s21, 0
      %s1037 = scalar_select %p1036, %s21, 0
      %s1038 = sadd.s32 %s1037, %s1035
      %s1039 = smul.addr %s1038, 4
      %s1040 = scalar_lea.vmem %s4, %s1039
      // Predicated region
      $region45: #{transformer_forward.40} parent=35 // pred_check
        %p1041 = pneg %p166
      $region46: #{transformer_forward.40} parent=35 // pred_check_branch
        %1043 = sbr.rel (%p1041) target = $region48
      $region47: #{transformer_forward.40} parent=35 // pred_region
        _
      $region48: #{transformer_forward.40} parent=35 // pred_fallthru
        _
    $region36: #{transformer_forward.40} parent=5 // pred_fallthru
      _
    %p1044 = scmp.le.s32.totalorder 2, %s10
    // Predicated region
    $region49: #{transformer_forward.40} parent=5 // pred_check
      %p1045 = pneg %p1044
    $region50: #{transformer_forward.40} parent=5 // pred_check_branch
      %1047 = sbr.rel (%p1045) target = $region52
    $region51: #{transformer_forward.40} parent=5 // pred_region
      %s1048 = ssub.s32 %s10, 2
      // Predicated region
      $region53: #{transformer_forward.40} parent=51 // pred_check
        %p1049 = pneg %p172
      $region54: #{transformer_forward.40} parent=51 // pred_check_branch
        %1051 = sbr.rel (%p1049) target = $region56
      $region55: #{transformer_forward.40} parent=51 // pred_region
        %p1052 = scmp.lt.s32.totalorder %s23, 1
        %s1053 = scalar_select %p1052, %s23, 1
        %p1054 = scmp.lt.s32.totalorder %s24, 0
        %s1055 = scalar_select %p1054, %s24, 0
        %s1056 = sadd.s32 %s1055, %s1053
        %s1057 = smul.addr %s1056, 4
        %s1058 = scalar_lea.vmem %s4, %s1057
      $region56: #{transformer_forward.40} parent=51 // pred_fallthru
        _
    $region52: #{transformer_forward.40} parent=5 // pred_fallthru
      _
  $region6: #{transformer_forward.40} parent=0 // loop_footer
    %s14 = sadd.s32 1, %s10
  $region7: #{transformer_forward.40} parent=0 // loop_footer_branch
    %9 = sbr.rel target = $region3
  $region8: #{transformer_forward.40} parent=0 // loop_exit
    _

// kernel: transformer_forward.29
$region0: #{transformer_forward.29}
  #allocation0 [shape = 'u32[]', space=smem, size = 0x4, offset = 0x4, fixed_abs, tag = 'smem constant byte address 0x4 - core index']
  #allocation1 [shape = 'u32[144,128]{1,0:T(1,128)}', space=vmem, size = 0x12000, scoped, tag = 'internal scratch']
  #allocation2 [shape = 'f32[16,128]{1,0:T(8,128)}', space=vmem, size = 0x2000, scoped, tag = 'scratch operand']
  %s0 = inlined_call_operand.vmem [shape: bf16[16,128], index: 0, kind: input, shape index: {}]
  %s1 = inlined_call_operand.vmem [shape: bf16[128,384], index: 1, kind: input, shape index: {}]
  %s2 = inlined_call_operand.vmem [shape: f32[1,384], index: 2, kind: input, shape index: {}]
  %s3 = inlined_call_operand.vmem [shape: bf16[16,384], index: 3, kind: output, shape index: {}]
  %s4 = sld [smem:[#allocation0]]
  $region131: #{transformer_forward.29} parent=0
    _
  %s6 = ssub.s32 1, %s4
  %s7 = scalar_select 0, %s6, %s4
  $region1: #{transformer_forward.29} parent=0
    #allocation3 [shape = 'u8[65536]{0}', space=vmem, size = 0x10000, scoped, tag = 'input window, operand 1']
    #allocation4 [shape = 'u8[8192]{0}', space=vmem, size = 0x2000, scoped, tag = 'output window, operand 0']
    loop: start=0, step=1, limit=5
    $region2: #{transformer_forward.29} parent=1 // loop_pre_header
      _
    $region3: #{transformer_forward.29} parent=1 // loop_header
      %s9 = sphi 0, %s13
      %p10 = scmp.ge.s32.totalorder %s9, 5
      %s16 = sphi 0, %s35
      %s17 = sphi 0, %s31
      %s18 = sphi 0, %s27
      %s19 = sphi 0, %s16
      %s20 = sphi 0, %s17
      %s21 = sphi 0, %s18
      %s22 = sphi 0, %s19
      %s23 = sphi 0, %s20
      %s24 = sphi 0, %s21
      %s40 = sphi 0, %s42
      %s43 = sphi 0, %s40
      %s44 = sphi 0, %s43
      %s60 = sphi 0, %s44
      %s68 = sphi 0, %s70
      %s71 = sphi 0, %s68
      %s72 = sphi 0, %s71
      %s88 = sphi 0, %s72
      %s94 = sphi 0, %s96
      %s97 = sphi 0, %s94
      %s98 = sphi 0, %s97
      %s114 = sphi 0, %s98
      %s122 = sphi 0, %s124
      %s125 = sphi 0, %s122
      %s126 = sphi 0, %s125
      %s142 = sphi 0, %s126
    $region4: #{transformer_forward.29} parent=1 // loop_header_branch
      %12 = sbr.rel (%p10) target = $region8
    $region5: #{transformer_forward.29} parent=1 // loop_body
      %s14 = ssub.s32 %s9, 1
      %s15 = ssub.s32 %s9, 2
      %s25 = sadd.s32 1, %s18
      %p26 = scmp.ge.s32.totalorder %s25, 1
      %s27 = scalar_select %p26, 0, %s25
      %s28 = sadd.s32 1, %s17
      %s29 = scalar_select %p26, %s28, %s17
      %p30 = scmp.ge.s32.totalorder %s29, 3
      %s31 = scalar_select %p30, 0, %s29
      %s32 = sadd.s32 1, %s16
      %s33 = scalar_select %p30, %s32, %s16
      %p34 = scmp.ge.s32.totalorder %s33, 1
      %s35 = scalar_select %p34, 0, %s33
      %s36 = ssub.s32 %s16, %s35
      %s37 = ssub.s32 %s18, %s27
      %s38 = sor.u32 %s36, %s37
      %p39 = scmp.eq.s32.totalorder %s38, 0
      %s41 = sadd.s32 %s40, 1
      %s42 = scalar_select %p39, %s40, %s41
      %p45 = pneg %p39
      %p46 = scmp.eq.s32.totalorder %s9, 2
      %p47 = por %p45, %p46
      %p48 = scmp.ne.s32.totalorder %s40, %s43
      %p49 = scmp.eq.s32.totalorder %s9, 0
      %p50 = por %p48, %p49
      %p51 = scmp.ne.s32.totalorder %s40, %s43
      %p52 = scmp.eq.s32.totalorder %s14, 2
      %p53 = por %p51, %p52
      %p54 = scmp.ne.s32.totalorder %s43, %s44
      %p55 = scmp.eq.s32.totalorder %s14, 0
      %p56 = por %p54, %p55
      %p57 = scmp.ne.s32.totalorder %s43, %s44
      %p58 = scmp.eq.s32.totalorder %s15, 2
      %p59 = por %p57, %p58
      %p61 = scmp.ne.s32.totalorder %s44, %s60
      %p62 = scmp.eq.s32.totalorder %s15, 0
      %p63 = por %p61, %p62
      %s64 = ssub.s32 %s18, %s27
      %s65 = ssub.s32 %s17, %s31
      %s66 = sor.u32 %s64, %s65
      %p67 = scmp.eq.s32.totalorder %s66, 0
      %s69 = sadd.s32 %s68, 1
      %s70 = scalar_select %p67, %s68, %s69
      %p73 = pneg %p67
      %p74 = scmp.eq.s32.totalorder %s9, 2
      %p75 = por %p73, %p74
      %p76 = scmp.ne.s32.totalorder %s68, %s71
      %p77 = scmp.eq.s32.totalorder %s9, 0
      %p78 = por %p76, %p77
      %p79 = scmp.ne.s32.totalorder %s68, %s71
      %p80 = scmp.eq.s32.totalorder %s14, 2
      %p81 = por %p79, %p80
      %p82 = scmp.ne.s32.totalorder %s71, %s72
      %p83 = scmp.eq.s32.totalorder %s14, 0
      %p84 = por %p82, %p83
      %p85 = scmp.ne.s32.totalorder %s71, %s72
      %p86 = scmp.eq.s32.totalorder %s15, 2
      %p87 = por %p85, %p86
      %p89 = scmp.ne.s32.totalorder %s72, %s88
      %p90 = scmp.eq.s32.totalorder %s15, 0
      %p91 = por %p89, %p90
      %s92 = ssub.s32 %s17, %s31
      %p93 = scmp.eq.s32.totalorder %s92, 0
      %s95 = sadd.s32 %s94, 1
      %s96 = scalar_select %p93, %s94, %s95
      %p99 = pneg %p93
      %p100 = scmp.eq.s32.totalorder %s9, 2
      %p101 = por %p99, %p100
      %p102 = scmp.ne.s32.totalorder %s94, %s97
      %p103 = scmp.eq.s32.totalorder %s9, 0
      %p104 = por %p102, %p103
      %p105 = scmp.ne.s32.totalorder %s94, %s97
      %p106 = scmp.eq.s32.totalorder %s14, 2
      %p107 = por %p105, %p106
      %p108 = scmp.ne.s32.totalorder %s97, %s98
      %p109 = scmp.eq.s32.totalorder %s14, 0
      %p110 = por %p108, %p109
      %p111 = scmp.ne.s32.totalorder %s97, %s98
      %p112 = scmp.eq.s32.totalorder %s15, 2
      %p113 = por %p111, %p112
      %p115 = scmp.ne.s32.totalorder %s98, %s114
      %p116 = scmp.eq.s32.totalorder %s15, 0
      %p117 = por %p115, %p116
      %s118 = ssub.s32 %s16, %s35
      %s119 = ssub.s32 %s17, %s31
      %s120 = sor.u32 %s118, %s119
      %p121 = scmp.eq.s32.totalorder %s120, 0
      %s123 = sadd.s32 %s122, 1
      %s124 = scalar_select %p121, %s122, %s123
      %p127 = pneg %p121
      %p128 = scmp.eq.s32.totalorder %s9, 2
      %p129 = por %p127, %p128
      %p130 = scmp.ne.s32.totalorder %s122, %s125
      %p131 = scmp.eq.s32.totalorder %s9, 0
      %p132 = por %p130, %p131
      %p133 = scmp.ne.s32.totalorder %s122, %s125
      %p134 = scmp.eq.s32.totalorder %s14, 2
      %p135 = por %p133, %p134
      %p136 = scmp.ne.s32.totalorder %s125, %s126
      %p137 = scmp.eq.s32.totalorder %s14, 0
      %p138 = por %p136, %p137
      %p139 = scmp.ne.s32.totalorder %s125, %s126
      %p140 = scmp.eq.s32.totalorder %s15, 2
      %p141 = por %p139, %p140
      %p143 = scmp.ne.s32.totalorder %s126, %s142
      %p144 = scmp.eq.s32.totalorder %s15, 0
      %p145 = por %p143, %p144
      %p146 = scmp.le.s32.totalorder 1, %s9
      %p147 = scmp.lt.s32.totalorder %s9, 4
      %p148 = pnand %p146, %p147
      %p149 = pneg %p148
      // Predicated region
      $region9: #{transformer_forward.29} parent=5 // pred_check
        _
      $region10: #{transformer_forward.29} parent=5 // pred_check_branch
        %151 = sbr.rel (%p148) target = $region12
      $region11: #{transformer_forward.29} parent=5 // pred_region
        %s152 = ssub.s32 %s9, 1
        // Predicated region
        $region13: #{transformer_forward.29} parent=11 // pred_check
          %p153 = pneg %p56
        $region14: #{transformer_forward.29} parent=11 // pred_check_branch
          %155 = sbr.rel (%p153) target = $region16
        $region15: #{transformer_forward.29} parent=11 // pred_region
          %s156 = smul.u32 2, %s19
          %p157 = scmp.lt.s32.totalorder %s156, 1
          %s158 = scalar_select %p157, %s156, 1
          %p159 = scmp.lt.s32.totalorder %s21, 0
          %s160 = scalar_select %p159, %s21, 0
          %s161 = sadd.s32 %s160, %s158
          %s162 = smul.addr %s161, 4
          %s163 = scalar_lea.vmem %s0, %s162
          %s164 = smul.u32 2, %s19
        $region16: #{transformer_forward.29} parent=11 // pred_fallthru
          _
      $region12: #{transformer_forward.29} parent=5 // pred_fallthru
        _
      %p165 = scmp.lt.s32.totalorder %s9, 3
      // Predicated region
      $region17: #{transformer_forward.29} parent=5 // pred_check
        %p166 = pneg %p165
      $region18: #{transformer_forward.29} parent=5 // pred_check_branch
        %168 = sbr.rel (%p166) target = $region20
      $region19: #{transformer_forward.29} parent=5 // pred_region
        // Predicated region
        $region21: #{transformer_forward.29} parent=19 // pred_check
          %p169 = pneg %p78
        $region22: #{transformer_forward.29} parent=19 // pred_check_branch
          %171 = sbr.rel (%p169) target = $region24
        $region23: #{transformer_forward.29} parent=19 // pred_region
          %s172 = sand.u32 %s68, 1
          %s173 = sand.u32 %s68, 1
          %s174 = smul.addr %s173, 64
          %s175 = scalar_lea.vmem [#allocation3], %s174
          %s176 = smul.u32 16, %s18
          %s177 = smul.addr %s176, 3
          %s178 = sadd.s32 %s17, %s177
          %s179 = smul.addr %s178, 4
          %s180 = scalar_lea.vmem %s1, %s179
          // Predicated region
          $region25: #{transformer_forward.29} parent=23 // pred_check
            _
          $region26: #{transformer_forward.29} parent=23 // pred_check_branch
            %182 = sbr.rel (0) target = $region28
          $region27: #{transformer_forward.29} parent=23 // pred_region
            // Predicated region
            $region29: #{transformer_forward.29} parent=27 // pred_check
              _
            $region30: #{transformer_forward.29} parent=27 // pred_check_branch
              %184 = sbr.rel target = $region32
            $region31: #{transformer_forward.29} parent=27 // pred_region
              // Predicated region
              $region44: #{transformer_forward.29} parent=31 // pred_check
                _
              $region45: #{transformer_forward.29} parent=31 // pred_check_branch
                %230 = sbr.rel (0) target = $region47
              $region46: #{transformer_forward.29} parent=31 // pred_region
                loop: start=0, step=1, limit=1
                $region48: #{transformer_forward.29} parent=46 // loop_pre_header
                  _
                $region49: #{transformer_forward.29} parent=46 // loop_header
                  %s232 = sphi 0, %s236
                  %p233 = scmp.ge.s32.totalorder %s232, 1
                  %s237 = sphi %s180, %s180
                  %s238 = sphi %s175, %s175
                $region50: #{transformer_forward.29} parent=46 // loop_header_branch
                  %235 = sbr.rel (%p233) target = $region54
                $region51: #{transformer_forward.29} parent=46 // loop_body
                  _
                $region52: #{transformer_forward.29} parent=46 // loop_footer
                  %s236 = sadd.s32 1, %s232
                $region53: #{transformer_forward.29} parent=46 // loop_footer_branch
                  %231 = sbr.rel target = $region49
                $region54: #{transformer_forward.29} parent=46 // loop_exit
                  _
                %s240 = ssub.s32 16, 1
                loop: start=0, step=1, limit=1
                $region55: #{transformer_forward.29} parent=46 // loop_pre_header
                  _
                $region56: #{transformer_forward.29} parent=46 // loop_header
                  %s242 = sphi 0, %s246
                  %p243 = scmp.ge.s32.totalorder %s242, 1
                  %s247 = sphi %s180, %s180
                  %s248 = sphi %s175, %s175
                $region57: #{transformer_forward.29} parent=46 // loop_header_branch
                  %245 = sbr.rel (%p243) target = $region61
                $region58: #{transformer_forward.29} parent=46 // loop_body
                  %v249 = vld [vmem:[%s247] sm:%s240]
                  %250 = vst [vmem:[%s248] sm:%s240] %v249
                  %v251 = vld [vmem:[%s247 + $0xc] sm:%s240]
                  %252 = vst [vmem:[%s248 + $0x4] sm:%s240] %v251
                  %v253 = vld [vmem:[%s247 + $0x18] sm:%s240]
                  %254 = vst [vmem:[%s248 + $0x8] sm:%s240] %v253
                  %v255 = vld [vmem:[%s247 + $0x24] sm:%s240]
                  %256 = vst [vmem:[%s248 + $0xc] sm:%s240] %v255
                  %v257 = vld [vmem:[%s247 + $0x30] sm:%s240]
                  %258 = vst [vmem:[%s248 + $0x10] sm:%s240] %v257
                  %v259 = vld [vmem:[%s247 + $0x3c] sm:%s240]
                  %260 = vst [vmem:[%s248 + $0x14] sm:%s240] %v259
                  %v261 = vld [vmem:[%s247 + $0x48] sm:%s240]
                  %262 = vst [vmem:[%s248 + $0x18] sm:%s240] %v261
                  %v263 = vld [vmem:[%s247 + $0x54] sm:%s240]
                  %264 = vst [vmem:[%s248 + $0x1c] sm:%s240] %v263
                  %v265 = vld [vmem:[%s247 + $0x60] sm:%s240]
                  %266 = vst [vmem:[%s248 + $0x20] sm:%s240] %v265
                  %v267 = vld [vmem:[%s247 + $0x6c] sm:%s240]
                  %268 = vst [vmem:[%s248 + $0x24] sm:%s240] %v267
                  %v269 = vld [vmem:[%s247 + $0x78] sm:%s240]
                  %270 = vst [vmem:[%s248 + $0x28] sm:%s240] %v269
                  %v271 = vld [vmem:[%s247 + $0x84] sm:%s240]
                  %272 = vst [vmem:[%s248 + $0x2c] sm:%s240] %v271
                  %v273 = vld [vmem:[%s247 + $0x90] sm:%s240]
                  %274 = vst [vmem:[%s248 + $0x30] sm:%s240] %v273
                  %v275 = vld [vmem:[%s247 + $0x9c] sm:%s240]
                  %276 = vst [vmem:[%s248 + $0x34] sm:%s240] %v275
                  %v277 = vld [vmem:[%s247 + $0xa8] sm:%s240]
                  %278 = vst [vmem:[%s248 + $0x38] sm:%s240] %v277
                  %v279 = vld [vmem:[%s247 + $0xb4] sm:%s240]
                  %280 = vst [vmem:[%s248 + $0x3c] sm:%s240] %v279
                $region59: #{transformer_forward.29} parent=46 // loop_footer
                  %s246 = sadd.s32 1, %s242
                $region60: #{transformer_forward.29} parent=46 // loop_footer_branch
                  %241 = sbr.rel target = $region56
                $region61: #{transformer_forward.29} parent=46 // loop_exit
                  _
              $region47: #{transformer_forward.29} parent=31 // pred_fallthru
                _
            $region32: #{transformer_forward.29} parent=27 // pred_fallthru
              _
            // Predicated region
            $region33: #{transformer_forward.29} parent=27 // pred_check
              _
            $region34: #{transformer_forward.29} parent=27 // pred_check_branch
              %186 = sbr.rel (0) target = $region36
            $region35: #{transformer_forward.29} parent=27 // pred_region
              %s188 = ssub.s32 16, 1
              loop: start=0, step=1, limit=1
              $region37: #{transformer_forward.29} parent=35 // loop_pre_header
                _
              $region38: #{transformer_forward.29} parent=35 // loop_header
                %s190 = sphi 0, %s194
                %p191 = scmp.ge.s32.totalorder %s190, 1
                %s195 = sphi %s180, %s180
                %s196 = sphi %s175, %s175
              $region39: #{transformer_forward.29} parent=35 // loop_header_branch
                %193 = sbr.rel (%p191) target = $region43
              $region40: #{transformer_forward.29} parent=35 // loop_body
                %v197 = vld [vmem:[%s195] sm:%s188]
                %198 = vst [vmem:[%s196] sm:%s188] %v197
                %v199 = vld [vmem:[%s195 + $0xc] sm:%s188]
                %200 = vst [vmem:[%s196 + $0x4] sm:%s188] %v199
                %v201 = vld [vmem:[%s195 + $0x18] sm:%s188]
                %202 = vst [vmem:[%s196 + $0x8] sm:%s188] %v201
                %v203 = vld [vmem:[%s195 + $0x24] sm:%s188]
                %204 = vst [vmem:[%s196 + $0xc] sm:%s188] %v203
                %v205 = vld [vmem:[%s195 + $0x30] sm:%s188]
                %206 = vst [vmem:[%s196 + $0x10] sm:%s188] %v205
                %v207 = vld [vmem:[%s195 + $0x3c] sm:%s188]
                %208 = vst [vmem:[%s196 + $0x14] sm:%s188] %v207
                %v209 = vld [vmem:[%s195 + $0x48] sm:%s188]
                %210 = vst [vmem:[%s196 + $0x18] sm:%s188] %v209
                %v211 = vld [vmem:[%s195 + $0x54] sm:%s188]
                %212 = vst [vmem:[%s196 + $0x1c] sm:%s188] %v211
                %v213 = vld [vmem:[%s195 + $0x60] sm:%s188]
                %214 = vst [vmem:[%s196 + $0x20] sm:%s188] %v213
                %v215 = vld [vmem:[%s195 + $0x6c] sm:%s188]
                %216 = vst [vmem:[%s196 + $0x24] sm:%s188] %v215
                %v217 = vld [vmem:[%s195 + $0x78] sm:%s188]
                %218 = vst [vmem:[%s196 + $0x28] sm:%s188] %v217
                %v219 = vld [vmem:[%s195 + $0x84] sm:%s188]
                %220 = vst [vmem:[%s196 + $0x2c] sm:%s188] %v219
                %v221 = vld [vmem:[%s195 + $0x90] sm:%s188]
                %222 = vst [vmem:[%s196 + $0x30] sm:%s188] %v221
                %v223 = vld [vmem:[%s195 + $0x9c] sm:%s188]
                %224 = vst [vmem:[%s196 + $0x34] sm:%s188] %v223
                %v225 = vld [vmem:[%s195 + $0xa8] sm:%s188]
                %226 = vst [vmem:[%s196 + $0x38] sm:%s188] %v225
                %v227 = vld [vmem:[%s195 + $0xb4] sm:%s188]
                %228 = vst [vmem:[%s196 + $0x3c] sm:%s188] %v227
              $region41: #{transformer_forward.29} parent=35 // loop_footer
                %s194 = sadd.s32 1, %s190
              $region42: #{transformer_forward.29} parent=35 // loop_footer_branch
                %189 = sbr.rel target = $region38
              $region43: #{transformer_forward.29} parent=35 // loop_exit
                _
            $region36: #{transformer_forward.29} parent=27 // pred_fallthru
              _
          $region28: #{transformer_forward.29} parent=23 // pred_fallthru
            _
          %281 = vnop
        $region24: #{transformer_forward.29} parent=19 // pred_fallthru
          _
        // Predicated region
        $region62: #{transformer_forward.29} parent=19 // pred_check
          %p282 = pneg %p104
        $region63: #{transformer_forward.29} parent=19 // pred_check_branch
          %284 = sbr.rel (%p282) target = $region65
        $region64: #{transformer_forward.29} parent=19 // pred_region
          %p285 = scmp.lt.s32.totalorder %s17, 2
          %s286 = scalar_select %p285, %s17, 2
          %s287 = scalar_lea.vmem %s2, %s286
        $region65: #{transformer_forward.29} parent=19 // pred_fallthru
          _
      $region20: #{transformer_forward.29} parent=5 // pred_fallthru
        _
      %p288 = scmp.le.s32.totalorder 1, %s9
      %p289 = scmp.lt.s32.totalorder %s9, 4
      %p290 = pnand %p288, %p289
      %p291 = pneg %p290
      // Predicated region
      $region66: #{transformer_forward.29} parent=5 // pred_check
        _
      $region67: #{transformer_forward.29} parent=5 // pred_check_branch
        %293 = sbr.rel (%p290) target = $region69
      $region68: #{transformer_forward.29} parent=5 // pred_region
        %s294 = ssub.s32 %s9, 1
        %s295 = sand.u32 %s71, 1
        %s296 = sand.u32 %s71, 1
        %s297 = smul.addr %s296, 64
        %s298 = scalar_lea.vmem [#allocation3], %s297
        // Predicated region
        $region70: #{transformer_forward.29} parent=68 // pred_check
          %p299 = pneg %p84
        $region71: #{transformer_forward.29} parent=68 // pred_check_branch
          %301 = sbr.rel (%p299) target = $region73
        $region72: #{transformer_forward.29} parent=68 // pred_region
          _
        $region73: #{transformer_forward.29} parent=68 // pred_fallthru
          _
        %s302 = smul.u32 2, %s19
        %p303 = scmp.lt.s32.totalorder %s302, 1
        %s304 = scalar_select %p303, %s302, 1
        %p305 = scmp.lt.s32.totalorder %s21, 0
        %s306 = scalar_select %p305, %s21, 0
        %s307 = sadd.s32 %s306, %s304
        %s308 = smul.addr %s307, 4
        %s309 = scalar_lea.vmem %s0, %s308
        %p310 = pneg %p56
        %p311 = pneg %p53
        %s312 = sand.u32 %s71, 1
        %s313 = sand.u32 %s71, 1
        %s314 = smul.addr %s313, 64
        %s315 = scalar_lea.vmem [#allocation3], %s314
        %p316 = pneg %p84
        %p317 = pneg %p81
        %p318 = scmp.lt.s32.totalorder %s20, 2
        %s319 = scalar_select %p318, %s20, 2
        %s320 = scalar_lea.vmem %s2, %s319
        %p321 = pneg %p110
        %p322 = pneg %p107
        %p323 = pneg %p138
        %p324 = pneg %p135
        %s325 = sand.u32 %s125, 1
        %s326 = sand.u32 %s125, 1
        %s327 = smul.addr %s326, 8
        %s328 = scalar_lea.vmem [#allocation4], %s327
        %s329 = smul.u32 2, %s19
        %p330 = scmp.lt.s32.totalorder %s329, 1
        %s331 = scalar_select %p330, %s329, 1
        %p332 = scmp.lt.s32.totalorder %s21, 0
        %s333 = scalar_select %p332, %s21, 0
        %s334 = sadd.s32 %s333, %s331
        %s335 = smul.addr %s334, 4
        %s336 = scalar_lea.vmem %s0, %s335
        %s337 = smul.u32 2, %s19
        %s338 = smul.u32 16, %s21
        %p339 = scmp.lt.s32.totalorder %s20, 2
        %s340 = scalar_select %p339, %s20, 2
        %s341 = scalar_lea.vmem %s2, %s340
        %s342 = smul.u32 2, %s19
        %p344 = scmp.eq.s32.totalorder %s21, 0
        // Predicated region
        $region74: #{transformer_forward.29} parent=68 // pred_check
          %p345 = pneg %p344
        $region75: #{transformer_forward.29} parent=68 // pred_check_branch
          %347 = sbr.rel (%p345) target = $region77
        $region76: #{transformer_forward.29} parent=68 // pred_region
          %348 = vst [vmem:[#allocation2] sm:$0xff] 0.0
          %349 = vst [vmem:[#allocation2 + $0x8] sm:$0xff] 0.0
        $region77: #{transformer_forward.29} parent=68 // pred_fallthru
          _
        %v350 = vld [vmem:[#allocation2] sm:$0xff]
        %v351 = vld [vmem:[#allocation2 + $0x8] sm:$0xff]
        %v352 = vld [vmem:[%s336] sm:$0xf]
        %v353 = vld [vmem:[%s336 + $0x4] sm:$0xf]
        %v354 = vld [vmem:[%s298] sm:$0xf]
        %v355 = vld [vmem:[%s298 + $0x4] sm:$0xf]
        %v356 = vld [vmem:[%s298 + $0x8] sm:$0xf]
        %v357 = vld [vmem:[%s298 + $0xc] sm:$0xf]
        %v358 = vld [vmem:[%s298 + $0x10] sm:$0xf]
        %v359 = vld [vmem:[%s298 + $0x14] sm:$0xf]
        %v360 = vld [vmem:[%s298 + $0x18] sm:$0xf]
        %v361 = vld [vmem:[%s298 + $0x1c] sm:$0xf]
        %v362 = vld [vmem:[%s298 + $0x20] sm:$0xf]
        %v363 = vld [vmem:[%s298 + $0x24] sm:$0xf]
        %v364 = vld [vmem:[%s298 + $0x28] sm:$0xf]
        %v365 = vld [vmem:[%s298 + $0x2c] sm:$0xf]
        %v366 = vld [vmem:[%s298 + $0x30] sm:$0xf]
        %v367 = vld [vmem:[%s298 + $0x34] sm:$0xf]
        %v368 = vld [vmem:[%s298 + $0x38] sm:$0xf]
        %v369 = vld [vmem:[%s298 + $0x3c] sm:$0xf]
        %v372 = vunpack.c.l.b16 %v352
        %v373 = vunpack.c.l.b16 %v353
        %v374 = vpack.c.b16 %v373, %v372
        %v392 = vunpack.c.l.b16 %v354
        %v393 = vunpack.c.l.b16 %v355
        %v394 = vunpack.c.l.b16 %v356
        %v395 = vunpack.c.l.b16 %v357
        %v396 = vunpack.c.l.b16 %v358
        %v397 = vunpack.c.l.b16 %v359
        %v398 = vunpack.c.l.b16 %v360
        %v399 = vunpack.c.l.b16 %v361
        %v400 = vunpack.c.l.b16 %v362
        %v401 = vunpack.c.l.b16 %v363
        %v402 = vunpack.c.l.b16 %v364
        %v403 = vunpack.c.l.b16 %v365
        %v404 = vunpack.c.l.b16 %v366
        %v405 = vunpack.c.l.b16 %v367
        %v406 = vunpack.c.l.b16 %v368
        %v407 = vunpack.c.l.b16 %v369
        %v408 = vpack.c.b16 %v393, %v392
        %v409 = vpack.c.b16 %v395, %v394
        %v410 = vpack.c.b16 %v397, %v396
        %v411 = vpack.c.b16 %v399, %v398
        %v412 = vpack.c.b16 %v401, %v400
        %v413 = vpack.c.b16 %v403, %v402
        %v414 = vpack.c.b16 %v405, %v404
        %v415 = vpack.c.b16 %v407, %v406
        %424 = vmatprep.subr.bf16.mxu0 0
        %425 = vmatpush1.bf16.msra.mxu0 %v415
        %426 = vmatprep.subr.bf16.mxu0 0
        %427 = vmatpush1.bf16.msra.mxu0 %v414
        %428 = vmatprep.subr.bf16.mxu0 0
        %429 = vmatpush1.bf16.msra.mxu0 %v413
        %430 = vmatprep.subr.bf16.mxu0 0
        %431 = vmatpush1.bf16.msra.mxu0 %v412
        %432 = vmatprep.subr.bf16.mxu0 0
        %433 = vmatpush1.bf16.msra.mxu0 %v411
        %434 = vmatprep.subr.bf16.mxu0 0
        %435 = vmatpush1.bf16.msra.mxu0 %v410
        %436 = vmatprep.subr.bf16.mxu0 0
        %437 = vmatpush1.bf16.msra.mxu0 %v409
        %438 = vmatprep.subr.bf16.mxu0 0
        %439 = vmatpush1.bf16.msra.mxu0 %v408
        %440 = vmatprep.subr.bf16.mxu0 0
        %441 = vmatpush2.bf16.msra.mxu0 0
        %442 = vmatprep.subr.bf16.mxu0 0
        %443 = vmatpush2.bf16.msra.mxu0 0
        %444 = vmatprep.subr.bf16.mxu0 0
        %445 = vmatpush2.bf16.msra.mxu0 0
        %446 = vmatprep.subr.bf16.mxu0 0
        %447 = vmatpush2.bf16.msra.mxu0 0
        %448 = vmatprep.subr.bf16.mxu0 0
        %449 = vmatpush2.bf16.msra.mxu0 0
        %450 = vmatprep.subr.bf16.mxu0 0
        %451 = vmatpush2.bf16.msra.mxu0 0
        %452 = vmatprep.subr.bf16.mxu0 0
        %453 = vmatpush2.bf16.msra.mxu0 0
        %454 = vmatprep.subr.bf16.mxu0 0
        %455 = vmatpush2.bf16.msra.mxu0 0
        %456 = vmatprep.mubr.bf16.mxu0 0
        %457 = vmatmul.mubr.bf16.gmra.mxu0 %v374
        %v458 = vpop.f32.mrf.mxu0
        %v459 = vadd.f32 0.0, %v458
        %v460 = vpop.f32.mrf.mxu0
        %v461 = vpop.f32.mrf.mxu0
        %v462 = vadd.f32 0.0, %v461
        %v463 = vpop.f32.mrf.mxu0
        %464 = vdwg.mxu0
        %v465 = vadd.f32 %v350, %v459
        %v466 = vadd.f32 %v351, %v462
        %467 = vst [vmem:[#allocation2] sm:$0xff] %v465
        %468 = vst [vmem:[#allocation2 + $0x8] sm:$0xff] %v466
        // Predicated region
        $region78: #{transformer_forward.29} parent=68 // pred_check
          %p469 = pneg %p344
        $region79: #{transformer_forward.29} parent=68 // pred_check_branch
          %471 = sbr.rel (%p469) target = $region81
        $region80: #{transformer_forward.29} parent=68 // pred_region
          %v472 = vld [vmem:[#allocation2] sm:$0xff]
          %v473 = vld [vmem:[#allocation2 + $0x8] sm:$0xff]
          %v474 = vld [vmem:[%s341] sm:$0x1]
          %v476 = vlaneseq
          %v477 = vshrl.u32 %v476, 7
          %v478 = vsub.s32 0, %v477
          %v479 = vrot.slane %v474, %v478
          %v481 = vadd.f32 %v472, %v479
          %v482 = vadd.f32 %v473, %v479
          %v483 = vpack.c.bf16 %v482, %v481
          %v485 = vunpack.c.l.b16 %v483
          %v486 = vunpack.c.h.b16 %v483
          %v487 = vpack.c.b16 %v485, %v485
          %v488 = vpack.c.b16 %v486, %v486
          %491 = vst [vmem:[%s328] sm:$0xf] %v487
          %492 = vst [vmem:[%s328 + $0x4] sm:$0xf] %v488
        $region81: #{transformer_forward.29} parent=68 // pred_fallthru
          _
        %s493 = sand.u32 %s125, 1
        %s494 = sand.u32 %s125, 1
        %s495 = smul.addr %s494, 8
        %s496 = scalar_lea.vmem [#allocation4], %s495
        // Predicated region
        $region82: #{transformer_forward.29} parent=68 // pred_check
          %p497 = pneg %p135
        $region83: #{transformer_forward.29} parent=68 // pred_check_branch
          %499 = sbr.rel (%p497) target = $region85
        $region84: #{transformer_forward.29} parent=68 // pred_region
          %s500 = smul.u32 2, %s19
          %s501 = smul.addr %s500, 3
          %s502 = sadd.s32 %s20, %s501
          %s503 = smul.addr %s502, 4
          %s504 = scalar_lea.vmem %s3, %s503
          // Predicated region
          $region86: #{transformer_forward.29} parent=84 // pred_check
            _
          $region87: #{transformer_forward.29} parent=84 // pred_check_branch
            %506 = sbr.rel (0) target = $region89
          $region88: #{transformer_forward.29} parent=84 // pred_region
            // Predicated region
            $region90: #{transformer_forward.29} parent=88 // pred_check
              _
            $region91: #{transformer_forward.29} parent=88 // pred_check_branch
              %508 = sbr.rel target = $region93
            $region92: #{transformer_forward.29} parent=88 // pred_region
              // Predicated region
              $region105: #{transformer_forward.29} parent=92 // pred_check
                _
              $region106: #{transformer_forward.29} parent=92 // pred_check_branch
                %526 = sbr.rel (0) target = $region108
              $region107: #{transformer_forward.29} parent=92 // pred_region
                loop: start=0, step=1, limit=1
                $region109: #{transformer_forward.29} parent=107 // loop_pre_header
                  _
                $region110: #{transformer_forward.29} parent=107 // loop_header
                  %s528 = sphi 0, %s532
                  %p529 = scmp.ge.s32.totalorder %s528, 1
                  %s533 = sphi %s496, %s496
                  %s534 = sphi %s504, %s504
                $region111: #{transformer_forward.29} parent=107 // loop_header_branch
                  %531 = sbr.rel (%p529) target = $region115
                $region112: #{transformer_forward.29} parent=107 // loop_body
                  _
                $region113: #{transformer_forward.29} parent=107 // loop_footer
                  %s532 = sadd.s32 1, %s528
                $region114: #{transformer_forward.29} parent=107 // loop_footer_branch
                  %527 = sbr.rel target = $region110
                $region115: #{transformer_forward.29} parent=107 // loop_exit
                  _
                %s536 = ssub.s32 16, 1
                loop: start=0, step=1, limit=1
                $region116: #{transformer_forward.29} parent=107 // loop_pre_header
                  _
                $region117: #{transformer_forward.29} parent=107 // loop_header
                  %s538 = sphi 0, %s542
                  %p539 = scmp.ge.s32.totalorder %s538, 1
                  %s543 = sphi %s496, %s496
                  %s544 = sphi %s504, %s504
                $region118: #{transformer_forward.29} parent=107 // loop_header_branch
                  %541 = sbr.rel (%p539) target = $region122
                $region119: #{transformer_forward.29} parent=107 // loop_body
                  %v545 = vld [vmem:[%s543] sm:%s536]
                  %546 = vst [vmem:[%s544] sm:%s536] %v545
                  %v547 = vld [vmem:[%s543 + $0x4] sm:%s536]
                  %548 = vst [vmem:[%s544 + $0xc] sm:%s536] %v547
                $region120: #{transformer_forward.29} parent=107 // loop_footer
                  %s542 = sadd.s32 1, %s538
                $region121: #{transformer_forward.29} parent=107 // loop_footer_branch
                  %537 = sbr.rel target = $region117
                $region122: #{transformer_forward.29} parent=107 // loop_exit
                  _
              $region108: #{transformer_forward.29} parent=92 // pred_fallthru
                _
            $region93: #{transformer_forward.29} parent=88 // pred_fallthru
              _
            // Predicated region
            $region94: #{transformer_forward.29} parent=88 // pred_check
              _
            $region95: #{transformer_forward.29} parent=88 // pred_check_branch
              %510 = sbr.rel (0) target = $region97
            $region96: #{transformer_forward.29} parent=88 // pred_region
              %s512 = ssub.s32 16, 1
              loop: start=0, step=1, limit=1
              $region98: #{transformer_forward.29} parent=96 // loop_pre_header
                _
              $region99: #{transformer_forward.29} parent=96 // loop_header
                %s514 = sphi 0, %s518
                %p515 = scmp.ge.s32.totalorder %s514, 1
                %s519 = sphi %s496, %s496
                %s520 = sphi %s504, %s504
              $region100: #{transformer_forward.29} parent=96 // loop_header_branch
                %517 = sbr.rel (%p515) target = $region104
              $region101: #{transformer_forward.29} parent=96 // loop_body
                %v521 = vld [vmem:[%s519] sm:%s512]
                %522 = vst [vmem:[%s520] sm:%s512] %v521
                %v523 = vld [vmem:[%s519 + $0x4] sm:%s512]
                %524 = vst [vmem:[%s520 + $0xc] sm:%s512] %v523
              $region102: #{transformer_forward.29} parent=96 // loop_footer
                %s518 = sadd.s32 1, %s514
              $region103: #{transformer_forward.29} parent=96 // loop_footer_branch
                %513 = sbr.rel target = $region99
              $region104: #{transformer_forward.29} parent=96 // loop_exit
                _
            $region97: #{transformer_forward.29} parent=88 // pred_fallthru
              _
          $region89: #{transformer_forward.29} parent=84 // pred_fallthru
            _
          %549 = vnop
        $region85: #{transformer_forward.29} parent=68 // pred_fallthru
          _
      $region69: #{transformer_forward.29} parent=5 // pred_fallthru
        _
      %p550 = scmp.le.s32.totalorder 2, %s9
      // Predicated region
      $region123: #{transformer_forward.29} parent=5 // pred_check
        %p551 = pneg %p550
      $region124: #{transformer_forward.29} parent=5 // pred_check_branch
        %553 = sbr.rel (%p551) target = $region126
      $region125: #{transformer_forward.29} parent=5 // pred_region
        %s554 = ssub.s32 %s9, 2
        // Predicated region
        $region127: #{transformer_forward.29} parent=125 // pred_check
          %p555 = pneg %p141
        $region128: #{transformer_forward.29} parent=125 // pred_check_branch
          %557 = sbr.rel (%p555) target = $region130
        $region129: #{transformer_forward.29} parent=125 // pred_region
          %s558 = sand.u32 %s126, 1
          %s559 = sand.u32 %s126, 1
          %s560 = smul.addr %s559, 8
          %s561 = scalar_lea.vmem [#allocation4], %s560
        $region130: #{transformer_forward.29} parent=125 // pred_fallthru
          _
      $region126: #{transformer_forward.29} parent=5 // pred_fallthru
        _
    $region6: #{transformer_forward.29} parent=1 // loop_footer
      %s13 = sadd.s32 1, %s9
    $region7: #{transformer_forward.29} parent=1 // loop_footer_branch
      %8 = sbr.rel target = $region3
    $region8: #{transformer_forward.29} parent=1 // loop_exit
      _

// kernel: transformer_forward.31
$region0: #{transformer_forward.31}
  #allocation0 [shape = 'u32[]', space=smem, size = 0x4, offset = 0x4, fixed_abs, tag = 'smem constant byte address 0x4 - core index']
  #allocation1 [shape = 'u32[144,128]{1,0:T(1,128)}', space=vmem, size = 0x12000, scoped, tag = 'internal scratch']
  #allocation2 [shape = 'f32[16,128]{1,0:T(8,128)}', space=vmem, size = 0x2000, scoped, tag = 'scratch operand']
  %s0 = inlined_call_operand.vmem [shape: bf16[16,128], index: 0, kind: input, shape index: {}]
  %s1 = inlined_call_operand.vmem [shape: bf16[128,128], index: 1, kind: input, shape index: {}]
  %s2 = inlined_call_operand.vmem [shape: f32[1,128], index: 2, kind: input, shape index: {}]
  %s3 = inlined_call_operand.vmem [shape: f32[16,128], index: 3, kind: input, shape index: {}]
  %s4 = inlined_call_operand.vmem [shape: f32[1,128], index: 4, kind: input, shape index: {}]
  %s5 = inlined_call_operand.vmem [shape: f32[1,128], index: 5, kind: input, shape index: {}]
  %s6 = inlined_call_operand.vmem [shape: f32[16,128], index: 6, kind: output, shape index: {}]
  %s7 = sld [smem:[#allocation0]]
  $region42: #{transformer_forward.31} parent=0
    _
  %s9 = ssub.s32 1, %s7
  %s10 = scalar_select 0, %s9, %s7
  // Predicated region
  $region2: #{transformer_forward.31} parent=0 // pred_check
    _
  $region3: #{transformer_forward.31} parent=0 // pred_check_branch
    %12 = sbr.rel (0) target = $region5
  $region4: #{transformer_forward.31} parent=0 // pred_region
    _
  $region5: #{transformer_forward.31} parent=0 // pred_fallthru
    _
  // Predicated region
  $region6: #{transformer_forward.31} parent=0 // pred_check
    _
  $region7: #{transformer_forward.31} parent=0 // pred_check_branch
    %14 = sbr.rel (0) target = $region9
  $region8: #{transformer_forward.31} parent=0 // pred_region
    _
  $region9: #{transformer_forward.31} parent=0 // pred_fallthru
    _
  // Predicated region
  $region10: #{transformer_forward.31} parent=0 // pred_check
    _
  $region11: #{transformer_forward.31} parent=0 // pred_check_branch
    %16 = sbr.rel (0) target = $region13
  $region12: #{transformer_forward.31} parent=0 // pred_region
    _
  $region13: #{transformer_forward.31} parent=0 // pred_fallthru
    _
  // Predicated region
  $region14: #{transformer_forward.31} parent=0 // pred_check
    _
  $region15: #{transformer_forward.31} parent=0 // pred_check_branch
    %18 = sbr.rel (0) target = $region17
  $region16: #{transformer_forward.31} parent=0 // pred_region
    _
  $region17: #{transformer_forward.31} parent=0 // pred_fallthru
    _
  // Predicated region
  $region18: #{transformer_forward.31} parent=0 // pred_check
    _
  $region19: #{transformer_forward.31} parent=0 // pred_check_branch
    %20 = sbr.rel (0) target = $region21
  $region20: #{transformer_forward.31} parent=0 // pred_region
    _
  $region21: #{transformer_forward.31} parent=0 // pred_fallthru
    _
  // Predicated region
  $region22: #{transformer_forward.31} parent=0 // pred_check
    _
  $region23: #{transformer_forward.31} parent=0 // pred_check_branch
    %22 = sbr.rel (0) target = $region25
  $region24: #{transformer_forward.31} parent=0 // pred_region
    _
  $region25: #{transformer_forward.31} parent=0 // pred_fallthru
    _
  %p24 = scmp.eq.s32.totalorder 0, 0
  // Predicated region
  $region26: #{transformer_forward.31} parent=0 // pred_check
    %p25 = pneg %p24
  $region27: #{transformer_forward.31} parent=0 // pred_check_branch
    %27 = sbr.rel (%p25) target = $region29
  $region28: #{transformer_forward.31} parent=0 // pred_region
    %28 = vst [vmem:[#allocation2] sm:$0xff] 0.0
    %29 = vst [vmem:[#allocation2 + $0x8] sm:$0xff] 0.0
  $region29: #{transformer_forward.31} parent=0 // pred_fallthru
    _
  %v30 = vld [vmem:[#allocation2] sm:$0xff]
  %v31 = vld [vmem:[#allocation2 + $0x8] sm:$0xff]
  %v32 = vld [vmem:[%s0] sm:$0xf]
  %v33 = vld [vmem:[%s0 + $0x4] sm:$0xf]
  %v34 = vld [vmem:[%s1] sm:$0xf]
  %v35 = vld [vmem:[%s1 + $0x4] sm:$0xf]
  %v36 = vld [vmem:[%s1 + $0x8] sm:$0xf]
  %v37 = vld [vmem:[%s1 + $0xc] sm:$0xf]
  %v38 = vld [vmem:[%s1 + $0x10] sm:$0xf]
  %v39 = vld [vmem:[%s1 + $0x14] sm:$0xf]
  %v40 = vld [vmem:[%s1 + $0x18] sm:$0xf]
  %v41 = vld [vmem:[%s1 + $0x1c] sm:$0xf]
  %v42 = vld [vmem:[%s1 + $0x20] sm:$0xf]
  %v43 = vld [vmem:[%s1 + $0x24] sm:$0xf]
  %v44 = vld [vmem:[%s1 + $0x28] sm:$0xf]
  %v45 = vld [vmem:[%s1 + $0x2c] sm:$0xf]
  %v46 = vld [vmem:[%s1 + $0x30] sm:$0xf]
  %v47 = vld [vmem:[%s1 + $0x34] sm:$0xf]
  %v48 = vld [vmem:[%s1 + $0x38] sm:$0xf]
  %v49 = vld [vmem:[%s1 + $0x3c] sm:$0xf]
  %v52 = vunpack.c.l.b16 %v32
  %v53 = vunpack.c.l.b16 %v33
  %v54 = vpack.c.b16 %v53, %v52
  %v72 = vunpack.c.l.b16 %v34
  %v73 = vunpack.c.l.b16 %v35
  %v74 = vunpack.c.l.b16 %v36
  %v75 = vunpack.c.l.b16 %v37
  %v76 = vunpack.c.l.b16 %v38
  %v77 = vunpack.c.l.b16 %v39
  %v78 = vunpack.c.l.b16 %v40
  %v79 = vunpack.c.l.b16 %v41
  %v80 = vunpack.c.l.b16 %v42
  %v81 = vunpack.c.l.b16 %v43
  %v82 = vunpack.c.l.b16 %v44
  %v83 = vunpack.c.l.b16 %v45
  %v84 = vunpack.c.l.b16 %v46
  %v85 = vunpack.c.l.b16 %v47
  %v86 = vunpack.c.l.b16 %v48
  %v87 = vunpack.c.l.b16 %v49
  %v88 = vpack.c.b16 %v73, %v72
  %v89 = vpack.c.b16 %v75, %v74
  %v90 = vpack.c.b16 %v77, %v76
  %v91 = vpack.c.b16 %v79, %v78
  %v92 = vpack.c.b16 %v81, %v80
  %v93 = vpack.c.b16 %v83, %v82
  %v94 = vpack.c.b16 %v85, %v84
  %v95 = vpack.c.b16 %v87, %v86
  %104 = vmatprep.subr.bf16.mxu0 0
  %105 = vmatpush1.bf16.msra.mxu0 %v95
  %106 = vmatprep.subr.bf16.mxu0 0
  %107 = vmatpush1.bf16.msra.mxu0 %v94
  %108 = vmatprep.subr.bf16.mxu0 0
  %109 = vmatpush1.bf16.msra.mxu0 %v93
  %110 = vmatprep.subr.bf16.mxu0 0
  %111 = vmatpush1.bf16.msra.mxu0 %v92
  %112 = vmatprep.subr.bf16.mxu0 0
  %113 = vmatpush1.bf16.msra.mxu0 %v91
  %114 = vmatprep.subr.bf16.mxu0 0
  %115 = vmatpush1.bf16.msra.mxu0 %v90
  %116 = vmatprep.subr.bf16.mxu0 0
  %117 = vmatpush1.bf16.msra.mxu0 %v89
  %118 = vmatprep.subr.bf16.mxu0 0
  %119 = vmatpush1.bf16.msra.mxu0 %v88
  %120 = vmatprep.subr.bf16.mxu0 0
  %121 = vmatpush2.bf16.msra.mxu0 0
  %122 = vmatprep.subr.bf16.mxu0 0
  %123 = vmatpush2.bf16.msra.mxu0 0
  %124 = vmatprep.subr.bf16.mxu0 0
  %125 = vmatpush2.bf16.msra.mxu0 0
  %126 = vmatprep.subr.bf16.mxu0 0
  %127 = vmatpush2.bf16.msra.mxu0 0
  %128 = vmatprep.subr.bf16.mxu0 0
  %129 = vmatpush2.bf16.msra.mxu0 0
  %130 = vmatprep.subr.bf16.mxu0 0
  %131 = vmatpush2.bf16.msra.mxu0 0
  %132 = vmatprep.subr.bf16.mxu0 0
  %133 = vmatpush2.bf16.msra.mxu0 0
  %134 = vmatprep.subr.bf16.mxu0 0
  %135 = vmatpush2.bf16.msra.mxu0 0
  %136 = vmatprep.mubr.bf16.mxu0 0
  %137 = vmatmul.mubr.bf16.gmra.mxu0 %v54
  %v138 = vpop.f32.mrf.mxu0
  %v139 = vadd.f32 0.0, %v138
  %v140 = vpop.f32.mrf.mxu0
  %v141 = vpop.f32.mrf.mxu0
  %v142 = vadd.f32 0.0, %v141
  %v143 = vpop.f32.mrf.mxu0
  %144 = vdwg.mxu0
  %v145 = vadd.f32 %v30, %v139
  %v146 = vadd.f32 %v31, %v142
  %147 = vst [vmem:[#allocation2] sm:$0xff] %v145
  %148 = vst [vmem:[#allocation2 + $0x8] sm:$0xff] %v146
  // Predicated region
  $region30: #{transformer_forward.31} parent=0 // pred_check
    %p149 = pneg %p24
  $region31: #{transformer_forward.31} parent=0 // pred_check_branch
    %151 = sbr.rel (%p149) target = $region33
  $region32: #{transformer_forward.31} parent=0 // pred_region
    %v152 = vld [vmem:[#allocation2] sm:$0xff]
    %v153 = vld [vmem:[#allocation2 + $0x8] sm:$0xff]
    %v154 = vld [vmem:[%s2] sm:$0x1]
    %v156 = vlaneseq
    %v157 = vshrl.u32 %v156, 7
    %v158 = vsub.s32 0, %v157
    %v159 = vrot.slane %v154, %v158
    %v161 = vadd.f32 %v152, %v159
    %v162 = vadd.f32 %v153, %v159
    %v163 = vld [vmem:[%s3] sm:$0xff]
    %v164 = vld [vmem:[%s3 + $0x8] sm:$0xff]
    %v165 = vadd.f32 %v161, %v163
    %v166 = vadd.f32 %v162, %v164
    %167 = vadd.xlane.f32.xlu0 %v165
    %v168 = vpop.xlane.xlu0 %167
    %169 = vadd.xlane.f32.xlu0 %v166
    %v170 = vpop.xlane.xlu0 %169
    %v171 = vrcp.pop 128.0
    %v172 = vmul.f32 %v168, %v171
    %v173 = vmul.f32 %v170, %v171
    %v174 = vsub.f32 %v165, %v172
    %v175 = vsub.f32 %v166, %v173
    %v176 = vmul.f32 %v174, %v174
    %v177 = vmul.f32 %v175, %v175
    %178 = vadd.xlane.f32.xlu0 %v176
    %v179 = vpop.xlane.xlu0 %178
    %180 = vadd.xlane.f32.xlu0 %v177
    %v181 = vpop.xlane.xlu0 %180
    %v182 = vmul.f32 %v179, %v171
    %v183 = vmul.f32 %v181, %v171
    %v184 = vadd.f32 %v182, 1e-05
    %v185 = vadd.f32 %v183, 1e-05
    %v186 = vrsqrt.pop %v184
    %v187 = vrsqrt.pop %v185
    %v188 = vmul.f32 %v174, %v186
    %v189 = vmul.f32 %v175, %v187
    %v190 = vld [vmem:[%s4] sm:$0x1]
    %v192 = vlaneseq
    %v193 = vshrl.u32 %v192, 7
    %v194 = vsub.s32 0, %v193
    %v195 = vrot.slane %v190, %v194
    %v197 = vmul.f32 %v188, %v195
    %v198 = vmul.f32 %v189, %v195
    %v199 = vld [vmem:[%s5] sm:$0x1]
    %v201 = vlaneseq
    %v202 = vshrl.u32 %v201, 7
    %v203 = vsub.s32 0, %v202
    %v204 = vrot.slane %v199, %v203
    %v206 = vadd.f32 %v197, %v204
    %v207 = vadd.f32 %v198, %v204
    %208 = vst [vmem:[%s6] sm:$0xff] %v206
    %209 = vst [vmem:[%s6 + $0x8] sm:$0xff] %v207
  $region33: #{transformer_forward.31} parent=0 // pred_fallthru
    _
  // Predicated region
  $region34: #{transformer_forward.31} parent=0 // pred_check
    _
  $region35: #{transformer_forward.31} parent=0 // pred_check_branch
    %211 = sbr.rel (0) target = $region37
  $region36: #{transformer_forward.31} parent=0 // pred_region
    _
  $region37: #{transformer_forward.31} parent=0 // pred_fallthru
    _
  // Predicated region
  $region38: #{transformer_forward.31} parent=0 // pred_check
    _
  $region39: #{transformer_forward.31} parent=0 // pred_check_branch
    %213 = sbr.rel (0) target = $region41
  $region40: #{transformer_forward.31} parent=0 // pred_region
    _
  $region41: #{transformer_forward.31} parent=0 // pred_fallthru
    _

// kernel: transformer_forward.30
$region0: #{transformer_forward.30}
  #allocation0 [shape = 'u32[]', space=smem, size = 0x4, offset = 0x4, fixed_abs, tag = 'smem constant byte address 0x4 - core index']
  #allocation1 [shape = 'u32[144,128]{1,0:T(1,128)}', space=vmem, size = 0x12000, scoped, tag = 'internal scratch']
  #allocation2 [shape = 'f32[4,8,1]{2,1,0:T(8,128)}', space=vmem, size = 0x4000, scoped, tag = 'scratch operand']
  #allocation3 [shape = 'f32[4,8,1]{2,1,0:T(8,128)}', space=vmem, size = 0x4000, scoped, tag = 'scratch operand']
  #allocation4 [shape = 'f32[8,128]{1,0:T(8,128)}', space=vmem, size = 0x1000, scoped, tag = 'scratch operand']
  %s0 = inlined_call_operand.vmem [shape: bf16[2,8,384], index: 0, kind: input, shape index: {}, may-alias: {0,1,2}]
  %s1 = inlined_call_operand.vmem [shape: bf16[2,8,384], index: 1, kind: input, shape index: {}, may-alias: {0,1,2}]
  %s2 = inlined_call_operand.vmem [shape: bf16[2,8,384], index: 2, kind: input, shape index: {}, may-alias: {0,1,2}]
  %s3 = inlined_call_operand.vmem [shape: f32[2,1,8], index: 3, kind: input, shape index: {}]
  %s4 = inlined_call_operand.vmem [shape: bf16[2,8,128], index: 4, kind: output, shape index: {}]
  %s5 = sld [smem:[#allocation0]]
  $region57: #{transformer_forward.30} parent=0
    _
  %s7 = ssub.s32 1, %s5
  %s8 = scalar_select 0, %s7, %s5
  loop: start=0, step=1, limit=4
  $region2: #{transformer_forward.30} parent=0 // loop_pre_header
    _
  $region3: #{transformer_forward.30} parent=0 // loop_header
    %s10 = sphi 0, %s14
    %p11 = scmp.ge.s32.totalorder %s10, 4
    %s17 = sphi 0, %s36
    %s18 = sphi 0, %s32
    %s19 = sphi 0, %s28
    %s20 = sphi 0, %s17
    %s21 = sphi 0, %s18
    %s22 = sphi 0, %s19
    %s23 = sphi 0, %s20
    %s24 = sphi 0, %s21
    %s25 = sphi 0, %s22
    %s41 = sphi 0, %s43
    %s44 = sphi 0, %s41
    %s45 = sphi 0, %s44
    %s61 = sphi 0, %s45
    %s69 = sphi 0, %s71
    %s72 = sphi 0, %s69
    %s73 = sphi 0, %s72
    %s89 = sphi 0, %s73
    %s97 = sphi 0, %s99
    %s100 = sphi 0, %s97
    %s101 = sphi 0, %s100
    %s117 = sphi 0, %s101
    %s125 = sphi 0, %s127
    %s128 = sphi 0, %s125
    %s129 = sphi 0, %s128
    %s145 = sphi 0, %s129
    %s153 = sphi 0, %s155
    %s156 = sphi 0, %s153
    %s157 = sphi 0, %s156
    %s173 = sphi 0, %s157
  $region4: #{transformer_forward.30} parent=0 // loop_header_branch
    %13 = sbr.rel (%p11) target = $region8
  $region5: #{transformer_forward.30} parent=0 // loop_body
    %s15 = ssub.s32 %s10, 1
    %s16 = ssub.s32 %s10, 2
    %s26 = sadd.s32 1, %s19
    %p27 = scmp.ge.s32.totalorder %s26, 1
    %s28 = scalar_select %p27, 0, %s26
    %s29 = sadd.s32 1, %s18
    %s30 = scalar_select %p27, %s29, %s18
    %p31 = scmp.ge.s32.totalorder %s30, 1
    %s32 = scalar_select %p31, 0, %s30
    %s33 = sadd.s32 1, %s17
    %s34 = scalar_select %p31, %s33, %s17
    %p35 = scmp.ge.s32.totalorder %s34, 2
    %s36 = scalar_select %p35, 0, %s34
    %s37 = ssub.s32 %s17, %s36
    %s38 = ssub.s32 %s18, %s32
    %s39 = sor.u32 %s37, %s38
    %p40 = scmp.eq.s32.totalorder %s39, 0
    %s42 = sadd.s32 %s41, 1
    %s43 = scalar_select %p40, %s41, %s42
    %p46 = pneg %p40
    %p47 = scmp.eq.s32.totalorder %s10, 1
    %p48 = por %p46, %p47
    %p49 = scmp.ne.s32.totalorder %s41, %s44
    %p50 = scmp.eq.s32.totalorder %s10, 0
    %p51 = por %p49, %p50
    %p52 = scmp.ne.s32.totalorder %s41, %s44
    %p53 = scmp.eq.s32.totalorder %s15, 1
    %p54 = por %p52, %p53
    %p55 = scmp.ne.s32.totalorder %s44, %s45
    %p56 = scmp.eq.s32.totalorder %s15, 0
    %p57 = por %p55, %p56
    %p58 = scmp.ne.s32.totalorder %s44, %s45
    %p59 = scmp.eq.s32.totalorder %s16, 1
    %p60 = por %p58, %p59
    %p62 = scmp.ne.s32.totalorder %s45, %s61
    %p63 = scmp.eq.s32.totalorder %s16, 0
    %p64 = por %p62, %p63
    %s65 = ssub.s32 %s17, %s36
    %s66 = ssub.s32 %s19, %s28
    %s67 = sor.u32 %s65, %s66
    %p68 = scmp.eq.s32.totalorder %s67, 0
    %s70 = sadd.s32 %s69, 1
    %s71 = scalar_select %p68, %s69, %s70
    %p74 = pneg %p68
    %p75 = scmp.eq.s32.totalorder %s10, 1
    %p76 = por %p74, %p75
    %p77 = scmp.ne.s32.totalorder %s69, %s72
    %p78 = scmp.eq.s32.totalorder %s10, 0
    %p79 = por %p77, %p78
    %p80 = scmp.ne.s32.totalorder %s69, %s72
    %p81 = scmp.eq.s32.totalorder %s15, 1
    %p82 = por %p80, %p81
    %p83 = scmp.ne.s32.totalorder %s72, %s73
    %p84 = scmp.eq.s32.totalorder %s15, 0
    %p85 = por %p83, %p84
    %p86 = scmp.ne.s32.totalorder %s72, %s73
    %p87 = scmp.eq.s32.totalorder %s16, 1
    %p88 = por %p86, %p87
    %p90 = scmp.ne.s32.totalorder %s73, %s89
    %p91 = scmp.eq.s32.totalorder %s16, 0
    %p92 = por %p90, %p91
    %s93 = ssub.s32 %s17, %s36
    %s94 = ssub.s32 %s19, %s28
    %s95 = sor.u32 %s93, %s94
    %p96 = scmp.eq.s32.totalorder %s95, 0
    %s98 = sadd.s32 %s97, 1
    %s99 = scalar_select %p96, %s97, %s98
    %p102 = pneg %p96
    %p103 = scmp.eq.s32.totalorder %s10, 1
    %p104 = por %p102, %p103
    %p105 = scmp.ne.s32.totalorder %s97, %s100
    %p106 = scmp.eq.s32.totalorder %s10, 0
    %p107 = por %p105, %p106
    %p108 = scmp.ne.s32.totalorder %s97, %s100
    %p109 = scmp.eq.s32.totalorder %s15, 1
    %p110 = por %p108, %p109
    %p111 = scmp.ne.s32.totalorder %s100, %s101
    %p112 = scmp.eq.s32.totalorder %s15, 0
    %p113 = por %p111, %p112
    %p114 = scmp.ne.s32.totalorder %s100, %s101
    %p115 = scmp.eq.s32.totalorder %s16, 1
    %p116 = por %p114, %p115
    %p118 = scmp.ne.s32.totalorder %s101, %s117
    %p119 = scmp.eq.s32.totalorder %s16, 0
    %p120 = por %p118, %p119
    %s121 = ssub.s32 %s17, %s36
    %s122 = ssub.s32 %s19, %s28
    %s123 = sor.u32 %s121, %s122
    %p124 = scmp.eq.s32.totalorder %s123, 0
    %s126 = sadd.s32 %s125, 1
    %s127 = scalar_select %p124, %s125, %s126
    %p130 = pneg %p124
    %p131 = scmp.eq.s32.totalorder %s10, 1
    %p132 = por %p130, %p131
    %p133 = scmp.ne.s32.totalorder %s125, %s128
    %p134 = scmp.eq.s32.totalorder %s10, 0
    %p135 = por %p133, %p134
    %p136 = scmp.ne.s32.totalorder %s125, %s128
    %p137 = scmp.eq.s32.totalorder %s15, 1
    %p138 = por %p136, %p137
    %p139 = scmp.ne.s32.totalorder %s128, %s129
    %p140 = scmp.eq.s32.totalorder %s15, 0
    %p141 = por %p139, %p140
    %p142 = scmp.ne.s32.totalorder %s128, %s129
    %p143 = scmp.eq.s32.totalorder %s16, 1
    %p144 = por %p142, %p143
    %p146 = scmp.ne.s32.totalorder %s129, %s145
    %p147 = scmp.eq.s32.totalorder %s16, 0
    %p148 = por %p146, %p147
    %s149 = ssub.s32 %s17, %s36
    %s150 = ssub.s32 %s18, %s32
    %s151 = sor.u32 %s149, %s150
    %p152 = scmp.eq.s32.totalorder %s151, 0
    %s154 = sadd.s32 %s153, 1
    %s155 = scalar_select %p152, %s153, %s154
    %p158 = pneg %p152
    %p159 = scmp.eq.s32.totalorder %s10, 1
    %p160 = por %p158, %p159
    %p161 = scmp.ne.s32.totalorder %s153, %s156
    %p162 = scmp.eq.s32.totalorder %s10, 0
    %p163 = por %p161, %p162
    %p164 = scmp.ne.s32.totalorder %s153, %s156
    %p165 = scmp.eq.s32.totalorder %s15, 1
    %p166 = por %p164, %p165
    %p167 = scmp.ne.s32.totalorder %s156, %s157
    %p168 = scmp.eq.s32.totalorder %s15, 0
    %p169 = por %p167, %p168
    %p170 = scmp.ne.s32.totalorder %s156, %s157
    %p171 = scmp.eq.s32.totalorder %s16, 1
    %p172 = por %p170, %p171
    %p174 = scmp.ne.s32.totalorder %s157, %s173
    %p175 = scmp.eq.s32.totalorder %s16, 0
    %p176 = por %p174, %p175
    %p177 = scmp.le.s32.totalorder 1, %s10
    %p178 = scmp.lt.s32.totalorder %s10, 3
    %p179 = pnand %p177, %p178
    %p180 = pneg %p179
    // Predicated region
    $region9: #{transformer_forward.30} parent=5 // pred_check
      _
    $region10: #{transformer_forward.30} parent=5 // pred_check_branch
      %182 = sbr.rel (%p179) target = $region12
    $region11: #{transformer_forward.30} parent=5 // pred_region
      %s183 = ssub.s32 %s10, 1
    $region12: #{transformer_forward.30} parent=5 // pred_fallthru
      _
    %p184 = scmp.lt.s32.totalorder %s10, 2
    // Predicated region
    $region13: #{transformer_forward.30} parent=5 // pred_check
      %p185 = pneg %p184
    $region14: #{transformer_forward.30} parent=5 // pred_check_branch
      %187 = sbr.rel (%p185) target = $region16
    $region15: #{transformer_forward.30} parent=5 // pred_region
      // Predicated region
      $region17: #{transformer_forward.30} parent=15 // pred_check
        %p188 = pneg %p51
      $region18: #{transformer_forward.30} parent=15 // pred_check_branch
        %190 = sbr.rel (%p188) target = $region20
      $region19: #{transformer_forward.30} parent=15 // pred_region
        %p191 = scmp.lt.s32.totalorder %s17, 1
        %s192 = scalar_select %p191, %s17, 1
        %p193 = scmp.lt.s32.totalorder %s18, 0
        %s194 = scalar_select %p193, %s18, 0
        %s195 = smul.addr %s194, 3
        %s196 = smul.addr %s192, 3
        %s197 = sadd.s32 %s195, %s196
        %s198 = smul.addr %s197, 4
        %s199 = scalar_lea.vmem %s0, %s198
      $region20: #{transformer_forward.30} parent=15 // pred_fallthru
        _
      // Predicated region
      $region21: #{transformer_forward.30} parent=15 // pred_check
        %p200 = pneg %p79
      $region22: #{transformer_forward.30} parent=15 // pred_check_branch
        %202 = sbr.rel (%p200) target = $region24
      $region23: #{transformer_forward.30} parent=15 // pred_region
        %p203 = scmp.lt.s32.totalorder %s17, 1
        %s204 = scalar_select %p203, %s17, 1
        %p205 = scmp.lt.s32.totalorder %s19, 0
        %s206 = scalar_select %p205, %s19, 0
        %s207 = smul.addr %s206, 3
        %s208 = sadd.s32 1, %s207
        %s209 = smul.addr %s204, 3
        %s210 = sadd.s32 %s208, %s209
        %s211 = smul.addr %s210, 4
        %s212 = scalar_lea.vmem %s1, %s211
      $region24: #{transformer_forward.30} parent=15 // pred_fallthru
        _
      // Predicated region
      $region25: #{transformer_forward.30} parent=15 // pred_check
        %p213 = pneg %p107
      $region26: #{transformer_forward.30} parent=15 // pred_check_branch
        %215 = sbr.rel (%p213) target = $region28
      $region27: #{transformer_forward.30} parent=15 // pred_region
        %p216 = scmp.lt.s32.totalorder %s17, 1
        %s217 = scalar_select %p216, %s17, 1
        %p218 = scmp.lt.s32.totalorder %s19, 0
        %s219 = scalar_select %p218, %s19, 0
        %s220 = smul.addr %s219, 3
        %s221 = sadd.s32 2, %s220
        %s222 = smul.addr %s217, 3
        %s223 = sadd.s32 %s221, %s222
        %s224 = smul.addr %s223, 4
        %s225 = scalar_lea.vmem %s2, %s224
      $region28: #{transformer_forward.30} parent=15 // pred_fallthru
        _
      // Predicated region
      $region29: #{transformer_forward.30} parent=15 // pred_check
        %p226 = pneg %p135
      $region30: #{transformer_forward.30} parent=15 // pred_check_branch
        %228 = sbr.rel (%p226) target = $region32
      $region31: #{transformer_forward.30} parent=15 // pred_region
        %p229 = scmp.lt.s32.totalorder %s17, 1
        %s230 = scalar_select %p229, %s17, 1
        %p231 = scmp.lt.s32.totalorder %s19, 0
        %s232 = scalar_select %p231, %s19, 0
        %s233 = sadd.s32 %s232, %s230
        %s234 = scalar_lea.vmem %s3, %s233
      $region32: #{transformer_forward.30} parent=15 // pred_fallthru
        _
    $region16: #{transformer_forward.30} parent=5 // pred_fallthru
      _
    %p235 = scmp.le.s32.totalorder 1, %s10
    %p236 = scmp.lt.s32.totalorder %s10, 3
    %p237 = pnand %p235, %p236
    %p238 = pneg %p237
    // Predicated region
    $region33: #{transformer_forward.30} parent=5 // pred_check
      _
    $region34: #{transformer_forward.30} parent=5 // pred_check_branch
      %240 = sbr.rel (%p237) target = $region36
    $region35: #{transformer_forward.30} parent=5 // pred_region
      %s241 = ssub.s32 %s10, 1
      %p242 = scmp.lt.s32.totalorder %s20, 1
      %s243 = scalar_select %p242, %s20, 1
      %p244 = scmp.lt.s32.totalorder %s21, 0
      %s245 = scalar_select %p244, %s21, 0
      %s246 = smul.addr %s245, 3
      %s247 = smul.addr %s243, 3
      %s248 = sadd.s32 %s246, %s247
      %s249 = smul.addr %s248, 4
      %s250 = scalar_lea.vmem %s0, %s249
      %p251 = pneg %p57
      %p252 = pneg %p54
      %p253 = scmp.lt.s32.totalorder %s20, 1
      %s254 = scalar_select %p253, %s20, 1
      %p255 = scmp.lt.s32.totalorder %s22, 0
      %s256 = scalar_select %p255, %s22, 0
      %s257 = smul.addr %s256, 3
      %s258 = sadd.s32 1, %s257
      %s259 = smul.addr %s254, 3
      %s260 = sadd.s32 %s258, %s259
      %s261 = smul.addr %s260, 4
      %s262 = scalar_lea.vmem %s1, %s261
      %p263 = pneg %p85
      %p264 = pneg %p82
      %p265 = scmp.lt.s32.totalorder %s20, 1
      %s266 = scalar_select %p265, %s20, 1
      %p267 = scmp.lt.s32.totalorder %s22, 0
      %s268 = scalar_select %p267, %s22, 0
      %s269 = smul.addr %s268, 3
      %s270 = sadd.s32 2, %s269
      %s271 = smul.addr %s266, 3
      %s272 = sadd.s32 %s270, %s271
      %s273 = smul.addr %s272, 4
      %s274 = scalar_lea.vmem %s2, %s273
      %p275 = pneg %p113
      %p276 = pneg %p110
      %p277 = scmp.lt.s32.totalorder %s20, 1
      %s278 = scalar_select %p277, %s20, 1
      %p279 = scmp.lt.s32.totalorder %s22, 0
      %s280 = scalar_select %p279, %s22, 0
      %s281 = sadd.s32 %s280, %s278
      %s282 = scalar_lea.vmem %s3, %s281
      %p283 = pneg %p141
      %p284 = pneg %p138
      %p285 = pneg %p169
      %p286 = pneg %p166
      %p287 = scmp.lt.s32.totalorder %s20, 1
      %s288 = scalar_select %p287, %s20, 1
      %p289 = scmp.lt.s32.totalorder %s21, 0
      %s290 = scalar_select %p289, %s21, 0
      %s291 = sadd.s32 %s290, %s288
      %s292 = smul.addr %s291, 4
      %s293 = scalar_lea.vmem %s4, %s292
      %p294 = scmp.lt.s32.totalorder %s20, 1
      %s295 = scalar_select %p294, %s20, 1
      %p296 = scmp.lt.s32.totalorder %s21, 0
      %s297 = scalar_select %p296, %s21, 0
      %s298 = smul.addr %s297, 3
      %s299 = smul.addr %s295, 3
      %s300 = sadd.s32 %s298, %s299
      %s301 = smul.addr %s300, 4
      %s302 = scalar_lea.vmem %s0, %s301
      %p303 = scmp.lt.s32.totalorder %s20, 1
      %s304 = scalar_select %p303, %s20, 1
      %p305 = scmp.lt.s32.totalorder %s22, 0
      %s306 = scalar_select %p305, %s22, 0
      %s307 = smul.addr %s306, 3
      %s308 = sadd.s32 1, %s307
      %s309 = smul.addr %s304, 3
      %s310 = sadd.s32 %s308, %s309
      %s311 = smul.addr %s310, 4
      %s312 = scalar_lea.vmem %s1, %s311
      %p313 = scmp.lt.s32.totalorder %s20, 1
      %s314 = scalar_select %p313, %s20, 1
      %p315 = scmp.lt.s32.totalorder %s22, 0
      %s316 = scalar_select %p315, %s22, 0
      %s317 = smul.addr %s316, 3
      %s318 = sadd.s32 2, %s317
      %s319 = smul.addr %s314, 3
      %s320 = sadd.s32 %s318, %s319
      %s321 = smul.addr %s320, 4
      %s322 = scalar_lea.vmem %s2, %s321
      %p323 = scmp.lt.s32.totalorder %s20, 1
      %s324 = scalar_select %p323, %s20, 1
      %p325 = scmp.lt.s32.totalorder %s22, 0
      %s326 = scalar_select %p325, %s22, 0
      %s327 = sadd.s32 %s326, %s324
      %s328 = scalar_lea.vmem %s3, %s327
      %p329 = scmp.lt.s32.totalorder %s20, 1
      %s330 = scalar_select %p329, %s20, 1
      %p331 = scmp.lt.s32.totalorder %s21, 0
      %s332 = scalar_select %p331, %s21, 0
      %s333 = sadd.s32 %s332, %s330
      %s334 = smul.addr %s333, 4
      %s335 = scalar_lea.vmem %s4, %s334
      %p337 = scmp.eq.s32.totalorder %s22, 0
      // Predicated region
      $region37: #{transformer_forward.30} parent=35 // pred_check
        %p338 = pneg %p337
      $region38: #{transformer_forward.30} parent=35 // pred_check_branch
        %340 = sbr.rel (%p338) target = $region40
      $region39: #{transformer_forward.30} parent=35 // pred_region
        %vm341 = vcmask 7168
        %342 = vst.msk [vmem:[#allocation2] sm:$0xff] %vm341, -inf
        %343 = vst.msk [vmem:[#allocation2 + $0x8] sm:$0xff] %vm341, -inf
        %344 = vst.msk [vmem:[#allocation2 + $0x10] sm:$0xff] %vm341, -inf
        %345 = vst.msk [vmem:[#allocation2 + $0x18] sm:$0xff] %vm341, -inf
        %346 = vst.msk [vmem:[#allocation3] sm:$0xff] %vm341, 0.0
        %347 = vst.msk [vmem:[#allocation3 + $0x8] sm:$0xff] %vm341, 0.0
        %348 = vst.msk [vmem:[#allocation3 + $0x10] sm:$0xff] %vm341, 0.0
        %349 = vst.msk [vmem:[#allocation3 + $0x18] sm:$0xff] %vm341, 0.0
        %350 = vst [vmem:[#allocation4] sm:$0xff] 0.0
      $region40: #{transformer_forward.30} parent=35 // pred_fallthru
        _
      %v351 = vld [vmem:[%s328] sm:$0x1]
      %vm352 = vcmp.gt.f32.partialorder %v351, 0.5
      %v353 = vsel %vm352, 1, 0
      %v354 = vlaneseq
      %v355 = vshrl.u32 %v354, 7
      %v356 = vsub.s32 0, %v355
      %v357 = vrot.slane %v353, %v356
      %vm358 = vcmp.eq.s32.totalorder %v357, 1
      %v359 = vld [vmem:[%s302] sm:$0xf]
      %v360 = vld [vmem:[%s312] sm:$0xf]
      %v361 = vld [vmem:[%s322] sm:$0xf]
      %vm362 = vcmask 261120
      %v364 = vsel %vm362, %v359, 0
      %v367 = vsel %vm362, %v360, 0
      %369 = vmatprep.subr.bf16.mxu0 0
      %370 = vmatpush1.bf16.xpose.msra.mxu0 0
      %371 = vmatprep.subr.bf16.mxu0 0
      %372 = vmatpush1.bf16.xpose.msra.mxu0 0
      %373 = vmatprep.subr.bf16.mxu0 0
      %374 = vmatpush1.bf16.xpose.msra.mxu0 0
      %375 = vmatprep.subr.bf16.mxu0 0
      %376 = vmatpush1.bf16.xpose.msra.mxu0 0
      %377 = vmatprep.subr.bf16.mxu0 0
      %378 = vmatpush1.bf16.xpose.msra.mxu0 0
      %379 = vmatprep.subr.bf16.mxu0 0
      %380 = vmatpush1.bf16.xpose.msra.mxu0 0
      %381 = vmatprep.subr.bf16.mxu0 0
      %382 = vmatpush1.bf16.xpose.msra.mxu0 0
      %383 = vmatprep.subr.bf16.mxu0 0
      %384 = vmatpush1.bf16.xpose.msra.mxu0 %v367
      %385 = vmatprep.subr.bf16.mxu0 0
      %386 = vmatpush2.bf16.xpose.msra.mxu0 0
      %387 = vmatprep.subr.bf16.mxu0 0
      %388 = vmatpush2.bf16.xpose.msra.mxu0 0
      %389 = vmatprep.subr.bf16.mxu0 0
      %390 = vmatpush2.bf16.xpose.msra.mxu0 0
      %391 = vmatprep.subr.bf16.mxu0 0
      %392 = vmatpush2.bf16.xpose.msra.mxu0 0
      %393 = vmatprep.subr.bf16.mxu0 0
      %394 = vmatpush2.bf16.xpose.msra.mxu0 0
      %395 = vmatprep.subr.bf16.mxu0 0
      %396 = vmatpush2.bf16.xpose.msra.mxu0 0
      %397 = vmatprep.subr.bf16.mxu0 0
      %398 = vmatpush2.bf16.xpose.msra.mxu0 0
      %399 = vmatprep.subr.bf16.mxu0 0
      %400 = vmatpush2.bf16.xpose.msra.mxu0 0
      %401 = vmatprep.mubr.bf16.mxu0 0
      %402 = vmatmul.mubr.bf16.gmra.mxu0 %v364
      %v403 = vpop.f32.mrf.mxu0
      %v404 = vadd.f32 0.0, %v403
      %v405 = vpop.f32.mrf.mxu0
      %v406 = vpop.f32.mrf.mxu0
      %v407 = vpop.f32.mrf.mxu0
      %408 = vdwg.mxu0
      %v409 = vmul.f32 %v404, 0.17677669
      %v410 = vsel %vm358, -1e+09, %v409
      %v411 = vld [vmem:[#allocation2] sm:$0xff]
      %vm412 = vcmask 64512
      %v413 = vsel %vm412, %v410, -inf
      %414 = vmax.xlane.f32.xlu0 %v413
      %v415 = vpop.xlane.xlu0 %414
      %v416 = vmax.f32 %v411, %v415
      %v417 = vsub.f32 %v411, %v416
      %v418 = vmul.f32 %v417, 1.442695
      %v419 = vpow.pop %v418
      %421 = vset.pattern.permute.xlu0 0
      %422 = vperm.xlu0 %421, %v416
      %v423 = vpop.permute.xlu0 %422
      %v425 = vsub.f32 %v410, %v423
      %v426 = vmul.f32 %v425, 1.442695
      %v427 = vpow.pop %v426
      %v428 = vld [vmem:[#allocation3] sm:$0xff]
      %v429 = vmul.f32 %v419, %v428
      %v430 = vsel %vm412, %v427, 0.0
      %431 = vadd.xlane.f32.xlu0 %v430
      %v432 = vpop.xlane.xlu0 %431
      %v433 = vadd.f32 %v429, %v432
      %vm434 = vcmask 7168
      %435 = vst.msk [vmem:[#allocation3] sm:$0xff] %vm434, %v433
      %v436 = vld [vmem:[#allocation4] sm:$0xff]
      %438 = vset.pattern.permute.xlu0 0
      %439 = vperm.xlu0 %438, %v419
      %v440 = vpop.permute.xlu0 %439
      %v442 = vmul.f32 %v440, %v436
      %v443 = vpack.c.bf16 %v427, %v427
      %v445 = vsel %vm412, %v443, 0
      %vm447 = vcmask 1043456
      %v449 = vsel %vm447, %v361, 0
      %451 = vmatprep.subr.bf16.mxu0 0
      %452 = vmatpush1.bf16.msra.mxu0 0
      %453 = vmatprep.subr.bf16.mxu0 0
      %454 = vmatpush1.bf16.msra.mxu0 0
      %455 = vmatprep.subr.bf16.mxu0 0
      %456 = vmatpush1.bf16.msra.mxu0 0
      %457 = vmatprep.subr.bf16.mxu0 0
      %458 = vmatpush1.bf16.msra.mxu0 0
      %459 = vmatprep.subr.bf16.mxu0 0
      %460 = vmatpush1.bf16.msra.mxu0 0
      %461 = vmatprep.subr.bf16.mxu0 0
      %462 = vmatpush1.bf16.msra.mxu0 0
      %463 = vmatprep.subr.bf16.mxu0 0
      %464 = vmatpush1.bf16.msra.mxu0 0
      %465 = vmatprep.subr.bf16.mxu0 0
      %466 = vmatpush1.bf16.msra.mxu0 %v449
      %467 = vmatprep.subr.bf16.mxu0 0
      %468 = vmatpush2.bf16.msra.mxu0 0
      %469 = vmatprep.subr.bf16.mxu0 0
      %470 = vmatpush2.bf16.msra.mxu0 0
      %471 = vmatprep.subr.bf16.mxu0 0
      %472 = vmatpush2.bf16.msra.mxu0 0
      %473 = vmatprep.subr.bf16.mxu0 0
      %474 = vmatpush2.bf16.msra.mxu0 0
      %475 = vmatprep.subr.bf16.mxu0 0
      %476 = vmatpush2.bf16.msra.mxu0 0
      %477 = vmatprep.subr.bf16.mxu0 0
      %478 = vmatpush2.bf16.msra.mxu0 0
      %479 = vmatprep.subr.bf16.mxu0 0
      %480 = vmatpush2.bf16.msra.mxu0 0
      %481 = vmatprep.subr.bf16.mxu0 0
      %482 = vmatpush2.bf16.msra.mxu0 0
      %483 = vmatprep.mubr.bf16.mxu0 0
      %484 = vmatmul.mubr.bf16.gmra.mxu0 %v445
      %v485 = vpop.f32.mrf.mxu0
      %v486 = vadd.f32 0.0, %v485
      %v487 = vpop.f32.mrf.mxu0
      %v488 = vpop.f32.mrf.mxu0
      %v489 = vpop.f32.mrf.mxu0
      %490 = vdwg.mxu0
      %v491 = vadd.f32 %v442, %v486
      %492 = vst.msk [vmem:[#allocation4] sm:$0xff] %vm362, %v491
      %493 = vst.msk [vmem:[#allocation2] sm:$0xff] %vm434, %v416
      %v494 = vld [vmem:[%s302] sm:$0xf]
      %v495 = vld [vmem:[%s312] sm:$0xf]
      %v496 = vld [vmem:[%s322] sm:$0xf]
      %v498 = vunpack.c.l.b16 %v494
      %v499 = vpack.c.b16 %v498, %v498
      %500 = vrot.lane.b32.xlu0 %v499, 96
      %v501 = vpop.permute.xlu0 %500
      %v503 = vunpack.c.l.b16 %v495
      %v504 = vpack.c.b16 %v503, %v503
      %505 = vrot.lane.b32.xlu0 %v504, 96
      %v506 = vpop.permute.xlu0 %505
      %v508 = vsel %vm362, %v501, 0
      %v511 = vsel %vm362, %v506, 0
      %513 = vmatprep.subr.bf16.mxu0 0
      %514 = vmatpush1.bf16.xpose.msra.mxu0 0
      %515 = vmatprep.subr.bf16.mxu0 0
      %516 = vmatpush1.bf16.xpose.msra.mxu0 0
      %517 = vmatprep.subr.bf16.mxu0 0
      %518 = vmatpush1.bf16.xpose.msra.mxu0 0
      %519 = vmatprep.subr.bf16.mxu0 0
      %520 = vmatpush1.bf16.xpose.msra.mxu0 0
      %521 = vmatprep.subr.bf16.mxu0 0
      %522 = vmatpush1.bf16.xpose.msra.mxu0 0
      %523 = vmatprep.subr.bf16.mxu0 0
      %524 = vmatpush1.bf16.xpose.msra.mxu0 0
      %525 = vmatprep.subr.bf16.mxu0 0
      %526 = vmatpush1.bf16.xpose.msra.mxu0 0
      %527 = vmatprep.subr.bf16.mxu0 0
      %528 = vmatpush1.bf16.xpose.msra.mxu0 %v511
      %529 = vmatprep.subr.bf16.mxu0 0
      %530 = vmatpush2.bf16.xpose.msra.mxu0 0
      %531 = vmatprep.subr.bf16.mxu0 0
      %532 = vmatpush2.bf16.xpose.msra.mxu0 0
      %533 = vmatprep.subr.bf16.mxu0 0
      %534 = vmatpush2.bf16.xpose.msra.mxu0 0
      %535 = vmatprep.subr.bf16.mxu0 0
      %536 = vmatpush2.bf16.xpose.msra.mxu0 0
      %537 = vmatprep.subr.bf16.mxu0 0
      %538 = vmatpush2.bf16.xpose.msra.mxu0 0
      %539 = vmatprep.subr.bf16.mxu0 0
      %540 = vmatpush2.bf16.xpose.msra.mxu0 0
      %541 = vmatprep.subr.bf16.mxu0 0
      %542 = vmatpush2.bf16.xpose.msra.mxu0 0
      %543 = vmatprep.subr.bf16.mxu0 0
      %544 = vmatpush2.bf16.xpose.msra.mxu0 0
      %545 = vmatprep.mubr.bf16.mxu0 0
      %546 = vmatmul.mubr.bf16.gmra.mxu0 %v508
      %v547 = vpop.f32.mrf.mxu0
      %v548 = vadd.f32 0.0, %v547
      %v549 = vpop.f32.mrf.mxu0
      %v550 = vpop.f32.mrf.mxu0
      %v551 = vpop.f32.mrf.mxu0
      %552 = vdwg.mxu0
      %v553 = vmul.f32 %v548, 0.17677669
      %v554 = vsel %vm358, -1e+09, %v553
      %s555 = scalar_lea.vmem [#allocation2], 8
      %v556 = vld [vmem:[%s555] sm:$0xff]
      %v557 = vsel %vm412, %v554, -inf
      %558 = vmax.xlane.f32.xlu0 %v557
      %v559 = vpop.xlane.xlu0 %558
      %v560 = vmax.f32 %v556, %v559
      %v561 = vsub.f32 %v556, %v560
      %v562 = vmul.f32 %v561, 1.442695
      %v563 = vpow.pop %v562
      %565 = vset.pattern.permute.xlu0 0
      %566 = vperm.xlu0 %565, %v560
      %v567 = vpop.permute.xlu0 %566
      %v569 = vsub.f32 %v554, %v567
      %v570 = vmul.f32 %v569, 1.442695
      %v571 = vpow.pop %v570
      %s572 = scalar_lea.vmem [#allocation3], 8
      %v573 = vld [vmem:[%s572] sm:$0xff]
      %v574 = vmul.f32 %v563, %v573
      %v575 = vsel %vm412, %v571, 0.0
      %576 = vadd.xlane.f32.xlu0 %v575
      %v577 = vpop.xlane.xlu0 %576
      %v578 = vadd.f32 %v574, %v577
      %579 = vst.msk [vmem:[%s572] sm:$0xff] %vm434, %v578
      %v580 = vld [vmem:[#allocation4] sm:$0xff]
      %582 = vset.pattern.permute.xlu0 0
      %583 = vperm.xlu0 %582, %v563
      %v584 = vpop.permute.xlu0 %583
      %v586 = vmul.f32 %v584, %v580
      %v587 = vpack.c.bf16 %v571, %v571
      %v589 = vunpack.c.l.b16 %v496
      %v590 = vpack.c.b16 %v589, %v589
      %591 = vrot.lane.b32.xlu0 %v590, 96
      %v592 = vpop.permute.xlu0 %591
      %v594 = vsel %vm412, %v587, 0
      %v597 = vsel %vm447, %v592, 0
      %599 = vmatprep.subr.bf16.mxu0 0
      %600 = vmatpush1.bf16.msra.mxu0 0
      %601 = vmatprep.subr.bf16.mxu0 0
      %602 = vmatpush1.bf16.msra.mxu0 0
      %603 = vmatprep.subr.bf16.mxu0 0
      %604 = vmatpush1.bf16.msra.mxu0 0
      %605 = vmatprep.subr.bf16.mxu0 0
      %606 = vmatpush1.bf16.msra.mxu0 0
      %607 = vmatprep.subr.bf16.mxu0 0
      %608 = vmatpush1.bf16.msra.mxu0 0
      %609 = vmatprep.subr.bf16.mxu0 0
      %610 = vmatpush1.bf16.msra.mxu0 0
      %611 = vmatprep.subr.bf16.mxu0 0
      %612 = vmatpush1.bf16.msra.mxu0 0
      %613 = vmatprep.subr.bf16.mxu0 0
      %614 = vmatpush1.bf16.msra.mxu0 %v597
      %615 = vmatprep.subr.bf16.mxu0 0
      %616 = vmatpush2.bf16.msra.mxu0 0
      %617 = vmatprep.subr.bf16.mxu0 0
      %618 = vmatpush2.bf16.msra.mxu0 0
      %619 = vmatprep.subr.bf16.mxu0 0
      %620 = vmatpush2.bf16.msra.mxu0 0
      %621 = vmatprep.subr.bf16.mxu0 0
      %622 = vmatpush2.bf16.msra.mxu0 0
      %623 = vmatprep.subr.bf16.mxu0 0
      %624 = vmatpush2.bf16.msra.mxu0 0
      %625 = vmatprep.subr.bf16.mxu0 0
      %626 = vmatpush2.bf16.msra.mxu0 0
      %627 = vmatprep.subr.bf16.mxu0 0
      %628 = vmatpush2.bf16.msra.mxu0 0
      %629 = vmatprep.subr.bf16.mxu0 0
      %630 = vmatpush2.bf16.msra.mxu0 0
      %631 = vmatprep.mubr.bf16.mxu0 0
      %632 = vmatmul.mubr.bf16.gmra.mxu0 %v594
      %v633 = vpop.f32.mrf.mxu0
      %v634 = vadd.f32 0.0, %v633
      %v635 = vpop.f32.mrf.mxu0
      %v636 = vpop.f32.mrf.mxu0
      %v637 = vpop.f32.mrf.mxu0
      %638 = vdwg.mxu0
      %640 = vrot.lane.b32.xlu0 %v634, 32
      %v641 = vpop.permute.xlu0 %640
      %v643 = vadd.f32 %v586, %v641
      %vm644 = vcmask 523520
      %645 = vst.msk [vmem:[#allocation4] sm:$0xff] %vm644, %v643
      %646 = vst.msk [vmem:[%s555] sm:$0xff] %vm434, %v560
      %v647 = vld [vmem:[%s302] sm:$0xf]
      %v648 = vld [vmem:[%s312] sm:$0xf]
      %v649 = vld [vmem:[%s322] sm:$0xf]
      %v651 = vunpack.c.l.b16 %v647
      %v652 = vpack.c.b16 %v651, %v651
      %653 = vrot.lane.b32.xlu0 %v652, 64
      %v654 = vpop.permute.xlu0 %653
      %v656 = vunpack.c.l.b16 %v648
      %v657 = vpack.c.b16 %v656, %v656
      %658 = vrot.lane.b32.xlu0 %v657, 64
      %v659 = vpop.permute.xlu0 %658
      %v661 = vsel %vm362, %v654, 0
      %v664 = vsel %vm362, %v659, 0
      %666 = vmatprep.subr.bf16.mxu0 0
      %667 = vmatpush1.bf16.xpose.msra.mxu0 0
      %668 = vmatprep.subr.bf16.mxu0 0
      %669 = vmatpush1.bf16.xpose.msra.mxu0 0
      %670 = vmatprep.subr.bf16.mxu0 0
      %671 = vmatpush1.bf16.xpose.msra.mxu0 0
      %672 = vmatprep.subr.bf16.mxu0 0
      %673 = vmatpush1.bf16.xpose.msra.mxu0 0
      %674 = vmatprep.subr.bf16.mxu0 0
      %675 = vmatpush1.bf16.xpose.msra.mxu0 0
      %676 = vmatprep.subr.bf16.mxu0 0
      %677 = vmatpush1.bf16.xpose.msra.mxu0 0
      %678 = vmatprep.subr.bf16.mxu0 0
      %679 = vmatpush1.bf16.xpose.msra.mxu0 0
      %680 = vmatprep.subr.bf16.mxu0 0
      %681 = vmatpush1.bf16.xpose.msra.mxu0 %v664
      %682 = vmatprep.subr.bf16.mxu0 0
      %683 = vmatpush2.bf16.xpose.msra.mxu0 0
      %684 = vmatprep.subr.bf16.mxu0 0
      %685 = vmatpush2.bf16.xpose.msra.mxu0 0
      %686 = vmatprep.subr.bf16.mxu0 0
      %687 = vmatpush2.bf16.xpose.msra.mxu0 0
      %688 = vmatprep.subr.bf16.mxu0 0
      %689 = vmatpush2.bf16.xpose.msra.mxu0 0
      %690 = vmatprep.subr.bf16.mxu0 0
      %691 = vmatpush2.bf16.xpose.msra.mxu0 0
      %692 = vmatprep.subr.bf16.mxu0 0
      %693 = vmatpush2.bf16.xpose.msra.mxu0 0
      %694 = vmatprep.subr.bf16.mxu0 0
      %695 = vmatpush2.bf16.xpose.msra.mxu0 0
      %696 = vmatprep.subr.bf16.mxu0 0
      %697 = vmatpush2.bf16.xpose.msra.mxu0 0
      %698 = vmatprep.mubr.bf16.mxu0 0
      %699 = vmatmul.mubr.bf16.gmra.mxu0 %v661
      %v700 = vpop.f32.mrf.mxu0
      %v701 = vadd.f32 0.0, %v700
      %v702 = vpop.f32.mrf.mxu0
      %v703 = vpop.f32.mrf.mxu0
      %v704 = vpop.f32.mrf.mxu0
      %705 = vdwg.mxu0
      %v706 = vmul.f32 %v701, 0.17677669
      %v707 = vsel %vm358, -1e+09, %v706
      %s708 = scalar_lea.vmem [#allocation2], 16
      %v709 = vld [vmem:[%s708] sm:$0xff]
      %v710 = vsel %vm412, %v707, -inf
      %711 = vmax.xlane.f32.xlu0 %v710
      %v712 = vpop.xlane.xlu0 %711
      %v713 = vmax.f32 %v709, %v712
      %v714 = vsub.f32 %v709, %v713
      %v715 = vmul.f32 %v714, 1.442695
      %v716 = vpow.pop %v715
      %718 = vset.pattern.permute.xlu0 0
      %719 = vperm.xlu0 %718, %v713
      %v720 = vpop.permute.xlu0 %719
      %v722 = vsub.f32 %v707, %v720
      %v723 = vmul.f32 %v722, 1.442695
      %v724 = vpow.pop %v723
      %s725 = scalar_lea.vmem [#allocation3], 16
      %v726 = vld [vmem:[%s725] sm:$0xff]
      %v727 = vmul.f32 %v716, %v726
      %v728 = vsel %vm412, %v724, 0.0
      %729 = vadd.xlane.f32.xlu0 %v728
      %v730 = vpop.xlane.xlu0 %729
      %v731 = vadd.f32 %v727, %v730
      %732 = vst.msk [vmem:[%s725] sm:$0xff] %vm434, %v731
      %v733 = vld [vmem:[#allocation4] sm:$0xff]
      %735 = vset.pattern.permute.xlu0 0
      %736 = vperm.xlu0 %735, %v716
      %v737 = vpop.permute.xlu0 %736
      %v739 = vmul.f32 %v737, %v733
      %v740 = vpack.c.bf16 %v724, %v724
      %v742 = vunpack.c.l.b16 %v649
      %v743 = vpack.c.b16 %v742, %v742
      %744 = vrot.lane.b32.xlu0 %v743, 64
      %v745 = vpop.permute.xlu0 %744
      %v747 = vsel %vm412, %v740, 0
      %v750 = vsel %vm447, %v745, 0
      %752 = vmatprep.subr.bf16.mxu0 0
      %753 = vmatpush1.bf16.msra.mxu0 0
      %754 = vmatprep.subr.bf16.mxu0 0
      %755 = vmatpush1.bf16.msra.mxu0 0
      %756 = vmatprep.subr.bf16.mxu0 0
      %757 = vmatpush1.bf16.msra.mxu0 0
      %758 = vmatprep.subr.bf16.mxu0 0
      %759 = vmatpush1.bf16.msra.mxu0 0
      %760 = vmatprep.subr.bf16.mxu0 0
      %761 = vmatpush1.bf16.msra.mxu0 0
      %762 = vmatprep.subr.bf16.mxu0 0
      %763 = vmatpush1.bf16.msra.mxu0 0
      %764 = vmatprep.subr.bf16.mxu0 0
      %765 = vmatpush1.bf16.msra.mxu0 0
      %766 = vmatprep.subr.bf16.mxu0 0
      %767 = vmatpush1.bf16.msra.mxu0 %v750
      %768 = vmatprep.subr.bf16.mxu0 0
      %769 = vmatpush2.bf16.msra.mxu0 0
      %770 = vmatprep.subr.bf16.mxu0 0
      %771 = vmatpush2.bf16.msra.mxu0 0
      %772 = vmatprep.subr.bf16.mxu0 0
      %773 = vmatpush2.bf16.msra.mxu0 0
      %774 = vmatprep.subr.bf16.mxu0 0
      %775 = vmatpush2.bf16.msra.mxu0 0
      %776 = vmatprep.subr.bf16.mxu0 0
      %777 = vmatpush2.bf16.msra.mxu0 0
      %778 = vmatprep.subr.bf16.mxu0 0
      %779 = vmatpush2.bf16.msra.mxu0 0
      %780 = vmatprep.subr.bf16.mxu0 0
      %781 = vmatpush2.bf16.msra.mxu0 0
      %782 = vmatprep.subr.bf16.mxu0 0
      %783 = vmatpush2.bf16.msra.mxu0 0
      %784 = vmatprep.mubr.bf16.mxu0 0
      %785 = vmatmul.mubr.bf16.gmra.mxu0 %v747
      %v786 = vpop.f32.mrf.mxu0
      %v787 = vadd.f32 0.0, %v786
      %v788 = vpop.f32.mrf.mxu0
      %v789 = vpop.f32.mrf.mxu0
      %v790 = vpop.f32.mrf.mxu0
      %791 = vdwg.mxu0
      %793 = vrot.lane.b32.xlu0 %v787, 64
      %v794 = vpop.permute.xlu0 %793
      %v796 = vadd.f32 %v739, %v794
      %vm797 = vcmask 785920
      %798 = vst.msk [vmem:[#allocation4] sm:$0xff] %vm797, %v796
      %799 = vst.msk [vmem:[%s708] sm:$0xff] %vm434, %v713
      %v800 = vld [vmem:[%s302] sm:$0xf]
      %v801 = vld [vmem:[%s312] sm:$0xf]
      %v802 = vld [vmem:[%s322] sm:$0xf]
      %v804 = vunpack.c.l.b16 %v800
      %v805 = vpack.c.b16 %v804, %v804
      %806 = vrot.lane.b32.xlu0 %v805, 32
      %v807 = vpop.permute.xlu0 %806
      %v809 = vunpack.c.l.b16 %v801
      %v810 = vpack.c.b16 %v809, %v809
      %811 = vrot.lane.b32.xlu0 %v810, 32
      %v812 = vpop.permute.xlu0 %811
      %v814 = vsel %vm362, %v807, 0
      %v817 = vsel %vm362, %v812, 0
      %819 = vmatprep.subr.bf16.mxu0 0
      %820 = vmatpush1.bf16.xpose.msra.mxu0 0
      %821 = vmatprep.subr.bf16.mxu0 0
      %822 = vmatpush1.bf16.xpose.msra.mxu0 0
      %823 = vmatprep.subr.bf16.mxu0 0
      %824 = vmatpush1.bf16.xpose.msra.mxu0 0
      %825 = vmatprep.subr.bf16.mxu0 0
      %826 = vmatpush1.bf16.xpose.msra.mxu0 0
      %827 = vmatprep.subr.bf16.mxu0 0
      %828 = vmatpush1.bf16.xpose.msra.mxu0 0
      %829 = vmatprep.subr.bf16.mxu0 0
      %830 = vmatpush1.bf16.xpose.msra.mxu0 0
      %831 = vmatprep.subr.bf16.mxu0 0
      %832 = vmatpush1.bf16.xpose.msra.mxu0 0
      %833 = vmatprep.subr.bf16.mxu0 0
      %834 = vmatpush1.bf16.xpose.msra.mxu0 %v817
      %835 = vmatprep.subr.bf16.mxu0 0
      %836 = vmatpush2.bf16.xpose.msra.mxu0 0
      %837 = vmatprep.subr.bf16.mxu0 0
      %838 = vmatpush2.bf16.xpose.msra.mxu0 0
      %839 = vmatprep.subr.bf16.mxu0 0
      %840 = vmatpush2.bf16.xpose.msra.mxu0 0
      %841 = vmatprep.subr.bf16.mxu0 0
      %842 = vmatpush2.bf16.xpose.msra.mxu0 0
      %843 = vmatprep.subr.bf16.mxu0 0
      %844 = vmatpush2.bf16.xpose.msra.mxu0 0
      %845 = vmatprep.subr.bf16.mxu0 0
      %846 = vmatpush2.bf16.xpose.msra.mxu0 0
      %847 = vmatprep.subr.bf16.mxu0 0
      %848 = vmatpush2.bf16.xpose.msra.mxu0 0
      %849 = vmatprep.subr.bf16.mxu0 0
      %850 = vmatpush2.bf16.xpose.msra.mxu0 0
      %851 = vmatprep.mubr.bf16.mxu0 0
      %852 = vmatmul.mubr.bf16.gmra.mxu0 %v814
      %v853 = vpop.f32.mrf.mxu0
      %v854 = vadd.f32 0.0, %v853
      %v855 = vpop.f32.mrf.mxu0
      %v856 = vpop.f32.mrf.mxu0
      %v857 = vpop.f32.mrf.mxu0
      %858 = vdwg.mxu0
      %v859 = vmul.f32 %v854, 0.17677669
      %v860 = vsel %vm358, -1e+09, %v859
      %s861 = scalar_lea.vmem [#allocation2], 24
      %v862 = vld [vmem:[%s861] sm:$0xff]
      %v863 = vsel %vm412, %v860, -inf
      %864 = vmax.xlane.f32.xlu0 %v863
      %v865 = vpop.xlane.xlu0 %864
      %v866 = vmax.f32 %v862, %v865
      %v867 = vsub.f32 %v862, %v866
      %v868 = vmul.f32 %v867, 1.442695
      %v869 = vpow.pop %v868
      %871 = vset.pattern.permute.xlu0 0
      %872 = vperm.xlu0 %871, %v866
      %v873 = vpop.permute.xlu0 %872
      %v875 = vsub.f32 %v860, %v873
      %v876 = vmul.f32 %v875, 1.442695
      %v877 = vpow.pop %v876
      %s878 = scalar_lea.vmem [#allocation3], 24
      %v879 = vld [vmem:[%s878] sm:$0xff]
      %v880 = vmul.f32 %v869, %v879
      %v881 = vsel %vm412, %v877, 0.0
      %882 = vadd.xlane.f32.xlu0 %v881
      %v883 = vpop.xlane.xlu0 %882
      %v884 = vadd.f32 %v880, %v883
      %885 = vst.msk [vmem:[%s878] sm:$0xff] %vm434, %v884
      %v886 = vld [vmem:[#allocation4] sm:$0xff]
      %888 = vset.pattern.permute.xlu0 0
      %889 = vperm.xlu0 %888, %v869
      %v890 = vpop.permute.xlu0 %889
      %v892 = vmul.f32 %v890, %v886
      %v893 = vpack.c.bf16 %v877, %v877
      %v895 = vunpack.c.l.b16 %v802
      %v896 = vpack.c.b16 %v895, %v895
      %897 = vrot.lane.b32.xlu0 %v896, 32
      %v898 = vpop.permute.xlu0 %897
      %v900 = vsel %vm412, %v893, 0
      %v903 = vsel %vm447, %v898, 0
      %905 = vmatprep.subr.bf16.mxu0 0
      %906 = vmatpush1.bf16.msra.mxu0 0
      %907 = vmatprep.subr.bf16.mxu0 0
      %908 = vmatpush1.bf16.msra.mxu0 0
      %909 = vmatprep.subr.bf16.mxu0 0
      %910 = vmatpush1.bf16.msra.mxu0 0
      %911 = vmatprep.subr.bf16.mxu0 0
      %912 = vmatpush1.bf16.msra.mxu0 0
      %913 = vmatprep.subr.bf16.mxu0 0
      %914 = vmatpush1.bf16.msra.mxu0 0
      %915 = vmatprep.subr.bf16.mxu0 0
      %916 = vmatpush1.bf16.msra.mxu0 0
      %917 = vmatprep.subr.bf16.mxu0 0
      %918 = vmatpush1.bf16.msra.mxu0 0
      %919 = vmatprep.subr.bf16.mxu0 0
      %920 = vmatpush1.bf16.msra.mxu0 %v903
      %921 = vmatprep.subr.bf16.mxu0 0
      %922 = vmatpush2.bf16.msra.mxu0 0
      %923 = vmatprep.subr.bf16.mxu0 0
      %924 = vmatpush2.bf16.msra.mxu0 0
      %925 = vmatprep.subr.bf16.mxu0 0
      %926 = vmatpush2.bf16.msra.mxu0 0
      %927 = vmatprep.subr.bf16.mxu0 0
      %928 = vmatpush2.bf16.msra.mxu0 0
      %929 = vmatprep.subr.bf16.mxu0 0
      %930 = vmatpush2.bf16.msra.mxu0 0
      %931 = vmatprep.subr.bf16.mxu0 0
      %932 = vmatpush2.bf16.msra.mxu0 0
      %933 = vmatprep.subr.bf16.mxu0 0
      %934 = vmatpush2.bf16.msra.mxu0 0
      %935 = vmatprep.subr.bf16.mxu0 0
      %936 = vmatpush2.bf16.msra.mxu0 0
      %937 = vmatprep.mubr.bf16.mxu0 0
      %938 = vmatmul.mubr.bf16.gmra.mxu0 %v900
      %v939 = vpop.f32.mrf.mxu0
      %v940 = vadd.f32 0.0, %v939
      %v941 = vpop.f32.mrf.mxu0
      %v942 = vpop.f32.mrf.mxu0
      %v943 = vpop.f32.mrf.mxu0
      %944 = vdwg.mxu0
      %946 = vrot.lane.b32.xlu0 %v940, 96
      %v947 = vpop.permute.xlu0 %946
      %v949 = vadd.f32 %v892, %v947
      %vm950 = vcmask 1048320
      %951 = vst.msk [vmem:[#allocation4] sm:$0xff] %vm950, %v949
      %952 = vst.msk [vmem:[%s861] sm:$0xff] %vm434, %v866
      // Predicated region
      $region41: #{transformer_forward.30} parent=35 // pred_check
        %p953 = pneg %p337
      $region42: #{transformer_forward.30} parent=35 // pred_check_branch
        %955 = sbr.rel (%p953) target = $region44
      $region43: #{transformer_forward.30} parent=35 // pred_region
        %v956 = vld [vmem:[#allocation3] sm:$0xff]
        %v957 = vrcp.pop %v956
        %v958 = vld [vmem:[#allocation4] sm:$0xff]
        %960 = vset.pattern.permute.xlu0 0
        %961 = vperm.xlu0 %960, %v957
        %v962 = vpop.permute.xlu0 %961
        %v964 = vmul.f32 %v958, %v962
        %v965 = vpack.c.bf16 %v964, %v964
        %vm966 = vcmask 257024
        %967 = vst.msk [vmem:[%s335] sm:$0xf] %vm966, %v965
        %v968 = vld [vmem:[%s572] sm:$0xff]
        %v969 = vrcp.pop %v968
        %v970 = vld [vmem:[#allocation4] sm:$0xff]
        %972 = vset.pattern.permute.xlu0 0
        %973 = vperm.xlu0 %972, %v969
        %v974 = vpop.permute.xlu0 %973
        %v976 = vmul.f32 %v970, %v974
        %v977 = vpack.c.bf16 %v976, %v976
        %vm978 = vcmask 519424
        %979 = vst.msk [vmem:[%s335] sm:$0xf] %vm978, %v977
        %v980 = vld [vmem:[%s725] sm:$0xff]
        %v981 = vrcp.pop %v980
        %v982 = vld [vmem:[#allocation4] sm:$0xff]
        %984 = vset.pattern.permute.xlu0 0
        %985 = vperm.xlu0 %984, %v981
        %v986 = vpop.permute.xlu0 %985
        %v988 = vmul.f32 %v982, %v986
        %v989 = vpack.c.bf16 %v988, %v988
        %vm990 = vcmask 781824
        %991 = vst.msk [vmem:[%s335] sm:$0xf] %vm990, %v989
        %v992 = vld [vmem:[%s878] sm:$0xff]
        %v993 = vrcp.pop %v992
        %v994 = vld [vmem:[#allocation4] sm:$0xff]
        %996 = vset.pattern.permute.xlu0 0
        %997 = vperm.xlu0 %996, %v993
        %v998 = vpop.permute.xlu0 %997
        %v1000 = vmul.f32 %v994, %v998
        %v1001 = vpack.c.bf16 %v1000, %v1000
        %vm1002 = vcmask 1044224
        %1003 = vst.msk [vmem:[%s335] sm:$0xf] %vm1002, %v1001
      $region44: #{transformer_forward.30} parent=35 // pred_fallthru
        _
      %p1004 = scmp.lt.s32.totalorder %s20, 1
      %s1005 = scalar_select %p1004, %s20, 1
      %p1006 = scmp.lt.s32.totalorder %s21, 0
      %s1007 = scalar_select %p1006, %s21, 0
      %s1008 = sadd.s32 %s1007, %s1005
      %s1009 = smul.addr %s1008, 4
      %s1010 = scalar_lea.vmem %s4, %s1009
      // Predicated region
      $region45: #{transformer_forward.30} parent=35 // pred_check
        %p1011 = pneg %p166
      $region46: #{transformer_forward.30} parent=35 // pred_check_branch
        %1013 = sbr.rel (%p1011) target = $region48
      $region47: #{transformer_forward.30} parent=35 // pred_region
        _
      $region48: #{transformer_forward.30} parent=35 // pred_fallthru
        _
    $region36: #{transformer_forward.30} parent=5 // pred_fallthru
      _
    %p1014 = scmp.le.s32.totalorder 2, %s10
    // Predicated region
    $region49: #{transformer_forward.30} parent=5 // pred_check
      %p1015 = pneg %p1014
    $region50: #{transformer_forward.30} parent=5 // pred_check_branch
      %1017 = sbr.rel (%p1015) target = $region52
    $region51: #{transformer_forward.30} parent=5 // pred_region
      %s1018 = ssub.s32 %s10, 2
      // Predicated region
      $region53: #{transformer_forward.30} parent=51 // pred_check
        %p1019 = pneg %p172
      $region54: #{transformer_forward.30} parent=51 // pred_check_branch
        %1021 = sbr.rel (%p1019) target = $region56
      $region55: #{transformer_forward.30} parent=51 // pred_region
        %p1022 = scmp.lt.s32.totalorder %s23, 1
        %s1023 = scalar_select %p1022, %s23, 1
        %p1024 = scmp.lt.s32.totalorder %s24, 0
        %s1025 = scalar_select %p1024, %s24, 0
        %s1026 = sadd.s32 %s1025, %s1023
        %s1027 = smul.addr %s1026, 4
        %s1028 = scalar_lea.vmem %s4, %s1027
      $region56: #{transformer_forward.30} parent=51 // pred_fallthru
        _
    $region52: #{transformer_forward.30} parent=5 // pred_fallthru
      _
  $region6: #{transformer_forward.30} parent=0 // loop_footer
    %s14 = sadd.s32 1, %s10
  $region7: #{transformer_forward.30} parent=0 // loop_footer_branch
    %9 = sbr.rel target = $region3
  $region8: #{transformer_forward.30} parent=0 // loop_exit
    _

// kernel: transformer_forward.32
$region0: #{transformer_forward.32}
  #allocation0 [shape = 'u32[]', space=smem, size = 0x4, offset = 0x4, fixed_abs, tag = 'smem constant byte address 0x4 - core index']
  #allocation1 [shape = 'u32[144,128]{1,0:T(1,128)}', space=vmem, size = 0x12000, scoped, tag = 'internal scratch']
  #allocation2 [shape = 'f32[16,256]{1,0:T(8,128)}', space=vmem, size = 0x4000, scoped, tag = 'scratch operand']
  %s0 = inlined_call_operand.vmem [shape: bf16[16,128], index: 0, kind: input, shape index: {}]
  %s1 = inlined_call_operand.vmem [shape: bf16[128,256], index: 1, kind: input, shape index: {}]
  %s2 = inlined_call_operand.vmem [shape: f32[1,256], index: 2, kind: input, shape index: {}]
  %s3 = inlined_call_operand.vmem [shape: bf16[16,256], index: 3, kind: output, shape index: {}]
  %s4 = sld [smem:[#allocation0]]
  $region30: #{transformer_forward.32} parent=0
    _
  %s6 = ssub.s32 1, %s4
  %s7 = scalar_select 0, %s6, %s4
  // Predicated region
  $region2: #{transformer_forward.32} parent=0 // pred_check
    _
  $region3: #{transformer_forward.32} parent=0 // pred_check_branch
    %9 = sbr.rel (0) target = $region5
  $region4: #{transformer_forward.32} parent=0 // pred_region
    _
  $region5: #{transformer_forward.32} parent=0 // pred_fallthru
    _
  // Predicated region
  $region6: #{transformer_forward.32} parent=0 // pred_check
    _
  $region7: #{transformer_forward.32} parent=0 // pred_check_branch
    %11 = sbr.rel (0) target = $region9
  $region8: #{transformer_forward.32} parent=0 // pred_region
    _
  $region9: #{transformer_forward.32} parent=0 // pred_fallthru
    _
  // Predicated region
  $region10: #{transformer_forward.32} parent=0 // pred_check
    _
  $region11: #{transformer_forward.32} parent=0 // pred_check_branch
    %13 = sbr.rel (0) target = $region13
  $region12: #{transformer_forward.32} parent=0 // pred_region
    _
  $region13: #{transformer_forward.32} parent=0 // pred_fallthru
    _
  %p15 = scmp.eq.s32.totalorder 0, 0
  // Predicated region
  $region14: #{transformer_forward.32} parent=0 // pred_check
    %p16 = pneg %p15
  $region15: #{transformer_forward.32} parent=0 // pred_check_branch
    %18 = sbr.rel (%p16) target = $region17
  $region16: #{transformer_forward.32} parent=0 // pred_region
    %19 = vst [vmem:[#allocation2] sm:$0xff] 0.0
    %20 = vst [vmem:[#allocation2 + $0x8] sm:$0xff] 0.0
    %21 = vst [vmem:[#allocation2 + $0x10] sm:$0xff] 0.0
    %22 = vst [vmem:[#allocation2 + $0x18] sm:$0xff] 0.0
  $region17: #{transformer_forward.32} parent=0 // pred_fallthru
    _
  %v23 = vld [vmem:[#allocation2] sm:$0xff]
  %v24 = vld [vmem:[#allocation2 + $0x8] sm:$0xff]
  %v25 = vld [vmem:[#allocation2 + $0x10] sm:$0xff]
  %v26 = vld [vmem:[#allocation2 + $0x18] sm:$0xff]
  %v27 = vld [vmem:[%s0] sm:$0xf]
  %v28 = vld [vmem:[%s0 + $0x4] sm:$0xf]
  %v29 = vld [vmem:[%s1] sm:$0xff]
  %v30 = vld [vmem:[%s1 + $0x8] sm:$0xff]
  %v31 = vld [vmem:[%s1 + $0x10] sm:$0xff]
  %v32 = vld [vmem:[%s1 + $0x18] sm:$0xff]
  %v33 = vld [vmem:[%s1 + $0x20] sm:$0xff]
  %v34 = vld [vmem:[%s1 + $0x28] sm:$0xff]
  %v35 = vld [vmem:[%s1 + $0x30] sm:$0xff]
  %v36 = vld [vmem:[%s1 + $0x38] sm:$0xff]
  %v37 = vld [vmem:[%s1 + $0x40] sm:$0xff]
  %v38 = vld [vmem:[%s1 + $0x48] sm:$0xff]
  %v39 = vld [vmem:[%s1 + $0x50] sm:$0xff]
  %v40 = vld [vmem:[%s1 + $0x58] sm:$0xff]
  %v41 = vld [vmem:[%s1 + $0x60] sm:$0xff]
  %v42 = vld [vmem:[%s1 + $0x68] sm:$0xff]
  %v43 = vld [vmem:[%s1 + $0x70] sm:$0xff]
  %v44 = vld [vmem:[%s1 + $0x78] sm:$0xff]
  %v47 = vunpack.c.l.b16 %v27
  %v48 = vunpack.c.l.b16 %v28
  %v49 = vpack.c.b16 %v48, %v47
  %v67 = vunpack.c.l.b16 %v29
  %v68 = vunpack.c.h.b16 %v29
  %v69 = vunpack.c.l.b16 %v30
  %v70 = vunpack.c.h.b16 %v30
  %v71 = vunpack.c.l.b16 %v31
  %v72 = vunpack.c.h.b16 %v31
  %v73 = vunpack.c.l.b16 %v32
  %v74 = vunpack.c.h.b16 %v32
  %v75 = vunpack.c.l.b16 %v33
  %v76 = vunpack.c.h.b16 %v33
  %v77 = vunpack.c.l.b16 %v34
  %v78 = vunpack.c.h.b16 %v34
  %v79 = vunpack.c.l.b16 %v35
  %v80 = vunpack.c.h.b16 %v35
  %v81 = vunpack.c.l.b16 %v36
  %v82 = vunpack.c.h.b16 %v36
  %v83 = vunpack.c.l.b16 %v37
  %v84 = vunpack.c.h.b16 %v37
  %v85 = vunpack.c.l.b16 %v38
  %v86 = vunpack.c.h.b16 %v38
  %v87 = vunpack.c.l.b16 %v39
  %v88 = vunpack.c.h.b16 %v39
  %v89 = vunpack.c.l.b16 %v40
  %v90 = vunpack.c.h.b16 %v40
  %v91 = vunpack.c.l.b16 %v41
  %v92 = vunpack.c.h.b16 %v41
  %v93 = vunpack.c.l.b16 %v42
  %v94 = vunpack.c.h.b16 %v42
  %v95 = vunpack.c.l.b16 %v43
  %v96 = vunpack.c.h.b16 %v43
  %v97 = vunpack.c.l.b16 %v44
  %v98 = vunpack.c.h.b16 %v44
  %v99 = vpack.c.b16 %v69, %v67
  %v100 = vpack.c.b16 %v70, %v68
  %v101 = vpack.c.b16 %v73, %v71
  %v102 = vpack.c.b16 %v74, %v72
  %v103 = vpack.c.b16 %v77, %v75
  %v104 = vpack.c.b16 %v78, %v76
  %v105 = vpack.c.b16 %v81, %v79
  %v106 = vpack.c.b16 %v82, %v80
  %v107 = vpack.c.b16 %v85, %v83
  %v108 = vpack.c.b16 %v86, %v84
  %v109 = vpack.c.b16 %v89, %v87
  %v110 = vpack.c.b16 %v90, %v88
  %v111 = vpack.c.b16 %v93, %v91
  %v112 = vpack.c.b16 %v94, %v92
  %v113 = vpack.c.b16 %v97, %v95
  %v114 = vpack.c.b16 %v98, %v96
  %131 = vmatprep.subr.bf16.mxu0 %v114
  %132 = vmatpush1.bf16.msra.mxu0 %v113
  %133 = vmatprep.subr.bf16.mxu0 %v112
  %134 = vmatpush1.bf16.msra.mxu0 %v111
  %135 = vmatprep.subr.bf16.mxu0 %v110
  %136 = vmatpush1.bf16.msra.mxu0 %v109
  %137 = vmatprep.subr.bf16.mxu0 %v108
  %138 = vmatpush1.bf16.msra.mxu0 %v107
  %139 = vmatprep.subr.bf16.mxu0 %v106
  %140 = vmatpush1.bf16.msra.mxu0 %v105
  %141 = vmatprep.subr.bf16.mxu0 %v104
  %142 = vmatpush1.bf16.msra.mxu0 %v103
  %143 = vmatprep.subr.bf16.mxu0 %v102
  %144 = vmatpush1.bf16.msra.mxu0 %v101
  %145 = vmatprep.subr.bf16.mxu0 %v100
  %146 = vmatpush1.bf16.msra.mxu0 %v99
  %147 = vmatprep.subr.bf16.mxu0 0
  %148 = vmatpush2.bf16.msra.mxu0 0
  %149 = vmatprep.subr.bf16.mxu0 0
  %150 = vmatpush2.bf16.msra.mxu0 0
  %151 = vmatprep.subr.bf16.mxu0 0
  %152 = vmatpush2.bf16.msra.mxu0 0
  %153 = vmatprep.subr.bf16.mxu0 0
  %154 = vmatpush2.bf16.msra.mxu0 0
  %155 = vmatprep.subr.bf16.mxu0 0
  %156 = vmatpush2.bf16.msra.mxu0 0
  %157 = vmatprep.subr.bf16.mxu0 0
  %158 = vmatpush2.bf16.msra.mxu0 0
  %159 = vmatprep.subr.bf16.mxu0 0
  %160 = vmatpush2.bf16.msra.mxu0 0
  %161 = vmatprep.subr.bf16.mxu0 0
  %162 = vmatpush2.bf16.msra.mxu0 0
  %163 = vmatprep.mubr.bf16.mxu0 0
  %164 = vmatmul.mubr.bf16.gmra.mxu0 %v49
  %v165 = vpop.f32.mrf.mxu0
  %v166 = vadd.f32 0.0, %v165
  %v167 = vpop.f32.mrf.mxu0
  %v168 = vadd.f32 0.0, %v167
  %v169 = vpop.f32.mrf.mxu0
  %v170 = vadd.f32 0.0, %v169
  %v171 = vpop.f32.mrf.mxu0
  %v172 = vadd.f32 0.0, %v171
  %173 = vdwg.mxu0
  %v174 = vadd.f32 %v23, %v166
  %v175 = vadd.f32 %v24, %v168
  %v176 = vadd.f32 %v25, %v170
  %v177 = vadd.f32 %v26, %v172
  %178 = vst [vmem:[#allocation2] sm:$0xff] %v174
  %179 = vst [vmem:[#allocation2 + $0x8] sm:$0xff] %v175
  %180 = vst [vmem:[#allocation2 + $0x10] sm:$0xff] %v176
  %181 = vst [vmem:[#allocation2 + $0x18] sm:$0xff] %v177
  // Predicated region
  $region18: #{transformer_forward.32} parent=0 // pred_check
    %p182 = pneg %p15
  $region19: #{transformer_forward.32} parent=0 // pred_check_branch
    %184 = sbr.rel (%p182) target = $region21
  $region20: #{transformer_forward.32} parent=0 // pred_region
    %v185 = vld [vmem:[#allocation2] sm:$0xff]
    %v186 = vld [vmem:[#allocation2 + $0x8] sm:$0xff]
    %v187 = vld [vmem:[#allocation2 + $0x10] sm:$0xff]
    %v188 = vld [vmem:[#allocation2 + $0x18] sm:$0xff]
    %v189 = vld [vmem:[%s2] sm:$0x3]
    %v191 = vlaneseq
    %v192 = vshrl.u32 %v191, 7
    %v193 = vsub.s32 0, %v192
    %v194 = vrot.slane %v189, %v193
    %v195 = vlaneseq
    %v196 = vshrl.u32 %v195, 7
    %v197 = vsub.s32 1, %v196
    %v198 = vrot.slane %v189, %v197
    %v201 = vadd.f32 %v185, %v194
    %v202 = vadd.f32 %v186, %v198
    %v203 = vadd.f32 %v187, %v194
    %v204 = vadd.f32 %v188, %v198
    %v205 = vmax.f32 %v201, 0.0
    %v206 = vmax.f32 %v202, 0.0
    %v207 = vmax.f32 %v203, 0.0
    %v208 = vmax.f32 %v204, 0.0
    %v209 = vpack.c.bf16 %v207, %v205
    %v210 = vpack.c.bf16 %v208, %v206
    %v213 = vunpack.c.l.b16 %v209
    %v214 = vunpack.c.l.b16 %v210
    %v215 = vunpack.c.h.b16 %v209
    %v216 = vunpack.c.h.b16 %v210
    %v217 = vpack.c.b16 %v214, %v213
    %v218 = vpack.c.b16 %v216, %v215
    %221 = vst [vmem:[%s3] sm:$0xff] %v217
    %222 = vst [vmem:[%s3 + $0x8] sm:$0xff] %v218
  $region21: #{transformer_forward.32} parent=0 // pred_fallthru
    _
  // Predicated region
  $region22: #{transformer_forward.32} parent=0 // pred_check
    _
  $region23: #{transformer_forward.32} parent=0 // pred_check_branch
    %224 = sbr.rel (0) target = $region25
  $region24: #{transformer_forward.32} parent=0 // pred_region
    _
  $region25: #{transformer_forward.32} parent=0 // pred_fallthru
    _
  // Predicated region
  $region26: #{transformer_forward.32} parent=0 // pred_check
    _
  $region27: #{transformer_forward.32} parent=0 // pred_check_branch
    %226 = sbr.rel (0) target = $region29
  $region28: #{transformer_forward.32} parent=0 // pred_region
    _
  $region29: #{transformer_forward.32} parent=0 // pred_fallthru
    _

// kernel: transformer_forward.33
$region0: #{transformer_forward.33}
  #allocation0 [shape = 'u32[]', space=smem, size = 0x4, offset = 0x4, fixed_abs, tag = 'smem constant byte address 0x4 - core index']
  #allocation1 [shape = 'u32[144,128]{1,0:T(1,128)}', space=vmem, size = 0x12000, scoped, tag = 'internal scratch']
  #allocation2 [shape = 'f32[16,128]{1,0:T(8,128)}', space=vmem, size = 0x2000, scoped, tag = 'scratch operand']
  %s0 = inlined_call_operand.vmem [shape: bf16[16,256], index: 0, kind: input, shape index: {}]
  %s1 = inlined_call_operand.vmem [shape: bf16[256,128], index: 1, kind: input, shape index: {}]
  %s2 = inlined_call_operand.vmem [shape: f32[1,128], index: 2, kind: input, shape index: {}]
  %s3 = inlined_call_operand.vmem [shape: f32[16,128], index: 3, kind: input, shape index: {}]
  %s4 = inlined_call_operand.vmem [shape: f32[1,128], index: 4, kind: input, shape index: {}]
  %s5 = inlined_call_operand.vmem [shape: f32[1,128], index: 5, kind: input, shape index: {}]
  %s6 = inlined_call_operand.vmem [shape: f32[16,128], index: 6, kind: output, shape index: {}]
  %s7 = sld [smem:[#allocation0]]
  $region42: #{transformer_forward.33} parent=0
    _
  %s9 = ssub.s32 1, %s7
  %s10 = scalar_select 0, %s9, %s7
  // Predicated region
  $region2: #{transformer_forward.33} parent=0 // pred_check
    _
  $region3: #{transformer_forward.33} parent=0 // pred_check_branch
    %12 = sbr.rel (0) target = $region5
  $region4: #{transformer_forward.33} parent=0 // pred_region
    _
  $region5: #{transformer_forward.33} parent=0 // pred_fallthru
    _
  // Predicated region
  $region6: #{transformer_forward.33} parent=0 // pred_check
    _
  $region7: #{transformer_forward.33} parent=0 // pred_check_branch
    %14 = sbr.rel (0) target = $region9
  $region8: #{transformer_forward.33} parent=0 // pred_region
    _
  $region9: #{transformer_forward.33} parent=0 // pred_fallthru
    _
  // Predicated region
  $region10: #{transformer_forward.33} parent=0 // pred_check
    _
  $region11: #{transformer_forward.33} parent=0 // pred_check_branch
    %16 = sbr.rel (0) target = $region13
  $region12: #{transformer_forward.33} parent=0 // pred_region
    _
  $region13: #{transformer_forward.33} parent=0 // pred_fallthru
    _
  // Predicated region
  $region14: #{transformer_forward.33} parent=0 // pred_check
    _
  $region15: #{transformer_forward.33} parent=0 // pred_check_branch
    %18 = sbr.rel (0) target = $region17
  $region16: #{transformer_forward.33} parent=0 // pred_region
    _
  $region17: #{transformer_forward.33} parent=0 // pred_fallthru
    _
  // Predicated region
  $region18: #{transformer_forward.33} parent=0 // pred_check
    _
  $region19: #{transformer_forward.33} parent=0 // pred_check_branch
    %20 = sbr.rel (0) target = $region21
  $region20: #{transformer_forward.33} parent=0 // pred_region
    _
  $region21: #{transformer_forward.33} parent=0 // pred_fallthru
    _
  // Predicated region
  $region22: #{transformer_forward.33} parent=0 // pred_check
    _
  $region23: #{transformer_forward.33} parent=0 // pred_check_branch
    %22 = sbr.rel (0) target = $region25
  $region24: #{transformer_forward.33} parent=0 // pred_region
    _
  $region25: #{transformer_forward.33} parent=0 // pred_fallthru
    _
  %p24 = scmp.eq.s32.totalorder 0, 0
  // Predicated region
  $region26: #{transformer_forward.33} parent=0 // pred_check
    %p25 = pneg %p24
  $region27: #{transformer_forward.33} parent=0 // pred_check_branch
    %27 = sbr.rel (%p25) target = $region29
  $region28: #{transformer_forward.33} parent=0 // pred_region
    %28 = vst [vmem:[#allocation2] sm:$0xff] 0.0
    %29 = vst [vmem:[#allocation2 + $0x8] sm:$0xff] 0.0
  $region29: #{transformer_forward.33} parent=0 // pred_fallthru
    _
  %v30 = vld [vmem:[#allocation2] sm:$0xff]
  %v31 = vld [vmem:[#allocation2 + $0x8] sm:$0xff]
  %v32 = vld [vmem:[%s0] sm:$0xff]
  %v33 = vld [vmem:[%s0 + $0x8] sm:$0xff]
  %v34 = vld [vmem:[%s1] sm:$0xf]
  %v35 = vld [vmem:[%s1 + $0x4] sm:$0xf]
  %v36 = vld [vmem:[%s1 + $0x8] sm:$0xf]
  %v37 = vld [vmem:[%s1 + $0xc] sm:$0xf]
  %v38 = vld [vmem:[%s1 + $0x10] sm:$0xf]
  %v39 = vld [vmem:[%s1 + $0x14] sm:$0xf]
  %v40 = vld [vmem:[%s1 + $0x18] sm:$0xf]
  %v41 = vld [vmem:[%s1 + $0x1c] sm:$0xf]
  %v42 = vld [vmem:[%s1 + $0x20] sm:$0xf]
  %v43 = vld [vmem:[%s1 + $0x24] sm:$0xf]
  %v44 = vld [vmem:[%s1 + $0x28] sm:$0xf]
  %v45 = vld [vmem:[%s1 + $0x2c] sm:$0xf]
  %v46 = vld [vmem:[%s1 + $0x30] sm:$0xf]
  %v47 = vld [vmem:[%s1 + $0x34] sm:$0xf]
  %v48 = vld [vmem:[%s1 + $0x38] sm:$0xf]
  %v49 = vld [vmem:[%s1 + $0x3c] sm:$0xf]
  %v50 = vld [vmem:[%s1 + $0x40] sm:$0xf]
  %v51 = vld [vmem:[%s1 + $0x44] sm:$0xf]
  %v52 = vld [vmem:[%s1 + $0x48] sm:$0xf]
  %v53 = vld [vmem:[%s1 + $0x4c] sm:$0xf]
  %v54 = vld [vmem:[%s1 + $0x50] sm:$0xf]
  %v55 = vld [vmem:[%s1 + $0x54] sm:$0xf]
  %v56 = vld [vmem:[%s1 + $0x58] sm:$0xf]
  %v57 = vld [vmem:[%s1 + $0x5c] sm:$0xf]
  %v58 = vld [vmem:[%s1 + $0x60] sm:$0xf]
  %v59 = vld [vmem:[%s1 + $0x64] sm:$0xf]
  %v60 = vld [vmem:[%s1 + $0x68] sm:$0xf]
  %v61 = vld [vmem:[%s1 + $0x6c] sm:$0xf]
  %v62 = vld [vmem:[%s1 + $0x70] sm:$0xf]
  %v63 = vld [vmem:[%s1 + $0x74] sm:$0xf]
  %v64 = vld [vmem:[%s1 + $0x78] sm:$0xf]
  %v65 = vld [vmem:[%s1 + $0x7c] sm:$0xf]
  %v68 = vunpack.c.l.b16 %v32
  %v69 = vunpack.c.h.b16 %v32
  %v70 = vunpack.c.l.b16 %v33
  %v71 = vunpack.c.h.b16 %v33
  %v72 = vpack.c.b16 %v70, %v68
  %v73 = vpack.c.b16 %v71, %v69
  %v108 = vunpack.c.l.b16 %v34
  %v109 = vunpack.c.l.b16 %v35
  %v110 = vunpack.c.l.b16 %v36
  %v111 = vunpack.c.l.b16 %v37
  %v112 = vunpack.c.l.b16 %v38
  %v113 = vunpack.c.l.b16 %v39
  %v114 = vunpack.c.l.b16 %v40
  %v115 = vunpack.c.l.b16 %v41
  %v116 = vunpack.c.l.b16 %v42
  %v117 = vunpack.c.l.b16 %v43
  %v118 = vunpack.c.l.b16 %v44
  %v119 = vunpack.c.l.b16 %v45
  %v120 = vunpack.c.l.b16 %v46
  %v121 = vunpack.c.l.b16 %v47
  %v122 = vunpack.c.l.b16 %v48
  %v123 = vunpack.c.l.b16 %v49
  %v124 = vunpack.c.l.b16 %v50
  %v125 = vunpack.c.l.b16 %v51
  %v126 = vunpack.c.l.b16 %v52
  %v127 = vunpack.c.l.b16 %v53
  %v128 = vunpack.c.l.b16 %v54
  %v129 = vunpack.c.l.b16 %v55
  %v130 = vunpack.c.l.b16 %v56
  %v131 = vunpack.c.l.b16 %v57
  %v132 = vunpack.c.l.b16 %v58
  %v133 = vunpack.c.l.b16 %v59
  %v134 = vunpack.c.l.b16 %v60
  %v135 = vunpack.c.l.b16 %v61
  %v136 = vunpack.c.l.b16 %v62
  %v137 = vunpack.c.l.b16 %v63
  %v138 = vunpack.c.l.b16 %v64
  %v139 = vunpack.c.l.b16 %v65
  %v140 = vpack.c.b16 %v109, %v108
  %v141 = vpack.c.b16 %v111, %v110
  %v142 = vpack.c.b16 %v113, %v112
  %v143 = vpack.c.b16 %v115, %v114
  %v144 = vpack.c.b16 %v117, %v116
  %v145 = vpack.c.b16 %v119, %v118
  %v146 = vpack.c.b16 %v121, %v120
  %v147 = vpack.c.b16 %v123, %v122
  %v148 = vpack.c.b16 %v125, %v124
  %v149 = vpack.c.b16 %v127, %v126
  %v150 = vpack.c.b16 %v129, %v128
  %v151 = vpack.c.b16 %v131, %v130
  %v152 = vpack.c.b16 %v133, %v132
  %v153 = vpack.c.b16 %v135, %v134
  %v154 = vpack.c.b16 %v137, %v136
  %v155 = vpack.c.b16 %v139, %v138
  %172 = vmatprep.subr.bf16.mxu0 0
  %173 = vmatpush1.bf16.msra.mxu0 %v147
  %174 = vmatprep.subr.bf16.mxu0 0
  %175 = vmatpush1.bf16.msra.mxu0 %v146
  %176 = vmatprep.subr.bf16.mxu0 0
  %177 = vmatpush1.bf16.msra.mxu0 %v145
  %178 = vmatprep.subr.bf16.mxu0 0
  %179 = vmatpush1.bf16.msra.mxu0 %v144
  %180 = vmatprep.subr.bf16.mxu0 0
  %181 = vmatpush1.bf16.msra.mxu0 %v143
  %182 = vmatprep.subr.bf16.mxu0 0
  %183 = vmatpush1.bf16.msra.mxu0 %v142
  %184 = vmatprep.subr.bf16.mxu0 0
  %185 = vmatpush1.bf16.msra.mxu0 %v141
  %186 = vmatprep.subr.bf16.mxu0 0
  %187 = vmatpush1.bf16.msra.mxu0 %v140
  %188 = vmatprep.subr.bf16.mxu0 0
  %189 = vmatpush2.bf16.msra.mxu0 %v155
  %190 = vmatprep.subr.bf16.mxu0 0
  %191 = vmatpush2.bf16.msra.mxu0 %v154
  %192 = vmatprep.subr.bf16.mxu0 0
  %193 = vmatpush2.bf16.msra.mxu0 %v153
  %194 = vmatprep.subr.bf16.mxu0 0
  %195 = vmatpush2.bf16.msra.mxu0 %v152
  %196 = vmatprep.subr.bf16.mxu0 0
  %197 = vmatpush2.bf16.msra.mxu0 %v151
  %198 = vmatprep.subr.bf16.mxu0 0
  %199 = vmatpush2.bf16.msra.mxu0 %v150
  %200 = vmatprep.subr.bf16.mxu0 0
  %201 = vmatpush2.bf16.msra.mxu0 %v149
  %202 = vmatprep.subr.bf16.mxu0 0
  %203 = vmatpush2.bf16.msra.mxu0 %v148
  %204 = vmatprep.mubr.bf16.mxu0 %v73
  %205 = vmatmul.mubr.bf16.gmra.mxu0 %v72
  %v206 = vpop.f32.mrf.mxu0
  %v207 = vadd.f32 0.0, %v206
  %v208 = vpop.f32.mrf.mxu0
  %v209 = vpop.f32.mrf.mxu0
  %v210 = vadd.f32 0.0, %v209
  %v211 = vpop.f32.mrf.mxu0
  %212 = vdwg.mxu0
  %v213 = vadd.f32 %v30, %v207
  %v214 = vadd.f32 %v31, %v210
  %215 = vst [vmem:[#allocation2] sm:$0xff] %v213
  %216 = vst [vmem:[#allocation2 + $0x8] sm:$0xff] %v214
  // Predicated region
  $region30: #{transformer_forward.33} parent=0 // pred_check
    %p217 = pneg %p24
  $region31: #{transformer_forward.33} parent=0 // pred_check_branch
    %219 = sbr.rel (%p217) target = $region33
  $region32: #{transformer_forward.33} parent=0 // pred_region
    %v220 = vld [vmem:[#allocation2] sm:$0xff]
    %v221 = vld [vmem:[#allocation2 + $0x8] sm:$0xff]
    %v222 = vld [vmem:[%s2] sm:$0x1]
    %v224 = vlaneseq
    %v225 = vshrl.u32 %v224, 7
    %v226 = vsub.s32 0, %v225
    %v227 = vrot.slane %v222, %v226
    %v229 = vadd.f32 %v220, %v227
    %v230 = vadd.f32 %v221, %v227
    %v231 = vld [vmem:[%s3] sm:$0xff]
    %v232 = vld [vmem:[%s3 + $0x8] sm:$0xff]
    %v233 = vadd.f32 %v229, %v231
    %v234 = vadd.f32 %v230, %v232
    %235 = vadd.xlane.f32.xlu0 %v233
    %v236 = vpop.xlane.xlu0 %235
    %237 = vadd.xlane.f32.xlu0 %v234
    %v238 = vpop.xlane.xlu0 %237
    %v239 = vrcp.pop 128.0
    %v240 = vmul.f32 %v236, %v239
    %v241 = vmul.f32 %v238, %v239
    %v242 = vsub.f32 %v233, %v240
    %v243 = vsub.f32 %v234, %v241
    %v244 = vmul.f32 %v242, %v242
    %v245 = vmul.f32 %v243, %v243
    %246 = vadd.xlane.f32.xlu0 %v244
    %v247 = vpop.xlane.xlu0 %246
    %248 = vadd.xlane.f32.xlu0 %v245
    %v249 = vpop.xlane.xlu0 %248
    %v250 = vmul.f32 %v247, %v239
    %v251 = vmul.f32 %v249, %v239
    %v252 = vadd.f32 %v250, 1e-05
    %v253 = vadd.f32 %v251, 1e-05
    %v254 = vrsqrt.pop %v252
    %v255 = vrsqrt.pop %v253
    %v256 = vmul.f32 %v242, %v254
    %v257 = vmul.f32 %v243, %v255
    %v258 = vld [vmem:[%s4] sm:$0x1]
    %v260 = vlaneseq
    %v261 = vshrl.u32 %v260, 7
    %v262 = vsub.s32 0, %v261
    %v263 = vrot.slane %v258, %v262
    %v265 = vmul.f32 %v256, %v263
    %v266 = vmul.f32 %v257, %v263
    %v267 = vld [vmem:[%s5] sm:$0x1]
    %v269 = vlaneseq
    %v270 = vshrl.u32 %v269, 7
    %v271 = vsub.s32 0, %v270
    %v272 = vrot.slane %v267, %v271
    %v274 = vadd.f32 %v265, %v272
    %v275 = vadd.f32 %v266, %v272
    %276 = vst [vmem:[%s6] sm:$0xff] %v274
    %277 = vst [vmem:[%s6 + $0x8] sm:$0xff] %v275
  $region33: #{transformer_forward.33} parent=0 // pred_fallthru
    _
  // Predicated region
  $region34: #{transformer_forward.33} parent=0 // pred_check
    _
  $region35: #{transformer_forward.33} parent=0 // pred_check_branch
    %279 = sbr.rel (0) target = $region37
  $region36: #{transformer_forward.33} parent=0 // pred_region
    _
  $region37: #{transformer_forward.33} parent=0 // pred_fallthru
    _
  // Predicated region
  $region38: #{transformer_forward.33} parent=0 // pred_check
    _
  $region39: #{transformer_forward.33} parent=0 // pred_check_branch
    %281 = sbr.rel (0) target = $region41
  $region40: #{transformer_forward.33} parent=0 // pred_region
    _
  $region41: #{transformer_forward.33} parent=0 // pred_fallthru
    _

// kernel: transformer_forward.43
$region0: #{transformer_forward.43}
  #allocation0 [shape = 'u32[]', space=smem, size = 0x4, offset = 0x4, fixed_abs, tag = 'smem constant byte address 0x4 - core index']
  #allocation1 [shape = 'u32[144,128]{1,0:T(1,128)}', space=vmem, size = 0x12000, scoped, tag = 'internal scratch']
  #allocation2 [shape = 'f32[16,256]{1,0:T(8,128)}', space=vmem, size = 0x4000, scoped, tag = 'scratch operand']
  %s0 = inlined_call_operand.vmem [shape: bf16[16,128], index: 0, kind: input, shape index: {}]
  %s1 = inlined_call_operand.vmem [shape: bf16[128,256], index: 1, kind: input, shape index: {}]
  %s2 = inlined_call_operand.vmem [shape: f32[1,256], index: 2, kind: input, shape index: {}]
  %s3 = inlined_call_operand.vmem [shape: bf16[16,256], index: 3, kind: output, shape index: {}]
  %s4 = sld [smem:[#allocation0]]
  $region30: #{transformer_forward.43} parent=0
    _
  %s6 = ssub.s32 1, %s4
  %s7 = scalar_select 0, %s6, %s4
  // Predicated region
  $region2: #{transformer_forward.43} parent=0 // pred_check
    _
  $region3: #{transformer_forward.43} parent=0 // pred_check_branch
    %9 = sbr.rel (0) target = $region5
  $region4: #{transformer_forward.43} parent=0 // pred_region
    _
  $region5: #{transformer_forward.43} parent=0 // pred_fallthru
    _
  // Predicated region
  $region6: #{transformer_forward.43} parent=0 // pred_check
    _
  $region7: #{transformer_forward.43} parent=0 // pred_check_branch
    %11 = sbr.rel (0) target = $region9
  $region8: #{transformer_forward.43} parent=0 // pred_region
    _
  $region9: #{transformer_forward.43} parent=0 // pred_fallthru
    _
  // Predicated region
  $region10: #{transformer_forward.43} parent=0 // pred_check
    _
  $region11: #{transformer_forward.43} parent=0 // pred_check_branch
    %13 = sbr.rel (0) target = $region13
  $region12: #{transformer_forward.43} parent=0 // pred_region
    _
  $region13: #{transformer_forward.43} parent=0 // pred_fallthru
    _
  %p15 = scmp.eq.s32.totalorder 0, 0
  // Predicated region
  $region14: #{transformer_forward.43} parent=0 // pred_check
    %p16 = pneg %p15
  $region15: #{transformer_forward.43} parent=0 // pred_check_branch
    %18 = sbr.rel (%p16) target = $region17
  $region16: #{transformer_forward.43} parent=0 // pred_region
    %19 = vst [vmem:[#allocation2] sm:$0xff] 0.0
    %20 = vst [vmem:[#allocation2 + $0x8] sm:$0xff] 0.0
    %21 = vst [vmem:[#allocation2 + $0x10] sm:$0xff] 0.0
    %22 = vst [vmem:[#allocation2 + $0x18] sm:$0xff] 0.0
  $region17: #{transformer_forward.43} parent=0 // pred_fallthru
    _
  %v23 = vld [vmem:[#allocation2] sm:$0xff]
  %v24 = vld [vmem:[#allocation2 + $0x8] sm:$0xff]
  %v25 = vld [vmem:[#allocation2 + $0x10] sm:$0xff]
  %v26 = vld [vmem:[#allocation2 + $0x18] sm:$0xff]
  %v27 = vld [vmem:[%s0] sm:$0xf]
  %v28 = vld [vmem:[%s0 + $0x4] sm:$0xf]
  %v29 = vld [vmem:[%s1] sm:$0xff]
  %v30 = vld [vmem:[%s1 + $0x8] sm:$0xff]
  %v31 = vld [vmem:[%s1 + $0x10] sm:$0xff]
  %v32 = vld [vmem:[%s1 + $0x18] sm:$0xff]
  %v33 = vld [vmem:[%s1 + $0x20] sm:$0xff]
  %v34 = vld [vmem:[%s1 + $0x28] sm:$0xff]
  %v35 = vld [vmem:[%s1 + $0x30] sm:$0xff]
  %v36 = vld [vmem:[%s1 + $0x38] sm:$0xff]
  %v37 = vld [vmem:[%s1 + $0x40] sm:$0xff]
  %v38 = vld [vmem:[%s1 + $0x48] sm:$0xff]
  %v39 = vld [vmem:[%s1 + $0x50] sm:$0xff]
  %v40 = vld [vmem:[%s1 + $0x58] sm:$0xff]
  %v41 = vld [vmem:[%s1 + $0x60] sm:$0xff]
  %v42 = vld [vmem:[%s1 + $0x68] sm:$0xff]
  %v43 = vld [vmem:[%s1 + $0x70] sm:$0xff]
  %v44 = vld [vmem:[%s1 + $0x78] sm:$0xff]
  %v47 = vunpack.c.l.b16 %v27
  %v48 = vunpack.c.l.b16 %v28
  %v49 = vpack.c.b16 %v48, %v47
  %v67 = vunpack.c.l.b16 %v29
  %v68 = vunpack.c.h.b16 %v29
  %v69 = vunpack.c.l.b16 %v30
  %v70 = vunpack.c.h.b16 %v30
  %v71 = vunpack.c.l.b16 %v31
  %v72 = vunpack.c.h.b16 %v31
  %v73 = vunpack.c.l.b16 %v32
  %v74 = vunpack.c.h.b16 %v32
  %v75 = vunpack.c.l.b16 %v33
  %v76 = vunpack.c.h.b16 %v33
  %v77 = vunpack.c.l.b16 %v34
  %v78 = vunpack.c.h.b16 %v34
  %v79 = vunpack.c.l.b16 %v35
  %v80 = vunpack.c.h.b16 %v35
  %v81 = vunpack.c.l.b16 %v36
  %v82 = vunpack.c.h.b16 %v36
  %v83 = vunpack.c.l.b16 %v37
  %v84 = vunpack.c.h.b16 %v37
  %v85 = vunpack.c.l.b16 %v38
  %v86 = vunpack.c.h.b16 %v38
  %v87 = vunpack.c.l.b16 %v39
  %v88 = vunpack.c.h.b16 %v39
  %v89 = vunpack.c.l.b16 %v40
  %v90 = vunpack.c.h.b16 %v40
  %v91 = vunpack.c.l.b16 %v41
  %v92 = vunpack.c.h.b16 %v41
  %v93 = vunpack.c.l.b16 %v42
  %v94 = vunpack.c.h.b16 %v42
  %v95 = vunpack.c.l.b16 %v43
  %v96 = vunpack.c.h.b16 %v43
  %v97 = vunpack.c.l.b16 %v44
  %v98 = vunpack.c.h.b16 %v44
  %v99 = vpack.c.b16 %v69, %v67
  %v100 = vpack.c.b16 %v70, %v68
  %v101 = vpack.c.b16 %v73, %v71
  %v102 = vpack.c.b16 %v74, %v72
  %v103 = vpack.c.b16 %v77, %v75
  %v104 = vpack.c.b16 %v78, %v76
  %v105 = vpack.c.b16 %v81, %v79
  %v106 = vpack.c.b16 %v82, %v80
  %v107 = vpack.c.b16 %v85, %v83
  %v108 = vpack.c.b16 %v86, %v84
  %v109 = vpack.c.b16 %v89, %v87
  %v110 = vpack.c.b16 %v90, %v88
  %v111 = vpack.c.b16 %v93, %v91
  %v112 = vpack.c.b16 %v94, %v92
  %v113 = vpack.c.b16 %v97, %v95
  %v114 = vpack.c.b16 %v98, %v96
  %131 = vmatprep.subr.bf16.mxu0 %v114
  %132 = vmatpush1.bf16.msra.mxu0 %v113
  %133 = vmatprep.subr.bf16.mxu0 %v112
  %134 = vmatpush1.bf16.msra.mxu0 %v111
  %135 = vmatprep.subr.bf16.mxu0 %v110
  %136 = vmatpush1.bf16.msra.mxu0 %v109
  %137 = vmatprep.subr.bf16.mxu0 %v108
  %138 = vmatpush1.bf16.msra.mxu0 %v107
  %139 = vmatprep.subr.bf16.mxu0 %v106
  %140 = vmatpush1.bf16.msra.mxu0 %v105
  %141 = vmatprep.subr.bf16.mxu0 %v104
  %142 = vmatpush1.bf16.msra.mxu0 %v103
  %143 = vmatprep.subr.bf16.mxu0 %v102
  %144 = vmatpush1.bf16.msra.mxu0 %v101
  %145 = vmatprep.subr.bf16.mxu0 %v100
  %146 = vmatpush1.bf16.msra.mxu0 %v99
  %147 = vmatprep.subr.bf16.mxu0 0
  %148 = vmatpush2.bf16.msra.mxu0 0
  %149 = vmatprep.subr.bf16.mxu0 0
  %150 = vmatpush2.bf16.msra.mxu0 0
  %151 = vmatprep.subr.bf16.mxu0 0
  %152 = vmatpush2.bf16.msra.mxu0 0
  %153 = vmatprep.subr.bf16.mxu0 0
  %154 = vmatpush2.bf16.msra.mxu0 0
  %155 = vmatprep.subr.bf16.mxu0 0
  %156 = vmatpush2.bf16.msra.mxu0 0
  %157 = vmatprep.subr.bf16.mxu0 0
  %158 = vmatpush2.bf16.msra.mxu0 0
  %159 = vmatprep.subr.bf16.mxu0 0
  %160 = vmatpush2.bf16.msra.mxu0 0
  %161 = vmatprep.subr.bf16.mxu0 0
  %162 = vmatpush2.bf16.msra.mxu0 0
  %163 = vmatprep.mubr.bf16.mxu0 0
  %164 = vmatmul.mubr.bf16.gmra.mxu0 %v49
  %v165 = vpop.f32.mrf.mxu0
  %v166 = vadd.f32 0.0, %v165
  %v167 = vpop.f32.mrf.mxu0
  %v168 = vadd.f32 0.0, %v167
  %v169 = vpop.f32.mrf.mxu0
  %v170 = vadd.f32 0.0, %v169
  %v171 = vpop.f32.mrf.mxu0
  %v172 = vadd.f32 0.0, %v171
  %173 = vdwg.mxu0
  %v174 = vadd.f32 %v23, %v166
  %v175 = vadd.f32 %v24, %v168
  %v176 = vadd.f32 %v25, %v170
  %v177 = vadd.f32 %v26, %v172
  %178 = vst [vmem:[#allocation2] sm:$0xff] %v174
  %179 = vst [vmem:[#allocation2 + $0x8] sm:$0xff] %v175
  %180 = vst [vmem:[#allocation2 + $0x10] sm:$0xff] %v176
  %181 = vst [vmem:[#allocation2 + $0x18] sm:$0xff] %v177
  // Predicated region
  $region18: #{transformer_forward.43} parent=0 // pred_check
    %p182 = pneg %p15
  $region19: #{transformer_forward.43} parent=0 // pred_check_branch
    %184 = sbr.rel (%p182) target = $region21
  $region20: #{transformer_forward.43} parent=0 // pred_region
    %v185 = vld [vmem:[#allocation2] sm:$0xff]
    %v186 = vld [vmem:[#allocation2 + $0x8] sm:$0xff]
    %v187 = vld [vmem:[#allocation2 + $0x10] sm:$0xff]
    %v188 = vld [vmem:[#allocation2 + $0x18] sm:$0xff]
    %v189 = vld [vmem:[%s2] sm:$0x3]
    %v191 = vlaneseq
    %v192 = vshrl.u32 %v191, 7
    %v193 = vsub.s32 0, %v192
    %v194 = vrot.slane %v189, %v193
    %v195 = vlaneseq
    %v196 = vshrl.u32 %v195, 7
    %v197 = vsub.s32 1, %v196
    %v198 = vrot.slane %v189, %v197
    %v201 = vadd.f32 %v185, %v194
    %v202 = vadd.f32 %v186, %v198
    %v203 = vadd.f32 %v187, %v194
    %v204 = vadd.f32 %v188, %v198
    %v205 = vpack.c.bf16 %v203, %v201
    %v206 = vpack.c.bf16 %v204, %v202
    %v209 = vunpack.c.l.b16 %v205
    %v210 = vunpack.c.l.b16 %v206
    %v211 = vunpack.c.h.b16 %v205
    %v212 = vunpack.c.h.b16 %v206
    %v213 = vpack.c.b16 %v210, %v209
    %v214 = vpack.c.b16 %v212, %v211
    %217 = vst [vmem:[%s3] sm:$0xff] %v213
    %218 = vst [vmem:[%s3 + $0x8] sm:$0xff] %v214
  $region21: #{transformer_forward.43} parent=0 // pred_fallthru
    _
  // Predicated region
  $region22: #{transformer_forward.43} parent=0 // pred_check
    _
  $region23: #{transformer_forward.43} parent=0 // pred_check_branch
    %220 = sbr.rel (0) target = $region25
  $region24: #{transformer_forward.43} parent=0 // pred_region
    _
  $region25: #{transformer_forward.43} parent=0 // pred_fallthru
    _
  // Predicated region
  $region26: #{transformer_forward.43} parent=0 // pred_check
    _
  $region27: #{transformer_forward.43} parent=0 // pred_check_branch
    %222 = sbr.rel (0) target = $region29
  $region28: #{transformer_forward.43} parent=0 // pred_region
    _
  $region29: #{transformer_forward.43} parent=0 // pred_fallthru
    _

// kernel: transformer_forward.46
$region0: #{transformer_forward.46}
  #allocation0 [shape = 'u32[]', space=smem, size = 0x4, offset = 0x4, fixed_abs, tag = 'smem constant byte address 0x4 - core index']
  #allocation1 [shape = 'u32[144,128]{1,0:T(1,128)}', space=vmem, size = 0x12000, scoped, tag = 'internal scratch']
  #allocation2 [shape = 'f32[14,256]{1,0:T(8,128)}', space=vmem, size = 0x4000, scoped, tag = 'scratch operand']
  %s0 = inlined_call_operand.vmem [shape: bf16[14,128], index: 0, kind: input, shape index: {}]
  %s1 = inlined_call_operand.vmem [shape: bf16[128,256], index: 1, kind: input, shape index: {}]
  %s2 = inlined_call_operand.vmem [shape: f32[1,256], index: 2, kind: input, shape index: {}]
  %s3 = inlined_call_operand.vmem [shape: bf16[14,256], index: 3, kind: output, shape index: {}]
  %s4 = sld [smem:[#allocation0]]
  $region30: #{transformer_forward.46} parent=0
    _
  %s6 = ssub.s32 1, %s4
  %s7 = scalar_select 0, %s6, %s4
  // Predicated region
  $region2: #{transformer_forward.46} parent=0 // pred_check
    _
  $region3: #{transformer_forward.46} parent=0 // pred_check_branch
    %9 = sbr.rel (0) target = $region5
  $region4: #{transformer_forward.46} parent=0 // pred_region
    _
  $region5: #{transformer_forward.46} parent=0 // pred_fallthru
    _
  // Predicated region
  $region6: #{transformer_forward.46} parent=0 // pred_check
    _
  $region7: #{transformer_forward.46} parent=0 // pred_check_branch
    %11 = sbr.rel (0) target = $region9
  $region8: #{transformer_forward.46} parent=0 // pred_region
    _
  $region9: #{transformer_forward.46} parent=0 // pred_fallthru
    _
  // Predicated region
  $region10: #{transformer_forward.46} parent=0 // pred_check
    _
  $region11: #{transformer_forward.46} parent=0 // pred_check_branch
    %13 = sbr.rel (0) target = $region13
  $region12: #{transformer_forward.46} parent=0 // pred_region
    _
  $region13: #{transformer_forward.46} parent=0 // pred_fallthru
    _
  %p15 = scmp.eq.s32.totalorder 0, 0
  // Predicated region
  $region14: #{transformer_forward.46} parent=0 // pred_check
    %p16 = pneg %p15
  $region15: #{transformer_forward.46} parent=0 // pred_check_branch
    %18 = sbr.rel (%p16) target = $region17
  $region16: #{transformer_forward.46} parent=0 // pred_region
    %19 = vst [vmem:[#allocation2] sm:$0xff] 0.0
    %20 = vst [vmem:[#allocation2 + $0x8] sm:$0xff] 0.0
    %21 = vst [vmem:[#allocation2 + $0x10] sm:$0x3f] 0.0
    %22 = vst [vmem:[#allocation2 + $0x18] sm:$0x3f] 0.0
  $region17: #{transformer_forward.46} parent=0 // pred_fallthru
    _
  %v23 = vld [vmem:[#allocation2] sm:$0xff]
  %v24 = vld [vmem:[#allocation2 + $0x8] sm:$0xff]
  %v25 = vld [vmem:[#allocation2 + $0x10] sm:$0x3f]
  %v26 = vld [vmem:[#allocation2 + $0x18] sm:$0x3f]
  %v27 = vld [vmem:[%s0] sm:$0xf]
  %v28 = vld [vmem:[%s0 + $0x4] sm:$0x7]
  %v29 = vld [vmem:[%s1] sm:$0xff]
  %v30 = vld [vmem:[%s1 + $0x8] sm:$0xff]
  %v31 = vld [vmem:[%s1 + $0x10] sm:$0xff]
  %v32 = vld [vmem:[%s1 + $0x18] sm:$0xff]
  %v33 = vld [vmem:[%s1 + $0x20] sm:$0xff]
  %v34 = vld [vmem:[%s1 + $0x28] sm:$0xff]
  %v35 = vld [vmem:[%s1 + $0x30] sm:$0xff]
  %v36 = vld [vmem:[%s1 + $0x38] sm:$0xff]
  %v37 = vld [vmem:[%s1 + $0x40] sm:$0xff]
  %v38 = vld [vmem:[%s1 + $0x48] sm:$0xff]
  %v39 = vld [vmem:[%s1 + $0x50] sm:$0xff]
  %v40 = vld [vmem:[%s1 + $0x58] sm:$0xff]
  %v41 = vld [vmem:[%s1 + $0x60] sm:$0xff]
  %v42 = vld [vmem:[%s1 + $0x68] sm:$0xff]
  %v43 = vld [vmem:[%s1 + $0x70] sm:$0xff]
  %v44 = vld [vmem:[%s1 + $0x78] sm:$0xff]
  %v47 = vunpack.c.l.b16 %v27
  %v48 = vunpack.c.l.b16 %v28
  %v49 = vpack.c.b16 %v48, %v47
  %v67 = vunpack.c.l.b16 %v29
  %v68 = vunpack.c.h.b16 %v29
  %v69 = vunpack.c.l.b16 %v30
  %v70 = vunpack.c.h.b16 %v30
  %v71 = vunpack.c.l.b16 %v31
  %v72 = vunpack.c.h.b16 %v31
  %v73 = vunpack.c.l.b16 %v32
  %v74 = vunpack.c.h.b16 %v32
  %v75 = vunpack.c.l.b16 %v33
  %v76 = vunpack.c.h.b16 %v33
  %v77 = vunpack.c.l.b16 %v34
  %v78 = vunpack.c.h.b16 %v34
  %v79 = vunpack.c.l.b16 %v35
  %v80 = vunpack.c.h.b16 %v35
  %v81 = vunpack.c.l.b16 %v36
  %v82 = vunpack.c.h.b16 %v36
  %v83 = vunpack.c.l.b16 %v37
  %v84 = vunpack.c.h.b16 %v37
  %v85 = vunpack.c.l.b16 %v38
  %v86 = vunpack.c.h.b16 %v38
  %v87 = vunpack.c.l.b16 %v39
  %v88 = vunpack.c.h.b16 %v39
  %v89 = vunpack.c.l.b16 %v40
  %v90 = vunpack.c.h.b16 %v40
  %v91 = vunpack.c.l.b16 %v41
  %v92 = vunpack.c.h.b16 %v41
  %v93 = vunpack.c.l.b16 %v42
  %v94 = vunpack.c.h.b16 %v42
  %v95 = vunpack.c.l.b16 %v43
  %v96 = vunpack.c.h.b16 %v43
  %v97 = vunpack.c.l.b16 %v44
  %v98 = vunpack.c.h.b16 %v44
  %v99 = vpack.c.b16 %v69, %v67
  %v100 = vpack.c.b16 %v70, %v68
  %v101 = vpack.c.b16 %v73, %v71
  %v102 = vpack.c.b16 %v74, %v72
  %v103 = vpack.c.b16 %v77, %v75
  %v104 = vpack.c.b16 %v78, %v76
  %v105 = vpack.c.b16 %v81, %v79
  %v106 = vpack.c.b16 %v82, %v80
  %v107 = vpack.c.b16 %v85, %v83
  %v108 = vpack.c.b16 %v86, %v84
  %v109 = vpack.c.b16 %v89, %v87
  %v110 = vpack.c.b16 %v90, %v88
  %v111 = vpack.c.b16 %v93, %v91
  %v112 = vpack.c.b16 %v94, %v92
  %v113 = vpack.c.b16 %v97, %v95
  %v114 = vpack.c.b16 %v98, %v96
  %131 = vmatprep.subr.bf16.mxu0 %v114
  %132 = vmatpush1.bf16.msra.mxu0 %v113
  %133 = vmatprep.subr.bf16.mxu0 %v112
  %134 = vmatpush1.bf16.msra.mxu0 %v111
  %135 = vmatprep.subr.bf16.mxu0 %v110
  %136 = vmatpush1.bf16.msra.mxu0 %v109
  %137 = vmatprep.subr.bf16.mxu0 %v108
  %138 = vmatpush1.bf16.msra.mxu0 %v107
  %139 = vmatprep.subr.bf16.mxu0 %v106
  %140 = vmatpush1.bf16.msra.mxu0 %v105
  %141 = vmatprep.subr.bf16.mxu0 %v104
  %142 = vmatpush1.bf16.msra.mxu0 %v103
  %143 = vmatprep.subr.bf16.mxu0 %v102
  %144 = vmatpush1.bf16.msra.mxu0 %v101
  %145 = vmatprep.subr.bf16.mxu0 %v100
  %146 = vmatpush1.bf16.msra.mxu0 %v99
  %147 = vmatprep.subr.bf16.mxu0 0
  %148 = vmatpush2.bf16.msra.mxu0 0
  %149 = vmatprep.subr.bf16.mxu0 0
  %150 = vmatpush2.bf16.msra.mxu0 0
  %151 = vmatprep.subr.bf16.mxu0 0
  %152 = vmatpush2.bf16.msra.mxu0 0
  %153 = vmatprep.subr.bf16.mxu0 0
  %154 = vmatpush2.bf16.msra.mxu0 0
  %155 = vmatprep.subr.bf16.mxu0 0
  %156 = vmatpush2.bf16.msra.mxu0 0
  %157 = vmatprep.subr.bf16.mxu0 0
  %158 = vmatpush2.bf16.msra.mxu0 0
  %159 = vmatprep.subr.bf16.mxu0 0
  %160 = vmatpush2.bf16.msra.mxu0 0
  %161 = vmatprep.subr.bf16.mxu0 0
  %162 = vmatpush2.bf16.msra.mxu0 0
  %163 = vmatprep.mubr.bf16.mxu0 0
  %164 = vmatmul.mubr.bf16.gmra.mxu0 %v49
  %v165 = vpop.f32.mrf.mxu0
  %v166 = vadd.f32 0.0, %v165
  %v167 = vpop.f32.mrf.mxu0
  %v168 = vadd.f32 0.0, %v167
  %v169 = vpop.f32.mrf.mxu0
  %v170 = vadd.f32 0.0, %v169
  %v171 = vpop.f32.mrf.mxu0
  %v172 = vadd.f32 0.0, %v171
  %173 = vdwg.mxu0
  %v174 = vadd.f32 %v23, %v166
  %v175 = vadd.f32 %v24, %v168
  %v176 = vadd.f32 %v25, %v170
  %v177 = vadd.f32 %v26, %v172
  %178 = vst [vmem:[#allocation2] sm:$0xff] %v174
  %179 = vst [vmem:[#allocation2 + $0x8] sm:$0xff] %v175
  %180 = vst [vmem:[#allocation2 + $0x10] sm:$0x3f] %v176
  %181 = vst [vmem:[#allocation2 + $0x18] sm:$0x3f] %v177
  // Predicated region
  $region18: #{transformer_forward.46} parent=0 // pred_check
    %p182 = pneg %p15
  $region19: #{transformer_forward.46} parent=0 // pred_check_branch
    %184 = sbr.rel (%p182) target = $region21
  $region20: #{transformer_forward.46} parent=0 // pred_region
    %v185 = vld [vmem:[#allocation2] sm:$0xff]
    %v186 = vld [vmem:[#allocation2 + $0x8] sm:$0xff]
    %v187 = vld [vmem:[#allocation2 + $0x10] sm:$0x3f]
    %v188 = vld [vmem:[#allocation2 + $0x18] sm:$0x3f]
    %v189 = vld [vmem:[%s2] sm:$0x3]
    %v191 = vlaneseq
    %v192 = vshrl.u32 %v191, 7
    %v193 = vsub.s32 0, %v192
    %v194 = vrot.slane %v189, %v193
    %v195 = vlaneseq
    %v196 = vshrl.u32 %v195, 7
    %v197 = vsub.s32 1, %v196
    %v198 = vrot.slane %v189, %v197
    %v201 = vadd.f32 %v185, %v194
    %v202 = vadd.f32 %v186, %v198
    %v203 = vadd.f32 %v187, %v194
    %v204 = vadd.f32 %v188, %v198
    %v205 = vmax.f32 %v201, 0.0
    %v206 = vmax.f32 %v202, 0.0
    %v207 = vmax.f32 %v203, 0.0
    %v208 = vmax.f32 %v204, 0.0
    %v209 = vpack.c.bf16 %v207, %v205
    %v210 = vpack.c.bf16 %v208, %v206
    %v213 = vunpack.c.l.b16 %v209
    %v214 = vunpack.c.l.b16 %v210
    %v215 = vunpack.c.h.b16 %v209
    %v216 = vunpack.c.h.b16 %v210
    %v217 = vpack.c.b16 %v214, %v213
    %v218 = vpack.c.b16 %v216, %v215
    %221 = vst [vmem:[%s3] sm:$0xff] %v217
    %222 = vst [vmem:[%s3 + $0x8] sm:$0x77] %v218
  $region21: #{transformer_forward.46} parent=0 // pred_fallthru
    _
  // Predicated region
  $region22: #{transformer_forward.46} parent=0 // pred_check
    _
  $region23: #{transformer_forward.46} parent=0 // pred_check_branch
    %224 = sbr.rel (0) target = $region25
  $region24: #{transformer_forward.46} parent=0 // pred_region
    _
  $region25: #{transformer_forward.46} parent=0 // pred_fallthru
    _
  // Predicated region
  $region26: #{transformer_forward.46} parent=0 // pred_check
    _
  $region27: #{transformer_forward.46} parent=0 // pred_check_branch
    %226 = sbr.rel (0) target = $region29
  $region28: #{transformer_forward.46} parent=0 // pred_region
    _
  $region29: #{transformer_forward.46} parent=0 // pred_fallthru
    _

// kernel: transformer_forward.44
$region0: #{transformer_forward.44}
  #allocation0 [shape = 'u32[]', space=smem, size = 0x4, offset = 0x4, fixed_abs, tag = 'smem constant byte address 0x4 - core index']
  #allocation1 [shape = 'u32[144,128]{1,0:T(1,128)}', space=vmem, size = 0x12000, scoped, tag = 'internal scratch']
  #allocation2 [shape = 'f32[4,7,1]{2,1,0:T(8,128)}', space=vmem, size = 0x4000, scoped, tag = 'scratch operand']
  #allocation3 [shape = 'f32[4,7,1]{2,1,0:T(8,128)}', space=vmem, size = 0x4000, scoped, tag = 'scratch operand']
  #allocation4 [shape = 'f32[7,128]{1,0:T(8,128)}', space=vmem, size = 0x1000, scoped, tag = 'scratch operand']
  %s0 = inlined_call_operand.vmem [shape: bf16[2,7,128], index: 0, kind: input, shape index: {}]
  %s1 = inlined_call_operand.vmem [shape: bf16[2,8,256], index: 1, kind: input, shape index: {}, may-alias: {1,2}]
  %s2 = inlined_call_operand.vmem [shape: bf16[2,8,256], index: 2, kind: input, shape index: {}, may-alias: {1,2}]
  %s3 = inlined_call_operand.vmem [shape: f32[2,1,8], index: 3, kind: input, shape index: {}]
  %s4 = inlined_call_operand.vmem [shape: bf16[2,7,128], index: 4, kind: output, shape index: {}]
  %s5 = sld [smem:[#allocation0]]
  $region57: #{transformer_forward.44} parent=0
    _
  %s7 = ssub.s32 1, %s5
  %s8 = scalar_select 0, %s7, %s5
  loop: start=0, step=1, limit=4
  $region2: #{transformer_forward.44} parent=0 // loop_pre_header
    _
  $region3: #{transformer_forward.44} parent=0 // loop_header
    %s10 = sphi 0, %s14
    %p11 = scmp.ge.s32.totalorder %s10, 4
    %s17 = sphi 0, %s36
    %s18 = sphi 0, %s32
    %s19 = sphi 0, %s28
    %s20 = sphi 0, %s17
    %s21 = sphi 0, %s18
    %s22 = sphi 0, %s19
    %s23 = sphi 0, %s20
    %s24 = sphi 0, %s21
    %s25 = sphi 0, %s22
    %s41 = sphi 0, %s43
    %s44 = sphi 0, %s41
    %s45 = sphi 0, %s44
    %s61 = sphi 0, %s45
    %s69 = sphi 0, %s71
    %s72 = sphi 0, %s69
    %s73 = sphi 0, %s72
    %s89 = sphi 0, %s73
    %s97 = sphi 0, %s99
    %s100 = sphi 0, %s97
    %s101 = sphi 0, %s100
    %s117 = sphi 0, %s101
    %s125 = sphi 0, %s127
    %s128 = sphi 0, %s125
    %s129 = sphi 0, %s128
    %s145 = sphi 0, %s129
    %s153 = sphi 0, %s155
    %s156 = sphi 0, %s153
    %s157 = sphi 0, %s156
    %s173 = sphi 0, %s157
  $region4: #{transformer_forward.44} parent=0 // loop_header_branch
    %13 = sbr.rel (%p11) target = $region8
  $region5: #{transformer_forward.44} parent=0 // loop_body
    %s15 = ssub.s32 %s10, 1
    %s16 = ssub.s32 %s10, 2
    %s26 = sadd.s32 1, %s19
    %p27 = scmp.ge.s32.totalorder %s26, 1
    %s28 = scalar_select %p27, 0, %s26
    %s29 = sadd.s32 1, %s18
    %s30 = scalar_select %p27, %s29, %s18
    %p31 = scmp.ge.s32.totalorder %s30, 1
    %s32 = scalar_select %p31, 0, %s30
    %s33 = sadd.s32 1, %s17
    %s34 = scalar_select %p31, %s33, %s17
    %p35 = scmp.ge.s32.totalorder %s34, 2
    %s36 = scalar_select %p35, 0, %s34
    %s37 = ssub.s32 %s17, %s36
    %s38 = ssub.s32 %s18, %s32
    %s39 = sor.u32 %s37, %s38
    %p40 = scmp.eq.s32.totalorder %s39, 0
    %s42 = sadd.s32 %s41, 1
    %s43 = scalar_select %p40, %s41, %s42
    %p46 = pneg %p40
    %p47 = scmp.eq.s32.totalorder %s10, 1
    %p48 = por %p46, %p47
    %p49 = scmp.ne.s32.totalorder %s41, %s44
    %p50 = scmp.eq.s32.totalorder %s10, 0
    %p51 = por %p49, %p50
    %p52 = scmp.ne.s32.totalorder %s41, %s44
    %p53 = scmp.eq.s32.totalorder %s15, 1
    %p54 = por %p52, %p53
    %p55 = scmp.ne.s32.totalorder %s44, %s45
    %p56 = scmp.eq.s32.totalorder %s15, 0
    %p57 = por %p55, %p56
    %p58 = scmp.ne.s32.totalorder %s44, %s45
    %p59 = scmp.eq.s32.totalorder %s16, 1
    %p60 = por %p58, %p59
    %p62 = scmp.ne.s32.totalorder %s45, %s61
    %p63 = scmp.eq.s32.totalorder %s16, 0
    %p64 = por %p62, %p63
    %s65 = ssub.s32 %s17, %s36
    %s66 = ssub.s32 %s19, %s28
    %s67 = sor.u32 %s65, %s66
    %p68 = scmp.eq.s32.totalorder %s67, 0
    %s70 = sadd.s32 %s69, 1
    %s71 = scalar_select %p68, %s69, %s70
    %p74 = pneg %p68
    %p75 = scmp.eq.s32.totalorder %s10, 1
    %p76 = por %p74, %p75
    %p77 = scmp.ne.s32.totalorder %s69, %s72
    %p78 = scmp.eq.s32.totalorder %s10, 0
    %p79 = por %p77, %p78
    %p80 = scmp.ne.s32.totalorder %s69, %s72
    %p81 = scmp.eq.s32.totalorder %s15, 1
    %p82 = por %p80, %p81
    %p83 = scmp.ne.s32.totalorder %s72, %s73
    %p84 = scmp.eq.s32.totalorder %s15, 0
    %p85 = por %p83, %p84
    %p86 = scmp.ne.s32.totalorder %s72, %s73
    %p87 = scmp.eq.s32.totalorder %s16, 1
    %p88 = por %p86, %p87
    %p90 = scmp.ne.s32.totalorder %s73, %s89
    %p91 = scmp.eq.s32.totalorder %s16, 0
    %p92 = por %p90, %p91
    %s93 = ssub.s32 %s17, %s36
    %s94 = ssub.s32 %s19, %s28
    %s95 = sor.u32 %s93, %s94
    %p96 = scmp.eq.s32.totalorder %s95, 0
    %s98 = sadd.s32 %s97, 1
    %s99 = scalar_select %p96, %s97, %s98
    %p102 = pneg %p96
    %p103 = scmp.eq.s32.totalorder %s10, 1
    %p104 = por %p102, %p103
    %p105 = scmp.ne.s32.totalorder %s97, %s100
    %p106 = scmp.eq.s32.totalorder %s10, 0
    %p107 = por %p105, %p106
    %p108 = scmp.ne.s32.totalorder %s97, %s100
    %p109 = scmp.eq.s32.totalorder %s15, 1
    %p110 = por %p108, %p109
    %p111 = scmp.ne.s32.totalorder %s100, %s101
    %p112 = scmp.eq.s32.totalorder %s15, 0
    %p113 = por %p111, %p112
    %p114 = scmp.ne.s32.totalorder %s100, %s101
    %p115 = scmp.eq.s32.totalorder %s16, 1
    %p116 = por %p114, %p115
    %p118 = scmp.ne.s32.totalorder %s101, %s117
    %p119 = scmp.eq.s32.totalorder %s16, 0
    %p120 = por %p118, %p119
    %s121 = ssub.s32 %s17, %s36
    %s122 = ssub.s32 %s19, %s28
    %s123 = sor.u32 %s121, %s122
    %p124 = scmp.eq.s32.totalorder %s123, 0
    %s126 = sadd.s32 %s125, 1
    %s127 = scalar_select %p124, %s125, %s126
    %p130 = pneg %p124
    %p131 = scmp.eq.s32.totalorder %s10, 1
    %p132 = por %p130, %p131
    %p133 = scmp.ne.s32.totalorder %s125, %s128
    %p134 = scmp.eq.s32.totalorder %s10, 0
    %p135 = por %p133, %p134
    %p136 = scmp.ne.s32.totalorder %s125, %s128
    %p137 = scmp.eq.s32.totalorder %s15, 1
    %p138 = por %p136, %p137
    %p139 = scmp.ne.s32.totalorder %s128, %s129
    %p140 = scmp.eq.s32.totalorder %s15, 0
    %p141 = por %p139, %p140
    %p142 = scmp.ne.s32.totalorder %s128, %s129
    %p143 = scmp.eq.s32.totalorder %s16, 1
    %p144 = por %p142, %p143
    %p146 = scmp.ne.s32.totalorder %s129, %s145
    %p147 = scmp.eq.s32.totalorder %s16, 0
    %p148 = por %p146, %p147
    %s149 = ssub.s32 %s17, %s36
    %s150 = ssub.s32 %s18, %s32
    %s151 = sor.u32 %s149, %s150
    %p152 = scmp.eq.s32.totalorder %s151, 0
    %s154 = sadd.s32 %s153, 1
    %s155 = scalar_select %p152, %s153, %s154
    %p158 = pneg %p152
    %p159 = scmp.eq.s32.totalorder %s10, 1
    %p160 = por %p158, %p159
    %p161 = scmp.ne.s32.totalorder %s153, %s156
    %p162 = scmp.eq.s32.totalorder %s10, 0
    %p163 = por %p161, %p162
    %p164 = scmp.ne.s32.totalorder %s153, %s156
    %p165 = scmp.eq.s32.totalorder %s15, 1
    %p166 = por %p164, %p165
    %p167 = scmp.ne.s32.totalorder %s156, %s157
    %p168 = scmp.eq.s32.totalorder %s15, 0
    %p169 = por %p167, %p168
    %p170 = scmp.ne.s32.totalorder %s156, %s157
    %p171 = scmp.eq.s32.totalorder %s16, 1
    %p172 = por %p170, %p171
    %p174 = scmp.ne.s32.totalorder %s157, %s173
    %p175 = scmp.eq.s32.totalorder %s16, 0
    %p176 = por %p174, %p175
    %p177 = scmp.le.s32.totalorder 1, %s10
    %p178 = scmp.lt.s32.totalorder %s10, 3
    %p179 = pnand %p177, %p178
    %p180 = pneg %p179
    // Predicated region
    $region9: #{transformer_forward.44} parent=5 // pred_check
      _
    $region10: #{transformer_forward.44} parent=5 // pred_check_branch
      %182 = sbr.rel (%p179) target = $region12
    $region11: #{transformer_forward.44} parent=5 // pred_region
      %s183 = ssub.s32 %s10, 1
    $region12: #{transformer_forward.44} parent=5 // pred_fallthru
      _
    %p184 = scmp.lt.s32.totalorder %s10, 2
    // Predicated region
    $region13: #{transformer_forward.44} parent=5 // pred_check
      %p185 = pneg %p184
    $region14: #{transformer_forward.44} parent=5 // pred_check_branch
      %187 = sbr.rel (%p185) target = $region16
    $region15: #{transformer_forward.44} parent=5 // pred_region
      // Predicated region
      $region17: #{transformer_forward.44} parent=15 // pred_check
        %p188 = pneg %p51
      $region18: #{transformer_forward.44} parent=15 // pred_check_branch
        %190 = sbr.rel (%p188) target = $region20
      $region19: #{transformer_forward.44} parent=15 // pred_region
        %p191 = scmp.lt.s32.totalorder %s17, 1
        %s192 = scalar_select %p191, %s17, 1
        %p193 = scmp.lt.s32.totalorder %s18, 0
        %s194 = scalar_select %p193, %s18, 0
        %s195 = sadd.s32 %s194, %s192
        %s196 = smul.addr %s195, 4
        %s197 = scalar_lea.vmem %s0, %s196
      $region20: #{transformer_forward.44} parent=15 // pred_fallthru
        _
      // Predicated region
      $region21: #{transformer_forward.44} parent=15 // pred_check
        %p198 = pneg %p79
      $region22: #{transformer_forward.44} parent=15 // pred_check_branch
        %200 = sbr.rel (%p198) target = $region24
      $region23: #{transformer_forward.44} parent=15 // pred_region
        %p201 = scmp.lt.s32.totalorder %s17, 1
        %s202 = scalar_select %p201, %s17, 1
        %p203 = scmp.lt.s32.totalorder %s19, 0
        %s204 = scalar_select %p203, %s19, 0
        %s205 = smul.addr %s204, 2
        %s206 = smul.addr %s202, 2
        %s207 = sadd.s32 %s205, %s206
        %s208 = smul.addr %s207, 4
        %s209 = scalar_lea.vmem %s1, %s208
      $region24: #{transformer_forward.44} parent=15 // pred_fallthru
        _
      // Predicated region
      $region25: #{transformer_forward.44} parent=15 // pred_check
        %p210 = pneg %p107
      $region26: #{transformer_forward.44} parent=15 // pred_check_branch
        %212 = sbr.rel (%p210) target = $region28
      $region27: #{transformer_forward.44} parent=15 // pred_region
        %p213 = scmp.lt.s32.totalorder %s17, 1
        %s214 = scalar_select %p213, %s17, 1
        %p215 = scmp.lt.s32.totalorder %s19, 0
        %s216 = scalar_select %p215, %s19, 0
        %s217 = smul.addr %s216, 2
        %s218 = sadd.s32 1, %s217
        %s219 = smul.addr %s214, 2
        %s220 = sadd.s32 %s218, %s219
        %s221 = smul.addr %s220, 4
        %s222 = scalar_lea.vmem %s2, %s221
      $region28: #{transformer_forward.44} parent=15 // pred_fallthru
        _
      // Predicated region
      $region29: #{transformer_forward.44} parent=15 // pred_check
        %p223 = pneg %p135
      $region30: #{transformer_forward.44} parent=15 // pred_check_branch
        %225 = sbr.rel (%p223) target = $region32
      $region31: #{transformer_forward.44} parent=15 // pred_region
        %p226 = scmp.lt.s32.totalorder %s17, 1
        %s227 = scalar_select %p226, %s17, 1
        %p228 = scmp.lt.s32.totalorder %s19, 0
        %s229 = scalar_select %p228, %s19, 0
        %s230 = sadd.s32 %s229, %s227
        %s231 = scalar_lea.vmem %s3, %s230
      $region32: #{transformer_forward.44} parent=15 // pred_fallthru
        _
    $region16: #{transformer_forward.44} parent=5 // pred_fallthru
      _
    %p232 = scmp.le.s32.totalorder 1, %s10
    %p233 = scmp.lt.s32.totalorder %s10, 3
    %p234 = pnand %p232, %p233
    %p235 = pneg %p234
    // Predicated region
    $region33: #{transformer_forward.44} parent=5 // pred_check
      _
    $region34: #{transformer_forward.44} parent=5 // pred_check_branch
      %237 = sbr.rel (%p234) target = $region36
    $region35: #{transformer_forward.44} parent=5 // pred_region
      %s238 = ssub.s32 %s10, 1
      %p239 = scmp.lt.s32.totalorder %s20, 1
      %s240 = scalar_select %p239, %s20, 1
      %p241 = scmp.lt.s32.totalorder %s21, 0
      %s242 = scalar_select %p241, %s21, 0
      %s243 = sadd.s32 %s242, %s240
      %s244 = smul.addr %s243, 4
      %s245 = scalar_lea.vmem %s0, %s244
      %p246 = pneg %p57
      %p247 = pneg %p54
      %p248 = scmp.lt.s32.totalorder %s20, 1
      %s249 = scalar_select %p248, %s20, 1
      %p250 = scmp.lt.s32.totalorder %s22, 0
      %s251 = scalar_select %p250, %s22, 0
      %s252 = smul.addr %s251, 2
      %s253 = smul.addr %s249, 2
      %s254 = sadd.s32 %s252, %s253
      %s255 = smul.addr %s254, 4
      %s256 = scalar_lea.vmem %s1, %s255
      %p257 = pneg %p85
      %p258 = pneg %p82
      %p259 = scmp.lt.s32.totalorder %s20, 1
      %s260 = scalar_select %p259, %s20, 1
      %p261 = scmp.lt.s32.totalorder %s22, 0
      %s262 = scalar_select %p261, %s22, 0
      %s263 = smul.addr %s262, 2
      %s264 = sadd.s32 1, %s263
      %s265 = smul.addr %s260, 2
      %s266 = sadd.s32 %s264, %s265
      %s267 = smul.addr %s266, 4
      %s268 = scalar_lea.vmem %s2, %s267
      %p269 = pneg %p113
      %p270 = pneg %p110
      %p271 = scmp.lt.s32.totalorder %s20, 1
      %s272 = scalar_select %p271, %s20, 1
      %p273 = scmp.lt.s32.totalorder %s22, 0
      %s274 = scalar_select %p273, %s22, 0
      %s275 = sadd.s32 %s274, %s272
      %s276 = scalar_lea.vmem %s3, %s275
      %p277 = pneg %p141
      %p278 = pneg %p138
      %p279 = pneg %p169
      %p280 = pneg %p166
      %p281 = scmp.lt.s32.totalorder %s20, 1
      %s282 = scalar_select %p281, %s20, 1
      %p283 = scmp.lt.s32.totalorder %s21, 0
      %s284 = scalar_select %p283, %s21, 0
      %s285 = sadd.s32 %s284, %s282
      %s286 = smul.addr %s285, 4
      %s287 = scalar_lea.vmem %s4, %s286
      %p288 = scmp.lt.s32.totalorder %s20, 1
      %s289 = scalar_select %p288, %s20, 1
      %p290 = scmp.lt.s32.totalorder %s21, 0
      %s291 = scalar_select %p290, %s21, 0
      %s292 = sadd.s32 %s291, %s289
      %s293 = smul.addr %s292, 4
      %s294 = scalar_lea.vmem %s0, %s293
      %p295 = scmp.lt.s32.totalorder %s20, 1
      %s296 = scalar_select %p295, %s20, 1
      %p297 = scmp.lt.s32.totalorder %s22, 0
      %s298 = scalar_select %p297, %s22, 0
      %s299 = smul.addr %s298, 2
      %s300 = smul.addr %s296, 2
      %s301 = sadd.s32 %s299, %s300
      %s302 = smul.addr %s301, 4
      %s303 = scalar_lea.vmem %s1, %s302
      %p304 = scmp.lt.s32.totalorder %s20, 1
      %s305 = scalar_select %p304, %s20, 1
      %p306 = scmp.lt.s32.totalorder %s22, 0
      %s307 = scalar_select %p306, %s22, 0
      %s308 = smul.addr %s307, 2
      %s309 = sadd.s32 1, %s308
      %s310 = smul.addr %s305, 2
      %s311 = sadd.s32 %s309, %s310
      %s312 = smul.addr %s311, 4
      %s313 = scalar_lea.vmem %s2, %s312
      %p314 = scmp.lt.s32.totalorder %s20, 1
      %s315 = scalar_select %p314, %s20, 1
      %p316 = scmp.lt.s32.totalorder %s22, 0
      %s317 = scalar_select %p316, %s22, 0
      %s318 = sadd.s32 %s317, %s315
      %s319 = scalar_lea.vmem %s3, %s318
      %p320 = scmp.lt.s32.totalorder %s20, 1
      %s321 = scalar_select %p320, %s20, 1
      %p322 = scmp.lt.s32.totalorder %s21, 0
      %s323 = scalar_select %p322, %s21, 0
      %s324 = sadd.s32 %s323, %s321
      %s325 = smul.addr %s324, 4
      %s326 = scalar_lea.vmem %s4, %s325
      %p328 = scmp.eq.s32.totalorder %s22, 0
      // Predicated region
      $region37: #{transformer_forward.44} parent=35 // pred_check
        %p329 = pneg %p328
      $region38: #{transformer_forward.44} parent=35 // pred_check_branch
        %331 = sbr.rel (%p329) target = $region40
      $region39: #{transformer_forward.44} parent=35 // pred_region
        %vm332 = vcmask 6144
        %333 = vst.msk [vmem:[#allocation2] sm:$0x7f] %vm332, -inf
        %334 = vst.msk [vmem:[#allocation2 + $0x8] sm:$0x7f] %vm332, -inf
        %335 = vst.msk [vmem:[#allocation2 + $0x10] sm:$0x7f] %vm332, -inf
        %336 = vst.msk [vmem:[#allocation2 + $0x18] sm:$0x7f] %vm332, -inf
        %337 = vst.msk [vmem:[#allocation3] sm:$0x7f] %vm332, 0.0
        %338 = vst.msk [vmem:[#allocation3 + $0x8] sm:$0x7f] %vm332, 0.0
        %339 = vst.msk [vmem:[#allocation3 + $0x10] sm:$0x7f] %vm332, 0.0
        %340 = vst.msk [vmem:[#allocation3 + $0x18] sm:$0x7f] %vm332, 0.0
        %341 = vst [vmem:[#allocation4] sm:$0x7f] 0.0
      $region40: #{transformer_forward.44} parent=35 // pred_fallthru
        _
      %v342 = vld [vmem:[%s319] sm:$0x1]
      %vm343 = vcmp.gt.f32.partialorder %v342, 0.5
      %v344 = vsel %vm343, 1, 0
      %v345 = vlaneseq
      %v346 = vshrl.u32 %v345, 7
      %v347 = vsub.s32 0, %v346
      %v348 = vrot.slane %v344, %v347
      %vm349 = vcmp.eq.s32.totalorder %v348, 1
      %v350 = vld [vmem:[%s294] sm:$0xf]
      %v351 = vld [vmem:[%s303] sm:$0xf]
      %v352 = vld [vmem:[%s313] sm:$0xf]
      %vm353 = vcmask 261120
      %v355 = vsel %vm353, %v350, 0
      %v358 = vsel %vm353, %v351, 0
      %360 = vmatprep.subr.bf16.mxu0 0
      %361 = vmatpush1.bf16.xpose.msra.mxu0 0
      %362 = vmatprep.subr.bf16.mxu0 0
      %363 = vmatpush1.bf16.xpose.msra.mxu0 0
      %364 = vmatprep.subr.bf16.mxu0 0
      %365 = vmatpush1.bf16.xpose.msra.mxu0 0
      %366 = vmatprep.subr.bf16.mxu0 0
      %367 = vmatpush1.bf16.xpose.msra.mxu0 0
      %368 = vmatprep.subr.bf16.mxu0 0
      %369 = vmatpush1.bf16.xpose.msra.mxu0 0
      %370 = vmatprep.subr.bf16.mxu0 0
      %371 = vmatpush1.bf16.xpose.msra.mxu0 0
      %372 = vmatprep.subr.bf16.mxu0 0
      %373 = vmatpush1.bf16.xpose.msra.mxu0 0
      %374 = vmatprep.subr.bf16.mxu0 0
      %375 = vmatpush1.bf16.xpose.msra.mxu0 %v358
      %376 = vmatprep.subr.bf16.mxu0 0
      %377 = vmatpush2.bf16.xpose.msra.mxu0 0
      %378 = vmatprep.subr.bf16.mxu0 0
      %379 = vmatpush2.bf16.xpose.msra.mxu0 0
      %380 = vmatprep.subr.bf16.mxu0 0
      %381 = vmatpush2.bf16.xpose.msra.mxu0 0
      %382 = vmatprep.subr.bf16.mxu0 0
      %383 = vmatpush2.bf16.xpose.msra.mxu0 0
      %384 = vmatprep.subr.bf16.mxu0 0
      %385 = vmatpush2.bf16.xpose.msra.mxu0 0
      %386 = vmatprep.subr.bf16.mxu0 0
      %387 = vmatpush2.bf16.xpose.msra.mxu0 0
      %388 = vmatprep.subr.bf16.mxu0 0
      %389 = vmatpush2.bf16.xpose.msra.mxu0 0
      %390 = vmatprep.subr.bf16.mxu0 0
      %391 = vmatpush2.bf16.xpose.msra.mxu0 0
      %392 = vmatprep.mubr.bf16.mxu0 0
      %393 = vmatmul.mubr.bf16.gmra.mxu0 %v355
      %v394 = vpop.f32.mrf.mxu0
      %v395 = vadd.f32 0.0, %v394
      %v396 = vpop.f32.mrf.mxu0
      %v397 = vpop.f32.mrf.mxu0
      %v398 = vpop.f32.mrf.mxu0
      %399 = vdwg.mxu0
      %v400 = vmul.f32 %v395, 0.17677669
      %v401 = vsel %vm349, -1e+09, %v400
      %v402 = vld [vmem:[#allocation2] sm:$0x7f]
      %vm403 = vcmask 63488
      %v404 = vsel %vm403, %v401, -inf
      %405 = vmax.xlane.f32.xlu0 %v404
      %v406 = vpop.xlane.xlu0 %405
      %v407 = vmax.f32 %v402, %v406
      %v408 = vsub.f32 %v402, %v407
      %v409 = vmul.f32 %v408, 1.442695
      %v410 = vpow.pop %v409
      %412 = vset.pattern.permute.xlu0 0
      %413 = vperm.xlu0 %412, %v407
      %v414 = vpop.permute.xlu0 %413
      %v416 = vsub.f32 %v401, %v414
      %v417 = vmul.f32 %v416, 1.442695
      %v418 = vpow.pop %v417
      %v419 = vld [vmem:[#allocation3] sm:$0x7f]
      %v420 = vmul.f32 %v410, %v419
      %v421 = vsel %vm403, %v418, 0.0
      %422 = vadd.xlane.f32.xlu0 %v421
      %v423 = vpop.xlane.xlu0 %422
      %v424 = vadd.f32 %v420, %v423
      %vm425 = vcmask 6144
      %426 = vst.msk [vmem:[#allocation3] sm:$0x7f] %vm425, %v424
      %v427 = vld [vmem:[#allocation4] sm:$0x7f]
      %429 = vset.pattern.permute.xlu0 0
      %430 = vperm.xlu0 %429, %v410
      %v431 = vpop.permute.xlu0 %430
      %v433 = vmul.f32 %v431, %v427
      %v434 = vpack.c.bf16 %v418, %v418
      %vm435 = vcmask 64512
      %v437 = vsel %vm435, %v434, 0
      %vm439 = vcmask 1043456
      %v441 = vsel %vm439, %v352, 0
      %443 = vmatprep.subr.bf16.mxu0 0
      %444 = vmatpush1.bf16.msra.mxu0 0
      %445 = vmatprep.subr.bf16.mxu0 0
      %446 = vmatpush1.bf16.msra.mxu0 0
      %447 = vmatprep.subr.bf16.mxu0 0
      %448 = vmatpush1.bf16.msra.mxu0 0
      %449 = vmatprep.subr.bf16.mxu0 0
      %450 = vmatpush1.bf16.msra.mxu0 0
      %451 = vmatprep.subr.bf16.mxu0 0
      %452 = vmatpush1.bf16.msra.mxu0 0
      %453 = vmatprep.subr.bf16.mxu0 0
      %454 = vmatpush1.bf16.msra.mxu0 0
      %455 = vmatprep.subr.bf16.mxu0 0
      %456 = vmatpush1.bf16.msra.mxu0 0
      %457 = vmatprep.subr.bf16.mxu0 0
      %458 = vmatpush1.bf16.msra.mxu0 %v441
      %459 = vmatprep.subr.bf16.mxu0 0
      %460 = vmatpush2.bf16.msra.mxu0 0
      %461 = vmatprep.subr.bf16.mxu0 0
      %462 = vmatpush2.bf16.msra.mxu0 0
      %463 = vmatprep.subr.bf16.mxu0 0
      %464 = vmatpush2.bf16.msra.mxu0 0
      %465 = vmatprep.subr.bf16.mxu0 0
      %466 = vmatpush2.bf16.msra.mxu0 0
      %467 = vmatprep.subr.bf16.mxu0 0
      %468 = vmatpush2.bf16.msra.mxu0 0
      %469 = vmatprep.subr.bf16.mxu0 0
      %470 = vmatpush2.bf16.msra.mxu0 0
      %471 = vmatprep.subr.bf16.mxu0 0
      %472 = vmatpush2.bf16.msra.mxu0 0
      %473 = vmatprep.subr.bf16.mxu0 0
      %474 = vmatpush2.bf16.msra.mxu0 0
      %475 = vmatprep.mubr.bf16.mxu0 0
      %476 = vmatmul.mubr.bf16.gmra.mxu0 %v437
      %v477 = vpop.f32.mrf.mxu0
      %v478 = vadd.f32 0.0, %v477
      %v479 = vpop.f32.mrf.mxu0
      %v480 = vpop.f32.mrf.mxu0
      %v481 = vpop.f32.mrf.mxu0
      %482 = vdwg.mxu0
      %v483 = vadd.f32 %v433, %v478
      %vm484 = vcmask 260096
      %485 = vst.msk [vmem:[#allocation4] sm:$0x7f] %vm484, %v483
      %486 = vst.msk [vmem:[#allocation2] sm:$0x7f] %vm425, %v407
      %v487 = vld [vmem:[%s294] sm:$0xf]
      %v488 = vld [vmem:[%s303] sm:$0xf]
      %v489 = vld [vmem:[%s313] sm:$0xf]
      %v491 = vunpack.c.l.b16 %v487
      %v492 = vpack.c.b16 %v491, %v491
      %493 = vrot.lane.b32.xlu0 %v492, 96
      %v494 = vpop.permute.xlu0 %493
      %v496 = vunpack.c.l.b16 %v488
      %v497 = vpack.c.b16 %v496, %v496
      %498 = vrot.lane.b32.xlu0 %v497, 96
      %v499 = vpop.permute.xlu0 %498
      %v501 = vsel %vm353, %v494, 0
      %v504 = vsel %vm353, %v499, 0
      %506 = vmatprep.subr.bf16.mxu0 0
      %507 = vmatpush1.bf16.xpose.msra.mxu0 0
      %508 = vmatprep.subr.bf16.mxu0 0
      %509 = vmatpush1.bf16.xpose.msra.mxu0 0
      %510 = vmatprep.subr.bf16.mxu0 0
      %511 = vmatpush1.bf16.xpose.msra.mxu0 0
      %512 = vmatprep.subr.bf16.mxu0 0
      %513 = vmatpush1.bf16.xpose.msra.mxu0 0
      %514 = vmatprep.subr.bf16.mxu0 0
      %515 = vmatpush1.bf16.xpose.msra.mxu0 0
      %516 = vmatprep.subr.bf16.mxu0 0
      %517 = vmatpush1.bf16.xpose.msra.mxu0 0
      %518 = vmatprep.subr.bf16.mxu0 0
      %519 = vmatpush1.bf16.xpose.msra.mxu0 0
      %520 = vmatprep.subr.bf16.mxu0 0
      %521 = vmatpush1.bf16.xpose.msra.mxu0 %v504
      %522 = vmatprep.subr.bf16.mxu0 0
      %523 = vmatpush2.bf16.xpose.msra.mxu0 0
      %524 = vmatprep.subr.bf16.mxu0 0
      %525 = vmatpush2.bf16.xpose.msra.mxu0 0
      %526 = vmatprep.subr.bf16.mxu0 0
      %527 = vmatpush2.bf16.xpose.msra.mxu0 0
      %528 = vmatprep.subr.bf16.mxu0 0
      %529 = vmatpush2.bf16.xpose.msra.mxu0 0
      %530 = vmatprep.subr.bf16.mxu0 0
      %531 = vmatpush2.bf16.xpose.msra.mxu0 0
      %532 = vmatprep.subr.bf16.mxu0 0
      %533 = vmatpush2.bf16.xpose.msra.mxu0 0
      %534 = vmatprep.subr.bf16.mxu0 0
      %535 = vmatpush2.bf16.xpose.msra.mxu0 0
      %536 = vmatprep.subr.bf16.mxu0 0
      %537 = vmatpush2.bf16.xpose.msra.mxu0 0
      %538 = vmatprep.mubr.bf16.mxu0 0
      %539 = vmatmul.mubr.bf16.gmra.mxu0 %v501
      %v540 = vpop.f32.mrf.mxu0
      %v541 = vadd.f32 0.0, %v540
      %v542 = vpop.f32.mrf.mxu0
      %v543 = vpop.f32.mrf.mxu0
      %v544 = vpop.f32.mrf.mxu0
      %545 = vdwg.mxu0
      %v546 = vmul.f32 %v541, 0.17677669
      %v547 = vsel %vm349, -1e+09, %v546
      %s548 = scalar_lea.vmem [#allocation2], 8
      %v549 = vld [vmem:[%s548] sm:$0x7f]
      %v550 = vsel %vm403, %v547, -inf
      %551 = vmax.xlane.f32.xlu0 %v550
      %v552 = vpop.xlane.xlu0 %551
      %v553 = vmax.f32 %v549, %v552
      %v554 = vsub.f32 %v549, %v553
      %v555 = vmul.f32 %v554, 1.442695
      %v556 = vpow.pop %v555
      %558 = vset.pattern.permute.xlu0 0
      %559 = vperm.xlu0 %558, %v553
      %v560 = vpop.permute.xlu0 %559
      %v562 = vsub.f32 %v547, %v560
      %v563 = vmul.f32 %v562, 1.442695
      %v564 = vpow.pop %v563
      %s565 = scalar_lea.vmem [#allocation3], 8
      %v566 = vld [vmem:[%s565] sm:$0x7f]
      %v567 = vmul.f32 %v556, %v566
      %v568 = vsel %vm403, %v564, 0.0
      %569 = vadd.xlane.f32.xlu0 %v568
      %v570 = vpop.xlane.xlu0 %569
      %v571 = vadd.f32 %v567, %v570
      %572 = vst.msk [vmem:[%s565] sm:$0x7f] %vm425, %v571
      %v573 = vld [vmem:[#allocation4] sm:$0x7f]
      %575 = vset.pattern.permute.xlu0 0
      %576 = vperm.xlu0 %575, %v556
      %v577 = vpop.permute.xlu0 %576
      %v579 = vmul.f32 %v577, %v573
      %v580 = vpack.c.bf16 %v564, %v564
      %v582 = vunpack.c.l.b16 %v489
      %v583 = vpack.c.b16 %v582, %v582
      %584 = vrot.lane.b32.xlu0 %v583, 96
      %v585 = vpop.permute.xlu0 %584
      %v587 = vsel %vm435, %v580, 0
      %v590 = vsel %vm439, %v585, 0
      %592 = vmatprep.subr.bf16.mxu0 0
      %593 = vmatpush1.bf16.msra.mxu0 0
      %594 = vmatprep.subr.bf16.mxu0 0
      %595 = vmatpush1.bf16.msra.mxu0 0
      %596 = vmatprep.subr.bf16.mxu0 0
      %597 = vmatpush1.bf16.msra.mxu0 0
      %598 = vmatprep.subr.bf16.mxu0 0
      %599 = vmatpush1.bf16.msra.mxu0 0
      %600 = vmatprep.subr.bf16.mxu0 0
      %601 = vmatpush1.bf16.msra.mxu0 0
      %602 = vmatprep.subr.bf16.mxu0 0
      %603 = vmatpush1.bf16.msra.mxu0 0
      %604 = vmatprep.subr.bf16.mxu0 0
      %605 = vmatpush1.bf16.msra.mxu0 0
      %606 = vmatprep.subr.bf16.mxu0 0
      %607 = vmatpush1.bf16.msra.mxu0 %v590
      %608 = vmatprep.subr.bf16.mxu0 0
      %609 = vmatpush2.bf16.msra.mxu0 0
      %610 = vmatprep.subr.bf16.mxu0 0
      %611 = vmatpush2.bf16.msra.mxu0 0
      %612 = vmatprep.subr.bf16.mxu0 0
      %613 = vmatpush2.bf16.msra.mxu0 0
      %614 = vmatprep.subr.bf16.mxu0 0
      %615 = vmatpush2.bf16.msra.mxu0 0
      %616 = vmatprep.subr.bf16.mxu0 0
      %617 = vmatpush2.bf16.msra.mxu0 0
      %618 = vmatprep.subr.bf16.mxu0 0
      %619 = vmatpush2.bf16.msra.mxu0 0
      %620 = vmatprep.subr.bf16.mxu0 0
      %621 = vmatpush2.bf16.msra.mxu0 0
      %622 = vmatprep.subr.bf16.mxu0 0
      %623 = vmatpush2.bf16.msra.mxu0 0
      %624 = vmatprep.mubr.bf16.mxu0 0
      %625 = vmatmul.mubr.bf16.gmra.mxu0 %v587
      %v626 = vpop.f32.mrf.mxu0
      %v627 = vadd.f32 0.0, %v626
      %v628 = vpop.f32.mrf.mxu0
      %v629 = vpop.f32.mrf.mxu0
      %v630 = vpop.f32.mrf.mxu0
      %631 = vdwg.mxu0
      %633 = vrot.lane.b32.xlu0 %v627, 32
      %v634 = vpop.permute.xlu0 %633
      %v636 = vadd.f32 %v579, %v634
      %vm637 = vcmask 522496
      %638 = vst.msk [vmem:[#allocation4] sm:$0x7f] %vm637, %v636
      %639 = vst.msk [vmem:[%s548] sm:$0x7f] %vm425, %v553
      %v640 = vld [vmem:[%s294] sm:$0xf]
      %v641 = vld [vmem:[%s303] sm:$0xf]
      %v642 = vld [vmem:[%s313] sm:$0xf]
      %v644 = vunpack.c.l.b16 %v640
      %v645 = vpack.c.b16 %v644, %v644
      %646 = vrot.lane.b32.xlu0 %v645, 64
      %v647 = vpop.permute.xlu0 %646
      %v649 = vunpack.c.l.b16 %v641
      %v650 = vpack.c.b16 %v649, %v649
      %651 = vrot.lane.b32.xlu0 %v650, 64
      %v652 = vpop.permute.xlu0 %651
      %v654 = vsel %vm353, %v647, 0
      %v657 = vsel %vm353, %v652, 0
      %659 = vmatprep.subr.bf16.mxu0 0
      %660 = vmatpush1.bf16.xpose.msra.mxu0 0
      %661 = vmatprep.subr.bf16.mxu0 0
      %662 = vmatpush1.bf16.xpose.msra.mxu0 0
      %663 = vmatprep.subr.bf16.mxu0 0
      %664 = vmatpush1.bf16.xpose.msra.mxu0 0
      %665 = vmatprep.subr.bf16.mxu0 0
      %666 = vmatpush1.bf16.xpose.msra.mxu0 0
      %667 = vmatprep.subr.bf16.mxu0 0
      %668 = vmatpush1.bf16.xpose.msra.mxu0 0
      %669 = vmatprep.subr.bf16.mxu0 0
      %670 = vmatpush1.bf16.xpose.msra.mxu0 0
      %671 = vmatprep.subr.bf16.mxu0 0
      %672 = vmatpush1.bf16.xpose.msra.mxu0 0
      %673 = vmatprep.subr.bf16.mxu0 0
      %674 = vmatpush1.bf16.xpose.msra.mxu0 %v657
      %675 = vmatprep.subr.bf16.mxu0 0
      %676 = vmatpush2.bf16.xpose.msra.mxu0 0
      %677 = vmatprep.subr.bf16.mxu0 0
      %678 = vmatpush2.bf16.xpose.msra.mxu0 0
      %679 = vmatprep.subr.bf16.mxu0 0
      %680 = vmatpush2.bf16.xpose.msra.mxu0 0
      %681 = vmatprep.subr.bf16.mxu0 0
      %682 = vmatpush2.bf16.xpose.msra.mxu0 0
      %683 = vmatprep.subr.bf16.mxu0 0
      %684 = vmatpush2.bf16.xpose.msra.mxu0 0
      %685 = vmatprep.subr.bf16.mxu0 0
      %686 = vmatpush2.bf16.xpose.msra.mxu0 0
      %687 = vmatprep.subr.bf16.mxu0 0
      %688 = vmatpush2.bf16.xpose.msra.mxu0 0
      %689 = vmatprep.subr.bf16.mxu0 0
      %690 = vmatpush2.bf16.xpose.msra.mxu0 0
      %691 = vmatprep.mubr.bf16.mxu0 0
      %692 = vmatmul.mubr.bf16.gmra.mxu0 %v654
      %v693 = vpop.f32.mrf.mxu0
      %v694 = vadd.f32 0.0, %v693
      %v695 = vpop.f32.mrf.mxu0
      %v696 = vpop.f32.mrf.mxu0
      %v697 = vpop.f32.mrf.mxu0
      %698 = vdwg.mxu0
      %v699 = vmul.f32 %v694, 0.17677669
      %v700 = vsel %vm349, -1e+09, %v699
      %s701 = scalar_lea.vmem [#allocation2], 16
      %v702 = vld [vmem:[%s701] sm:$0x7f]
      %v703 = vsel %vm403, %v700, -inf
      %704 = vmax.xlane.f32.xlu0 %v703
      %v705 = vpop.xlane.xlu0 %704
      %v706 = vmax.f32 %v702, %v705
      %v707 = vsub.f32 %v702, %v706
      %v708 = vmul.f32 %v707, 1.442695
      %v709 = vpow.pop %v708
      %711 = vset.pattern.permute.xlu0 0
      %712 = vperm.xlu0 %711, %v706
      %v713 = vpop.permute.xlu0 %712
      %v715 = vsub.f32 %v700, %v713
      %v716 = vmul.f32 %v715, 1.442695
      %v717 = vpow.pop %v716
      %s718 = scalar_lea.vmem [#allocation3], 16
      %v719 = vld [vmem:[%s718] sm:$0x7f]
      %v720 = vmul.f32 %v709, %v719
      %v721 = vsel %vm403, %v717, 0.0
      %722 = vadd.xlane.f32.xlu0 %v721
      %v723 = vpop.xlane.xlu0 %722
      %v724 = vadd.f32 %v720, %v723
      %725 = vst.msk [vmem:[%s718] sm:$0x7f] %vm425, %v724
      %v726 = vld [vmem:[#allocation4] sm:$0x7f]
      %728 = vset.pattern.permute.xlu0 0
      %729 = vperm.xlu0 %728, %v709
      %v730 = vpop.permute.xlu0 %729
      %v732 = vmul.f32 %v730, %v726
      %v733 = vpack.c.bf16 %v717, %v717
      %v735 = vunpack.c.l.b16 %v642
      %v736 = vpack.c.b16 %v735, %v735
      %737 = vrot.lane.b32.xlu0 %v736, 64
      %v738 = vpop.permute.xlu0 %737
      %v740 = vsel %vm435, %v733, 0
      %v743 = vsel %vm439, %v738, 0
      %745 = vmatprep.subr.bf16.mxu0 0
      %746 = vmatpush1.bf16.msra.mxu0 0
      %747 = vmatprep.subr.bf16.mxu0 0
      %748 = vmatpush1.bf16.msra.mxu0 0
      %749 = vmatprep.subr.bf16.mxu0 0
      %750 = vmatpush1.bf16.msra.mxu0 0
      %751 = vmatprep.subr.bf16.mxu0 0
      %752 = vmatpush1.bf16.msra.mxu0 0
      %753 = vmatprep.subr.bf16.mxu0 0
      %754 = vmatpush1.bf16.msra.mxu0 0
      %755 = vmatprep.subr.bf16.mxu0 0
      %756 = vmatpush1.bf16.msra.mxu0 0
      %757 = vmatprep.subr.bf16.mxu0 0
      %758 = vmatpush1.bf16.msra.mxu0 0
      %759 = vmatprep.subr.bf16.mxu0 0
      %760 = vmatpush1.bf16.msra.mxu0 %v743
      %761 = vmatprep.subr.bf16.mxu0 0
      %762 = vmatpush2.bf16.msra.mxu0 0
      %763 = vmatprep.subr.bf16.mxu0 0
      %764 = vmatpush2.bf16.msra.mxu0 0
      %765 = vmatprep.subr.bf16.mxu0 0
      %766 = vmatpush2.bf16.msra.mxu0 0
      %767 = vmatprep.subr.bf16.mxu0 0
      %768 = vmatpush2.bf16.msra.mxu0 0
      %769 = vmatprep.subr.bf16.mxu0 0
      %770 = vmatpush2.bf16.msra.mxu0 0
      %771 = vmatprep.subr.bf16.mxu0 0
      %772 = vmatpush2.bf16.msra.mxu0 0
      %773 = vmatprep.subr.bf16.mxu0 0
      %774 = vmatpush2.bf16.msra.mxu0 0
      %775 = vmatprep.subr.bf16.mxu0 0
      %776 = vmatpush2.bf16.msra.mxu0 0
      %777 = vmatprep.mubr.bf16.mxu0 0
      %778 = vmatmul.mubr.bf16.gmra.mxu0 %v740
      %v779 = vpop.f32.mrf.mxu0
      %v780 = vadd.f32 0.0, %v779
      %v781 = vpop.f32.mrf.mxu0
      %v782 = vpop.f32.mrf.mxu0
      %v783 = vpop.f32.mrf.mxu0
      %784 = vdwg.mxu0
      %786 = vrot.lane.b32.xlu0 %v780, 64
      %v787 = vpop.permute.xlu0 %786
      %v789 = vadd.f32 %v732, %v787
      %vm790 = vcmask 784896
      %791 = vst.msk [vmem:[#allocation4] sm:$0x7f] %vm790, %v789
      %792 = vst.msk [vmem:[%s701] sm:$0x7f] %vm425, %v706
      %v793 = vld [vmem:[%s294] sm:$0xf]
      %v794 = vld [vmem:[%s303] sm:$0xf]
      %v795 = vld [vmem:[%s313] sm:$0xf]
      %v797 = vunpack.c.l.b16 %v793
      %v798 = vpack.c.b16 %v797, %v797
      %799 = vrot.lane.b32.xlu0 %v798, 32
      %v800 = vpop.permute.xlu0 %799
      %v802 = vunpack.c.l.b16 %v794
      %v803 = vpack.c.b16 %v802, %v802
      %804 = vrot.lane.b32.xlu0 %v803, 32
      %v805 = vpop.permute.xlu0 %804
      %v807 = vsel %vm353, %v800, 0
      %v810 = vsel %vm353, %v805, 0
      %812 = vmatprep.subr.bf16.mxu0 0
      %813 = vmatpush1.bf16.xpose.msra.mxu0 0
      %814 = vmatprep.subr.bf16.mxu0 0
      %815 = vmatpush1.bf16.xpose.msra.mxu0 0
      %816 = vmatprep.subr.bf16.mxu0 0
      %817 = vmatpush1.bf16.xpose.msra.mxu0 0
      %818 = vmatprep.subr.bf16.mxu0 0
      %819 = vmatpush1.bf16.xpose.msra.mxu0 0
      %820 = vmatprep.subr.bf16.mxu0 0
      %821 = vmatpush1.bf16.xpose.msra.mxu0 0
      %822 = vmatprep.subr.bf16.mxu0 0
      %823 = vmatpush1.bf16.xpose.msra.mxu0 0
      %824 = vmatprep.subr.bf16.mxu0 0
      %825 = vmatpush1.bf16.xpose.msra.mxu0 0
      %826 = vmatprep.subr.bf16.mxu0 0
      %827 = vmatpush1.bf16.xpose.msra.mxu0 %v810
      %828 = vmatprep.subr.bf16.mxu0 0
      %829 = vmatpush2.bf16.xpose.msra.mxu0 0
      %830 = vmatprep.subr.bf16.mxu0 0
      %831 = vmatpush2.bf16.xpose.msra.mxu0 0
      %832 = vmatprep.subr.bf16.mxu0 0
      %833 = vmatpush2.bf16.xpose.msra.mxu0 0
      %834 = vmatprep.subr.bf16.mxu0 0
      %835 = vmatpush2.bf16.xpose.msra.mxu0 0
      %836 = vmatprep.subr.bf16.mxu0 0
      %837 = vmatpush2.bf16.xpose.msra.mxu0 0
      %838 = vmatprep.subr.bf16.mxu0 0
      %839 = vmatpush2.bf16.xpose.msra.mxu0 0
      %840 = vmatprep.subr.bf16.mxu0 0
      %841 = vmatpush2.bf16.xpose.msra.mxu0 0
      %842 = vmatprep.subr.bf16.mxu0 0
      %843 = vmatpush2.bf16.xpose.msra.mxu0 0
      %844 = vmatprep.mubr.bf16.mxu0 0
      %845 = vmatmul.mubr.bf16.gmra.mxu0 %v807
      %v846 = vpop.f32.mrf.mxu0
      %v847 = vadd.f32 0.0, %v846
      %v848 = vpop.f32.mrf.mxu0
      %v849 = vpop.f32.mrf.mxu0
      %v850 = vpop.f32.mrf.mxu0
      %851 = vdwg.mxu0
      %v852 = vmul.f32 %v847, 0.17677669
      %v853 = vsel %vm349, -1e+09, %v852
      %s854 = scalar_lea.vmem [#allocation2], 24
      %v855 = vld [vmem:[%s854] sm:$0x7f]
      %v856 = vsel %vm403, %v853, -inf
      %857 = vmax.xlane.f32.xlu0 %v856
      %v858 = vpop.xlane.xlu0 %857
      %v859 = vmax.f32 %v855, %v858
      %v860 = vsub.f32 %v855, %v859
      %v861 = vmul.f32 %v860, 1.442695
      %v862 = vpow.pop %v861
      %864 = vset.pattern.permute.xlu0 0
      %865 = vperm.xlu0 %864, %v859
      %v866 = vpop.permute.xlu0 %865
      %v868 = vsub.f32 %v853, %v866
      %v869 = vmul.f32 %v868, 1.442695
      %v870 = vpow.pop %v869
      %s871 = scalar_lea.vmem [#allocation3], 24
      %v872 = vld [vmem:[%s871] sm:$0x7f]
      %v873 = vmul.f32 %v862, %v872
      %v874 = vsel %vm403, %v870, 0.0
      %875 = vadd.xlane.f32.xlu0 %v874
      %v876 = vpop.xlane.xlu0 %875
      %v877 = vadd.f32 %v873, %v876
      %878 = vst.msk [vmem:[%s871] sm:$0x7f] %vm425, %v877
      %v879 = vld [vmem:[#allocation4] sm:$0x7f]
      %881 = vset.pattern.permute.xlu0 0
      %882 = vperm.xlu0 %881, %v862
      %v883 = vpop.permute.xlu0 %882
      %v885 = vmul.f32 %v883, %v879
      %v886 = vpack.c.bf16 %v870, %v870
      %v888 = vunpack.c.l.b16 %v795
      %v889 = vpack.c.b16 %v888, %v888
      %890 = vrot.lane.b32.xlu0 %v889, 32
      %v891 = vpop.permute.xlu0 %890
      %v893 = vsel %vm435, %v886, 0
      %v896 = vsel %vm439, %v891, 0
      %898 = vmatprep.subr.bf16.mxu0 0
      %899 = vmatpush1.bf16.msra.mxu0 0
      %900 = vmatprep.subr.bf16.mxu0 0
      %901 = vmatpush1.bf16.msra.mxu0 0
      %902 = vmatprep.subr.bf16.mxu0 0
      %903 = vmatpush1.bf16.msra.mxu0 0
      %904 = vmatprep.subr.bf16.mxu0 0
      %905 = vmatpush1.bf16.msra.mxu0 0
      %906 = vmatprep.subr.bf16.mxu0 0
      %907 = vmatpush1.bf16.msra.mxu0 0
      %908 = vmatprep.subr.bf16.mxu0 0
      %909 = vmatpush1.bf16.msra.mxu0 0
      %910 = vmatprep.subr.bf16.mxu0 0
      %911 = vmatpush1.bf16.msra.mxu0 0
      %912 = vmatprep.subr.bf16.mxu0 0
      %913 = vmatpush1.bf16.msra.mxu0 %v896
      %914 = vmatprep.subr.bf16.mxu0 0
      %915 = vmatpush2.bf16.msra.mxu0 0
      %916 = vmatprep.subr.bf16.mxu0 0
      %917 = vmatpush2.bf16.msra.mxu0 0
      %918 = vmatprep.subr.bf16.mxu0 0
      %919 = vmatpush2.bf16.msra.mxu0 0
      %920 = vmatprep.subr.bf16.mxu0 0
      %921 = vmatpush2.bf16.msra.mxu0 0
      %922 = vmatprep.subr.bf16.mxu0 0
      %923 = vmatpush2.bf16.msra.mxu0 0
      %924 = vmatprep.subr.bf16.mxu0 0
      %925 = vmatpush2.bf16.msra.mxu0 0
      %926 = vmatprep.subr.bf16.mxu0 0
      %927 = vmatpush2.bf16.msra.mxu0 0
      %928 = vmatprep.subr.bf16.mxu0 0
      %929 = vmatpush2.bf16.msra.mxu0 0
      %930 = vmatprep.mubr.bf16.mxu0 0
      %931 = vmatmul.mubr.bf16.gmra.mxu0 %v893
      %v932 = vpop.f32.mrf.mxu0
      %v933 = vadd.f32 0.0, %v932
      %v934 = vpop.f32.mrf.mxu0
      %v935 = vpop.f32.mrf.mxu0
      %v936 = vpop.f32.mrf.mxu0
      %937 = vdwg.mxu0
      %939 = vrot.lane.b32.xlu0 %v933, 96
      %v940 = vpop.permute.xlu0 %939
      %v942 = vadd.f32 %v885, %v940
      %vm943 = vcmask 1047296
      %944 = vst.msk [vmem:[#allocation4] sm:$0x7f] %vm943, %v942
      %945 = vst.msk [vmem:[%s854] sm:$0x7f] %vm425, %v859
      // Predicated region
      $region41: #{transformer_forward.44} parent=35 // pred_check
        %p946 = pneg %p328
      $region42: #{transformer_forward.44} parent=35 // pred_check_branch
        %948 = sbr.rel (%p946) target = $region44
      $region43: #{transformer_forward.44} parent=35 // pred_region
        %v949 = vld [vmem:[#allocation3] sm:$0x7f]
        %v950 = vrcp.pop %v949
        %v951 = vld [vmem:[#allocation4] sm:$0x7f]
        %953 = vset.pattern.permute.xlu0 0
        %954 = vperm.xlu0 %953, %v950
        %v955 = vpop.permute.xlu0 %954
        %v957 = vmul.f32 %v951, %v955
        %v958 = vpack.c.bf16 %v957, %v957
        %vm959 = vcmask 257024
        %vm960 = vsmask.f32 3328
        %vm961 = vmand %vm959, %vm960
        %v962 = vld [vmem:[%s326] sm:$0xf]
        %v963 = vsel %vm961, %v958, %v962
        %964 = vst [vmem:[%s326] sm:$0xf] %v963
        %v965 = vld [vmem:[%s565] sm:$0x7f]
        %v966 = vrcp.pop %v965
        %v967 = vld [vmem:[#allocation4] sm:$0x7f]
        %969 = vset.pattern.permute.xlu0 0
        %970 = vperm.xlu0 %969, %v966
        %v971 = vpop.permute.xlu0 %970
        %v973 = vmul.f32 %v967, %v971
        %v974 = vpack.c.bf16 %v973, %v973
        %vm975 = vcmask 519424
        %vm976 = vmand %vm975, %vm960
        %v977 = vld [vmem:[%s326] sm:$0xf]
        %v978 = vsel %vm976, %v974, %v977
        %979 = vst [vmem:[%s326] sm:$0xf] %v978
        %v980 = vld [vmem:[%s718] sm:$0x7f]
        %v981 = vrcp.pop %v980
        %v982 = vld [vmem:[#allocation4] sm:$0x7f]
        %984 = vset.pattern.permute.xlu0 0
        %985 = vperm.xlu0 %984, %v981
        %v986 = vpop.permute.xlu0 %985
        %v988 = vmul.f32 %v982, %v986
        %v989 = vpack.c.bf16 %v988, %v988
        %vm990 = vcmask 781824
        %vm991 = vmand %vm990, %vm960
        %v992 = vld [vmem:[%s326] sm:$0xf]
        %v993 = vsel %vm991, %v989, %v992
        %994 = vst [vmem:[%s326] sm:$0xf] %v993
        %v995 = vld [vmem:[%s871] sm:$0x7f]
        %v996 = vrcp.pop %v995
        %v997 = vld [vmem:[#allocation4] sm:$0x7f]
        %999 = vset.pattern.permute.xlu0 0
        %1000 = vperm.xlu0 %999, %v996
        %v1001 = vpop.permute.xlu0 %1000
        %v1003 = vmul.f32 %v997, %v1001
        %v1004 = vpack.c.bf16 %v1003, %v1003
        %vm1005 = vcmask 1044224
        %vm1006 = vmand %vm1005, %vm960
        %v1007 = vld [vmem:[%s326] sm:$0xf]
        %v1008 = vsel %vm1006, %v1004, %v1007
        %1009 = vst [vmem:[%s326] sm:$0xf] %v1008
      $region44: #{transformer_forward.44} parent=35 // pred_fallthru
        _
      %p1010 = scmp.lt.s32.totalorder %s20, 1
      %s1011 = scalar_select %p1010, %s20, 1
      %p1012 = scmp.lt.s32.totalorder %s21, 0
      %s1013 = scalar_select %p1012, %s21, 0
      %s1014 = sadd.s32 %s1013, %s1011
      %s1015 = smul.addr %s1014, 4
      %s1016 = scalar_lea.vmem %s4, %s1015
      // Predicated region
      $region45: #{transformer_forward.44} parent=35 // pred_check
        %p1017 = pneg %p166
      $region46: #{transformer_forward.44} parent=35 // pred_check_branch
        %1019 = sbr.rel (%p1017) target = $region48
      $region47: #{transformer_forward.44} parent=35 // pred_region
        _
      $region48: #{transformer_forward.44} parent=35 // pred_fallthru
        _
    $region36: #{transformer_forward.44} parent=5 // pred_fallthru
      _
    %p1020 = scmp.le.s32.totalorder 2, %s10
    // Predicated region
    $region49: #{transformer_forward.44} parent=5 // pred_check
      %p1021 = pneg %p1020
    $region50: #{transformer_forward.44} parent=5 // pred_check_branch
      %1023 = sbr.rel (%p1021) target = $region52
    $region51: #{transformer_forward.44} parent=5 // pred_region
      %s1024 = ssub.s32 %s10, 2
      // Predicated region
      $region53: #{transformer_forward.44} parent=51 // pred_check
        %p1025 = pneg %p172
      $region54: #{transformer_forward.44} parent=51 // pred_check_branch
        %1027 = sbr.rel (%p1025) target = $region56
      $region55: #{transformer_forward.44} parent=51 // pred_region
        %p1028 = scmp.lt.s32.totalorder %s23, 1
        %s1029 = scalar_select %p1028, %s23, 1
        %p1030 = scmp.lt.s32.totalorder %s24, 0
        %s1031 = scalar_select %p1030, %s24, 0
        %s1032 = sadd.s32 %s1031, %s1029
        %s1033 = smul.addr %s1032, 4
        %s1034 = scalar_lea.vmem %s4, %s1033
      $region56: #{transformer_forward.44} parent=51 // pred_fallthru
        _
    $region52: #{transformer_forward.44} parent=5 // pred_fallthru
      _
  $region6: #{transformer_forward.44} parent=0 // loop_footer
    %s14 = sadd.s32 1, %s10
  $region7: #{transformer_forward.44} parent=0 // loop_footer_branch
    %9 = sbr.rel target = $region3
  $region8: #{transformer_forward.44} parent=0 // loop_exit
    _

// kernel: transformer_forward.57
$region0: #{transformer_forward.57}
  #allocation0 [shape = 'u32[]', space=smem, size = 0x4, offset = 0x4, fixed_abs, tag = 'smem constant byte address 0x4 - core index']
  #allocation1 [shape = 'u32[144,128]{1,0:T(1,128)}', space=vmem, size = 0x12000, scoped, tag = 'internal scratch']
  #allocation2 [shape = 'f32[14,128]{1,0:T(8,128)}', space=vmem, size = 0x2000, scoped, tag = 'scratch operand']
  %s0 = inlined_call_operand.vmem [shape: bf16[14,128], index: 0, kind: input, shape index: {}]
  %s1 = inlined_call_operand.vmem [shape: bf16[128,128], index: 1, kind: input, shape index: {}]
  %s2 = inlined_call_operand.vmem [shape: f32[1,128], index: 2, kind: input, shape index: {}]
  %s3 = inlined_call_operand.vmem [shape: f32[14,128], index: 3, kind: output, shape index: {}]
  %s4 = sld [smem:[#allocation0]]
  $region30: #{transformer_forward.57} parent=0
    _
  %s6 = ssub.s32 1, %s4
  %s7 = scalar_select 0, %s6, %s4
  // Predicated region
  $region2: #{transformer_forward.57} parent=0 // pred_check
    _
  $region3: #{transformer_forward.57} parent=0 // pred_check_branch
    %9 = sbr.rel (0) target = $region5
  $region4: #{transformer_forward.57} parent=0 // pred_region
    _
  $region5: #{transformer_forward.57} parent=0 // pred_fallthru
    _
  // Predicated region
  $region6: #{transformer_forward.57} parent=0 // pred_check
    _
  $region7: #{transformer_forward.57} parent=0 // pred_check_branch
    %11 = sbr.rel (0) target = $region9
  $region8: #{transformer_forward.57} parent=0 // pred_region
    _
  $region9: #{transformer_forward.57} parent=0 // pred_fallthru
    _
  // Predicated region
  $region10: #{transformer_forward.57} parent=0 // pred_check
    _
  $region11: #{transformer_forward.57} parent=0 // pred_check_branch
    %13 = sbr.rel (0) target = $region13
  $region12: #{transformer_forward.57} parent=0 // pred_region
    _
  $region13: #{transformer_forward.57} parent=0 // pred_fallthru
    _
  %p15 = scmp.eq.s32.totalorder 0, 0
  // Predicated region
  $region14: #{transformer_forward.57} parent=0 // pred_check
    %p16 = pneg %p15
  $region15: #{transformer_forward.57} parent=0 // pred_check_branch
    %18 = sbr.rel (%p16) target = $region17
  $region16: #{transformer_forward.57} parent=0 // pred_region
    %19 = vst [vmem:[#allocation2] sm:$0xff] 0.0
    %20 = vst [vmem:[#allocation2 + $0x8] sm:$0x3f] 0.0
  $region17: #{transformer_forward.57} parent=0 // pred_fallthru
    _
  %v21 = vld [vmem:[#allocation2] sm:$0xff]
  %v22 = vld [vmem:[#allocation2 + $0x8] sm:$0x3f]
  %v23 = vld [vmem:[%s0] sm:$0xf]
  %v24 = vld [vmem:[%s0 + $0x4] sm:$0x7]
  %v25 = vld [vmem:[%s1] sm:$0xf]
  %v26 = vld [vmem:[%s1 + $0x4] sm:$0xf]
  %v27 = vld [vmem:[%s1 + $0x8] sm:$0xf]
  %v28 = vld [vmem:[%s1 + $0xc] sm:$0xf]
  %v29 = vld [vmem:[%s1 + $0x10] sm:$0xf]
  %v30 = vld [vmem:[%s1 + $0x14] sm:$0xf]
  %v31 = vld [vmem:[%s1 + $0x18] sm:$0xf]
  %v32 = vld [vmem:[%s1 + $0x1c] sm:$0xf]
  %v33 = vld [vmem:[%s1 + $0x20] sm:$0xf]
  %v34 = vld [vmem:[%s1 + $0x24] sm:$0xf]
  %v35 = vld [vmem:[%s1 + $0x28] sm:$0xf]
  %v36 = vld [vmem:[%s1 + $0x2c] sm:$0xf]
  %v37 = vld [vmem:[%s1 + $0x30] sm:$0xf]
  %v38 = vld [vmem:[%s1 + $0x34] sm:$0xf]
  %v39 = vld [vmem:[%s1 + $0x38] sm:$0xf]
  %v40 = vld [vmem:[%s1 + $0x3c] sm:$0xf]
  %v43 = vunpack.c.l.b16 %v23
  %v44 = vunpack.c.l.b16 %v24
  %v45 = vpack.c.b16 %v44, %v43
  %v63 = vunpack.c.l.b16 %v25
  %v64 = vunpack.c.l.b16 %v26
  %v65 = vunpack.c.l.b16 %v27
  %v66 = vunpack.c.l.b16 %v28
  %v67 = vunpack.c.l.b16 %v29
  %v68 = vunpack.c.l.b16 %v30
  %v69 = vunpack.c.l.b16 %v31
  %v70 = vunpack.c.l.b16 %v32
  %v71 = vunpack.c.l.b16 %v33
  %v72 = vunpack.c.l.b16 %v34
  %v73 = vunpack.c.l.b16 %v35
  %v74 = vunpack.c.l.b16 %v36
  %v75 = vunpack.c.l.b16 %v37
  %v76 = vunpack.c.l.b16 %v38
  %v77 = vunpack.c.l.b16 %v39
  %v78 = vunpack.c.l.b16 %v40
  %v79 = vpack.c.b16 %v64, %v63
  %v80 = vpack.c.b16 %v66, %v65
  %v81 = vpack.c.b16 %v68, %v67
  %v82 = vpack.c.b16 %v70, %v69
  %v83 = vpack.c.b16 %v72, %v71
  %v84 = vpack.c.b16 %v74, %v73
  %v85 = vpack.c.b16 %v76, %v75
  %v86 = vpack.c.b16 %v78, %v77
  %95 = vmatprep.subr.bf16.mxu0 0
  %96 = vmatpush1.bf16.msra.mxu0 %v86
  %97 = vmatprep.subr.bf16.mxu0 0
  %98 = vmatpush1.bf16.msra.mxu0 %v85
  %99 = vmatprep.subr.bf16.mxu0 0
  %100 = vmatpush1.bf16.msra.mxu0 %v84
  %101 = vmatprep.subr.bf16.mxu0 0
  %102 = vmatpush1.bf16.msra.mxu0 %v83
  %103 = vmatprep.subr.bf16.mxu0 0
  %104 = vmatpush1.bf16.msra.mxu0 %v82
  %105 = vmatprep.subr.bf16.mxu0 0
  %106 = vmatpush1.bf16.msra.mxu0 %v81
  %107 = vmatprep.subr.bf16.mxu0 0
  %108 = vmatpush1.bf16.msra.mxu0 %v80
  %109 = vmatprep.subr.bf16.mxu0 0
  %110 = vmatpush1.bf16.msra.mxu0 %v79
  %111 = vmatprep.subr.bf16.mxu0 0
  %112 = vmatpush2.bf16.msra.mxu0 0
  %113 = vmatprep.subr.bf16.mxu0 0
  %114 = vmatpush2.bf16.msra.mxu0 0
  %115 = vmatprep.subr.bf16.mxu0 0
  %116 = vmatpush2.bf16.msra.mxu0 0
  %117 = vmatprep.subr.bf16.mxu0 0
  %118 = vmatpush2.bf16.msra.mxu0 0
  %119 = vmatprep.subr.bf16.mxu0 0
  %120 = vmatpush2.bf16.msra.mxu0 0
  %121 = vmatprep.subr.bf16.mxu0 0
  %122 = vmatpush2.bf16.msra.mxu0 0
  %123 = vmatprep.subr.bf16.mxu0 0
  %124 = vmatpush2.bf16.msra.mxu0 0
  %125 = vmatprep.subr.bf16.mxu0 0
  %126 = vmatpush2.bf16.msra.mxu0 0
  %127 = vmatprep.mubr.bf16.mxu0 0
  %128 = vmatmul.mubr.bf16.gmra.mxu0 %v45
  %v129 = vpop.f32.mrf.mxu0
  %v130 = vadd.f32 0.0, %v129
  %v131 = vpop.f32.mrf.mxu0
  %v132 = vpop.f32.mrf.mxu0
  %v133 = vadd.f32 0.0, %v132
  %v134 = vpop.f32.mrf.mxu0
  %135 = vdwg.mxu0
  %v136 = vadd.f32 %v21, %v130
  %v137 = vadd.f32 %v22, %v133
  %138 = vst [vmem:[#allocation2] sm:$0xff] %v136
  %139 = vst [vmem:[#allocation2 + $0x8] sm:$0x3f] %v137
  // Predicated region
  $region18: #{transformer_forward.57} parent=0 // pred_check
    %p140 = pneg %p15
  $region19: #{transformer_forward.57} parent=0 // pred_check_branch
    %142 = sbr.rel (%p140) target = $region21
  $region20: #{transformer_forward.57} parent=0 // pred_region
    %v143 = vld [vmem:[#allocation2] sm:$0xff]
    %v144 = vld [vmem:[#allocation2 + $0x8] sm:$0x3f]
    %v145 = vld [vmem:[%s2] sm:$0x1]
    %v147 = vlaneseq
    %v148 = vshrl.u32 %v147, 7
    %v149 = vsub.s32 0, %v148
    %v150 = vrot.slane %v145, %v149
    %v152 = vadd.f32 %v143, %v150
    %v153 = vadd.f32 %v144, %v150
    %154 = vst [vmem:[%s3] sm:$0xff] %v152
    %155 = vst [vmem:[%s3 + $0x8] sm:$0x3f] %v153
  $region21: #{transformer_forward.57} parent=0 // pred_fallthru
    _
  // Predicated region
  $region22: #{transformer_forward.57} parent=0 // pred_check
    _
  $region23: #{transformer_forward.57} parent=0 // pred_check_branch
    %157 = sbr.rel (0) target = $region25
  $region24: #{transformer_forward.57} parent=0 // pred_region
    _
  $region25: #{transformer_forward.57} parent=0 // pred_fallthru
    _
  // Predicated region
  $region26: #{transformer_forward.57} parent=0 // pred_check
    _
  $region27: #{transformer_forward.57} parent=0 // pred_check_branch
    %159 = sbr.rel (0) target = $region29
  $region28: #{transformer_forward.57} parent=0 // pred_region
    _
  $region29: #{transformer_forward.57} parent=0 // pred_fallthru
    _

// kernel: transformer_forward.47
$region0: #{transformer_forward.47}
  #allocation0 [shape = 'u32[]', space=smem, size = 0x4, offset = 0x4, fixed_abs, tag = 'smem constant byte address 0x4 - core index']
  #allocation1 [shape = 'u32[144,128]{1,0:T(1,128)}', space=vmem, size = 0x12000, scoped, tag = 'internal scratch']
  #allocation2 [shape = 'f32[14,128]{1,0:T(8,128)}', space=vmem, size = 0x2000, scoped, tag = 'scratch operand']
  %s0 = inlined_call_operand.vmem [shape: bf16[14,256], index: 0, kind: input, shape index: {}]
  %s1 = inlined_call_operand.vmem [shape: bf16[256,128], index: 1, kind: input, shape index: {}]
  %s2 = inlined_call_operand.vmem [shape: f32[1,128], index: 2, kind: input, shape index: {}]
  %s3 = inlined_call_operand.vmem [shape: f32[14,128], index: 3, kind: input, shape index: {}]
  %s4 = inlined_call_operand.vmem [shape: f32[1,128], index: 4, kind: input, shape index: {}]
  %s5 = inlined_call_operand.vmem [shape: f32[1,128], index: 5, kind: input, shape index: {}]
  %s6 = inlined_call_operand.vmem [shape: f32[14,128], index: 6, kind: output, shape index: {}]
  %s7 = sld [smem:[#allocation0]]
  $region42: #{transformer_forward.47} parent=0
    _
  %s9 = ssub.s32 1, %s7
  %s10 = scalar_select 0, %s9, %s7
  // Predicated region
  $region2: #{transformer_forward.47} parent=0 // pred_check
    _
  $region3: #{transformer_forward.47} parent=0 // pred_check_branch
    %12 = sbr.rel (0) target = $region5
  $region4: #{transformer_forward.47} parent=0 // pred_region
    _
  $region5: #{transformer_forward.47} parent=0 // pred_fallthru
    _
  // Predicated region
  $region6: #{transformer_forward.47} parent=0 // pred_check
    _
  $region7: #{transformer_forward.47} parent=0 // pred_check_branch
    %14 = sbr.rel (0) target = $region9
  $region8: #{transformer_forward.47} parent=0 // pred_region
    _
  $region9: #{transformer_forward.47} parent=0 // pred_fallthru
    _
  // Predicated region
  $region10: #{transformer_forward.47} parent=0 // pred_check
    _
  $region11: #{transformer_forward.47} parent=0 // pred_check_branch
    %16 = sbr.rel (0) target = $region13
  $region12: #{transformer_forward.47} parent=0 // pred_region
    _
  $region13: #{transformer_forward.47} parent=0 // pred_fallthru
    _
  // Predicated region
  $region14: #{transformer_forward.47} parent=0 // pred_check
    _
  $region15: #{transformer_forward.47} parent=0 // pred_check_branch
    %18 = sbr.rel (0) target = $region17
  $region16: #{transformer_forward.47} parent=0 // pred_region
    _
  $region17: #{transformer_forward.47} parent=0 // pred_fallthru
    _
  // Predicated region
  $region18: #{transformer_forward.47} parent=0 // pred_check
    _
  $region19: #{transformer_forward.47} parent=0 // pred_check_branch
    %20 = sbr.rel (0) target = $region21
  $region20: #{transformer_forward.47} parent=0 // pred_region
    _
  $region21: #{transformer_forward.47} parent=0 // pred_fallthru
    _
  // Predicated region
  $region22: #{transformer_forward.47} parent=0 // pred_check
    _
  $region23: #{transformer_forward.47} parent=0 // pred_check_branch
    %22 = sbr.rel (0) target = $region25
  $region24: #{transformer_forward.47} parent=0 // pred_region
    _
  $region25: #{transformer_forward.47} parent=0 // pred_fallthru
    _
  %p24 = scmp.eq.s32.totalorder 0, 0
  // Predicated region
  $region26: #{transformer_forward.47} parent=0 // pred_check
    %p25 = pneg %p24
  $region27: #{transformer_forward.47} parent=0 // pred_check_branch
    %27 = sbr.rel (%p25) target = $region29
  $region28: #{transformer_forward.47} parent=0 // pred_region
    %28 = vst [vmem:[#allocation2] sm:$0xff] 0.0
    %29 = vst [vmem:[#allocation2 + $0x8] sm:$0x3f] 0.0
  $region29: #{transformer_forward.47} parent=0 // pred_fallthru
    _
  %v30 = vld [vmem:[#allocation2] sm:$0xff]
  %v31 = vld [vmem:[#allocation2 + $0x8] sm:$0x3f]
  %v32 = vld [vmem:[%s0] sm:$0xff]
  %v33 = vld [vmem:[%s0 + $0x8] sm:$0x77]
  %v34 = vld [vmem:[%s1] sm:$0xf]
  %v35 = vld [vmem:[%s1 + $0x4] sm:$0xf]
  %v36 = vld [vmem:[%s1 + $0x8] sm:$0xf]
  %v37 = vld [vmem:[%s1 + $0xc] sm:$0xf]
  %v38 = vld [vmem:[%s1 + $0x10] sm:$0xf]
  %v39 = vld [vmem:[%s1 + $0x14] sm:$0xf]
  %v40 = vld [vmem:[%s1 + $0x18] sm:$0xf]
  %v41 = vld [vmem:[%s1 + $0x1c] sm:$0xf]
  %v42 = vld [vmem:[%s1 + $0x20] sm:$0xf]
  %v43 = vld [vmem:[%s1 + $0x24] sm:$0xf]
  %v44 = vld [vmem:[%s1 + $0x28] sm:$0xf]
  %v45 = vld [vmem:[%s1 + $0x2c] sm:$0xf]
  %v46 = vld [vmem:[%s1 + $0x30] sm:$0xf]
  %v47 = vld [vmem:[%s1 + $0x34] sm:$0xf]
  %v48 = vld [vmem:[%s1 + $0x38] sm:$0xf]
  %v49 = vld [vmem:[%s1 + $0x3c] sm:$0xf]
  %v50 = vld [vmem:[%s1 + $0x40] sm:$0xf]
  %v51 = vld [vmem:[%s1 + $0x44] sm:$0xf]
  %v52 = vld [vmem:[%s1 + $0x48] sm:$0xf]
  %v53 = vld [vmem:[%s1 + $0x4c] sm:$0xf]
  %v54 = vld [vmem:[%s1 + $0x50] sm:$0xf]
  %v55 = vld [vmem:[%s1 + $0x54] sm:$0xf]
  %v56 = vld [vmem:[%s1 + $0x58] sm:$0xf]
  %v57 = vld [vmem:[%s1 + $0x5c] sm:$0xf]
  %v58 = vld [vmem:[%s1 + $0x60] sm:$0xf]
  %v59 = vld [vmem:[%s1 + $0x64] sm:$0xf]
  %v60 = vld [vmem:[%s1 + $0x68] sm:$0xf]
  %v61 = vld [vmem:[%s1 + $0x6c] sm:$0xf]
  %v62 = vld [vmem:[%s1 + $0x70] sm:$0xf]
  %v63 = vld [vmem:[%s1 + $0x74] sm:$0xf]
  %v64 = vld [vmem:[%s1 + $0x78] sm:$0xf]
  %v65 = vld [vmem:[%s1 + $0x7c] sm:$0xf]
  %v68 = vunpack.c.l.b16 %v32
  %v69 = vunpack.c.h.b16 %v32
  %v70 = vunpack.c.l.b16 %v33
  %v71 = vunpack.c.h.b16 %v33
  %v72 = vpack.c.b16 %v70, %v68
  %v73 = vpack.c.b16 %v71, %v69
  %v108 = vunpack.c.l.b16 %v34
  %v109 = vunpack.c.l.b16 %v35
  %v110 = vunpack.c.l.b16 %v36
  %v111 = vunpack.c.l.b16 %v37
  %v112 = vunpack.c.l.b16 %v38
  %v113 = vunpack.c.l.b16 %v39
  %v114 = vunpack.c.l.b16 %v40
  %v115 = vunpack.c.l.b16 %v41
  %v116 = vunpack.c.l.b16 %v42
  %v117 = vunpack.c.l.b16 %v43
  %v118 = vunpack.c.l.b16 %v44
  %v119 = vunpack.c.l.b16 %v45
  %v120 = vunpack.c.l.b16 %v46
  %v121 = vunpack.c.l.b16 %v47
  %v122 = vunpack.c.l.b16 %v48
  %v123 = vunpack.c.l.b16 %v49
  %v124 = vunpack.c.l.b16 %v50
  %v125 = vunpack.c.l.b16 %v51
  %v126 = vunpack.c.l.b16 %v52
  %v127 = vunpack.c.l.b16 %v53
  %v128 = vunpack.c.l.b16 %v54
  %v129 = vunpack.c.l.b16 %v55
  %v130 = vunpack.c.l.b16 %v56
  %v131 = vunpack.c.l.b16 %v57
  %v132 = vunpack.c.l.b16 %v58
  %v133 = vunpack.c.l.b16 %v59
  %v134 = vunpack.c.l.b16 %v60
  %v135 = vunpack.c.l.b16 %v61
  %v136 = vunpack.c.l.b16 %v62
  %v137 = vunpack.c.l.b16 %v63
  %v138 = vunpack.c.l.b16 %v64
  %v139 = vunpack.c.l.b16 %v65
  %v140 = vpack.c.b16 %v109, %v108
  %v141 = vpack.c.b16 %v111, %v110
  %v142 = vpack.c.b16 %v113, %v112
  %v143 = vpack.c.b16 %v115, %v114
  %v144 = vpack.c.b16 %v117, %v116
  %v145 = vpack.c.b16 %v119, %v118
  %v146 = vpack.c.b16 %v121, %v120
  %v147 = vpack.c.b16 %v123, %v122
  %v148 = vpack.c.b16 %v125, %v124
  %v149 = vpack.c.b16 %v127, %v126
  %v150 = vpack.c.b16 %v129, %v128
  %v151 = vpack.c.b16 %v131, %v130
  %v152 = vpack.c.b16 %v133, %v132
  %v153 = vpack.c.b16 %v135, %v134
  %v154 = vpack.c.b16 %v137, %v136
  %v155 = vpack.c.b16 %v139, %v138
  %172 = vmatprep.subr.bf16.mxu0 0
  %173 = vmatpush1.bf16.msra.mxu0 %v147
  %174 = vmatprep.subr.bf16.mxu0 0
  %175 = vmatpush1.bf16.msra.mxu0 %v146
  %176 = vmatprep.subr.bf16.mxu0 0
  %177 = vmatpush1.bf16.msra.mxu0 %v145
  %178 = vmatprep.subr.bf16.mxu0 0
  %179 = vmatpush1.bf16.msra.mxu0 %v144
  %180 = vmatprep.subr.bf16.mxu0 0
  %181 = vmatpush1.bf16.msra.mxu0 %v143
  %182 = vmatprep.subr.bf16.mxu0 0
  %183 = vmatpush1.bf16.msra.mxu0 %v142
  %184 = vmatprep.subr.bf16.mxu0 0
  %185 = vmatpush1.bf16.msra.mxu0 %v141
  %186 = vmatprep.subr.bf16.mxu0 0
  %187 = vmatpush1.bf16.msra.mxu0 %v140
  %188 = vmatprep.subr.bf16.mxu0 0
  %189 = vmatpush2.bf16.msra.mxu0 %v155
  %190 = vmatprep.subr.bf16.mxu0 0
  %191 = vmatpush2.bf16.msra.mxu0 %v154
  %192 = vmatprep.subr.bf16.mxu0 0
  %193 = vmatpush2.bf16.msra.mxu0 %v153
  %194 = vmatprep.subr.bf16.mxu0 0
  %195 = vmatpush2.bf16.msra.mxu0 %v152
  %196 = vmatprep.subr.bf16.mxu0 0
  %197 = vmatpush2.bf16.msra.mxu0 %v151
  %198 = vmatprep.subr.bf16.mxu0 0
  %199 = vmatpush2.bf16.msra.mxu0 %v150
  %200 = vmatprep.subr.bf16.mxu0 0
  %201 = vmatpush2.bf16.msra.mxu0 %v149
  %202 = vmatprep.subr.bf16.mxu0 0
  %203 = vmatpush2.bf16.msra.mxu0 %v148
  %204 = vmatprep.mubr.bf16.mxu0 %v73
  %205 = vmatmul.mubr.bf16.gmra.mxu0 %v72
  %v206 = vpop.f32.mrf.mxu0
  %v207 = vadd.f32 0.0, %v206
  %v208 = vpop.f32.mrf.mxu0
  %v209 = vpop.f32.mrf.mxu0
  %v210 = vadd.f32 0.0, %v209
  %v211 = vpop.f32.mrf.mxu0
  %212 = vdwg.mxu0
  %v213 = vadd.f32 %v30, %v207
  %v214 = vadd.f32 %v31, %v210
  %215 = vst [vmem:[#allocation2] sm:$0xff] %v213
  %216 = vst [vmem:[#allocation2 + $0x8] sm:$0x3f] %v214
  // Predicated region
  $region30: #{transformer_forward.47} parent=0 // pred_check
    %p217 = pneg %p24
  $region31: #{transformer_forward.47} parent=0 // pred_check_branch
    %219 = sbr.rel (%p217) target = $region33
  $region32: #{transformer_forward.47} parent=0 // pred_region
    %v220 = vld [vmem:[#allocation2] sm:$0xff]
    %v221 = vld [vmem:[#allocation2 + $0x8] sm:$0x3f]
    %v222 = vld [vmem:[%s2] sm:$0x1]
    %v224 = vlaneseq
    %v225 = vshrl.u32 %v224, 7
    %v226 = vsub.s32 0, %v225
    %v227 = vrot.slane %v222, %v226
    %v229 = vadd.f32 %v220, %v227
    %v230 = vadd.f32 %v221, %v227
    %v231 = vld [vmem:[%s3] sm:$0xff]
    %v232 = vld [vmem:[%s3 + $0x8] sm:$0x3f]
    %v233 = vadd.f32 %v229, %v231
    %v234 = vadd.f32 %v230, %v232
    %235 = vadd.xlane.f32.xlu0 %v233
    %v236 = vpop.xlane.xlu0 %235
    %vm237 = vcmask 1045504
    %v238 = vsel %vm237, %v234, 0.0
    %239 = vadd.xlane.f32.xlu0 %v238
    %v240 = vpop.xlane.xlu0 %239
    %v241 = vrcp.pop 128.0
    %v242 = vmul.f32 %v236, %v241
    %v243 = vmul.f32 %v240, %v241
    %v244 = vsub.f32 %v233, %v242
    %v245 = vsub.f32 %v234, %v243
    %v246 = vmul.f32 %v244, %v244
    %v247 = vmul.f32 %v245, %v245
    %248 = vadd.xlane.f32.xlu0 %v246
    %v249 = vpop.xlane.xlu0 %248
    %v250 = vsel %vm237, %v247, 0.0
    %251 = vadd.xlane.f32.xlu0 %v250
    %v252 = vpop.xlane.xlu0 %251
    %v253 = vmul.f32 %v249, %v241
    %v254 = vmul.f32 %v252, %v241
    %v255 = vadd.f32 %v253, 1e-05
    %v256 = vadd.f32 %v254, 1e-05
    %v257 = vrsqrt.pop %v255
    %v258 = vrsqrt.pop %v256
    %v259 = vmul.f32 %v244, %v257
    %v260 = vmul.f32 %v245, %v258
    %v261 = vld [vmem:[%s4] sm:$0x1]
    %v263 = vlaneseq
    %v264 = vshrl.u32 %v263, 7
    %v265 = vsub.s32 0, %v264
    %v266 = vrot.slane %v261, %v265
    %v268 = vmul.f32 %v259, %v266
    %v269 = vmul.f32 %v260, %v266
    %v270 = vld [vmem:[%s5] sm:$0x1]
    %v272 = vlaneseq
    %v273 = vshrl.u32 %v272, 7
    %v274 = vsub.s32 0, %v273
    %v275 = vrot.slane %v270, %v274
    %v277 = vadd.f32 %v268, %v275
    %v278 = vadd.f32 %v269, %v275
    %279 = vst [vmem:[%s6] sm:$0xff] %v277
    %280 = vst [vmem:[%s6 + $0x8] sm:$0x3f] %v278
  $region33: #{transformer_forward.47} parent=0 // pred_fallthru
    _
  // Predicated region
  $region34: #{transformer_forward.47} parent=0 // pred_check
    _
  $region35: #{transformer_forward.47} parent=0 // pred_check_branch
    %282 = sbr.rel (0) target = $region37
  $region36: #{transformer_forward.47} parent=0 // pred_region
    _
  $region37: #{transformer_forward.47} parent=0 // pred_fallthru
    _
  // Predicated region
  $region38: #{transformer_forward.47} parent=0 // pred_check
    _
  $region39: #{transformer_forward.47} parent=0 // pred_check_branch
    %284 = sbr.rel (0) target = $region41
  $region40: #{transformer_forward.47} parent=0 // pred_region
    _
  $region41: #{transformer_forward.47} parent=0 // pred_fallthru
    _

</llo_original>
